<compile_context>
chip_gen: v7x
topology: tpu7x:2x2x1
jax: 0.10.0
libtpu: 0.0.40
codegen_flags: <defaults>
</compile_context>

<pallas_src>
import functools

import jax
import jax.numpy as jnp
import numpy as np
from jax.experimental import pallas as pl
from jax.experimental.pallas import tpu as pltpu


def _equiv_sum_mlp_kernel(n, num_classes, num_rest, first_relu, sub_b,
                          x_ref, t_ref, b1_ref, *refs):
    """refs = [per remaining hidden layer: W, b] + [w_out_row, b_out (SMEM)] + [out_ref]."""
    out_ref = refs[-1]
    wrefs = refs[:-1]

    block_b = x_ref.shape[0]
    n_cols = n * num_classes
    num_sub = block_b // sub_b

    # Grid-invariant weights: load once per grid step (hoisted out of the sub-tile loop).
    t = t_ref[...]                                     # (n*C, h1) bf16, fused T @ W1
    b1 = b1_ref[...]                                   # (1, h1)   f32
    ws = [wrefs[2 * i][...] for i in range(num_rest)]  # remaining hidden weights (bf16)
    bs = [wrefs[2 * i + 1][...] for i in range(num_rest)]
    w_out = wrefs[2 * num_rest][...]                   # (1, last) f32, VPU path
    b_out = wrefs[2 * num_rest + 1][0, 0]              # scalar f32 from SMEM

    # Static (unrolled) loop over 256-row MXU sub-tiles: keeps the one-hot and
    # activation temporaries <= sub_b rows (vreg-resident) while the outer grid
    # block is big enough to amortize the ~600-cycle per-grid-step overhead.
    for s in range(num_sub):
        xs = x_ref[s * sub_b:(s + 1) * sub_b, :]       # (sub_b, n) int32, static slice

        # Flattened one-hot over (position, class): oh[b, p*C + c] = (xs[b, p] == c).
        # Pure iota-compare VPU work; cast straight to the dot dtype (no f32 pass).
        col = jax.lax.broadcasted_iota(jnp.int32, (sub_b, n_cols), 1)
        oh_mask = None
        for p in range(n):
            hit = col == (xs[:, p:p + 1] + p * num_classes)
            oh_mask = hit if oh_mask is None else (oh_mask | hit)
        oh = oh_mask.astype(t.dtype)                   # (sub_b, n*C) bf16

        # Fused stage-1 + first head Linear (folded on host):  relu(oh @ (T@W1) + b1).
        h = jnp.dot(oh, t, preferred_element_type=jnp.float32) + b1
        if first_relu:
            h = jnp.maximum(h, 0.0)

        # Remaining head Linear->ReLU layers: bf16 MXU inputs, f32 accum/bias/ReLU.
        # TODO(synk): if the MRF pop latency of these tiny matmuls dominates on
        # v5e/v6e, move the last hidden layer to the VPU like the output layer.
        for i in range(num_rest):
            h = jnp.dot(h.astype(ws[i].dtype), ws[i],
                        preferred_element_type=jnp.float32) + bs[i]
            h = jnp.maximum(h, 0.0)

        # Final Linear(last, 1): VPU multiply + lane reduce (XLU); lane-dense store.
        # TODO(synk): if the bundle shows a costly sublane->lane relayout here,
        # build the output row lane-major in a (1, block_b) f32 scratch instead.
        y = jnp.sum(h * w_out, axis=-1) + b_out        # (sub_b,)
        out_ref[0, s * sub_b:(s + 1) * sub_b] = y


def init_params(key, n, num_classes, phi_dim, mlp_hidden):
    """Parameters with the same shapes/semantics as the PyTorch module."""
    k_val, k_pos, key = jax.random.split(key, 3)
    params = {
        "wval": jax.random.normal(k_val, (num_classes, phi_dim), jnp.float32)
        / np.sqrt(num_classes),                        # val_emb.weight (transposed)
        "pos_emb": jax.random.normal(k_pos, (n, phi_dim), jnp.float32),
        "hidden": [],
    }
    in_f = phi_dim
    for h in mlp_hidden:
        key, kw, kb = jax.random.split(key, 3)
        w = jax.random.normal(kw, (in_f, h), jnp.float32) / np.sqrt(in_f)
        b = jax.random.normal(kb, (h,), jnp.float32) * 0.1
        params["hidden"].append((w, b))
        in_f = h
    key, kw, kb = jax.random.split(key, 3)
    params["wout"] = jax.random.normal(kw, (in_f, 1), jnp.float32) / np.sqrt(in_f)
    params["bout"] = jax.random.normal(kb, (1,), jnp.float32) * 0.1
    return params


def equivariant_sum_mlp_pallas(x, params, *, block_b=None, sub_b=256,
                               dot_dtype=jnp.bfloat16):
    """x: int (B, n)  ->  float32 (B, 1), same semantics as the PyTorch forward."""
    B, n = x.shape
    num_classes, phi_dim = params["wval"].shape
    # sub_b multiple of 128 keeps stores lane-dense; 256 fills v6e/v7x MXU rows
    # (128 is already optimal on the v5e 4x128^2 MXU — pass sub_b=128 there).
    assert sub_b % 128 == 0, "sub_b must be a multiple of 128"

    if block_b is None:
        # Large blocks amortize the per-grid-step overhead, but keep >= 2 grid
        # tiles so the "parallel" axis can be sharded across both v7x TensorCores.
        half = ((B + 2 * sub_b - 1) // (2 * sub_b)) * sub_b   # ~ceil(B/2), sub_b-aligned
        block_b = min(2048, max(sub_b, half))
    assert block_b % sub_b == 0, "block_b must be a multiple of sub_b"

    x = x.astype(jnp.int32)
    B_pad = ((B + block_b - 1) // block_b) * block_b
    if B_pad != B:
        x = jnp.pad(x, ((0, B_pad - B), (0, 0)))       # padded rows use class 0
    num_tiles = B_pad // block_b

    # Stage-1 table in f32:  T[p*C + c, :] = pos_emb[p, :] * W_val[c, :]
    T = (params["pos_emb"][:, None, :] * params["wval"][None, :, :]).reshape(
        n * num_classes, phi_dim).astype(jnp.float32)

    hidden = params["hidden"]
    if hidden:
        # Fold the first head Linear into the table (no nonlinearity in between):
        #   (oh @ T) @ W1 == oh @ (T @ W1); computed in f32 on host, cast once to bf16.
        w1, b1 = hidden[0]
        t_fused = (T @ w1.astype(jnp.float32)).astype(dot_dtype)
        first_bias = b1.reshape(1, -1).astype(jnp.float32)
        first_relu = True
        rest = hidden[1:]
    else:
        t_fused = T.astype(dot_dtype)
        first_bias = jnp.zeros((1, phi_dim), jnp.float32)
        first_relu = False
        rest = []
    num_rest = len(rest)

    flat_w = []
    for (w, b) in rest:
        flat_w += [w.astype(dot_dtype), b.reshape(1, -1).astype(jnp.float32)]
    flat_w += [
        params["wout"].reshape(1, -1).astype(jnp.float32),   # (1, last) row, VPU path
        params["bout"].reshape(1, 1).astype(jnp.float32),    # scalar, goes to SMEM
    ]

    kernel = functools.partial(_equiv_sum_mlp_kernel, n, num_classes, num_rest,
                               first_relu, sub_b)

    in_specs = [
        pl.BlockSpec((block_b, n), lambda i: (i, 0)),        # int labels, tiled on batch
        pl.BlockSpec(t_fused.shape, lambda i: (0, 0)),       # fused (table @ W1) bf16
        pl.BlockSpec(first_bias.shape, lambda i: (0, 0)),    # first bias f32
    ]
    for w in flat_w[:-1]:                                    # grid-invariant weights/biases
        in_specs.append(pl.BlockSpec(w.shape, lambda i: (0, 0)))
    in_specs.append(pl.BlockSpec(memory_space=pltpu.MemorySpace.SMEM))  # output bias
    # TODO(synk): on v7x with production-size tables, add pipeline_mode=pl.Buffered(1)
    # to the constant-index specs above to single-buffer them within the 64 MiB VMEM.

    out_specs = pl.BlockSpec((1, block_b), lambda i: (0, i))  # lane-dense output blocks

    out = pl.pallas_call(
        kernel,
        out_shape=jax.ShapeDtypeStruct((1, B_pad), jnp.float32),
        grid=(num_tiles,),
        in_specs=in_specs,
        out_specs=out_specs,
        compiler_params=pltpu.CompilerParams(
            dimension_semantics=("parallel",),
            vmem_limit_bytes=32 * 1024 * 1024,
        ),
    )(x, t_fused, first_bias, *flat_w)

    return out.reshape(B_pad, 1)[:B]


def reference_jax(x, params):
    """Pure-JAX reference matching the PyTorch forward exactly (f32)."""
    num_classes = params["wval"].shape[0]
    oh = jax.nn.one_hot(x, num_classes, dtype=jnp.float32)       # (B, n, C)
    h = (oh @ params["wval"]) * params["pos_emb"][None, :, :]    # (B, n, phi)
    u = h.sum(axis=1)                                            # (B, phi)
    for (w, b) in params["hidden"]:
        u = jnp.maximum(u @ w + b, 0.0)
    return u @ params["wout"] + params["bout"]                   # (B, 1)


if __name__ == "__main__":
    n, num_classes = 8, 5
    phi_dim, mlp_hidden = 32, [32, 16]

    key = jax.random.PRNGKey(0)
    kx, kx2, kp = jax.random.split(key, 3)
    params = init_params(kp, n, num_classes, phi_dim, mlp_hidden)

    # Primary config: B=1024 -> block_b auto-picks 512, grid=(2,) ("parallel": both
    # v7x TCs get a tile) with two 256-row MXU sub-tiles per grid step (amortizes
    # the per-step overhead).  bf16 MXU inputs -> tolerance loosened vs f32 ref.
    B = 1024
    x = jax.random.randint(kx, (B, n), 0, num_classes, dtype=jnp.int32)
    out = jax.block_until_ready(equivariant_sum_mlp_pallas(x, params))
    ref = reference_jax(x, params)
    assert out.shape == (B, 1)
    np.testing.assert_allclose(np.asarray(out), np.asarray(ref), rtol=5e-2, atol=5e-2)

    # Ragged batch: exercises the zero-padding path (B=200 -> one 256-row block).
    B2 = 200
    x2 = jax.random.randint(kx2, (B2, n), 0, num_classes, dtype=jnp.int32)
    out2 = jax.block_until_ready(equivariant_sum_mlp_pallas(x2, params))
    ref2 = reference_jax(x2, params)
    assert out2.shape == (B2, 1)
    np.testing.assert_allclose(np.asarray(out2), np.asarray(ref2), rtol=5e-2, atol=5e-2)

    print("KERNEL_OK")
</pallas_src>

<mosaic_0001>
module attributes {stable_mosaic.version = 11 : i64} {
  func.func @_equiv_sum_mlp_kernel(%arg0: i32, %arg1: memref<512x8xi32, #tpu.memory_space<vmem>>, %arg2: memref<40x32xbf16, #tpu.memory_space<vmem>>, %arg3: memref<1x32xf32, #tpu.memory_space<vmem>>, %arg4: memref<32x16xbf16, #tpu.memory_space<vmem>>, %arg5: memref<1x16xf32, #tpu.memory_space<vmem>>, %arg6: memref<1x16xf32, #tpu.memory_space<vmem>>, %arg7: memref<1x1xf32, #tpu.memory_space<smem>>, %arg8: memref<1x512xf32, #tpu.memory_space<vmem>>) attributes {dimension_semantics = [#tpu.dimension_semantics<parallel>], iteration_bounds = array<i64: 2>, scalar_prefetch = 0 : i64, scratch_operands = 0 : i64, tpu.core_type = #tpu.core_type<tc>, window_params = [{transform_indices = @transform_0, window_bounds = array<i64: 512, 8>}, {pipeline_mode = #tpu.pipeline_mode<synchronous>, transform_indices = @transform_1, window_bounds = array<i64: 40, 32>}, {pipeline_mode = #tpu.pipeline_mode<synchronous>, transform_indices = @transform_2, window_bounds = array<i64: 1, 32>}, {pipeline_mode = #tpu.pipeline_mode<synchronous>, transform_indices = @transform_3, window_bounds = array<i64: 32, 16>}, {pipeline_mode = #tpu.pipeline_mode<synchronous>, transform_indices = @transform_4, window_bounds = array<i64: 1, 16>}, {pipeline_mode = #tpu.pipeline_mode<synchronous>, transform_indices = @transform_5, window_bounds = array<i64: 1, 16>}, {transform_indices = @transform_6, window_bounds = array<i64: 1, 1>}, {transform_indices = @transform_7, window_bounds = array<i64: 1, 512>}]} {
    %c0 = arith.constant 0 : index
    %c0_0 = arith.constant 0 : index
    %0 = vector.load %arg2[%c0, %c0_0] : memref<40x32xbf16, #tpu.memory_space<vmem>>, vector<40x32xbf16>
    %c0_1 = arith.constant 0 : index
    %c0_2 = arith.constant 0 : index
    %1 = vector.load %arg3[%c0_1, %c0_2] : memref<1x32xf32, #tpu.memory_space<vmem>>, vector<1x32xf32>
    %c0_3 = arith.constant 0 : index
    %c0_4 = arith.constant 0 : index
    %2 = vector.load %arg4[%c0_3, %c0_4] : memref<32x16xbf16, #tpu.memory_space<vmem>>, vector<32x16xbf16>
    %c0_5 = arith.constant 0 : index
    %c0_6 = arith.constant 0 : index
    %3 = vector.load %arg5[%c0_5, %c0_6] : memref<1x16xf32, #tpu.memory_space<vmem>>, vector<1x16xf32>
    %c0_7 = arith.constant 0 : index
    %c0_8 = arith.constant 0 : index
    %4 = vector.load %arg6[%c0_7, %c0_8] : memref<1x16xf32, #tpu.memory_space<vmem>>, vector<1x16xf32>
    %c0_9 = arith.constant 0 : index
    %c0_10 = arith.constant 0 : index
    %5 = memref.load %arg7[%c0_9, %c0_10] : memref<1x1xf32, #tpu.memory_space<smem>>
    %c0_11 = arith.constant 0 : index
    %c0_12 = arith.constant 0 : index
    %6 = vector.load %arg1[%c0_11, %c0_12] : memref<512x8xi32, #tpu.memory_space<vmem>>, vector<256x8xi32>
    %7 = tpu.iota {dimensions = array<i32: 1>} : vector<256x40xi32>
    %8 = vector.extract_strided_slice %6 {offsets = [0, 0], sizes = [256, 1], strides = [1, 1]} : vector<256x8xi32> to vector<256x1xi32>
    %c0_i32 = arith.constant 0 : i32
    %9 = vector.broadcast %c0_i32 : i32 to vector<256x1xi32>
    %10 = arith.addi %8, %9 : vector<256x1xi32>
    %11 = vector.broadcast %10 : vector<256x1xi32> to vector<256x40xi32>
    %12 = arith.cmpi eq, %7, %11 : vector<256x40xi32>
    %13 = vector.extract_strided_slice %6 {offsets = [0, 1], sizes = [256, 1], strides = [1, 1]} : vector<256x8xi32> to vector<256x1xi32>
    %c5_i32 = arith.constant 5 : i32
    %14 = vector.broadcast %c5_i32 : i32 to vector<256x1xi32>
    %15 = arith.addi %13, %14 : vector<256x1xi32>
    %16 = vector.broadcast %15 : vector<256x1xi32> to vector<256x40xi32>
    %17 = arith.cmpi eq, %7, %16 : vector<256x40xi32>
    %18 = arith.ori %12, %17 : vector<256x40xi1>
    %19 = vector.extract_strided_slice %6 {offsets = [0, 2], sizes = [256, 1], strides = [1, 1]} : vector<256x8xi32> to vector<256x1xi32>
    %c10_i32 = arith.constant 10 : i32
    %20 = vector.broadcast %c10_i32 : i32 to vector<256x1xi32>
    %21 = arith.addi %19, %20 : vector<256x1xi32>
    %22 = vector.broadcast %21 : vector<256x1xi32> to vector<256x40xi32>
    %23 = arith.cmpi eq, %7, %22 : vector<256x40xi32>
    %24 = arith.ori %18, %23 : vector<256x40xi1>
    %25 = vector.extract_strided_slice %6 {offsets = [0, 3], sizes = [256, 1], strides = [1, 1]} : vector<256x8xi32> to vector<256x1xi32>
    %c15_i32 = arith.constant 15 : i32
    %26 = vector.broadcast %c15_i32 : i32 to vector<256x1xi32>
    %27 = arith.addi %25, %26 : vector<256x1xi32>
    %28 = vector.broadcast %27 : vector<256x1xi32> to vector<256x40xi32>
    %29 = arith.cmpi eq, %7, %28 : vector<256x40xi32>
    %30 = arith.ori %24, %29 : vector<256x40xi1>
    %31 = vector.extract_strided_slice %6 {offsets = [0, 4], sizes = [256, 1], strides = [1, 1]} : vector<256x8xi32> to vector<256x1xi32>
    %c20_i32 = arith.constant 20 : i32
    %32 = vector.broadcast %c20_i32 : i32 to vector<256x1xi32>
    %33 = arith.addi %31, %32 : vector<256x1xi32>
    %34 = vector.broadcast %33 : vector<256x1xi32> to vector<256x40xi32>
    %35 = arith.cmpi eq, %7, %34 : vector<256x40xi32>
    %36 = arith.ori %30, %35 : vector<256x40xi1>
    %37 = vector.extract_strided_slice %6 {offsets = [0, 5], sizes = [256, 1], strides = [1, 1]} : vector<256x8xi32> to vector<256x1xi32>
    %c25_i32 = arith.constant 25 : i32
    %38 = vector.broadcast %c25_i32 : i32 to vector<256x1xi32>
    %39 = arith.addi %37, %38 : vector<256x1xi32>
    %40 = vector.broadcast %39 : vector<256x1xi32> to vector<256x40xi32>
    %41 = arith.cmpi eq, %7, %40 : vector<256x40xi32>
    %42 = arith.ori %36, %41 : vector<256x40xi1>
    %43 = vector.extract_strided_slice %6 {offsets = [0, 6], sizes = [256, 1], strides = [1, 1]} : vector<256x8xi32> to vector<256x1xi32>
    %c30_i32 = arith.constant 30 : i32
    %44 = vector.broadcast %c30_i32 : i32 to vector<256x1xi32>
    %45 = arith.addi %43, %44 : vector<256x1xi32>
    %46 = vector.broadcast %45 : vector<256x1xi32> to vector<256x40xi32>
    %47 = arith.cmpi eq, %7, %46 : vector<256x40xi32>
    %48 = arith.ori %42, %47 : vector<256x40xi1>
    %49 = vector.extract_strided_slice %6 {offsets = [0, 7], sizes = [256, 1], strides = [1, 1]} : vector<256x8xi32> to vector<256x1xi32>
    %c35_i32 = arith.constant 35 : i32
    %50 = vector.broadcast %c35_i32 : i32 to vector<256x1xi32>
    %51 = arith.addi %49, %50 : vector<256x1xi32>
    %52 = vector.broadcast %51 : vector<256x1xi32> to vector<256x40xi32>
    %53 = arith.cmpi eq, %7, %52 : vector<256x40xi32>
    %54 = arith.ori %48, %53 : vector<256x40xi1>
    %55 = arith.extui %54 : vector<256x40xi1> to vector<256x40xi32>
    %56 = arith.sitofp %55 : vector<256x40xi32> to vector<256x40xf32>
    %57 = arith.truncf %56 : vector<256x40xf32> to vector<256x40xbf16>
    %cst = arith.constant dense<0.000000e+00> : vector<256x32xf32>
    %58 = tpu.matmul %57, %0, %cst {dimension_numbers = #tpu.dot_dimension_numbers<[1], [0], [0], [1], [0, 0, 1, 1], [], []>} : vector<256x40xbf16>, vector<40x32xbf16>, vector<256x32xf32> -> vector<256x32xf32>
    %59 = vector.broadcast %1 : vector<1x32xf32> to vector<256x32xf32>
    %60 = arith.addf %58, %59 : vector<256x32xf32>
    %cst_13 = arith.constant 0.000000e+00 : f32
    %61 = vector.broadcast %cst_13 : f32 to vector<256x32xf32>
    %62 = arith.maximumf %60, %61 : vector<256x32xf32>
    %63 = arith.truncf %62 : vector<256x32xf32> to vector<256x32xbf16>
    %cst_14 = arith.constant dense<0.000000e+00> : vector<256x16xf32>
    %64 = tpu.matmul %63, %2, %cst_14 {dimension_numbers = #tpu.dot_dimension_numbers<[1], [0], [0], [1], [0, 0, 1, 1], [], []>} : vector<256x32xbf16>, vector<32x16xbf16>, vector<256x16xf32> -> vector<256x16xf32>
    %65 = vector.broadcast %3 : vector<1x16xf32> to vector<256x16xf32>
    %66 = arith.addf %64, %65 : vector<256x16xf32>
    %cst_15 = arith.constant 0.000000e+00 : f32
    %67 = vector.broadcast %cst_15 : f32 to vector<256x16xf32>
    %68 = arith.maximumf %66, %67 : vector<256x16xf32>
    %69 = vector.broadcast %4 : vector<1x16xf32> to vector<256x16xf32>
    %70 = arith.mulf %68, %69 : vector<256x16xf32>
    %cst_16 = arith.constant dense<0.000000e+00> : vector<256xf32>
    %71 = vector.multi_reduction <add>, %70, %cst_16 [1] : vector<256x16xf32> to vector<256xf32>
    %72 = vector.broadcast %5 : f32 to vector<256xf32>
    %73 = arith.addf %71, %72 : vector<256xf32>
    %c0_17 = arith.constant 0 : index
    %c0_18 = arith.constant 0 : index
    %74 = vector.load %arg8[%c0_17, %c0_18] : memref<1x512xf32, #tpu.memory_space<vmem>>, vector<1x256xf32>
    %75 = vector.shape_cast %74 : vector<1x256xf32> to vector<256xf32>
    %76 = vector.shape_cast %73 : vector<256xf32> to vector<1x256xf32>
    tpu.vector_store %arg8[%c0_17, %c0_18], %76 {strides = array<i32>} : memref<1x512xf32, #tpu.memory_space<vmem>>, vector<1x256xf32>,
    %c256 = arith.constant 256 : index
    %c0_19 = arith.constant 0 : index
    %77 = vector.load %arg1[%c256, %c0_19] : memref<512x8xi32, #tpu.memory_space<vmem>>, vector<256x8xi32>
    %78 = tpu.iota {dimensions = array<i32: 1>} : vector<256x40xi32>
    %79 = vector.extract_strided_slice %77 {offsets = [0, 0], sizes = [256, 1], strides = [1, 1]} : vector<256x8xi32> to vector<256x1xi32>
    %c0_i32_20 = arith.constant 0 : i32
    %80 = vector.broadcast %c0_i32_20 : i32 to vector<256x1xi32>
    %81 = arith.addi %79, %80 : vector<256x1xi32>
    %82 = vector.broadcast %81 : vector<256x1xi32> to vector<256x40xi32>
    %83 = arith.cmpi eq, %78, %82 : vector<256x40xi32>
    %84 = vector.extract_strided_slice %77 {offsets = [0, 1], sizes = [256, 1], strides = [1, 1]} : vector<256x8xi32> to vector<256x1xi32>
    %c5_i32_21 = arith.constant 5 : i32
    %85 = vector.broadcast %c5_i32_21 : i32 to vector<256x1xi32>
    %86 = arith.addi %84, %85 : vector<256x1xi32>
    %87 = vector.broadcast %86 : vector<256x1xi32> to vector<256x40xi32>
    %88 = arith.cmpi eq, %78, %87 : vector<256x40xi32>
    %89 = arith.ori %83, %88 : vector<256x40xi1>
    %90 = vector.extract_strided_slice %77 {offsets = [0, 2], sizes = [256, 1], strides = [1, 1]} : vector<256x8xi32> to vector<256x1xi32>
    %c10_i32_22 = arith.constant 10 : i32
    %91 = vector.broadcast %c10_i32_22 : i32 to vector<256x1xi32>
    %92 = arith.addi %90, %91 : vector<256x1xi32>
    %93 = vector.broadcast %92 : vector<256x1xi32> to vector<256x40xi32>
    %94 = arith.cmpi eq, %78, %93 : vector<256x40xi32>
    %95 = arith.ori %89, %94 : vector<256x40xi1>
    %96 = vector.extract_strided_slice %77 {offsets = [0, 3], sizes = [256, 1], strides = [1, 1]} : vector<256x8xi32> to vector<256x1xi32>
    %c15_i32_23 = arith.constant 15 : i32
    %97 = vector.broadcast %c15_i32_23 : i32 to vector<256x1xi32>
    %98 = arith.addi %96, %97 : vector<256x1xi32>
    %99 = vector.broadcast %98 : vector<256x1xi32> to vector<256x40xi32>
    %100 = arith.cmpi eq, %78, %99 : vector<256x40xi32>
    %101 = arith.ori %95, %100 : vector<256x40xi1>
    %102 = vector.extract_strided_slice %77 {offsets = [0, 4], sizes = [256, 1], strides = [1, 1]} : vector<256x8xi32> to vector<256x1xi32>
    %c20_i32_24 = arith.constant 20 : i32
    %103 = vector.broadcast %c20_i32_24 : i32 to vector<256x1xi32>
    %104 = arith.addi %102, %103 : vector<256x1xi32>
    %105 = vector.broadcast %104 : vector<256x1xi32> to vector<256x40xi32>
    %106 = arith.cmpi eq, %78, %105 : vector<256x40xi32>
    %107 = arith.ori %101, %106 : vector<256x40xi1>
    %108 = vector.extract_strided_slice %77 {offsets = [0, 5], sizes = [256, 1], strides = [1, 1]} : vector<256x8xi32> to vector<256x1xi32>
    %c25_i32_25 = arith.constant 25 : i32
    %109 = vector.broadcast %c25_i32_25 : i32 to vector<256x1xi32>
    %110 = arith.addi %108, %109 : vector<256x1xi32>
    %111 = vector.broadcast %110 : vector<256x1xi32> to vector<256x40xi32>
    %112 = arith.cmpi eq, %78, %111 : vector<256x40xi32>
    %113 = arith.ori %107, %112 : vector<256x40xi1>
    %114 = vector.extract_strided_slice %77 {offsets = [0, 6], sizes = [256, 1], strides = [1, 1]} : vector<256x8xi32> to vector<256x1xi32>
    %c30_i32_26 = arith.constant 30 : i32
    %115 = vector.broadcast %c30_i32_26 : i32 to vector<256x1xi32>
    %116 = arith.addi %114, %115 : vector<256x1xi32>
    %117 = vector.broadcast %116 : vector<256x1xi32> to vector<256x40xi32>
    %118 = arith.cmpi eq, %78, %117 : vector<256x40xi32>
    %119 = arith.ori %113, %118 : vector<256x40xi1>
    %120 = vector.extract_strided_slice %77 {offsets = [0, 7], sizes = [256, 1], strides = [1, 1]} : vector<256x8xi32> to vector<256x1xi32>
    %c35_i32_27 = arith.constant 35 : i32
    %121 = vector.broadcast %c35_i32_27 : i32 to vector<256x1xi32>
    %122 = arith.addi %120, %121 : vector<256x1xi32>
    %123 = vector.broadcast %122 : vector<256x1xi32> to vector<256x40xi32>
    %124 = arith.cmpi eq, %78, %123 : vector<256x40xi32>
    %125 = arith.ori %119, %124 : vector<256x40xi1>
    %126 = arith.extui %125 : vector<256x40xi1> to vector<256x40xi32>
    %127 = arith.sitofp %126 : vector<256x40xi32> to vector<256x40xf32>
    %128 = arith.truncf %127 : vector<256x40xf32> to vector<256x40xbf16>
    %cst_28 = arith.constant dense<0.000000e+00> : vector<256x32xf32>
    %129 = tpu.matmul %128, %0, %cst_28 {dimension_numbers = #tpu.dot_dimension_numbers<[1], [0], [0], [1], [0, 0, 1, 1], [], []>} : vector<256x40xbf16>, vector<40x32xbf16>, vector<256x32xf32> -> vector<256x32xf32>
    %130 = vector.broadcast %1 : vector<1x32xf32> to vector<256x32xf32>
    %131 = arith.addf %129, %130 : vector<256x32xf32>
    %cst_29 = arith.constant 0.000000e+00 : f32
    %132 = vector.broadcast %cst_29 : f32 to vector<256x32xf32>
    %133 = arith.maximumf %131, %132 : vector<256x32xf32>
    %134 = arith.truncf %133 : vector<256x32xf32> to vector<256x32xbf16>
    %cst_30 = arith.constant dense<0.000000e+00> : vector<256x16xf32>
    %135 = tpu.matmul %134, %2, %cst_30 {dimension_numbers = #tpu.dot_dimension_numbers<[1], [0], [0], [1], [0, 0, 1, 1], [], []>} : vector<256x32xbf16>, vector<32x16xbf16>, vector<256x16xf32> -> vector<256x16xf32>
    %136 = vector.broadcast %3 : vector<1x16xf32> to vector<256x16xf32>
    %137 = arith.addf %135, %136 : vector<256x16xf32>
    %cst_31 = arith.constant 0.000000e+00 : f32
    %138 = vector.broadcast %cst_31 : f32 to vector<256x16xf32>
    %139 = arith.maximumf %137, %138 : vector<256x16xf32>
    %140 = vector.broadcast %4 : vector<1x16xf32> to vector<256x16xf32>
    %141 = arith.mulf %139, %140 : vector<256x16xf32>
    %cst_32 = arith.constant dense<0.000000e+00> : vector<256xf32>
    %142 = vector.multi_reduction <add>, %141, %cst_32 [1] : vector<256x16xf32> to vector<256xf32>
    %143 = vector.broadcast %5 : f32 to vector<256xf32>
    %144 = arith.addf %142, %143 : vector<256xf32>
    %c0_33 = arith.constant 0 : index
    %c256_34 = arith.constant 256 : index
    %145 = vector.load %arg8[%c0_33, %c256_34] : memref<1x512xf32, #tpu.memory_space<vmem>>, vector<1x256xf32>
    %146 = vector.shape_cast %145 : vector<1x256xf32> to vector<256xf32>
    %147 = vector.shape_cast %144 : vector<256xf32> to vector<1x256xf32>
    tpu.vector_store %arg8[%c0_33, %c256_34], %147 {strides = array<i32>} : memref<1x512xf32, #tpu.memory_space<vmem>>, vector<1x256xf32>,
    return
  }
  func.func @transform_0(%arg0: i32) -> (i32, i32) {
    %c0_i32 = arith.constant 0 : i32
    %c0_i32_0 = arith.constant 0 : i32
    return %arg0, %c0_i32 : i32, i32
  }
  func.func @transform_1(%arg0: i32) -> (i32, i32) {
    %c0_i32 = arith.constant 0 : i32
    %c0_i32_0 = arith.constant 0 : i32
    %c0_i32_1 = arith.constant 0 : i32
    return %c0_i32, %c0_i32_0 : i32, i32
  }
  func.func @transform_2(%arg0: i32) -> (i32, i32) {
    %c0_i32 = arith.constant 0 : i32
    %c0_i32_0 = arith.constant 0 : i32
    %c0_i32_1 = arith.constant 0 : i32
    return %c0_i32, %c0_i32_0 : i32, i32
  }
  func.func @transform_3(%arg0: i32) -> (i32, i32) {
    %c0_i32 = arith.constant 0 : i32
    %c0_i32_0 = arith.constant 0 : i32
    %c0_i32_1 = arith.constant 0 : i32
    return %c0_i32, %c0_i32_0 : i32, i32
  }
  func.func @transform_4(%arg0: i32) -> (i32, i32) {
    %c0_i32 = arith.constant 0 : i32
    %c0_i32_0 = arith.constant 0 : i32
    %c0_i32_1 = arith.constant 0 : i32
    return %c0_i32, %c0_i32_0 : i32, i32
  }
  func.func @transform_5(%arg0: i32) -> (i32, i32) {
    %c0_i32 = arith.constant 0 : i32
    %c0_i32_0 = arith.constant 0 : i32
    %c0_i32_1 = arith.constant 0 : i32
    return %c0_i32, %c0_i32_0 : i32, i32
  }
  func.func @transform_6(%arg0: i32) -> (i32, i32) {
    %c0_i32 = arith.constant 0 : i32
    %c0_i32_0 = arith.constant 0 : i32
    %c0_i32_1 = arith.constant 0 : i32
    return %c0_i32, %c0_i32_0 : i32, i32
  }
  func.func @transform_7(%arg0: i32) -> (i32, i32) {
    %c0_i32 = arith.constant 0 : i32
    %c0_i32_0 = arith.constant 0 : i32
    return %c0_i32, %arg0 : i32, i32
  }
}

</mosaic_0001>

<llo_original>
// kernel: tpu_custom_call.1
$region0: #{tpu_custom_call.1}
  #allocation0 [shape = 'u32[]', space=smem, size = 0x4, offset = 0x4, fixed_abs, tag = 'smem constant byte address 0x4 - core index']
  #allocation1 [shape = 'u32[144,128]{1,0:T(1,128)}', space=vmem, size = 0x12000, scoped, tag = 'internal scratch']
  #allocation2 [shape = 'f32[1,1]{1,0:T(1,128)S(6)}', space=smem, size = 0x200, scoped, tag = 'scoped memory for tpu_custom_call.1']
  %s0 = inlined_call_operand.vmem [shape: s32[1024,8], index: 0, kind: input, shape index: {}]
  %s1 = inlined_call_operand.vmem [shape: bf16[40,32], index: 1, kind: input, shape index: {}]
  %s2 = inlined_call_operand.vmem [shape: f32[1,32], index: 2, kind: input, shape index: {}]
  %s3 = inlined_call_operand.vmem [shape: bf16[32,16], index: 3, kind: input, shape index: {}]
  %s4 = inlined_call_operand.vmem [shape: f32[1,16], index: 4, kind: input, shape index: {}]
  %s5 = inlined_call_operand.vmem [shape: f32[1,16], index: 5, kind: input, shape index: {}]
  %s6 = inlined_call_operand.<no memory space> [shape: f32[1,1], index: 6, kind: input, shape index: {}]
  %s7 = inlined_call_operand.hbm [shape: f32[1,1024], index: 7, kind: output, shape index: {}]
  %s8 = sld [smem:[#allocation0]]
  $region61: #{tpu_custom_call.1} parent=0
    _
  %s10 = ssub.s32 1, %s8
  %s11 = scalar_select 0, %s10, %s8
  %12 = sst [smem:[#allocation2]] %s6
  $region1: #{tpu_custom_call.1} parent=0
    #allocation3 [shape = 'u8[4096]{0}', space=vmem, size = 0x1000, scoped, tag = 'output window, operand 0']
    #allocation4 [shape = 's32[2]{0}', space=sflag, size = 0x8, scoped, tag = 'scoped memory for tpu_custom_call.1']
    %13 = vsyncpa [#allocation4], 0
    %s14 = scalar_lea.sflag [#allocation4], 1
    %15 = vsyncpa %s14, 0
    loop: start=0, step=1, limit=4
    $region2: #{tpu_custom_call.1} parent=1 // loop_pre_header
      _
    $region3: #{tpu_custom_call.1} parent=1 // loop_header
      %s17 = sphi 0, %s21
      %p18 = scmp.ge.s32.totalorder %s17, 4
      %s27 = sphi 0, %s29
      %s30 = sphi 0, %s27
      %s31 = sphi 0, %s30
      %s47 = sphi 0, %s31
      %s51 = sphi 0, %s51
      %s53 = sphi 0, %s51
      %s54 = sphi 0, %s53
      %s68 = sphi 0, %s54
      %s72 = sphi 0, %s72
      %s74 = sphi 0, %s72
      %s75 = sphi 0, %s74
      %s89 = sphi 0, %s75
      %s93 = sphi 0, %s93
      %s95 = sphi 0, %s93
      %s96 = sphi 0, %s95
      %s110 = sphi 0, %s96
      %s114 = sphi 0, %s114
      %s116 = sphi 0, %s114
      %s117 = sphi 0, %s116
      %s131 = sphi 0, %s117
      %s135 = sphi 0, %s135
      %s137 = sphi 0, %s135
      %s138 = sphi 0, %s137
      %s152 = sphi 0, %s138
      %s156 = sphi 0, %s156
      %s158 = sphi 0, %s156
      %s159 = sphi 0, %s158
      %s173 = sphi 0, %s159
      %s179 = sphi 0, %s181
      %s182 = sphi 0, %s179
      %s183 = sphi 0, %s182
      %s199 = sphi 0, %s183
    $region4: #{tpu_custom_call.1} parent=1 // loop_header_branch
      %20 = sbr.rel (%p18) target = $region8
    $region5: #{tpu_custom_call.1} parent=1 // loop_body
      %s22 = ssub.s32 %s17, 1
      %s23 = ssub.s32 %s17, 2
      %s24 = sadd.s32 %s17, 1
      %s25 = ssub.s32 %s17, %s24
      %p26 = scmp.eq.s32.totalorder %s25, 0
      %s28 = sadd.s32 %s27, 1
      %s29 = scalar_select %p26, %s27, %s28
      %p32 = pneg %p26
      %p33 = scmp.eq.s32.totalorder %s17, 1
      %p34 = por %p32, %p33
      %p35 = scmp.ne.s32.totalorder %s27, %s30
      %p36 = scmp.eq.s32.totalorder %s17, 0
      %p37 = por %p35, %p36
      %p38 = scmp.ne.s32.totalorder %s27, %s30
      %p39 = scmp.eq.s32.totalorder %s22, 1
      %p40 = por %p38, %p39
      %p41 = scmp.ne.s32.totalorder %s30, %s31
      %p42 = scmp.eq.s32.totalorder %s22, 0
      %p43 = por %p41, %p42
      %p44 = scmp.ne.s32.totalorder %s30, %s31
      %p45 = scmp.eq.s32.totalorder %s23, 1
      %p46 = por %p44, %p45
      %p48 = scmp.ne.s32.totalorder %s31, %s47
      %p49 = scmp.eq.s32.totalorder %s23, 0
      %p50 = por %p48, %p49
      %s52 = sadd.s32 %s51, 1
      %p55 = scmp.eq.s32.totalorder %s17, 1
      %p56 = scmp.ne.s32.totalorder %s51, %s53
      %p57 = scmp.eq.s32.totalorder %s17, 0
      %p58 = por %p56, %p57
      %p59 = scmp.ne.s32.totalorder %s51, %s53
      %p60 = scmp.eq.s32.totalorder %s22, 1
      %p61 = por %p59, %p60
      %p62 = scmp.ne.s32.totalorder %s53, %s54
      %p63 = scmp.eq.s32.totalorder %s22, 0
      %p64 = por %p62, %p63
      %p65 = scmp.ne.s32.totalorder %s53, %s54
      %p66 = scmp.eq.s32.totalorder %s23, 1
      %p67 = por %p65, %p66
      %p69 = scmp.ne.s32.totalorder %s54, %s68
      %p70 = scmp.eq.s32.totalorder %s23, 0
      %p71 = por %p69, %p70
      %s73 = sadd.s32 %s72, 1
      %p76 = scmp.eq.s32.totalorder %s17, 1
      %p77 = scmp.ne.s32.totalorder %s72, %s74
      %p78 = scmp.eq.s32.totalorder %s17, 0
      %p79 = por %p77, %p78
      %p80 = scmp.ne.s32.totalorder %s72, %s74
      %p81 = scmp.eq.s32.totalorder %s22, 1
      %p82 = por %p80, %p81
      %p83 = scmp.ne.s32.totalorder %s74, %s75
      %p84 = scmp.eq.s32.totalorder %s22, 0
      %p85 = por %p83, %p84
      %p86 = scmp.ne.s32.totalorder %s74, %s75
      %p87 = scmp.eq.s32.totalorder %s23, 1
      %p88 = por %p86, %p87
      %p90 = scmp.ne.s32.totalorder %s75, %s89
      %p91 = scmp.eq.s32.totalorder %s23, 0
      %p92 = por %p90, %p91
      %s94 = sadd.s32 %s93, 1
      %p97 = scmp.eq.s32.totalorder %s17, 1
      %p98 = scmp.ne.s32.totalorder %s93, %s95
      %p99 = scmp.eq.s32.totalorder %s17, 0
      %p100 = por %p98, %p99
      %p101 = scmp.ne.s32.totalorder %s93, %s95
      %p102 = scmp.eq.s32.totalorder %s22, 1
      %p103 = por %p101, %p102
      %p104 = scmp.ne.s32.totalorder %s95, %s96
      %p105 = scmp.eq.s32.totalorder %s22, 0
      %p106 = por %p104, %p105
      %p107 = scmp.ne.s32.totalorder %s95, %s96
      %p108 = scmp.eq.s32.totalorder %s23, 1
      %p109 = por %p107, %p108
      %p111 = scmp.ne.s32.totalorder %s96, %s110
      %p112 = scmp.eq.s32.totalorder %s23, 0
      %p113 = por %p111, %p112
      %s115 = sadd.s32 %s114, 1
      %p118 = scmp.eq.s32.totalorder %s17, 1
      %p119 = scmp.ne.s32.totalorder %s114, %s116
      %p120 = scmp.eq.s32.totalorder %s17, 0
      %p121 = por %p119, %p120
      %p122 = scmp.ne.s32.totalorder %s114, %s116
      %p123 = scmp.eq.s32.totalorder %s22, 1
      %p124 = por %p122, %p123
      %p125 = scmp.ne.s32.totalorder %s116, %s117
      %p126 = scmp.eq.s32.totalorder %s22, 0
      %p127 = por %p125, %p126
      %p128 = scmp.ne.s32.totalorder %s116, %s117
      %p129 = scmp.eq.s32.totalorder %s23, 1
      %p130 = por %p128, %p129
      %p132 = scmp.ne.s32.totalorder %s117, %s131
      %p133 = scmp.eq.s32.totalorder %s23, 0
      %p134 = por %p132, %p133
      %s136 = sadd.s32 %s135, 1
      %p139 = scmp.eq.s32.totalorder %s17, 1
      %p140 = scmp.ne.s32.totalorder %s135, %s137
      %p141 = scmp.eq.s32.totalorder %s17, 0
      %p142 = por %p140, %p141
      %p143 = scmp.ne.s32.totalorder %s135, %s137
      %p144 = scmp.eq.s32.totalorder %s22, 1
      %p145 = por %p143, %p144
      %p146 = scmp.ne.s32.totalorder %s137, %s138
      %p147 = scmp.eq.s32.totalorder %s22, 0
      %p148 = por %p146, %p147
      %p149 = scmp.ne.s32.totalorder %s137, %s138
      %p150 = scmp.eq.s32.totalorder %s23, 1
      %p151 = por %p149, %p150
      %p153 = scmp.ne.s32.totalorder %s138, %s152
      %p154 = scmp.eq.s32.totalorder %s23, 0
      %p155 = por %p153, %p154
      %s157 = sadd.s32 %s156, 1
      %p160 = scmp.eq.s32.totalorder %s17, 1
      %p161 = scmp.ne.s32.totalorder %s156, %s158
      %p162 = scmp.eq.s32.totalorder %s17, 0
      %p163 = por %p161, %p162
      %p164 = scmp.ne.s32.totalorder %s156, %s158
      %p165 = scmp.eq.s32.totalorder %s22, 1
      %p166 = por %p164, %p165
      %p167 = scmp.ne.s32.totalorder %s158, %s159
      %p168 = scmp.eq.s32.totalorder %s22, 0
      %p169 = por %p167, %p168
      %p170 = scmp.ne.s32.totalorder %s158, %s159
      %p171 = scmp.eq.s32.totalorder %s23, 1
      %p172 = por %p170, %p171
      %p174 = scmp.ne.s32.totalorder %s159, %s173
      %p175 = scmp.eq.s32.totalorder %s23, 0
      %p176 = por %p174, %p175
      %s177 = ssub.s32 %s17, %s24
      %p178 = scmp.eq.s32.totalorder %s177, 0
      %s180 = sadd.s32 %s179, 1
      %s181 = scalar_select %p178, %s179, %s180
      %p184 = pneg %p178
      %p185 = scmp.eq.s32.totalorder %s17, 1
      %p186 = por %p184, %p185
      %p187 = scmp.ne.s32.totalorder %s179, %s182
      %p188 = scmp.eq.s32.totalorder %s17, 0
      %p189 = por %p187, %p188
      %p190 = scmp.ne.s32.totalorder %s179, %s182
      %p191 = scmp.eq.s32.totalorder %s22, 1
      %p192 = por %p190, %p191
      %p193 = scmp.ne.s32.totalorder %s182, %s183
      %p194 = scmp.eq.s32.totalorder %s22, 0
      %p195 = por %p193, %p194
      %p196 = scmp.ne.s32.totalorder %s182, %s183
      %p197 = scmp.eq.s32.totalorder %s23, 1
      %p198 = por %p196, %p197
      %p200 = scmp.ne.s32.totalorder %s183, %s199
      %p201 = scmp.eq.s32.totalorder %s23, 0
      %p202 = por %p200, %p201
      %p203 = scmp.le.s32.totalorder 1, %s17
      %p204 = scmp.lt.s32.totalorder %s17, 3
      %p205 = pnand %p203, %p204
      %p206 = pneg %p205
      // Predicated region
      $region9: #{tpu_custom_call.1} parent=5 // pred_check
        _
      $region10: #{tpu_custom_call.1} parent=5 // pred_check_branch
        %208 = sbr.rel (%p205) target = $region12
      $region11: #{tpu_custom_call.1} parent=5 // pred_region
        %s209 = ssub.s32 %s17, 1
        // Predicated region
        $region13: #{tpu_custom_call.1} parent=11 // pred_check
          %p210 = pneg %p64
        $region14: #{tpu_custom_call.1} parent=11 // pred_check_branch
          %212 = sbr.rel (%p210) target = $region16
        $region15: #{tpu_custom_call.1} parent=11 // pred_region
          _
        $region16: #{tpu_custom_call.1} parent=11 // pred_fallthru
          _
        // Predicated region
        $region17: #{tpu_custom_call.1} parent=11 // pred_check
          %p213 = pneg %p85
        $region18: #{tpu_custom_call.1} parent=11 // pred_check_branch
          %215 = sbr.rel (%p213) target = $region20
        $region19: #{tpu_custom_call.1} parent=11 // pred_region
          _
        $region20: #{tpu_custom_call.1} parent=11 // pred_fallthru
          _
        // Predicated region
        $region21: #{tpu_custom_call.1} parent=11 // pred_check
          %p216 = pneg %p106
        $region22: #{tpu_custom_call.1} parent=11 // pred_check_branch
          %218 = sbr.rel (%p216) target = $region24
        $region23: #{tpu_custom_call.1} parent=11 // pred_region
          _
        $region24: #{tpu_custom_call.1} parent=11 // pred_fallthru
          _
        // Predicated region
        $region25: #{tpu_custom_call.1} parent=11 // pred_check
          %p219 = pneg %p127
        $region26: #{tpu_custom_call.1} parent=11 // pred_check_branch
          %221 = sbr.rel (%p219) target = $region28
        $region27: #{tpu_custom_call.1} parent=11 // pred_region
          _
        $region28: #{tpu_custom_call.1} parent=11 // pred_fallthru
          _
        // Predicated region
        $region29: #{tpu_custom_call.1} parent=11 // pred_check
          %p222 = pneg %p148
        $region30: #{tpu_custom_call.1} parent=11 // pred_check_branch
          %224 = sbr.rel (%p222) target = $region32
        $region31: #{tpu_custom_call.1} parent=11 // pred_region
          _
        $region32: #{tpu_custom_call.1} parent=11 // pred_fallthru
          _
        // Predicated region
        $region33: #{tpu_custom_call.1} parent=11 // pred_check
          %p225 = pneg %p169
        $region34: #{tpu_custom_call.1} parent=11 // pred_check_branch
          %227 = sbr.rel (%p225) target = $region36
        $region35: #{tpu_custom_call.1} parent=11 // pred_region
          _
        $region36: #{tpu_custom_call.1} parent=11 // pred_fallthru
          _
      $region12: #{tpu_custom_call.1} parent=5 // pred_fallthru
        _
      %p228 = scmp.lt.s32.totalorder %s17, 2
      // Predicated region
      $region37: #{tpu_custom_call.1} parent=5 // pred_check
        %p229 = pneg %p228
      $region38: #{tpu_custom_call.1} parent=5 // pred_check_branch
        %231 = sbr.rel (%p229) target = $region40
      $region39: #{tpu_custom_call.1} parent=5 // pred_region
        // Predicated region
        $region41: #{tpu_custom_call.1} parent=39 // pred_check
          %p232 = pneg %p37
        $region42: #{tpu_custom_call.1} parent=39 // pred_check_branch
          %234 = sbr.rel (%p232) target = $region44
        $region43: #{tpu_custom_call.1} parent=39 // pred_region
          %s235 = smul.u32 64, %s17
          %p236 = scmp.lt.s32.totalorder %s235, 127
          %s237 = scalar_select %p236, %s235, 127
          %s238 = smul.addr %s237, 8
          %s239 = scalar_lea.vmem %s0, %s238
          %s240 = smul.u32 64, %s17
        $region44: #{tpu_custom_call.1} parent=39 // pred_fallthru
          _
      $region40: #{tpu_custom_call.1} parent=5 // pred_fallthru
        _
      %p241 = scmp.le.s32.totalorder 1, %s17
      %p242 = scmp.lt.s32.totalorder %s17, 3
      %p243 = pnand %p241, %p242
      %p244 = pneg %p243
      // Predicated region
      $region45: #{tpu_custom_call.1} parent=5 // pred_check
        _
      $region46: #{tpu_custom_call.1} parent=5 // pred_check_branch
        %246 = sbr.rel (%p243) target = $region48
      $region47: #{tpu_custom_call.1} parent=5 // pred_region
        %s247 = ssub.s32 %s17, 1
        %s248 = smul.u32 64, %s22
        %p249 = scmp.lt.s32.totalorder %s248, 127
        %s250 = scalar_select %p249, %s248, 127
        %s251 = smul.addr %s250, 8
        %s252 = scalar_lea.vmem %s0, %s251
        %p253 = pneg %p43
        %p254 = pneg %p40
        %p255 = pneg %p64
        %p256 = pneg %p61
        %p257 = pneg %p85
        %p258 = pneg %p82
        %p259 = pneg %p106
        %p260 = pneg %p103
        %p261 = pneg %p127
        %p262 = pneg %p124
        %p263 = pneg %p148
        %p264 = pneg %p145
        %p265 = pneg %p169
        %p266 = pneg %p166
        %p267 = pneg %p195
        %p268 = pneg %p192
        %s269 = sand.u32 %s182, 1
        %s270 = scalar_lea.sflag [#allocation4], %s269
        %s271 = sand.u32 %s182, 1
        %s272 = smul.addr %s271, 4
        %s273 = scalar_lea.vmem [#allocation3], %s272
        %s274 = smul.u32 64, %s22
        %p275 = scmp.lt.s32.totalorder %s274, 127
        %s276 = scalar_select %p275, %s274, 127
        %s277 = smul.addr %s276, 8
        %s278 = scalar_lea.vmem %s0, %s277
        %s279 = smul.u32 64, %s22
        %s280 = smul.u32 4, %s22
        %v282 = vld [vmem:[%s1] sm:$0xf]
        %v283 = vld [vmem:[%s1 + $0x4] sm:$0xf]
        %v284 = vld [vmem:[%s1 + $0x8] sm:$0xf]
        %v285 = vld [vmem:[%s1 + $0xc] sm:$0xf]
        %v286 = vld [vmem:[%s1 + $0x10] sm:$0xf]
        %v287 = vld [vmem:[%s2] sm:$0x1]
        %v288 = vld [vmem:[%s3] sm:$0xf]
        %v289 = vld [vmem:[%s3 + $0x4] sm:$0xf]
        %v290 = vld [vmem:[%s3 + $0x8] sm:$0xf]
        %v291 = vld [vmem:[%s3 + $0xc] sm:$0xf]
        %v292 = vld [vmem:[%s4] sm:$0x1]
        %v293 = vld [vmem:[%s5] sm:$0x1]
        %s294 = sld [smem:[#allocation2]]
        %v295 = vld [vmem:[%s278] sm:$0xff]
        %v296 = vld [vmem:[%s278 + $0x8] sm:$0xff]
        %v297 = vld [vmem:[%s278 + $0x10] sm:$0xff]
        %v298 = vld [vmem:[%s278 + $0x18] sm:$0xff]
        %v299 = vld [vmem:[%s278 + $0x20] sm:$0xff]
        %v300 = vld [vmem:[%s278 + $0x28] sm:$0xff]
        %v301 = vld [vmem:[%s278 + $0x30] sm:$0xff]
        %v302 = vld [vmem:[%s278 + $0x38] sm:$0xff]
        %v303 = vld [vmem:[%s278 + $0x40] sm:$0xff]
        %v304 = vld [vmem:[%s278 + $0x48] sm:$0xff]
        %v305 = vld [vmem:[%s278 + $0x50] sm:$0xff]
        %v306 = vld [vmem:[%s278 + $0x58] sm:$0xff]
        %v307 = vld [vmem:[%s278 + $0x60] sm:$0xff]
        %v308 = vld [vmem:[%s278 + $0x68] sm:$0xff]
        %v309 = vld [vmem:[%s278 + $0x70] sm:$0xff]
        %v310 = vld [vmem:[%s278 + $0x78] sm:$0xff]
        %v311 = vld [vmem:[%s278 + $0x80] sm:$0xff]
        %v312 = vld [vmem:[%s278 + $0x88] sm:$0xff]
        %v313 = vld [vmem:[%s278 + $0x90] sm:$0xff]
        %v314 = vld [vmem:[%s278 + $0x98] sm:$0xff]
        %v315 = vld [vmem:[%s278 + $0xa0] sm:$0xff]
        %v316 = vld [vmem:[%s278 + $0xa8] sm:$0xff]
        %v317 = vld [vmem:[%s278 + $0xb0] sm:$0xff]
        %v318 = vld [vmem:[%s278 + $0xb8] sm:$0xff]
        %v319 = vld [vmem:[%s278 + $0xc0] sm:$0xff]
        %v320 = vld [vmem:[%s278 + $0xc8] sm:$0xff]
        %v321 = vld [vmem:[%s278 + $0xd0] sm:$0xff]
        %v322 = vld [vmem:[%s278 + $0xd8] sm:$0xff]
        %v323 = vld [vmem:[%s278 + $0xe0] sm:$0xff]
        %v324 = vld [vmem:[%s278 + $0xe8] sm:$0xff]
        %v325 = vld [vmem:[%s278 + $0xf0] sm:$0xff]
        %v326 = vld [vmem:[%s278 + $0xf8] sm:$0xff]
        %v327 = vlaneseq
        %v328 = vand.u32 %v327, 127
        %329 = vset.pattern.permute.xlu0 0
        %330 = vperm.xlu0 %329, %v295
        %v331 = vpop.permute.xlu0 %330
        %332 = vset.pattern.permute.xlu0 0
        %333 = vperm.xlu0 %332, %v296
        %v334 = vpop.permute.xlu0 %333
        %335 = vset.pattern.permute.xlu0 0
        %336 = vperm.xlu0 %335, %v297
        %v337 = vpop.permute.xlu0 %336
        %338 = vset.pattern.permute.xlu0 0
        %339 = vperm.xlu0 %338, %v298
        %v340 = vpop.permute.xlu0 %339
        %341 = vset.pattern.permute.xlu0 0
        %342 = vperm.xlu0 %341, %v299
        %v343 = vpop.permute.xlu0 %342
        %344 = vset.pattern.permute.xlu0 0
        %345 = vperm.xlu0 %344, %v300
        %v346 = vpop.permute.xlu0 %345
        %347 = vset.pattern.permute.xlu0 0
        %348 = vperm.xlu0 %347, %v301
        %v349 = vpop.permute.xlu0 %348
        %350 = vset.pattern.permute.xlu0 0
        %351 = vperm.xlu0 %350, %v302
        %v352 = vpop.permute.xlu0 %351
        %353 = vset.pattern.permute.xlu0 0
        %354 = vperm.xlu0 %353, %v303
        %v355 = vpop.permute.xlu0 %354
        %356 = vset.pattern.permute.xlu0 0
        %357 = vperm.xlu0 %356, %v304
        %v358 = vpop.permute.xlu0 %357
        %359 = vset.pattern.permute.xlu0 0
        %360 = vperm.xlu0 %359, %v305
        %v361 = vpop.permute.xlu0 %360
        %362 = vset.pattern.permute.xlu0 0
        %363 = vperm.xlu0 %362, %v306
        %v364 = vpop.permute.xlu0 %363
        %365 = vset.pattern.permute.xlu0 0
        %366 = vperm.xlu0 %365, %v307
        %v367 = vpop.permute.xlu0 %366
        %368 = vset.pattern.permute.xlu0 0
        %369 = vperm.xlu0 %368, %v308
        %v370 = vpop.permute.xlu0 %369
        %371 = vset.pattern.permute.xlu0 0
        %372 = vperm.xlu0 %371, %v309
        %v373 = vpop.permute.xlu0 %372
        %374 = vset.pattern.permute.xlu0 0
        %375 = vperm.xlu0 %374, %v310
        %v376 = vpop.permute.xlu0 %375
        %377 = vset.pattern.permute.xlu0 0
        %378 = vperm.xlu0 %377, %v311
        %v379 = vpop.permute.xlu0 %378
        %380 = vset.pattern.permute.xlu0 0
        %381 = vperm.xlu0 %380, %v312
        %v382 = vpop.permute.xlu0 %381
        %383 = vset.pattern.permute.xlu0 0
        %384 = vperm.xlu0 %383, %v313
        %v385 = vpop.permute.xlu0 %384
        %386 = vset.pattern.permute.xlu0 0
        %387 = vperm.xlu0 %386, %v314
        %v388 = vpop.permute.xlu0 %387
        %389 = vset.pattern.permute.xlu0 0
        %390 = vperm.xlu0 %389, %v315
        %v391 = vpop.permute.xlu0 %390
        %392 = vset.pattern.permute.xlu0 0
        %393 = vperm.xlu0 %392, %v316
        %v394 = vpop.permute.xlu0 %393
        %395 = vset.pattern.permute.xlu0 0
        %396 = vperm.xlu0 %395, %v317
        %v397 = vpop.permute.xlu0 %396
        %398 = vset.pattern.permute.xlu0 0
        %399 = vperm.xlu0 %398, %v318
        %v400 = vpop.permute.xlu0 %399
        %401 = vset.pattern.permute.xlu0 0
        %402 = vperm.xlu0 %401, %v319
        %v403 = vpop.permute.xlu0 %402
        %404 = vset.pattern.permute.xlu0 0
        %405 = vperm.xlu0 %404, %v320
        %v406 = vpop.permute.xlu0 %405
        %407 = vset.pattern.permute.xlu0 0
        %408 = vperm.xlu0 %407, %v321
        %v409 = vpop.permute.xlu0 %408
        %410 = vset.pattern.permute.xlu0 0
        %411 = vperm.xlu0 %410, %v322
        %v412 = vpop.permute.xlu0 %411
        %413 = vset.pattern.permute.xlu0 0
        %414 = vperm.xlu0 %413, %v323
        %v415 = vpop.permute.xlu0 %414
        %416 = vset.pattern.permute.xlu0 0
        %417 = vperm.xlu0 %416, %v324
        %v418 = vpop.permute.xlu0 %417
        %419 = vset.pattern.permute.xlu0 0
        %420 = vperm.xlu0 %419, %v325
        %v421 = vpop.permute.xlu0 %420
        %422 = vset.pattern.permute.xlu0 0
        %423 = vperm.xlu0 %422, %v326
        %v424 = vpop.permute.xlu0 %423
        %vm425 = vcmp.eq.s32.totalorder %v328, %v331
        %vm426 = vcmp.eq.s32.totalorder %v328, %v334
        %vm427 = vcmp.eq.s32.totalorder %v328, %v337
        %vm428 = vcmp.eq.s32.totalorder %v328, %v340
        %vm429 = vcmp.eq.s32.totalorder %v328, %v343
        %vm430 = vcmp.eq.s32.totalorder %v328, %v346
        %vm431 = vcmp.eq.s32.totalorder %v328, %v349
        %vm432 = vcmp.eq.s32.totalorder %v328, %v352
        %vm433 = vcmp.eq.s32.totalorder %v328, %v355
        %vm434 = vcmp.eq.s32.totalorder %v328, %v358
        %vm435 = vcmp.eq.s32.totalorder %v328, %v361
        %vm436 = vcmp.eq.s32.totalorder %v328, %v364
        %vm437 = vcmp.eq.s32.totalorder %v328, %v367
        %vm438 = vcmp.eq.s32.totalorder %v328, %v370
        %vm439 = vcmp.eq.s32.totalorder %v328, %v373
        %vm440 = vcmp.eq.s32.totalorder %v328, %v376
        %vm441 = vcmp.eq.s32.totalorder %v328, %v379
        %vm442 = vcmp.eq.s32.totalorder %v328, %v382
        %vm443 = vcmp.eq.s32.totalorder %v328, %v385
        %vm444 = vcmp.eq.s32.totalorder %v328, %v388
        %vm445 = vcmp.eq.s32.totalorder %v328, %v391
        %vm446 = vcmp.eq.s32.totalorder %v328, %v394
        %vm447 = vcmp.eq.s32.totalorder %v328, %v397
        %vm448 = vcmp.eq.s32.totalorder %v328, %v400
        %vm449 = vcmp.eq.s32.totalorder %v328, %v403
        %vm450 = vcmp.eq.s32.totalorder %v328, %v406
        %vm451 = vcmp.eq.s32.totalorder %v328, %v409
        %vm452 = vcmp.eq.s32.totalorder %v328, %v412
        %vm453 = vcmp.eq.s32.totalorder %v328, %v415
        %vm454 = vcmp.eq.s32.totalorder %v328, %v418
        %vm455 = vcmp.eq.s32.totalorder %v328, %v421
        %vm456 = vcmp.eq.s32.totalorder %v328, %v424
        %v457 = vadd.s32 %v295, 5
        %v458 = vadd.s32 %v296, 5
        %v459 = vadd.s32 %v297, 5
        %v460 = vadd.s32 %v298, 5
        %v461 = vadd.s32 %v299, 5
        %v462 = vadd.s32 %v300, 5
        %v463 = vadd.s32 %v301, 5
        %v464 = vadd.s32 %v302, 5
        %v465 = vadd.s32 %v303, 5
        %v466 = vadd.s32 %v304, 5
        %v467 = vadd.s32 %v305, 5
        %v468 = vadd.s32 %v306, 5
        %v469 = vadd.s32 %v307, 5
        %v470 = vadd.s32 %v308, 5
        %v471 = vadd.s32 %v309, 5
        %v472 = vadd.s32 %v310, 5
        %v473 = vadd.s32 %v311, 5
        %v474 = vadd.s32 %v312, 5
        %v475 = vadd.s32 %v313, 5
        %v476 = vadd.s32 %v314, 5
        %v477 = vadd.s32 %v315, 5
        %v478 = vadd.s32 %v316, 5
        %v479 = vadd.s32 %v317, 5
        %v480 = vadd.s32 %v318, 5
        %v481 = vadd.s32 %v319, 5
        %v482 = vadd.s32 %v320, 5
        %v483 = vadd.s32 %v321, 5
        %v484 = vadd.s32 %v322, 5
        %v485 = vadd.s32 %v323, 5
        %v486 = vadd.s32 %v324, 5
        %v487 = vadd.s32 %v325, 5
        %v488 = vadd.s32 %v326, 5
        %489 = vset.pattern.permute.xlu0 1
        %490 = vperm.xlu0 %489, %v457
        %v491 = vpop.permute.xlu0 %490
        %492 = vset.pattern.permute.xlu0 1
        %493 = vperm.xlu0 %492, %v458
        %v494 = vpop.permute.xlu0 %493
        %495 = vset.pattern.permute.xlu0 1
        %496 = vperm.xlu0 %495, %v459
        %v497 = vpop.permute.xlu0 %496
        %498 = vset.pattern.permute.xlu0 1
        %499 = vperm.xlu0 %498, %v460
        %v500 = vpop.permute.xlu0 %499
        %501 = vset.pattern.permute.xlu0 1
        %502 = vperm.xlu0 %501, %v461
        %v503 = vpop.permute.xlu0 %502
        %504 = vset.pattern.permute.xlu0 1
        %505 = vperm.xlu0 %504, %v462
        %v506 = vpop.permute.xlu0 %505
        %507 = vset.pattern.permute.xlu0 1
        %508 = vperm.xlu0 %507, %v463
        %v509 = vpop.permute.xlu0 %508
        %510 = vset.pattern.permute.xlu0 1
        %511 = vperm.xlu0 %510, %v464
        %v512 = vpop.permute.xlu0 %511
        %513 = vset.pattern.permute.xlu0 1
        %514 = vperm.xlu0 %513, %v465
        %v515 = vpop.permute.xlu0 %514
        %516 = vset.pattern.permute.xlu0 1
        %517 = vperm.xlu0 %516, %v466
        %v518 = vpop.permute.xlu0 %517
        %519 = vset.pattern.permute.xlu0 1
        %520 = vperm.xlu0 %519, %v467
        %v521 = vpop.permute.xlu0 %520
        %522 = vset.pattern.permute.xlu0 1
        %523 = vperm.xlu0 %522, %v468
        %v524 = vpop.permute.xlu0 %523
        %525 = vset.pattern.permute.xlu0 1
        %526 = vperm.xlu0 %525, %v469
        %v527 = vpop.permute.xlu0 %526
        %528 = vset.pattern.permute.xlu0 1
        %529 = vperm.xlu0 %528, %v470
        %v530 = vpop.permute.xlu0 %529
        %531 = vset.pattern.permute.xlu0 1
        %532 = vperm.xlu0 %531, %v471
        %v533 = vpop.permute.xlu0 %532
        %534 = vset.pattern.permute.xlu0 1
        %535 = vperm.xlu0 %534, %v472
        %v536 = vpop.permute.xlu0 %535
        %537 = vset.pattern.permute.xlu0 1
        %538 = vperm.xlu0 %537, %v473
        %v539 = vpop.permute.xlu0 %538
        %540 = vset.pattern.permute.xlu0 1
        %541 = vperm.xlu0 %540, %v474
        %v542 = vpop.permute.xlu0 %541
        %543 = vset.pattern.permute.xlu0 1
        %544 = vperm.xlu0 %543, %v475
        %v545 = vpop.permute.xlu0 %544
        %546 = vset.pattern.permute.xlu0 1
        %547 = vperm.xlu0 %546, %v476
        %v548 = vpop.permute.xlu0 %547
        %549 = vset.pattern.permute.xlu0 1
        %550 = vperm.xlu0 %549, %v477
        %v551 = vpop.permute.xlu0 %550
        %552 = vset.pattern.permute.xlu0 1
        %553 = vperm.xlu0 %552, %v478
        %v554 = vpop.permute.xlu0 %553
        %555 = vset.pattern.permute.xlu0 1
        %556 = vperm.xlu0 %555, %v479
        %v557 = vpop.permute.xlu0 %556
        %558 = vset.pattern.permute.xlu0 1
        %559 = vperm.xlu0 %558, %v480
        %v560 = vpop.permute.xlu0 %559
        %561 = vset.pattern.permute.xlu0 1
        %562 = vperm.xlu0 %561, %v481
        %v563 = vpop.permute.xlu0 %562
        %564 = vset.pattern.permute.xlu0 1
        %565 = vperm.xlu0 %564, %v482
        %v566 = vpop.permute.xlu0 %565
        %567 = vset.pattern.permute.xlu0 1
        %568 = vperm.xlu0 %567, %v483
        %v569 = vpop.permute.xlu0 %568
        %570 = vset.pattern.permute.xlu0 1
        %571 = vperm.xlu0 %570, %v484
        %v572 = vpop.permute.xlu0 %571
        %573 = vset.pattern.permute.xlu0 1
        %574 = vperm.xlu0 %573, %v485
        %v575 = vpop.permute.xlu0 %574
        %576 = vset.pattern.permute.xlu0 1
        %577 = vperm.xlu0 %576, %v486
        %v578 = vpop.permute.xlu0 %577
        %579 = vset.pattern.permute.xlu0 1
        %580 = vperm.xlu0 %579, %v487
        %v581 = vpop.permute.xlu0 %580
        %582 = vset.pattern.permute.xlu0 1
        %583 = vperm.xlu0 %582, %v488
        %v584 = vpop.permute.xlu0 %583
        %vm585 = vcmp.eq.s32.totalorder %v328, %v491
        %vm586 = vcmp.eq.s32.totalorder %v328, %v494
        %vm587 = vcmp.eq.s32.totalorder %v328, %v497
        %vm588 = vcmp.eq.s32.totalorder %v328, %v500
        %vm589 = vcmp.eq.s32.totalorder %v328, %v503
        %vm590 = vcmp.eq.s32.totalorder %v328, %v506
        %vm591 = vcmp.eq.s32.totalorder %v328, %v509
        %vm592 = vcmp.eq.s32.totalorder %v328, %v512
        %vm593 = vcmp.eq.s32.totalorder %v328, %v515
        %vm594 = vcmp.eq.s32.totalorder %v328, %v518
        %vm595 = vcmp.eq.s32.totalorder %v328, %v521
        %vm596 = vcmp.eq.s32.totalorder %v328, %v524
        %vm597 = vcmp.eq.s32.totalorder %v328, %v527
        %vm598 = vcmp.eq.s32.totalorder %v328, %v530
        %vm599 = vcmp.eq.s32.totalorder %v328, %v533
        %vm600 = vcmp.eq.s32.totalorder %v328, %v536
        %vm601 = vcmp.eq.s32.totalorder %v328, %v539
        %vm602 = vcmp.eq.s32.totalorder %v328, %v542
        %vm603 = vcmp.eq.s32.totalorder %v328, %v545
        %vm604 = vcmp.eq.s32.totalorder %v328, %v548
        %vm605 = vcmp.eq.s32.totalorder %v328, %v551
        %vm606 = vcmp.eq.s32.totalorder %v328, %v554
        %vm607 = vcmp.eq.s32.totalorder %v328, %v557
        %vm608 = vcmp.eq.s32.totalorder %v328, %v560
        %vm609 = vcmp.eq.s32.totalorder %v328, %v563
        %vm610 = vcmp.eq.s32.totalorder %v328, %v566
        %vm611 = vcmp.eq.s32.totalorder %v328, %v569
        %vm612 = vcmp.eq.s32.totalorder %v328, %v572
        %vm613 = vcmp.eq.s32.totalorder %v328, %v575
        %vm614 = vcmp.eq.s32.totalorder %v328, %v578
        %vm615 = vcmp.eq.s32.totalorder %v328, %v581
        %vm616 = vcmp.eq.s32.totalorder %v328, %v584
        %vm617 = vmor %vm425, %vm585
        %vm618 = vmor %vm426, %vm586
        %vm619 = vmor %vm427, %vm587
        %vm620 = vmor %vm428, %vm588
        %vm621 = vmor %vm429, %vm589
        %vm622 = vmor %vm430, %vm590
        %vm623 = vmor %vm431, %vm591
        %vm624 = vmor %vm432, %vm592
        %vm625 = vmor %vm433, %vm593
        %vm626 = vmor %vm434, %vm594
        %vm627 = vmor %vm435, %vm595
        %vm628 = vmor %vm436, %vm596
        %vm629 = vmor %vm437, %vm597
        %vm630 = vmor %vm438, %vm598
        %vm631 = vmor %vm439, %vm599
        %vm632 = vmor %vm440, %vm600
        %vm633 = vmor %vm441, %vm601
        %vm634 = vmor %vm442, %vm602
        %vm635 = vmor %vm443, %vm603
        %vm636 = vmor %vm444, %vm604
        %vm637 = vmor %vm445, %vm605
        %vm638 = vmor %vm446, %vm606
        %vm639 = vmor %vm447, %vm607
        %vm640 = vmor %vm448, %vm608
        %vm641 = vmor %vm449, %vm609
        %vm642 = vmor %vm450, %vm610
        %vm643 = vmor %vm451, %vm611
        %vm644 = vmor %vm452, %vm612
        %vm645 = vmor %vm453, %vm613
        %vm646 = vmor %vm454, %vm614
        %vm647 = vmor %vm455, %vm615
        %vm648 = vmor %vm456, %vm616
        %v649 = vadd.s32 %v295, 10
        %v650 = vadd.s32 %v296, 10
        %v651 = vadd.s32 %v297, 10
        %v652 = vadd.s32 %v298, 10
        %v653 = vadd.s32 %v299, 10
        %v654 = vadd.s32 %v300, 10
        %v655 = vadd.s32 %v301, 10
        %v656 = vadd.s32 %v302, 10
        %v657 = vadd.s32 %v303, 10
        %v658 = vadd.s32 %v304, 10
        %v659 = vadd.s32 %v305, 10
        %v660 = vadd.s32 %v306, 10
        %v661 = vadd.s32 %v307, 10
        %v662 = vadd.s32 %v308, 10
        %v663 = vadd.s32 %v309, 10
        %v664 = vadd.s32 %v310, 10
        %v665 = vadd.s32 %v311, 10
        %v666 = vadd.s32 %v312, 10
        %v667 = vadd.s32 %v313, 10
        %v668 = vadd.s32 %v314, 10
        %v669 = vadd.s32 %v315, 10
        %v670 = vadd.s32 %v316, 10
        %v671 = vadd.s32 %v317, 10
        %v672 = vadd.s32 %v318, 10
        %v673 = vadd.s32 %v319, 10
        %v674 = vadd.s32 %v320, 10
        %v675 = vadd.s32 %v321, 10
        %v676 = vadd.s32 %v322, 10
        %v677 = vadd.s32 %v323, 10
        %v678 = vadd.s32 %v324, 10
        %v679 = vadd.s32 %v325, 10
        %v680 = vadd.s32 %v326, 10
        %681 = vset.pattern.permute.xlu0 2
        %682 = vperm.xlu0 %681, %v649
        %v683 = vpop.permute.xlu0 %682
        %684 = vset.pattern.permute.xlu0 2
        %685 = vperm.xlu0 %684, %v650
        %v686 = vpop.permute.xlu0 %685
        %687 = vset.pattern.permute.xlu0 2
        %688 = vperm.xlu0 %687, %v651
        %v689 = vpop.permute.xlu0 %688
        %690 = vset.pattern.permute.xlu0 2
        %691 = vperm.xlu0 %690, %v652
        %v692 = vpop.permute.xlu0 %691
        %693 = vset.pattern.permute.xlu0 2
        %694 = vperm.xlu0 %693, %v653
        %v695 = vpop.permute.xlu0 %694
        %696 = vset.pattern.permute.xlu0 2
        %697 = vperm.xlu0 %696, %v654
        %v698 = vpop.permute.xlu0 %697
        %699 = vset.pattern.permute.xlu0 2
        %700 = vperm.xlu0 %699, %v655
        %v701 = vpop.permute.xlu0 %700
        %702 = vset.pattern.permute.xlu0 2
        %703 = vperm.xlu0 %702, %v656
        %v704 = vpop.permute.xlu0 %703
        %705 = vset.pattern.permute.xlu0 2
        %706 = vperm.xlu0 %705, %v657
        %v707 = vpop.permute.xlu0 %706
        %708 = vset.pattern.permute.xlu0 2
        %709 = vperm.xlu0 %708, %v658
        %v710 = vpop.permute.xlu0 %709
        %711 = vset.pattern.permute.xlu0 2
        %712 = vperm.xlu0 %711, %v659
        %v713 = vpop.permute.xlu0 %712
        %714 = vset.pattern.permute.xlu0 2
        %715 = vperm.xlu0 %714, %v660
        %v716 = vpop.permute.xlu0 %715
        %717 = vset.pattern.permute.xlu0 2
        %718 = vperm.xlu0 %717, %v661
        %v719 = vpop.permute.xlu0 %718
        %720 = vset.pattern.permute.xlu0 2
        %721 = vperm.xlu0 %720, %v662
        %v722 = vpop.permute.xlu0 %721
        %723 = vset.pattern.permute.xlu0 2
        %724 = vperm.xlu0 %723, %v663
        %v725 = vpop.permute.xlu0 %724
        %726 = vset.pattern.permute.xlu0 2
        %727 = vperm.xlu0 %726, %v664
        %v728 = vpop.permute.xlu0 %727
        %729 = vset.pattern.permute.xlu0 2
        %730 = vperm.xlu0 %729, %v665
        %v731 = vpop.permute.xlu0 %730
        %732 = vset.pattern.permute.xlu0 2
        %733 = vperm.xlu0 %732, %v666
        %v734 = vpop.permute.xlu0 %733
        %735 = vset.pattern.permute.xlu0 2
        %736 = vperm.xlu0 %735, %v667
        %v737 = vpop.permute.xlu0 %736
        %738 = vset.pattern.permute.xlu0 2
        %739 = vperm.xlu0 %738, %v668
        %v740 = vpop.permute.xlu0 %739
        %741 = vset.pattern.permute.xlu0 2
        %742 = vperm.xlu0 %741, %v669
        %v743 = vpop.permute.xlu0 %742
        %744 = vset.pattern.permute.xlu0 2
        %745 = vperm.xlu0 %744, %v670
        %v746 = vpop.permute.xlu0 %745
        %747 = vset.pattern.permute.xlu0 2
        %748 = vperm.xlu0 %747, %v671
        %v749 = vpop.permute.xlu0 %748
        %750 = vset.pattern.permute.xlu0 2
        %751 = vperm.xlu0 %750, %v672
        %v752 = vpop.permute.xlu0 %751
        %753 = vset.pattern.permute.xlu0 2
        %754 = vperm.xlu0 %753, %v673
        %v755 = vpop.permute.xlu0 %754
        %756 = vset.pattern.permute.xlu0 2
        %757 = vperm.xlu0 %756, %v674
        %v758 = vpop.permute.xlu0 %757
        %759 = vset.pattern.permute.xlu0 2
        %760 = vperm.xlu0 %759, %v675
        %v761 = vpop.permute.xlu0 %760
        %762 = vset.pattern.permute.xlu0 2
        %763 = vperm.xlu0 %762, %v676
        %v764 = vpop.permute.xlu0 %763
        %765 = vset.pattern.permute.xlu0 2
        %766 = vperm.xlu0 %765, %v677
        %v767 = vpop.permute.xlu0 %766
        %768 = vset.pattern.permute.xlu0 2
        %769 = vperm.xlu0 %768, %v678
        %v770 = vpop.permute.xlu0 %769
        %771 = vset.pattern.permute.xlu0 2
        %772 = vperm.xlu0 %771, %v679
        %v773 = vpop.permute.xlu0 %772
        %774 = vset.pattern.permute.xlu0 2
        %775 = vperm.xlu0 %774, %v680
        %v776 = vpop.permute.xlu0 %775
        %vm777 = vcmp.eq.s32.totalorder %v328, %v683
        %vm778 = vcmp.eq.s32.totalorder %v328, %v686
        %vm779 = vcmp.eq.s32.totalorder %v328, %v689
        %vm780 = vcmp.eq.s32.totalorder %v328, %v692
        %vm781 = vcmp.eq.s32.totalorder %v328, %v695
        %vm782 = vcmp.eq.s32.totalorder %v328, %v698
        %vm783 = vcmp.eq.s32.totalorder %v328, %v701
        %vm784 = vcmp.eq.s32.totalorder %v328, %v704
        %vm785 = vcmp.eq.s32.totalorder %v328, %v707
        %vm786 = vcmp.eq.s32.totalorder %v328, %v710
        %vm787 = vcmp.eq.s32.totalorder %v328, %v713
        %vm788 = vcmp.eq.s32.totalorder %v328, %v716
        %vm789 = vcmp.eq.s32.totalorder %v328, %v719
        %vm790 = vcmp.eq.s32.totalorder %v328, %v722
        %vm791 = vcmp.eq.s32.totalorder %v328, %v725
        %vm792 = vcmp.eq.s32.totalorder %v328, %v728
        %vm793 = vcmp.eq.s32.totalorder %v328, %v731
        %vm794 = vcmp.eq.s32.totalorder %v328, %v734
        %vm795 = vcmp.eq.s32.totalorder %v328, %v737
        %vm796 = vcmp.eq.s32.totalorder %v328, %v740
        %vm797 = vcmp.eq.s32.totalorder %v328, %v743
        %vm798 = vcmp.eq.s32.totalorder %v328, %v746
        %vm799 = vcmp.eq.s32.totalorder %v328, %v749
        %vm800 = vcmp.eq.s32.totalorder %v328, %v752
        %vm801 = vcmp.eq.s32.totalorder %v328, %v755
        %vm802 = vcmp.eq.s32.totalorder %v328, %v758
        %vm803 = vcmp.eq.s32.totalorder %v328, %v761
        %vm804 = vcmp.eq.s32.totalorder %v328, %v764
        %vm805 = vcmp.eq.s32.totalorder %v328, %v767
        %vm806 = vcmp.eq.s32.totalorder %v328, %v770
        %vm807 = vcmp.eq.s32.totalorder %v328, %v773
        %vm808 = vcmp.eq.s32.totalorder %v328, %v776
        %vm809 = vmor %vm617, %vm777
        %vm810 = vmor %vm618, %vm778
        %vm811 = vmor %vm619, %vm779
        %vm812 = vmor %vm620, %vm780
        %vm813 = vmor %vm621, %vm781
        %vm814 = vmor %vm622, %vm782
        %vm815 = vmor %vm623, %vm783
        %vm816 = vmor %vm624, %vm784
        %vm817 = vmor %vm625, %vm785
        %vm818 = vmor %vm626, %vm786
        %vm819 = vmor %vm627, %vm787
        %vm820 = vmor %vm628, %vm788
        %vm821 = vmor %vm629, %vm789
        %vm822 = vmor %vm630, %vm790
        %vm823 = vmor %vm631, %vm791
        %vm824 = vmor %vm632, %vm792
        %vm825 = vmor %vm633, %vm793
        %vm826 = vmor %vm634, %vm794
        %vm827 = vmor %vm635, %vm795
        %vm828 = vmor %vm636, %vm796
        %vm829 = vmor %vm637, %vm797
        %vm830 = vmor %vm638, %vm798
        %vm831 = vmor %vm639, %vm799
        %vm832 = vmor %vm640, %vm800
        %vm833 = vmor %vm641, %vm801
        %vm834 = vmor %vm642, %vm802
        %vm835 = vmor %vm643, %vm803
        %vm836 = vmor %vm644, %vm804
        %vm837 = vmor %vm645, %vm805
        %vm838 = vmor %vm646, %vm806
        %vm839 = vmor %vm647, %vm807
        %vm840 = vmor %vm648, %vm808
        %v841 = vadd.s32 %v295, 15
        %v842 = vadd.s32 %v296, 15
        %v843 = vadd.s32 %v297, 15
        %v844 = vadd.s32 %v298, 15
        %v845 = vadd.s32 %v299, 15
        %v846 = vadd.s32 %v300, 15
        %v847 = vadd.s32 %v301, 15
        %v848 = vadd.s32 %v302, 15
        %v849 = vadd.s32 %v303, 15
        %v850 = vadd.s32 %v304, 15
        %v851 = vadd.s32 %v305, 15
        %v852 = vadd.s32 %v306, 15
        %v853 = vadd.s32 %v307, 15
        %v854 = vadd.s32 %v308, 15
        %v855 = vadd.s32 %v309, 15
        %v856 = vadd.s32 %v310, 15
        %v857 = vadd.s32 %v311, 15
        %v858 = vadd.s32 %v312, 15
        %v859 = vadd.s32 %v313, 15
        %v860 = vadd.s32 %v314, 15
        %v861 = vadd.s32 %v315, 15
        %v862 = vadd.s32 %v316, 15
        %v863 = vadd.s32 %v317, 15
        %v864 = vadd.s32 %v318, 15
        %v865 = vadd.s32 %v319, 15
        %v866 = vadd.s32 %v320, 15
        %v867 = vadd.s32 %v321, 15
        %v868 = vadd.s32 %v322, 15
        %v869 = vadd.s32 %v323, 15
        %v870 = vadd.s32 %v324, 15
        %v871 = vadd.s32 %v325, 15
        %v872 = vadd.s32 %v326, 15
        %873 = vset.pattern.permute.xlu0 3
        %874 = vperm.xlu0 %873, %v841
        %v875 = vpop.permute.xlu0 %874
        %876 = vset.pattern.permute.xlu0 3
        %877 = vperm.xlu0 %876, %v842
        %v878 = vpop.permute.xlu0 %877
        %879 = vset.pattern.permute.xlu0 3
        %880 = vperm.xlu0 %879, %v843
        %v881 = vpop.permute.xlu0 %880
        %882 = vset.pattern.permute.xlu0 3
        %883 = vperm.xlu0 %882, %v844
        %v884 = vpop.permute.xlu0 %883
        %885 = vset.pattern.permute.xlu0 3
        %886 = vperm.xlu0 %885, %v845
        %v887 = vpop.permute.xlu0 %886
        %888 = vset.pattern.permute.xlu0 3
        %889 = vperm.xlu0 %888, %v846
        %v890 = vpop.permute.xlu0 %889
        %891 = vset.pattern.permute.xlu0 3
        %892 = vperm.xlu0 %891, %v847
        %v893 = vpop.permute.xlu0 %892
        %894 = vset.pattern.permute.xlu0 3
        %895 = vperm.xlu0 %894, %v848
        %v896 = vpop.permute.xlu0 %895
        %897 = vset.pattern.permute.xlu0 3
        %898 = vperm.xlu0 %897, %v849
        %v899 = vpop.permute.xlu0 %898
        %900 = vset.pattern.permute.xlu0 3
        %901 = vperm.xlu0 %900, %v850
        %v902 = vpop.permute.xlu0 %901
        %903 = vset.pattern.permute.xlu0 3
        %904 = vperm.xlu0 %903, %v851
        %v905 = vpop.permute.xlu0 %904
        %906 = vset.pattern.permute.xlu0 3
        %907 = vperm.xlu0 %906, %v852
        %v908 = vpop.permute.xlu0 %907
        %909 = vset.pattern.permute.xlu0 3
        %910 = vperm.xlu0 %909, %v853
        %v911 = vpop.permute.xlu0 %910
        %912 = vset.pattern.permute.xlu0 3
        %913 = vperm.xlu0 %912, %v854
        %v914 = vpop.permute.xlu0 %913
        %915 = vset.pattern.permute.xlu0 3
        %916 = vperm.xlu0 %915, %v855
        %v917 = vpop.permute.xlu0 %916
        %918 = vset.pattern.permute.xlu0 3
        %919 = vperm.xlu0 %918, %v856
        %v920 = vpop.permute.xlu0 %919
        %921 = vset.pattern.permute.xlu0 3
        %922 = vperm.xlu0 %921, %v857
        %v923 = vpop.permute.xlu0 %922
        %924 = vset.pattern.permute.xlu0 3
        %925 = vperm.xlu0 %924, %v858
        %v926 = vpop.permute.xlu0 %925
        %927 = vset.pattern.permute.xlu0 3
        %928 = vperm.xlu0 %927, %v859
        %v929 = vpop.permute.xlu0 %928
        %930 = vset.pattern.permute.xlu0 3
        %931 = vperm.xlu0 %930, %v860
        %v932 = vpop.permute.xlu0 %931
        %933 = vset.pattern.permute.xlu0 3
        %934 = vperm.xlu0 %933, %v861
        %v935 = vpop.permute.xlu0 %934
        %936 = vset.pattern.permute.xlu0 3
        %937 = vperm.xlu0 %936, %v862
        %v938 = vpop.permute.xlu0 %937
        %939 = vset.pattern.permute.xlu0 3
        %940 = vperm.xlu0 %939, %v863
        %v941 = vpop.permute.xlu0 %940
        %942 = vset.pattern.permute.xlu0 3
        %943 = vperm.xlu0 %942, %v864
        %v944 = vpop.permute.xlu0 %943
        %945 = vset.pattern.permute.xlu0 3
        %946 = vperm.xlu0 %945, %v865
        %v947 = vpop.permute.xlu0 %946
        %948 = vset.pattern.permute.xlu0 3
        %949 = vperm.xlu0 %948, %v866
        %v950 = vpop.permute.xlu0 %949
        %951 = vset.pattern.permute.xlu0 3
        %952 = vperm.xlu0 %951, %v867
        %v953 = vpop.permute.xlu0 %952
        %954 = vset.pattern.permute.xlu0 3
        %955 = vperm.xlu0 %954, %v868
        %v956 = vpop.permute.xlu0 %955
        %957 = vset.pattern.permute.xlu0 3
        %958 = vperm.xlu0 %957, %v869
        %v959 = vpop.permute.xlu0 %958
        %960 = vset.pattern.permute.xlu0 3
        %961 = vperm.xlu0 %960, %v870
        %v962 = vpop.permute.xlu0 %961
        %963 = vset.pattern.permute.xlu0 3
        %964 = vperm.xlu0 %963, %v871
        %v965 = vpop.permute.xlu0 %964
        %966 = vset.pattern.permute.xlu0 3
        %967 = vperm.xlu0 %966, %v872
        %v968 = vpop.permute.xlu0 %967
        %vm969 = vcmp.eq.s32.totalorder %v328, %v875
        %vm970 = vcmp.eq.s32.totalorder %v328, %v878
        %vm971 = vcmp.eq.s32.totalorder %v328, %v881
        %vm972 = vcmp.eq.s32.totalorder %v328, %v884
        %vm973 = vcmp.eq.s32.totalorder %v328, %v887
        %vm974 = vcmp.eq.s32.totalorder %v328, %v890
        %vm975 = vcmp.eq.s32.totalorder %v328, %v893
        %vm976 = vcmp.eq.s32.totalorder %v328, %v896
        %vm977 = vcmp.eq.s32.totalorder %v328, %v899
        %vm978 = vcmp.eq.s32.totalorder %v328, %v902
        %vm979 = vcmp.eq.s32.totalorder %v328, %v905
        %vm980 = vcmp.eq.s32.totalorder %v328, %v908
        %vm981 = vcmp.eq.s32.totalorder %v328, %v911
        %vm982 = vcmp.eq.s32.totalorder %v328, %v914
        %vm983 = vcmp.eq.s32.totalorder %v328, %v917
        %vm984 = vcmp.eq.s32.totalorder %v328, %v920
        %vm985 = vcmp.eq.s32.totalorder %v328, %v923
        %vm986 = vcmp.eq.s32.totalorder %v328, %v926
        %vm987 = vcmp.eq.s32.totalorder %v328, %v929
        %vm988 = vcmp.eq.s32.totalorder %v328, %v932
        %vm989 = vcmp.eq.s32.totalorder %v328, %v935
        %vm990 = vcmp.eq.s32.totalorder %v328, %v938
        %vm991 = vcmp.eq.s32.totalorder %v328, %v941
        %vm992 = vcmp.eq.s32.totalorder %v328, %v944
        %vm993 = vcmp.eq.s32.totalorder %v328, %v947
        %vm994 = vcmp.eq.s32.totalorder %v328, %v950
        %vm995 = vcmp.eq.s32.totalorder %v328, %v953
        %vm996 = vcmp.eq.s32.totalorder %v328, %v956
        %vm997 = vcmp.eq.s32.totalorder %v328, %v959
        %vm998 = vcmp.eq.s32.totalorder %v328, %v962
        %vm999 = vcmp.eq.s32.totalorder %v328, %v965
        %vm1000 = vcmp.eq.s32.totalorder %v328, %v968
        %vm1001 = vmor %vm809, %vm969
        %vm1002 = vmor %vm810, %vm970
        %vm1003 = vmor %vm811, %vm971
        %vm1004 = vmor %vm812, %vm972
        %vm1005 = vmor %vm813, %vm973
        %vm1006 = vmor %vm814, %vm974
        %vm1007 = vmor %vm815, %vm975
        %vm1008 = vmor %vm816, %vm976
        %vm1009 = vmor %vm817, %vm977
        %vm1010 = vmor %vm818, %vm978
        %vm1011 = vmor %vm819, %vm979
        %vm1012 = vmor %vm820, %vm980
        %vm1013 = vmor %vm821, %vm981
        %vm1014 = vmor %vm822, %vm982
        %vm1015 = vmor %vm823, %vm983
        %vm1016 = vmor %vm824, %vm984
        %vm1017 = vmor %vm825, %vm985
        %vm1018 = vmor %vm826, %vm986
        %vm1019 = vmor %vm827, %vm987
        %vm1020 = vmor %vm828, %vm988
        %vm1021 = vmor %vm829, %vm989
        %vm1022 = vmor %vm830, %vm990
        %vm1023 = vmor %vm831, %vm991
        %vm1024 = vmor %vm832, %vm992
        %vm1025 = vmor %vm833, %vm993
        %vm1026 = vmor %vm834, %vm994
        %vm1027 = vmor %vm835, %vm995
        %vm1028 = vmor %vm836, %vm996
        %vm1029 = vmor %vm837, %vm997
        %vm1030 = vmor %vm838, %vm998
        %vm1031 = vmor %vm839, %vm999
        %vm1032 = vmor %vm840, %vm1000
        %v1033 = vadd.s32 %v295, 20
        %v1034 = vadd.s32 %v296, 20
        %v1035 = vadd.s32 %v297, 20
        %v1036 = vadd.s32 %v298, 20
        %v1037 = vadd.s32 %v299, 20
        %v1038 = vadd.s32 %v300, 20
        %v1039 = vadd.s32 %v301, 20
        %v1040 = vadd.s32 %v302, 20
        %v1041 = vadd.s32 %v303, 20
        %v1042 = vadd.s32 %v304, 20
        %v1043 = vadd.s32 %v305, 20
        %v1044 = vadd.s32 %v306, 20
        %v1045 = vadd.s32 %v307, 20
        %v1046 = vadd.s32 %v308, 20
        %v1047 = vadd.s32 %v309, 20
        %v1048 = vadd.s32 %v310, 20
        %v1049 = vadd.s32 %v311, 20
        %v1050 = vadd.s32 %v312, 20
        %v1051 = vadd.s32 %v313, 20
        %v1052 = vadd.s32 %v314, 20
        %v1053 = vadd.s32 %v315, 20
        %v1054 = vadd.s32 %v316, 20
        %v1055 = vadd.s32 %v317, 20
        %v1056 = vadd.s32 %v318, 20
        %v1057 = vadd.s32 %v319, 20
        %v1058 = vadd.s32 %v320, 20
        %v1059 = vadd.s32 %v321, 20
        %v1060 = vadd.s32 %v322, 20
        %v1061 = vadd.s32 %v323, 20
        %v1062 = vadd.s32 %v324, 20
        %v1063 = vadd.s32 %v325, 20
        %v1064 = vadd.s32 %v326, 20
        %1065 = vset.pattern.permute.xlu0 4
        %1066 = vperm.xlu0 %1065, %v1033
        %v1067 = vpop.permute.xlu0 %1066
        %1068 = vset.pattern.permute.xlu0 4
        %1069 = vperm.xlu0 %1068, %v1034
        %v1070 = vpop.permute.xlu0 %1069
        %1071 = vset.pattern.permute.xlu0 4
        %1072 = vperm.xlu0 %1071, %v1035
        %v1073 = vpop.permute.xlu0 %1072
        %1074 = vset.pattern.permute.xlu0 4
        %1075 = vperm.xlu0 %1074, %v1036
        %v1076 = vpop.permute.xlu0 %1075
        %1077 = vset.pattern.permute.xlu0 4
        %1078 = vperm.xlu0 %1077, %v1037
        %v1079 = vpop.permute.xlu0 %1078
        %1080 = vset.pattern.permute.xlu0 4
        %1081 = vperm.xlu0 %1080, %v1038
        %v1082 = vpop.permute.xlu0 %1081
        %1083 = vset.pattern.permute.xlu0 4
        %1084 = vperm.xlu0 %1083, %v1039
        %v1085 = vpop.permute.xlu0 %1084
        %1086 = vset.pattern.permute.xlu0 4
        %1087 = vperm.xlu0 %1086, %v1040
        %v1088 = vpop.permute.xlu0 %1087
        %1089 = vset.pattern.permute.xlu0 4
        %1090 = vperm.xlu0 %1089, %v1041
        %v1091 = vpop.permute.xlu0 %1090
        %1092 = vset.pattern.permute.xlu0 4
        %1093 = vperm.xlu0 %1092, %v1042
        %v1094 = vpop.permute.xlu0 %1093
        %1095 = vset.pattern.permute.xlu0 4
        %1096 = vperm.xlu0 %1095, %v1043
        %v1097 = vpop.permute.xlu0 %1096
        %1098 = vset.pattern.permute.xlu0 4
        %1099 = vperm.xlu0 %1098, %v1044
        %v1100 = vpop.permute.xlu0 %1099
        %1101 = vset.pattern.permute.xlu0 4
        %1102 = vperm.xlu0 %1101, %v1045
        %v1103 = vpop.permute.xlu0 %1102
        %1104 = vset.pattern.permute.xlu0 4
        %1105 = vperm.xlu0 %1104, %v1046
        %v1106 = vpop.permute.xlu0 %1105
        %1107 = vset.pattern.permute.xlu0 4
        %1108 = vperm.xlu0 %1107, %v1047
        %v1109 = vpop.permute.xlu0 %1108
        %1110 = vset.pattern.permute.xlu0 4
        %1111 = vperm.xlu0 %1110, %v1048
        %v1112 = vpop.permute.xlu0 %1111
        %1113 = vset.pattern.permute.xlu0 4
        %1114 = vperm.xlu0 %1113, %v1049
        %v1115 = vpop.permute.xlu0 %1114
        %1116 = vset.pattern.permute.xlu0 4
        %1117 = vperm.xlu0 %1116, %v1050
        %v1118 = vpop.permute.xlu0 %1117
        %1119 = vset.pattern.permute.xlu0 4
        %1120 = vperm.xlu0 %1119, %v1051
        %v1121 = vpop.permute.xlu0 %1120
        %1122 = vset.pattern.permute.xlu0 4
        %1123 = vperm.xlu0 %1122, %v1052
        %v1124 = vpop.permute.xlu0 %1123
        %1125 = vset.pattern.permute.xlu0 4
        %1126 = vperm.xlu0 %1125, %v1053
        %v1127 = vpop.permute.xlu0 %1126
        %1128 = vset.pattern.permute.xlu0 4
        %1129 = vperm.xlu0 %1128, %v1054
        %v1130 = vpop.permute.xlu0 %1129
        %1131 = vset.pattern.permute.xlu0 4
        %1132 = vperm.xlu0 %1131, %v1055
        %v1133 = vpop.permute.xlu0 %1132
        %1134 = vset.pattern.permute.xlu0 4
        %1135 = vperm.xlu0 %1134, %v1056
        %v1136 = vpop.permute.xlu0 %1135
        %1137 = vset.pattern.permute.xlu0 4
        %1138 = vperm.xlu0 %1137, %v1057
        %v1139 = vpop.permute.xlu0 %1138
        %1140 = vset.pattern.permute.xlu0 4
        %1141 = vperm.xlu0 %1140, %v1058
        %v1142 = vpop.permute.xlu0 %1141
        %1143 = vset.pattern.permute.xlu0 4
        %1144 = vperm.xlu0 %1143, %v1059
        %v1145 = vpop.permute.xlu0 %1144
        %1146 = vset.pattern.permute.xlu0 4
        %1147 = vperm.xlu0 %1146, %v1060
        %v1148 = vpop.permute.xlu0 %1147
        %1149 = vset.pattern.permute.xlu0 4
        %1150 = vperm.xlu0 %1149, %v1061
        %v1151 = vpop.permute.xlu0 %1150
        %1152 = vset.pattern.permute.xlu0 4
        %1153 = vperm.xlu0 %1152, %v1062
        %v1154 = vpop.permute.xlu0 %1153
        %1155 = vset.pattern.permute.xlu0 4
        %1156 = vperm.xlu0 %1155, %v1063
        %v1157 = vpop.permute.xlu0 %1156
        %1158 = vset.pattern.permute.xlu0 4
        %1159 = vperm.xlu0 %1158, %v1064
        %v1160 = vpop.permute.xlu0 %1159
        %vm1161 = vcmp.eq.s32.totalorder %v328, %v1067
        %vm1162 = vcmp.eq.s32.totalorder %v328, %v1070
        %vm1163 = vcmp.eq.s32.totalorder %v328, %v1073
        %vm1164 = vcmp.eq.s32.totalorder %v328, %v1076
        %vm1165 = vcmp.eq.s32.totalorder %v328, %v1079
        %vm1166 = vcmp.eq.s32.totalorder %v328, %v1082
        %vm1167 = vcmp.eq.s32.totalorder %v328, %v1085
        %vm1168 = vcmp.eq.s32.totalorder %v328, %v1088
        %vm1169 = vcmp.eq.s32.totalorder %v328, %v1091
        %vm1170 = vcmp.eq.s32.totalorder %v328, %v1094
        %vm1171 = vcmp.eq.s32.totalorder %v328, %v1097
        %vm1172 = vcmp.eq.s32.totalorder %v328, %v1100
        %vm1173 = vcmp.eq.s32.totalorder %v328, %v1103
        %vm1174 = vcmp.eq.s32.totalorder %v328, %v1106
        %vm1175 = vcmp.eq.s32.totalorder %v328, %v1109
        %vm1176 = vcmp.eq.s32.totalorder %v328, %v1112
        %vm1177 = vcmp.eq.s32.totalorder %v328, %v1115
        %vm1178 = vcmp.eq.s32.totalorder %v328, %v1118
        %vm1179 = vcmp.eq.s32.totalorder %v328, %v1121
        %vm1180 = vcmp.eq.s32.totalorder %v328, %v1124
        %vm1181 = vcmp.eq.s32.totalorder %v328, %v1127
        %vm1182 = vcmp.eq.s32.totalorder %v328, %v1130
        %vm1183 = vcmp.eq.s32.totalorder %v328, %v1133
        %vm1184 = vcmp.eq.s32.totalorder %v328, %v1136
        %vm1185 = vcmp.eq.s32.totalorder %v328, %v1139
        %vm1186 = vcmp.eq.s32.totalorder %v328, %v1142
        %vm1187 = vcmp.eq.s32.totalorder %v328, %v1145
        %vm1188 = vcmp.eq.s32.totalorder %v328, %v1148
        %vm1189 = vcmp.eq.s32.totalorder %v328, %v1151
        %vm1190 = vcmp.eq.s32.totalorder %v328, %v1154
        %vm1191 = vcmp.eq.s32.totalorder %v328, %v1157
        %vm1192 = vcmp.eq.s32.totalorder %v328, %v1160
        %vm1193 = vmor %vm1001, %vm1161
        %vm1194 = vmor %vm1002, %vm1162
        %vm1195 = vmor %vm1003, %vm1163
        %vm1196 = vmor %vm1004, %vm1164
        %vm1197 = vmor %vm1005, %vm1165
        %vm1198 = vmor %vm1006, %vm1166
        %vm1199 = vmor %vm1007, %vm1167
        %vm1200 = vmor %vm1008, %vm1168
        %vm1201 = vmor %vm1009, %vm1169
        %vm1202 = vmor %vm1010, %vm1170
        %vm1203 = vmor %vm1011, %vm1171
        %vm1204 = vmor %vm1012, %vm1172
        %vm1205 = vmor %vm1013, %vm1173
        %vm1206 = vmor %vm1014, %vm1174
        %vm1207 = vmor %vm1015, %vm1175
        %vm1208 = vmor %vm1016, %vm1176
        %vm1209 = vmor %vm1017, %vm1177
        %vm1210 = vmor %vm1018, %vm1178
        %vm1211 = vmor %vm1019, %vm1179
        %vm1212 = vmor %vm1020, %vm1180
        %vm1213 = vmor %vm1021, %vm1181
        %vm1214 = vmor %vm1022, %vm1182
        %vm1215 = vmor %vm1023, %vm1183
        %vm1216 = vmor %vm1024, %vm1184
        %vm1217 = vmor %vm1025, %vm1185
        %vm1218 = vmor %vm1026, %vm1186
        %vm1219 = vmor %vm1027, %vm1187
        %vm1220 = vmor %vm1028, %vm1188
        %vm1221 = vmor %vm1029, %vm1189
        %vm1222 = vmor %vm1030, %vm1190
        %vm1223 = vmor %vm1031, %vm1191
        %vm1224 = vmor %vm1032, %vm1192
        %v1225 = vadd.s32 %v295, 25
        %v1226 = vadd.s32 %v296, 25
        %v1227 = vadd.s32 %v297, 25
        %v1228 = vadd.s32 %v298, 25
        %v1229 = vadd.s32 %v299, 25
        %v1230 = vadd.s32 %v300, 25
        %v1231 = vadd.s32 %v301, 25
        %v1232 = vadd.s32 %v302, 25
        %v1233 = vadd.s32 %v303, 25
        %v1234 = vadd.s32 %v304, 25
        %v1235 = vadd.s32 %v305, 25
        %v1236 = vadd.s32 %v306, 25
        %v1237 = vadd.s32 %v307, 25
        %v1238 = vadd.s32 %v308, 25
        %v1239 = vadd.s32 %v309, 25
        %v1240 = vadd.s32 %v310, 25
        %v1241 = vadd.s32 %v311, 25
        %v1242 = vadd.s32 %v312, 25
        %v1243 = vadd.s32 %v313, 25
        %v1244 = vadd.s32 %v314, 25
        %v1245 = vadd.s32 %v315, 25
        %v1246 = vadd.s32 %v316, 25
        %v1247 = vadd.s32 %v317, 25
        %v1248 = vadd.s32 %v318, 25
        %v1249 = vadd.s32 %v319, 25
        %v1250 = vadd.s32 %v320, 25
        %v1251 = vadd.s32 %v321, 25
        %v1252 = vadd.s32 %v322, 25
        %v1253 = vadd.s32 %v323, 25
        %v1254 = vadd.s32 %v324, 25
        %v1255 = vadd.s32 %v325, 25
        %v1256 = vadd.s32 %v326, 25
        %1257 = vset.pattern.permute.xlu0 5
        %1258 = vperm.xlu0 %1257, %v1225
        %v1259 = vpop.permute.xlu0 %1258
        %1260 = vset.pattern.permute.xlu0 5
        %1261 = vperm.xlu0 %1260, %v1226
        %v1262 = vpop.permute.xlu0 %1261
        %1263 = vset.pattern.permute.xlu0 5
        %1264 = vperm.xlu0 %1263, %v1227
        %v1265 = vpop.permute.xlu0 %1264
        %1266 = vset.pattern.permute.xlu0 5
        %1267 = vperm.xlu0 %1266, %v1228
        %v1268 = vpop.permute.xlu0 %1267
        %1269 = vset.pattern.permute.xlu0 5
        %1270 = vperm.xlu0 %1269, %v1229
        %v1271 = vpop.permute.xlu0 %1270
        %1272 = vset.pattern.permute.xlu0 5
        %1273 = vperm.xlu0 %1272, %v1230
        %v1274 = vpop.permute.xlu0 %1273
        %1275 = vset.pattern.permute.xlu0 5
        %1276 = vperm.xlu0 %1275, %v1231
        %v1277 = vpop.permute.xlu0 %1276
        %1278 = vset.pattern.permute.xlu0 5
        %1279 = vperm.xlu0 %1278, %v1232
        %v1280 = vpop.permute.xlu0 %1279
        %1281 = vset.pattern.permute.xlu0 5
        %1282 = vperm.xlu0 %1281, %v1233
        %v1283 = vpop.permute.xlu0 %1282
        %1284 = vset.pattern.permute.xlu0 5
        %1285 = vperm.xlu0 %1284, %v1234
        %v1286 = vpop.permute.xlu0 %1285
        %1287 = vset.pattern.permute.xlu0 5
        %1288 = vperm.xlu0 %1287, %v1235
        %v1289 = vpop.permute.xlu0 %1288
        %1290 = vset.pattern.permute.xlu0 5
        %1291 = vperm.xlu0 %1290, %v1236
        %v1292 = vpop.permute.xlu0 %1291
        %1293 = vset.pattern.permute.xlu0 5
        %1294 = vperm.xlu0 %1293, %v1237
        %v1295 = vpop.permute.xlu0 %1294
        %1296 = vset.pattern.permute.xlu0 5
        %1297 = vperm.xlu0 %1296, %v1238
        %v1298 = vpop.permute.xlu0 %1297
        %1299 = vset.pattern.permute.xlu0 5
        %1300 = vperm.xlu0 %1299, %v1239
        %v1301 = vpop.permute.xlu0 %1300
        %1302 = vset.pattern.permute.xlu0 5
        %1303 = vperm.xlu0 %1302, %v1240
        %v1304 = vpop.permute.xlu0 %1303
        %1305 = vset.pattern.permute.xlu0 5
        %1306 = vperm.xlu0 %1305, %v1241
        %v1307 = vpop.permute.xlu0 %1306
        %1308 = vset.pattern.permute.xlu0 5
        %1309 = vperm.xlu0 %1308, %v1242
        %v1310 = vpop.permute.xlu0 %1309
        %1311 = vset.pattern.permute.xlu0 5
        %1312 = vperm.xlu0 %1311, %v1243
        %v1313 = vpop.permute.xlu0 %1312
        %1314 = vset.pattern.permute.xlu0 5
        %1315 = vperm.xlu0 %1314, %v1244
        %v1316 = vpop.permute.xlu0 %1315
        %1317 = vset.pattern.permute.xlu0 5
        %1318 = vperm.xlu0 %1317, %v1245
        %v1319 = vpop.permute.xlu0 %1318
        %1320 = vset.pattern.permute.xlu0 5
        %1321 = vperm.xlu0 %1320, %v1246
        %v1322 = vpop.permute.xlu0 %1321
        %1323 = vset.pattern.permute.xlu0 5
        %1324 = vperm.xlu0 %1323, %v1247
        %v1325 = vpop.permute.xlu0 %1324
        %1326 = vset.pattern.permute.xlu0 5
        %1327 = vperm.xlu0 %1326, %v1248
        %v1328 = vpop.permute.xlu0 %1327
        %1329 = vset.pattern.permute.xlu0 5
        %1330 = vperm.xlu0 %1329, %v1249
        %v1331 = vpop.permute.xlu0 %1330
        %1332 = vset.pattern.permute.xlu0 5
        %1333 = vperm.xlu0 %1332, %v1250
        %v1334 = vpop.permute.xlu0 %1333
        %1335 = vset.pattern.permute.xlu0 5
        %1336 = vperm.xlu0 %1335, %v1251
        %v1337 = vpop.permute.xlu0 %1336
        %1338 = vset.pattern.permute.xlu0 5
        %1339 = vperm.xlu0 %1338, %v1252
        %v1340 = vpop.permute.xlu0 %1339
        %1341 = vset.pattern.permute.xlu0 5
        %1342 = vperm.xlu0 %1341, %v1253
        %v1343 = vpop.permute.xlu0 %1342
        %1344 = vset.pattern.permute.xlu0 5
        %1345 = vperm.xlu0 %1344, %v1254
        %v1346 = vpop.permute.xlu0 %1345
        %1347 = vset.pattern.permute.xlu0 5
        %1348 = vperm.xlu0 %1347, %v1255
        %v1349 = vpop.permute.xlu0 %1348
        %1350 = vset.pattern.permute.xlu0 5
        %1351 = vperm.xlu0 %1350, %v1256
        %v1352 = vpop.permute.xlu0 %1351
        %vm1353 = vcmp.eq.s32.totalorder %v328, %v1259
        %vm1354 = vcmp.eq.s32.totalorder %v328, %v1262
        %vm1355 = vcmp.eq.s32.totalorder %v328, %v1265
        %vm1356 = vcmp.eq.s32.totalorder %v328, %v1268
        %vm1357 = vcmp.eq.s32.totalorder %v328, %v1271
        %vm1358 = vcmp.eq.s32.totalorder %v328, %v1274
        %vm1359 = vcmp.eq.s32.totalorder %v328, %v1277
        %vm1360 = vcmp.eq.s32.totalorder %v328, %v1280
        %vm1361 = vcmp.eq.s32.totalorder %v328, %v1283
        %vm1362 = vcmp.eq.s32.totalorder %v328, %v1286
        %vm1363 = vcmp.eq.s32.totalorder %v328, %v1289
        %vm1364 = vcmp.eq.s32.totalorder %v328, %v1292
        %vm1365 = vcmp.eq.s32.totalorder %v328, %v1295
        %vm1366 = vcmp.eq.s32.totalorder %v328, %v1298
        %vm1367 = vcmp.eq.s32.totalorder %v328, %v1301
        %vm1368 = vcmp.eq.s32.totalorder %v328, %v1304
        %vm1369 = vcmp.eq.s32.totalorder %v328, %v1307
        %vm1370 = vcmp.eq.s32.totalorder %v328, %v1310
        %vm1371 = vcmp.eq.s32.totalorder %v328, %v1313
        %vm1372 = vcmp.eq.s32.totalorder %v328, %v1316
        %vm1373 = vcmp.eq.s32.totalorder %v328, %v1319
        %vm1374 = vcmp.eq.s32.totalorder %v328, %v1322
        %vm1375 = vcmp.eq.s32.totalorder %v328, %v1325
        %vm1376 = vcmp.eq.s32.totalorder %v328, %v1328
        %vm1377 = vcmp.eq.s32.totalorder %v328, %v1331
        %vm1378 = vcmp.eq.s32.totalorder %v328, %v1334
        %vm1379 = vcmp.eq.s32.totalorder %v328, %v1337
        %vm1380 = vcmp.eq.s32.totalorder %v328, %v1340
        %vm1381 = vcmp.eq.s32.totalorder %v328, %v1343
        %vm1382 = vcmp.eq.s32.totalorder %v328, %v1346
        %vm1383 = vcmp.eq.s32.totalorder %v328, %v1349
        %vm1384 = vcmp.eq.s32.totalorder %v328, %v1352
        %vm1385 = vmor %vm1193, %vm1353
        %vm1386 = vmor %vm1194, %vm1354
        %vm1387 = vmor %vm1195, %vm1355
        %vm1388 = vmor %vm1196, %vm1356
        %vm1389 = vmor %vm1197, %vm1357
        %vm1390 = vmor %vm1198, %vm1358
        %vm1391 = vmor %vm1199, %vm1359
        %vm1392 = vmor %vm1200, %vm1360
        %vm1393 = vmor %vm1201, %vm1361
        %vm1394 = vmor %vm1202, %vm1362
        %vm1395 = vmor %vm1203, %vm1363
        %vm1396 = vmor %vm1204, %vm1364
        %vm1397 = vmor %vm1205, %vm1365
        %vm1398 = vmor %vm1206, %vm1366
        %vm1399 = vmor %vm1207, %vm1367
        %vm1400 = vmor %vm1208, %vm1368
        %vm1401 = vmor %vm1209, %vm1369
        %vm1402 = vmor %vm1210, %vm1370
        %vm1403 = vmor %vm1211, %vm1371
        %vm1404 = vmor %vm1212, %vm1372
        %vm1405 = vmor %vm1213, %vm1373
        %vm1406 = vmor %vm1214, %vm1374
        %vm1407 = vmor %vm1215, %vm1375
        %vm1408 = vmor %vm1216, %vm1376
        %vm1409 = vmor %vm1217, %vm1377
        %vm1410 = vmor %vm1218, %vm1378
        %vm1411 = vmor %vm1219, %vm1379
        %vm1412 = vmor %vm1220, %vm1380
        %vm1413 = vmor %vm1221, %vm1381
        %vm1414 = vmor %vm1222, %vm1382
        %vm1415 = vmor %vm1223, %vm1383
        %vm1416 = vmor %vm1224, %vm1384
        %v1417 = vadd.s32 %v295, 30
        %v1418 = vadd.s32 %v296, 30
        %v1419 = vadd.s32 %v297, 30
        %v1420 = vadd.s32 %v298, 30
        %v1421 = vadd.s32 %v299, 30
        %v1422 = vadd.s32 %v300, 30
        %v1423 = vadd.s32 %v301, 30
        %v1424 = vadd.s32 %v302, 30
        %v1425 = vadd.s32 %v303, 30
        %v1426 = vadd.s32 %v304, 30
        %v1427 = vadd.s32 %v305, 30
        %v1428 = vadd.s32 %v306, 30
        %v1429 = vadd.s32 %v307, 30
        %v1430 = vadd.s32 %v308, 30
        %v1431 = vadd.s32 %v309, 30
        %v1432 = vadd.s32 %v310, 30
        %v1433 = vadd.s32 %v311, 30
        %v1434 = vadd.s32 %v312, 30
        %v1435 = vadd.s32 %v313, 30
        %v1436 = vadd.s32 %v314, 30
        %v1437 = vadd.s32 %v315, 30
        %v1438 = vadd.s32 %v316, 30
        %v1439 = vadd.s32 %v317, 30
        %v1440 = vadd.s32 %v318, 30
        %v1441 = vadd.s32 %v319, 30
        %v1442 = vadd.s32 %v320, 30
        %v1443 = vadd.s32 %v321, 30
        %v1444 = vadd.s32 %v322, 30
        %v1445 = vadd.s32 %v323, 30
        %v1446 = vadd.s32 %v324, 30
        %v1447 = vadd.s32 %v325, 30
        %v1448 = vadd.s32 %v326, 30
        %1449 = vset.pattern.permute.xlu0 6
        %1450 = vperm.xlu0 %1449, %v1417
        %v1451 = vpop.permute.xlu0 %1450
        %1452 = vset.pattern.permute.xlu0 6
        %1453 = vperm.xlu0 %1452, %v1418
        %v1454 = vpop.permute.xlu0 %1453
        %1455 = vset.pattern.permute.xlu0 6
        %1456 = vperm.xlu0 %1455, %v1419
        %v1457 = vpop.permute.xlu0 %1456
        %1458 = vset.pattern.permute.xlu0 6
        %1459 = vperm.xlu0 %1458, %v1420
        %v1460 = vpop.permute.xlu0 %1459
        %1461 = vset.pattern.permute.xlu0 6
        %1462 = vperm.xlu0 %1461, %v1421
        %v1463 = vpop.permute.xlu0 %1462
        %1464 = vset.pattern.permute.xlu0 6
        %1465 = vperm.xlu0 %1464, %v1422
        %v1466 = vpop.permute.xlu0 %1465
        %1467 = vset.pattern.permute.xlu0 6
        %1468 = vperm.xlu0 %1467, %v1423
        %v1469 = vpop.permute.xlu0 %1468
        %1470 = vset.pattern.permute.xlu0 6
        %1471 = vperm.xlu0 %1470, %v1424
        %v1472 = vpop.permute.xlu0 %1471
        %1473 = vset.pattern.permute.xlu0 6
        %1474 = vperm.xlu0 %1473, %v1425
        %v1475 = vpop.permute.xlu0 %1474
        %1476 = vset.pattern.permute.xlu0 6
        %1477 = vperm.xlu0 %1476, %v1426
        %v1478 = vpop.permute.xlu0 %1477
        %1479 = vset.pattern.permute.xlu0 6
        %1480 = vperm.xlu0 %1479, %v1427
        %v1481 = vpop.permute.xlu0 %1480
        %1482 = vset.pattern.permute.xlu0 6
        %1483 = vperm.xlu0 %1482, %v1428
        %v1484 = vpop.permute.xlu0 %1483
        %1485 = vset.pattern.permute.xlu0 6
        %1486 = vperm.xlu0 %1485, %v1429
        %v1487 = vpop.permute.xlu0 %1486
        %1488 = vset.pattern.permute.xlu0 6
        %1489 = vperm.xlu0 %1488, %v1430
        %v1490 = vpop.permute.xlu0 %1489
        %1491 = vset.pattern.permute.xlu0 6
        %1492 = vperm.xlu0 %1491, %v1431
        %v1493 = vpop.permute.xlu0 %1492
        %1494 = vset.pattern.permute.xlu0 6
        %1495 = vperm.xlu0 %1494, %v1432
        %v1496 = vpop.permute.xlu0 %1495
        %1497 = vset.pattern.permute.xlu0 6
        %1498 = vperm.xlu0 %1497, %v1433
        %v1499 = vpop.permute.xlu0 %1498
        %1500 = vset.pattern.permute.xlu0 6
        %1501 = vperm.xlu0 %1500, %v1434
        %v1502 = vpop.permute.xlu0 %1501
        %1503 = vset.pattern.permute.xlu0 6
        %1504 = vperm.xlu0 %1503, %v1435
        %v1505 = vpop.permute.xlu0 %1504
        %1506 = vset.pattern.permute.xlu0 6
        %1507 = vperm.xlu0 %1506, %v1436
        %v1508 = vpop.permute.xlu0 %1507
        %1509 = vset.pattern.permute.xlu0 6
        %1510 = vperm.xlu0 %1509, %v1437
        %v1511 = vpop.permute.xlu0 %1510
        %1512 = vset.pattern.permute.xlu0 6
        %1513 = vperm.xlu0 %1512, %v1438
        %v1514 = vpop.permute.xlu0 %1513
        %1515 = vset.pattern.permute.xlu0 6
        %1516 = vperm.xlu0 %1515, %v1439
        %v1517 = vpop.permute.xlu0 %1516
        %1518 = vset.pattern.permute.xlu0 6
        %1519 = vperm.xlu0 %1518, %v1440
        %v1520 = vpop.permute.xlu0 %1519
        %1521 = vset.pattern.permute.xlu0 6
        %1522 = vperm.xlu0 %1521, %v1441
        %v1523 = vpop.permute.xlu0 %1522
        %1524 = vset.pattern.permute.xlu0 6
        %1525 = vperm.xlu0 %1524, %v1442
        %v1526 = vpop.permute.xlu0 %1525
        %1527 = vset.pattern.permute.xlu0 6
        %1528 = vperm.xlu0 %1527, %v1443
        %v1529 = vpop.permute.xlu0 %1528
        %1530 = vset.pattern.permute.xlu0 6
        %1531 = vperm.xlu0 %1530, %v1444
        %v1532 = vpop.permute.xlu0 %1531
        %1533 = vset.pattern.permute.xlu0 6
        %1534 = vperm.xlu0 %1533, %v1445
        %v1535 = vpop.permute.xlu0 %1534
        %1536 = vset.pattern.permute.xlu0 6
        %1537 = vperm.xlu0 %1536, %v1446
        %v1538 = vpop.permute.xlu0 %1537
        %1539 = vset.pattern.permute.xlu0 6
        %1540 = vperm.xlu0 %1539, %v1447
        %v1541 = vpop.permute.xlu0 %1540
        %1542 = vset.pattern.permute.xlu0 6
        %1543 = vperm.xlu0 %1542, %v1448
        %v1544 = vpop.permute.xlu0 %1543
        %vm1545 = vcmp.eq.s32.totalorder %v328, %v1451
        %vm1546 = vcmp.eq.s32.totalorder %v328, %v1454
        %vm1547 = vcmp.eq.s32.totalorder %v328, %v1457
        %vm1548 = vcmp.eq.s32.totalorder %v328, %v1460
        %vm1549 = vcmp.eq.s32.totalorder %v328, %v1463
        %vm1550 = vcmp.eq.s32.totalorder %v328, %v1466
        %vm1551 = vcmp.eq.s32.totalorder %v328, %v1469
        %vm1552 = vcmp.eq.s32.totalorder %v328, %v1472
        %vm1553 = vcmp.eq.s32.totalorder %v328, %v1475
        %vm1554 = vcmp.eq.s32.totalorder %v328, %v1478
        %vm1555 = vcmp.eq.s32.totalorder %v328, %v1481
        %vm1556 = vcmp.eq.s32.totalorder %v328, %v1484
        %vm1557 = vcmp.eq.s32.totalorder %v328, %v1487
        %vm1558 = vcmp.eq.s32.totalorder %v328, %v1490
        %vm1559 = vcmp.eq.s32.totalorder %v328, %v1493
        %vm1560 = vcmp.eq.s32.totalorder %v328, %v1496
        %vm1561 = vcmp.eq.s32.totalorder %v328, %v1499
        %vm1562 = vcmp.eq.s32.totalorder %v328, %v1502
        %vm1563 = vcmp.eq.s32.totalorder %v328, %v1505
        %vm1564 = vcmp.eq.s32.totalorder %v328, %v1508
        %vm1565 = vcmp.eq.s32.totalorder %v328, %v1511
        %vm1566 = vcmp.eq.s32.totalorder %v328, %v1514
        %vm1567 = vcmp.eq.s32.totalorder %v328, %v1517
        %vm1568 = vcmp.eq.s32.totalorder %v328, %v1520
        %vm1569 = vcmp.eq.s32.totalorder %v328, %v1523
        %vm1570 = vcmp.eq.s32.totalorder %v328, %v1526
        %vm1571 = vcmp.eq.s32.totalorder %v328, %v1529
        %vm1572 = vcmp.eq.s32.totalorder %v328, %v1532
        %vm1573 = vcmp.eq.s32.totalorder %v328, %v1535
        %vm1574 = vcmp.eq.s32.totalorder %v328, %v1538
        %vm1575 = vcmp.eq.s32.totalorder %v328, %v1541
        %vm1576 = vcmp.eq.s32.totalorder %v328, %v1544
        %vm1577 = vmor %vm1385, %vm1545
        %vm1578 = vmor %vm1386, %vm1546
        %vm1579 = vmor %vm1387, %vm1547
        %vm1580 = vmor %vm1388, %vm1548
        %vm1581 = vmor %vm1389, %vm1549
        %vm1582 = vmor %vm1390, %vm1550
        %vm1583 = vmor %vm1391, %vm1551
        %vm1584 = vmor %vm1392, %vm1552
        %vm1585 = vmor %vm1393, %vm1553
        %vm1586 = vmor %vm1394, %vm1554
        %vm1587 = vmor %vm1395, %vm1555
        %vm1588 = vmor %vm1396, %vm1556
        %vm1589 = vmor %vm1397, %vm1557
        %vm1590 = vmor %vm1398, %vm1558
        %vm1591 = vmor %vm1399, %vm1559
        %vm1592 = vmor %vm1400, %vm1560
        %vm1593 = vmor %vm1401, %vm1561
        %vm1594 = vmor %vm1402, %vm1562
        %vm1595 = vmor %vm1403, %vm1563
        %vm1596 = vmor %vm1404, %vm1564
        %vm1597 = vmor %vm1405, %vm1565
        %vm1598 = vmor %vm1406, %vm1566
        %vm1599 = vmor %vm1407, %vm1567
        %vm1600 = vmor %vm1408, %vm1568
        %vm1601 = vmor %vm1409, %vm1569
        %vm1602 = vmor %vm1410, %vm1570
        %vm1603 = vmor %vm1411, %vm1571
        %vm1604 = vmor %vm1412, %vm1572
        %vm1605 = vmor %vm1413, %vm1573
        %vm1606 = vmor %vm1414, %vm1574
        %vm1607 = vmor %vm1415, %vm1575
        %vm1608 = vmor %vm1416, %vm1576
        %v1609 = vadd.s32 %v295, 35
        %v1610 = vadd.s32 %v296, 35
        %v1611 = vadd.s32 %v297, 35
        %v1612 = vadd.s32 %v298, 35
        %v1613 = vadd.s32 %v299, 35
        %v1614 = vadd.s32 %v300, 35
        %v1615 = vadd.s32 %v301, 35
        %v1616 = vadd.s32 %v302, 35
        %v1617 = vadd.s32 %v303, 35
        %v1618 = vadd.s32 %v304, 35
        %v1619 = vadd.s32 %v305, 35
        %v1620 = vadd.s32 %v306, 35
        %v1621 = vadd.s32 %v307, 35
        %v1622 = vadd.s32 %v308, 35
        %v1623 = vadd.s32 %v309, 35
        %v1624 = vadd.s32 %v310, 35
        %v1625 = vadd.s32 %v311, 35
        %v1626 = vadd.s32 %v312, 35
        %v1627 = vadd.s32 %v313, 35
        %v1628 = vadd.s32 %v314, 35
        %v1629 = vadd.s32 %v315, 35
        %v1630 = vadd.s32 %v316, 35
        %v1631 = vadd.s32 %v317, 35
        %v1632 = vadd.s32 %v318, 35
        %v1633 = vadd.s32 %v319, 35
        %v1634 = vadd.s32 %v320, 35
        %v1635 = vadd.s32 %v321, 35
        %v1636 = vadd.s32 %v322, 35
        %v1637 = vadd.s32 %v323, 35
        %v1638 = vadd.s32 %v324, 35
        %v1639 = vadd.s32 %v325, 35
        %v1640 = vadd.s32 %v326, 35
        %1641 = vset.pattern.permute.xlu0 7
        %1642 = vperm.xlu0 %1641, %v1609
        %v1643 = vpop.permute.xlu0 %1642
        %1644 = vset.pattern.permute.xlu0 7
        %1645 = vperm.xlu0 %1644, %v1610
        %v1646 = vpop.permute.xlu0 %1645
        %1647 = vset.pattern.permute.xlu0 7
        %1648 = vperm.xlu0 %1647, %v1611
        %v1649 = vpop.permute.xlu0 %1648
        %1650 = vset.pattern.permute.xlu0 7
        %1651 = vperm.xlu0 %1650, %v1612
        %v1652 = vpop.permute.xlu0 %1651
        %1653 = vset.pattern.permute.xlu0 7
        %1654 = vperm.xlu0 %1653, %v1613
        %v1655 = vpop.permute.xlu0 %1654
        %1656 = vset.pattern.permute.xlu0 7
        %1657 = vperm.xlu0 %1656, %v1614
        %v1658 = vpop.permute.xlu0 %1657
        %1659 = vset.pattern.permute.xlu0 7
        %1660 = vperm.xlu0 %1659, %v1615
        %v1661 = vpop.permute.xlu0 %1660
        %1662 = vset.pattern.permute.xlu0 7
        %1663 = vperm.xlu0 %1662, %v1616
        %v1664 = vpop.permute.xlu0 %1663
        %1665 = vset.pattern.permute.xlu0 7
        %1666 = vperm.xlu0 %1665, %v1617
        %v1667 = vpop.permute.xlu0 %1666
        %1668 = vset.pattern.permute.xlu0 7
        %1669 = vperm.xlu0 %1668, %v1618
        %v1670 = vpop.permute.xlu0 %1669
        %1671 = vset.pattern.permute.xlu0 7
        %1672 = vperm.xlu0 %1671, %v1619
        %v1673 = vpop.permute.xlu0 %1672
        %1674 = vset.pattern.permute.xlu0 7
        %1675 = vperm.xlu0 %1674, %v1620
        %v1676 = vpop.permute.xlu0 %1675
        %1677 = vset.pattern.permute.xlu0 7
        %1678 = vperm.xlu0 %1677, %v1621
        %v1679 = vpop.permute.xlu0 %1678
        %1680 = vset.pattern.permute.xlu0 7
        %1681 = vperm.xlu0 %1680, %v1622
        %v1682 = vpop.permute.xlu0 %1681
        %1683 = vset.pattern.permute.xlu0 7
        %1684 = vperm.xlu0 %1683, %v1623
        %v1685 = vpop.permute.xlu0 %1684
        %1686 = vset.pattern.permute.xlu0 7
        %1687 = vperm.xlu0 %1686, %v1624
        %v1688 = vpop.permute.xlu0 %1687
        %1689 = vset.pattern.permute.xlu0 7
        %1690 = vperm.xlu0 %1689, %v1625
        %v1691 = vpop.permute.xlu0 %1690
        %1692 = vset.pattern.permute.xlu0 7
        %1693 = vperm.xlu0 %1692, %v1626
        %v1694 = vpop.permute.xlu0 %1693
        %1695 = vset.pattern.permute.xlu0 7
        %1696 = vperm.xlu0 %1695, %v1627
        %v1697 = vpop.permute.xlu0 %1696
        %1698 = vset.pattern.permute.xlu0 7
        %1699 = vperm.xlu0 %1698, %v1628
        %v1700 = vpop.permute.xlu0 %1699
        %1701 = vset.pattern.permute.xlu0 7
        %1702 = vperm.xlu0 %1701, %v1629
        %v1703 = vpop.permute.xlu0 %1702
        %1704 = vset.pattern.permute.xlu0 7
        %1705 = vperm.xlu0 %1704, %v1630
        %v1706 = vpop.permute.xlu0 %1705
        %1707 = vset.pattern.permute.xlu0 7
        %1708 = vperm.xlu0 %1707, %v1631
        %v1709 = vpop.permute.xlu0 %1708
        %1710 = vset.pattern.permute.xlu0 7
        %1711 = vperm.xlu0 %1710, %v1632
        %v1712 = vpop.permute.xlu0 %1711
        %1713 = vset.pattern.permute.xlu0 7
        %1714 = vperm.xlu0 %1713, %v1633
        %v1715 = vpop.permute.xlu0 %1714
        %1716 = vset.pattern.permute.xlu0 7
        %1717 = vperm.xlu0 %1716, %v1634
        %v1718 = vpop.permute.xlu0 %1717
        %1719 = vset.pattern.permute.xlu0 7
        %1720 = vperm.xlu0 %1719, %v1635
        %v1721 = vpop.permute.xlu0 %1720
        %1722 = vset.pattern.permute.xlu0 7
        %1723 = vperm.xlu0 %1722, %v1636
        %v1724 = vpop.permute.xlu0 %1723
        %1725 = vset.pattern.permute.xlu0 7
        %1726 = vperm.xlu0 %1725, %v1637
        %v1727 = vpop.permute.xlu0 %1726
        %1728 = vset.pattern.permute.xlu0 7
        %1729 = vperm.xlu0 %1728, %v1638
        %v1730 = vpop.permute.xlu0 %1729
        %1731 = vset.pattern.permute.xlu0 7
        %1732 = vperm.xlu0 %1731, %v1639
        %v1733 = vpop.permute.xlu0 %1732
        %1734 = vset.pattern.permute.xlu0 7
        %1735 = vperm.xlu0 %1734, %v1640
        %v1736 = vpop.permute.xlu0 %1735
        %vm1737 = vcmp.eq.s32.totalorder %v328, %v1643
        %vm1738 = vcmp.eq.s32.totalorder %v328, %v1646
        %vm1739 = vcmp.eq.s32.totalorder %v328, %v1649
        %vm1740 = vcmp.eq.s32.totalorder %v328, %v1652
        %vm1741 = vcmp.eq.s32.totalorder %v328, %v1655
        %vm1742 = vcmp.eq.s32.totalorder %v328, %v1658
        %vm1743 = vcmp.eq.s32.totalorder %v328, %v1661
        %vm1744 = vcmp.eq.s32.totalorder %v328, %v1664
        %vm1745 = vcmp.eq.s32.totalorder %v328, %v1667
        %vm1746 = vcmp.eq.s32.totalorder %v328, %v1670
        %vm1747 = vcmp.eq.s32.totalorder %v328, %v1673
        %vm1748 = vcmp.eq.s32.totalorder %v328, %v1676
        %vm1749 = vcmp.eq.s32.totalorder %v328, %v1679
        %vm1750 = vcmp.eq.s32.totalorder %v328, %v1682
        %vm1751 = vcmp.eq.s32.totalorder %v328, %v1685
        %vm1752 = vcmp.eq.s32.totalorder %v328, %v1688
        %vm1753 = vcmp.eq.s32.totalorder %v328, %v1691
        %vm1754 = vcmp.eq.s32.totalorder %v328, %v1694
        %vm1755 = vcmp.eq.s32.totalorder %v328, %v1697
        %vm1756 = vcmp.eq.s32.totalorder %v328, %v1700
        %vm1757 = vcmp.eq.s32.totalorder %v328, %v1703
        %vm1758 = vcmp.eq.s32.totalorder %v328, %v1706
        %vm1759 = vcmp.eq.s32.totalorder %v328, %v1709
        %vm1760 = vcmp.eq.s32.totalorder %v328, %v1712
        %vm1761 = vcmp.eq.s32.totalorder %v328, %v1715
        %vm1762 = vcmp.eq.s32.totalorder %v328, %v1718
        %vm1763 = vcmp.eq.s32.totalorder %v328, %v1721
        %vm1764 = vcmp.eq.s32.totalorder %v328, %v1724
        %vm1765 = vcmp.eq.s32.totalorder %v328, %v1727
        %vm1766 = vcmp.eq.s32.totalorder %v328, %v1730
        %vm1767 = vcmp.eq.s32.totalorder %v328, %v1733
        %vm1768 = vcmp.eq.s32.totalorder %v328, %v1736
        %vm1769 = vmor %vm1577, %vm1737
        %vm1770 = vmor %vm1578, %vm1738
        %vm1771 = vmor %vm1579, %vm1739
        %vm1772 = vmor %vm1580, %vm1740
        %vm1773 = vmor %vm1581, %vm1741
        %vm1774 = vmor %vm1582, %vm1742
        %vm1775 = vmor %vm1583, %vm1743
        %vm1776 = vmor %vm1584, %vm1744
        %vm1777 = vmor %vm1585, %vm1745
        %vm1778 = vmor %vm1586, %vm1746
        %vm1779 = vmor %vm1587, %vm1747
        %vm1780 = vmor %vm1588, %vm1748
        %vm1781 = vmor %vm1589, %vm1749
        %vm1782 = vmor %vm1590, %vm1750
        %vm1783 = vmor %vm1591, %vm1751
        %vm1784 = vmor %vm1592, %vm1752
        %vm1785 = vmor %vm1593, %vm1753
        %vm1786 = vmor %vm1594, %vm1754
        %vm1787 = vmor %vm1595, %vm1755
        %vm1788 = vmor %vm1596, %vm1756
        %vm1789 = vmor %vm1597, %vm1757
        %vm1790 = vmor %vm1598, %vm1758
        %vm1791 = vmor %vm1599, %vm1759
        %vm1792 = vmor %vm1600, %vm1760
        %vm1793 = vmor %vm1601, %vm1761
        %vm1794 = vmor %vm1602, %vm1762
        %vm1795 = vmor %vm1603, %vm1763
        %vm1796 = vmor %vm1604, %vm1764
        %vm1797 = vmor %vm1605, %vm1765
        %vm1798 = vmor %vm1606, %vm1766
        %vm1799 = vmor %vm1607, %vm1767
        %vm1800 = vmor %vm1608, %vm1768
        %v1801 = vsel %vm1769, 1, 0
        %v1802 = vsel %vm1770, 1, 0
        %v1803 = vsel %vm1771, 1, 0
        %v1804 = vsel %vm1772, 1, 0
        %v1805 = vsel %vm1773, 1, 0
        %v1806 = vsel %vm1774, 1, 0
        %v1807 = vsel %vm1775, 1, 0
        %v1808 = vsel %vm1776, 1, 0
        %v1809 = vsel %vm1777, 1, 0
        %v1810 = vsel %vm1778, 1, 0
        %v1811 = vsel %vm1779, 1, 0
        %v1812 = vsel %vm1780, 1, 0
        %v1813 = vsel %vm1781, 1, 0
        %v1814 = vsel %vm1782, 1, 0
        %v1815 = vsel %vm1783, 1, 0
        %v1816 = vsel %vm1784, 1, 0
        %v1817 = vsel %vm1785, 1, 0
        %v1818 = vsel %vm1786, 1, 0
        %v1819 = vsel %vm1787, 1, 0
        %v1820 = vsel %vm1788, 1, 0
        %v1821 = vsel %vm1789, 1, 0
        %v1822 = vsel %vm1790, 1, 0
        %v1823 = vsel %vm1791, 1, 0
        %v1824 = vsel %vm1792, 1, 0
        %v1825 = vsel %vm1793, 1, 0
        %v1826 = vsel %vm1794, 1, 0
        %v1827 = vsel %vm1795, 1, 0
        %v1828 = vsel %vm1796, 1, 0
        %v1829 = vsel %vm1797, 1, 0
        %v1830 = vsel %vm1798, 1, 0
        %v1831 = vsel %vm1799, 1, 0
        %v1832 = vsel %vm1800, 1, 0
        %v1833 = vcvt.s32.f32 %v1801
        %v1834 = vcvt.s32.f32 %v1802
        %v1835 = vcvt.s32.f32 %v1803
        %v1836 = vcvt.s32.f32 %v1804
        %v1837 = vcvt.s32.f32 %v1805
        %v1838 = vcvt.s32.f32 %v1806
        %v1839 = vcvt.s32.f32 %v1807
        %v1840 = vcvt.s32.f32 %v1808
        %v1841 = vcvt.s32.f32 %v1809
        %v1842 = vcvt.s32.f32 %v1810
        %v1843 = vcvt.s32.f32 %v1811
        %v1844 = vcvt.s32.f32 %v1812
        %v1845 = vcvt.s32.f32 %v1813
        %v1846 = vcvt.s32.f32 %v1814
        %v1847 = vcvt.s32.f32 %v1815
        %v1848 = vcvt.s32.f32 %v1816
        %v1849 = vcvt.s32.f32 %v1817
        %v1850 = vcvt.s32.f32 %v1818
        %v1851 = vcvt.s32.f32 %v1819
        %v1852 = vcvt.s32.f32 %v1820
        %v1853 = vcvt.s32.f32 %v1821
        %v1854 = vcvt.s32.f32 %v1822
        %v1855 = vcvt.s32.f32 %v1823
        %v1856 = vcvt.s32.f32 %v1824
        %v1857 = vcvt.s32.f32 %v1825
        %v1858 = vcvt.s32.f32 %v1826
        %v1859 = vcvt.s32.f32 %v1827
        %v1860 = vcvt.s32.f32 %v1828
        %v1861 = vcvt.s32.f32 %v1829
        %v1862 = vcvt.s32.f32 %v1830
        %v1863 = vcvt.s32.f32 %v1831
        %v1864 = vcvt.s32.f32 %v1832
        %v1865 = vpack.c.bf16 %v1834, %v1833
        %v1866 = vpack.c.bf16 %v1836, %v1835
        %v1867 = vpack.c.bf16 %v1838, %v1837
        %v1868 = vpack.c.bf16 %v1840, %v1839
        %v1869 = vpack.c.bf16 %v1842, %v1841
        %v1870 = vpack.c.bf16 %v1844, %v1843
        %v1871 = vpack.c.bf16 %v1846, %v1845
        %v1872 = vpack.c.bf16 %v1848, %v1847
        %v1873 = vpack.c.bf16 %v1850, %v1849
        %v1874 = vpack.c.bf16 %v1852, %v1851
        %v1875 = vpack.c.bf16 %v1854, %v1853
        %v1876 = vpack.c.bf16 %v1856, %v1855
        %v1877 = vpack.c.bf16 %v1858, %v1857
        %v1878 = vpack.c.bf16 %v1860, %v1859
        %v1879 = vpack.c.bf16 %v1862, %v1861
        %v1880 = vpack.c.bf16 %v1864, %v1863
        %v1882 = vlaneseq
        %v1883 = vshrl.u32 %v1882, 7
        %v1884 = vsub.s32 0, %v1883
        %v1885 = vrot.slane %v287, %v1884
        %v1892 = vunpack.c.l.b16 %v282
        %v1893 = vunpack.c.l.b16 %v283
        %v1894 = vunpack.c.l.b16 %v284
        %v1895 = vunpack.c.l.b16 %v285
        %v1896 = vunpack.c.l.b16 %v286
        %v1897 = vpack.c.b16 %v1893, %v1892
        %v1898 = vpack.c.b16 %v1895, %v1894
        %v1899 = vpack.c.b16 %v1896, %v1896
        %vm1902 = vcmask 326656
        %v1904 = vsel %vm1902, %v1865, 0
        %v1907 = vsel %vm1902, %v1866, 0
        %v1910 = vsel %vm1902, %v1867, 0
        %v1913 = vsel %vm1902, %v1868, 0
        %v1916 = vsel %vm1902, %v1869, 0
        %v1919 = vsel %vm1902, %v1870, 0
        %v1922 = vsel %vm1902, %v1871, 0
        %v1925 = vsel %vm1902, %v1872, 0
        %v1928 = vsel %vm1902, %v1873, 0
        %v1931 = vsel %vm1902, %v1874, 0
        %v1934 = vsel %vm1902, %v1875, 0
        %v1937 = vsel %vm1902, %v1876, 0
        %v1940 = vsel %vm1902, %v1877, 0
        %v1943 = vsel %vm1902, %v1878, 0
        %v1946 = vsel %vm1902, %v1879, 0
        %v1949 = vsel %vm1902, %v1880, 0
        %vm1951 = vcmask 1043456
        %v1953 = vsel %vm1951, %v1899, 0
        %1955 = vmatprep.subr.bf16.mxu0 0
        %1956 = vmatpush1.bf16.msra.mxu0 %v1897
        %1957 = vmatprep.subr.bf16.mxu0 0
        %1958 = vmatpush1.bf16.msra.mxu0 %v1898
        %1959 = vmatprep.subr.bf16.mxu0 0
        %1960 = vmatpush1.bf16.msra.mxu0 %v1953
        %1961 = vmatprep.subr.bf16.mxu0 0
        %1962 = vmatpush1.bf16.msra.mxu0 0
        %1963 = vmatprep.subr.bf16.mxu0 0
        %1964 = vmatpush1.bf16.msra.mxu0 0
        %1965 = vmatprep.subr.bf16.mxu0 0
        %1966 = vmatpush1.bf16.msra.mxu0 0
        %1967 = vmatprep.subr.bf16.mxu0 0
        %1968 = vmatpush1.bf16.msra.mxu0 0
        %1969 = vmatprep.subr.bf16.mxu0 0
        %1970 = vmatpush1.bf16.msra.mxu0 0
        %1971 = vmatprep.subr.bf16.mxu0 0
        %1972 = vmatpush1.bf16.msra.mxu0 0
        %1973 = vmatprep.subr.bf16.mxu0 0
        %1974 = vmatpush1.bf16.msra.mxu0 0
        %1975 = vmatprep.subr.bf16.mxu0 0
        %1976 = vmatpush1.bf16.msra.mxu0 0
        %1977 = vmatprep.subr.bf16.mxu0 0
        %1978 = vmatpush1.bf16.msra.mxu0 0
        %1979 = vmatprep.subr.bf16.mxu0 0
        %1980 = vmatpush1.bf16.msra.mxu0 0
        %1981 = vmatprep.subr.bf16.mxu0 0
        %1982 = vmatpush1.bf16.msra.mxu0 0
        %1983 = vmatprep.subr.bf16.mxu0 0
        %1984 = vmatpush1.bf16.msra.mxu0 0
        %1985 = vmatprep.subr.bf16.mxu0 0
        %1986 = vmatpush1.bf16.msra.mxu0 0
        %1987 = vmatprep.mubr.bf16.mxu0 0
        %1988 = vmatmul.mubr.bf16.gmra.mrb[0].mxu0 %v1904
        %v1989 = vpop.f32.mrb[0].mxu0
        %v1990 = vadd.f32 %v1885, %v1989
        %v1991 = vpop.f32.mrb[0].mxu0
        %v1992 = vpop.f32.mrb[0].mxu0
        %v1993 = vadd.f32 %v1885, %v1992
        %v1994 = vpop.f32.mrb[0].mxu0
        %1995 = vmatprep.mubr.bf16.mxu0 0
        %1996 = vmatmul.mubr.bf16.gmra.mrb[0].mxu0 %v1907
        %v1997 = vpop.f32.mrb[0].mxu0
        %v1998 = vadd.f32 %v1885, %v1997
        %v1999 = vpop.f32.mrb[0].mxu0
        %v2000 = vpop.f32.mrb[0].mxu0
        %v2001 = vadd.f32 %v1885, %v2000
        %v2002 = vpop.f32.mrb[0].mxu0
        %2003 = vmatprep.mubr.bf16.mxu0 0
        %2004 = vmatmul.mubr.bf16.gmra.mrb[0].mxu0 %v1910
        %v2005 = vpop.f32.mrb[0].mxu0
        %v2006 = vadd.f32 %v1885, %v2005
        %v2007 = vpop.f32.mrb[0].mxu0
        %v2008 = vpop.f32.mrb[0].mxu0
        %v2009 = vadd.f32 %v1885, %v2008
        %v2010 = vpop.f32.mrb[0].mxu0
        %2011 = vmatprep.mubr.bf16.mxu0 0
        %2012 = vmatmul.mubr.bf16.gmra.mrb[0].mxu0 %v1913
        %v2013 = vpop.f32.mrb[0].mxu0
        %v2014 = vadd.f32 %v1885, %v2013
        %v2015 = vpop.f32.mrb[0].mxu0
        %v2016 = vpop.f32.mrb[0].mxu0
        %v2017 = vadd.f32 %v1885, %v2016
        %v2018 = vpop.f32.mrb[0].mxu0
        %2019 = vmatprep.mubr.bf16.mxu0 0
        %2020 = vmatmul.mubr.bf16.gmra.mrb[0].mxu0 %v1916
        %v2021 = vpop.f32.mrb[0].mxu0
        %v2022 = vadd.f32 %v1885, %v2021
        %v2023 = vpop.f32.mrb[0].mxu0
        %v2024 = vpop.f32.mrb[0].mxu0
        %v2025 = vadd.f32 %v1885, %v2024
        %v2026 = vpop.f32.mrb[0].mxu0
        %2027 = vmatprep.mubr.bf16.mxu0 0
        %2028 = vmatmul.mubr.bf16.gmra.mrb[0].mxu0 %v1919
        %v2029 = vpop.f32.mrb[0].mxu0
        %v2030 = vadd.f32 %v1885, %v2029
        %v2031 = vpop.f32.mrb[0].mxu0
        %v2032 = vpop.f32.mrb[0].mxu0
        %v2033 = vadd.f32 %v1885, %v2032
        %v2034 = vpop.f32.mrb[0].mxu0
        %2035 = vmatprep.mubr.bf16.mxu0 0
        %2036 = vmatmul.mubr.bf16.gmra.mrb[0].mxu0 %v1922
        %v2037 = vpop.f32.mrb[0].mxu0
        %v2038 = vadd.f32 %v1885, %v2037
        %v2039 = vpop.f32.mrb[0].mxu0
        %v2040 = vpop.f32.mrb[0].mxu0
        %v2041 = vadd.f32 %v1885, %v2040
        %v2042 = vpop.f32.mrb[0].mxu0
        %2043 = vmatprep.mubr.bf16.mxu0 0
        %2044 = vmatmul.mubr.bf16.gmra.mrb[0].mxu0 %v1925
        %v2045 = vpop.f32.mrb[0].mxu0
        %v2046 = vadd.f32 %v1885, %v2045
        %v2047 = vpop.f32.mrb[0].mxu0
        %v2048 = vpop.f32.mrb[0].mxu0
        %v2049 = vadd.f32 %v1885, %v2048
        %v2050 = vpop.f32.mrb[0].mxu0
        %2051 = vmatprep.mubr.bf16.mxu0 0
        %2052 = vmatmul.mubr.bf16.gmra.mrb[0].mxu0 %v1928
        %v2053 = vpop.f32.mrb[0].mxu0
        %v2054 = vadd.f32 %v1885, %v2053
        %v2055 = vpop.f32.mrb[0].mxu0
        %v2056 = vpop.f32.mrb[0].mxu0
        %v2057 = vadd.f32 %v1885, %v2056
        %v2058 = vpop.f32.mrb[0].mxu0
        %2059 = vmatprep.mubr.bf16.mxu0 0
        %2060 = vmatmul.mubr.bf16.gmra.mrb[0].mxu0 %v1931
        %v2061 = vpop.f32.mrb[0].mxu0
        %v2062 = vadd.f32 %v1885, %v2061
        %v2063 = vpop.f32.mrb[0].mxu0
        %v2064 = vpop.f32.mrb[0].mxu0
        %v2065 = vadd.f32 %v1885, %v2064
        %v2066 = vpop.f32.mrb[0].mxu0
        %2067 = vmatprep.mubr.bf16.mxu0 0
        %2068 = vmatmul.mubr.bf16.gmra.mrb[0].mxu0 %v1934
        %v2069 = vpop.f32.mrb[0].mxu0
        %v2070 = vadd.f32 %v1885, %v2069
        %v2071 = vpop.f32.mrb[0].mxu0
        %v2072 = vpop.f32.mrb[0].mxu0
        %v2073 = vadd.f32 %v1885, %v2072
        %v2074 = vpop.f32.mrb[0].mxu0
        %2075 = vmatprep.mubr.bf16.mxu0 0
        %2076 = vmatmul.mubr.bf16.gmra.mrb[0].mxu0 %v1937
        %v2077 = vpop.f32.mrb[0].mxu0
        %v2078 = vadd.f32 %v1885, %v2077
        %v2079 = vpop.f32.mrb[0].mxu0
        %v2080 = vpop.f32.mrb[0].mxu0
        %v2081 = vadd.f32 %v1885, %v2080
        %v2082 = vpop.f32.mrb[0].mxu0
        %2083 = vmatprep.mubr.bf16.mxu0 0
        %2084 = vmatmul.mubr.bf16.gmra.mrb[0].mxu0 %v1940
        %v2085 = vpop.f32.mrb[0].mxu0
        %v2086 = vadd.f32 %v1885, %v2085
        %v2087 = vpop.f32.mrb[0].mxu0
        %v2088 = vpop.f32.mrb[0].mxu0
        %v2089 = vadd.f32 %v1885, %v2088
        %v2090 = vpop.f32.mrb[0].mxu0
        %2091 = vmatprep.mubr.bf16.mxu0 0
        %2092 = vmatmul.mubr.bf16.gmra.mrb[0].mxu0 %v1943
        %v2093 = vpop.f32.mrb[0].mxu0
        %v2094 = vadd.f32 %v1885, %v2093
        %v2095 = vpop.f32.mrb[0].mxu0
        %v2096 = vpop.f32.mrb[0].mxu0
        %v2097 = vadd.f32 %v1885, %v2096
        %v2098 = vpop.f32.mrb[0].mxu0
        %2099 = vmatprep.mubr.bf16.mxu0 0
        %2100 = vmatmul.mubr.bf16.gmra.mrb[0].mxu0 %v1946
        %v2101 = vpop.f32.mrb[0].mxu0
        %v2102 = vadd.f32 %v1885, %v2101
        %v2103 = vpop.f32.mrb[0].mxu0
        %v2104 = vpop.f32.mrb[0].mxu0
        %v2105 = vadd.f32 %v1885, %v2104
        %v2106 = vpop.f32.mrb[0].mxu0
        %2107 = vmatprep.mubr.bf16.mxu0 0
        %2108 = vmatmul.mubr.bf16.gmra.mrb[0].mxu0 %v1949
        %v2109 = vpop.f32.mrb[0].mxu0
        %v2110 = vadd.f32 %v1885, %v2109
        %v2111 = vpop.f32.mrb[0].mxu0
        %v2112 = vpop.f32.mrb[0].mxu0
        %v2113 = vadd.f32 %v1885, %v2112
        %v2114 = vpop.f32.mrb[0].mxu0
        %2115 = vdwg.mxu0
        %v2116 = vmax.f32 %v1990, 0.0
        %v2117 = vmax.f32 %v1993, 0.0
        %v2118 = vmax.f32 %v1998, 0.0
        %v2119 = vmax.f32 %v2001, 0.0
        %v2120 = vmax.f32 %v2006, 0.0
        %v2121 = vmax.f32 %v2009, 0.0
        %v2122 = vmax.f32 %v2014, 0.0
        %v2123 = vmax.f32 %v2017, 0.0
        %v2124 = vmax.f32 %v2022, 0.0
        %v2125 = vmax.f32 %v2025, 0.0
        %v2126 = vmax.f32 %v2030, 0.0
        %v2127 = vmax.f32 %v2033, 0.0
        %v2128 = vmax.f32 %v2038, 0.0
        %v2129 = vmax.f32 %v2041, 0.0
        %v2130 = vmax.f32 %v2046, 0.0
        %v2131 = vmax.f32 %v2049, 0.0
        %v2132 = vmax.f32 %v2054, 0.0
        %v2133 = vmax.f32 %v2057, 0.0
        %v2134 = vmax.f32 %v2062, 0.0
        %v2135 = vmax.f32 %v2065, 0.0
        %v2136 = vmax.f32 %v2070, 0.0
        %v2137 = vmax.f32 %v2073, 0.0
        %v2138 = vmax.f32 %v2078, 0.0
        %v2139 = vmax.f32 %v2081, 0.0
        %v2140 = vmax.f32 %v2086, 0.0
        %v2141 = vmax.f32 %v2089, 0.0
        %v2142 = vmax.f32 %v2094, 0.0
        %v2143 = vmax.f32 %v2097, 0.0
        %v2144 = vmax.f32 %v2102, 0.0
        %v2145 = vmax.f32 %v2105, 0.0
        %v2146 = vmax.f32 %v2110, 0.0
        %v2147 = vmax.f32 %v2113, 0.0
        %v2148 = vpack.c.bf16 %v2117, %v2116
        %v2149 = vpack.c.bf16 %v2119, %v2118
        %v2150 = vpack.c.bf16 %v2121, %v2120
        %v2151 = vpack.c.bf16 %v2123, %v2122
        %v2152 = vpack.c.bf16 %v2125, %v2124
        %v2153 = vpack.c.bf16 %v2127, %v2126
        %v2154 = vpack.c.bf16 %v2129, %v2128
        %v2155 = vpack.c.bf16 %v2131, %v2130
        %v2156 = vpack.c.bf16 %v2133, %v2132
        %v2157 = vpack.c.bf16 %v2135, %v2134
        %v2158 = vpack.c.bf16 %v2137, %v2136
        %v2159 = vpack.c.bf16 %v2139, %v2138
        %v2160 = vpack.c.bf16 %v2141, %v2140
        %v2161 = vpack.c.bf16 %v2143, %v2142
        %v2162 = vpack.c.bf16 %v2145, %v2144
        %v2163 = vpack.c.bf16 %v2147, %v2146
        %v2165 = vlaneseq
        %v2166 = vshrl.u32 %v2165, 7
        %v2167 = vsub.s32 0, %v2166
        %v2168 = vrot.slane %v292, %v2167
        %v2174 = vunpack.c.l.b16 %v288
        %v2175 = vunpack.c.l.b16 %v289
        %v2176 = vunpack.c.l.b16 %v290
        %v2177 = vunpack.c.l.b16 %v291
        %v2178 = vpack.c.b16 %v2175, %v2174
        %v2179 = vpack.c.b16 %v2177, %v2176
        %vm2182 = vcmask 261120
        %v2184 = vsel %vm2182, %v2148, 0
        %v2187 = vsel %vm2182, %v2149, 0
        %v2190 = vsel %vm2182, %v2150, 0
        %v2193 = vsel %vm2182, %v2151, 0
        %v2196 = vsel %vm2182, %v2152, 0
        %v2199 = vsel %vm2182, %v2153, 0
        %v2202 = vsel %vm2182, %v2154, 0
        %v2205 = vsel %vm2182, %v2155, 0
        %v2208 = vsel %vm2182, %v2156, 0
        %v2211 = vsel %vm2182, %v2157, 0
        %v2214 = vsel %vm2182, %v2158, 0
        %v2217 = vsel %vm2182, %v2159, 0
        %v2220 = vsel %vm2182, %v2160, 0
        %v2223 = vsel %vm2182, %v2161, 0
        %v2226 = vsel %vm2182, %v2162, 0
        %v2229 = vsel %vm2182, %v2163, 0
        %2231 = vmatprep.subr.bf16.mxu0 0
        %2232 = vmatpush1.bf16.msra.mxu0 %v2178
        %2233 = vmatprep.subr.bf16.mxu0 0
        %2234 = vmatpush1.bf16.msra.mxu0 %v2179
        %2235 = vmatprep.subr.bf16.mxu0 0
        %2236 = vmatpush1.bf16.msra.mxu0 0
        %2237 = vmatprep.subr.bf16.mxu0 0
        %2238 = vmatpush1.bf16.msra.mxu0 0
        %2239 = vmatprep.subr.bf16.mxu0 0
        %2240 = vmatpush1.bf16.msra.mxu0 0
        %2241 = vmatprep.subr.bf16.mxu0 0
        %2242 = vmatpush1.bf16.msra.mxu0 0
        %2243 = vmatprep.subr.bf16.mxu0 0
        %2244 = vmatpush1.bf16.msra.mxu0 0
        %2245 = vmatprep.subr.bf16.mxu0 0
        %2246 = vmatpush1.bf16.msra.mxu0 0
        %2247 = vmatprep.subr.bf16.mxu0 0
        %2248 = vmatpush1.bf16.msra.mxu0 0
        %2249 = vmatprep.subr.bf16.mxu0 0
        %2250 = vmatpush1.bf16.msra.mxu0 0
        %2251 = vmatprep.subr.bf16.mxu0 0
        %2252 = vmatpush1.bf16.msra.mxu0 0
        %2253 = vmatprep.subr.bf16.mxu0 0
        %2254 = vmatpush1.bf16.msra.mxu0 0
        %2255 = vmatprep.subr.bf16.mxu0 0
        %2256 = vmatpush1.bf16.msra.mxu0 0
        %2257 = vmatprep.subr.bf16.mxu0 0
        %2258 = vmatpush1.bf16.msra.mxu0 0
        %2259 = vmatprep.subr.bf16.mxu0 0
        %2260 = vmatpush1.bf16.msra.mxu0 0
        %2261 = vmatprep.subr.bf16.mxu0 0
        %2262 = vmatpush1.bf16.msra.mxu0 0
        %2263 = vmatprep.mubr.bf16.mxu0 0
        %2264 = vmatmul.mubr.bf16.gmra.mrb[0].mxu0 %v2184
        %v2265 = vpop.f32.mrb[0].mxu0
        %v2266 = vadd.f32 %v2168, %v2265
        %v2267 = vpop.f32.mrb[0].mxu0
        %v2268 = vpop.f32.mrb[0].mxu0
        %v2269 = vadd.f32 %v2168, %v2268
        %v2270 = vpop.f32.mrb[0].mxu0
        %2271 = vmatprep.mubr.bf16.mxu0 0
        %2272 = vmatmul.mubr.bf16.gmra.mrb[0].mxu0 %v2187
        %v2273 = vpop.f32.mrb[0].mxu0
        %v2274 = vadd.f32 %v2168, %v2273
        %v2275 = vpop.f32.mrb[0].mxu0
        %v2276 = vpop.f32.mrb[0].mxu0
        %v2277 = vadd.f32 %v2168, %v2276
        %v2278 = vpop.f32.mrb[0].mxu0
        %2279 = vmatprep.mubr.bf16.mxu0 0
        %2280 = vmatmul.mubr.bf16.gmra.mrb[0].mxu0 %v2190
        %v2281 = vpop.f32.mrb[0].mxu0
        %v2282 = vadd.f32 %v2168, %v2281
        %v2283 = vpop.f32.mrb[0].mxu0
        %v2284 = vpop.f32.mrb[0].mxu0
        %v2285 = vadd.f32 %v2168, %v2284
        %v2286 = vpop.f32.mrb[0].mxu0
        %2287 = vmatprep.mubr.bf16.mxu0 0
        %2288 = vmatmul.mubr.bf16.gmra.mrb[0].mxu0 %v2193
        %v2289 = vpop.f32.mrb[0].mxu0
        %v2290 = vadd.f32 %v2168, %v2289
        %v2291 = vpop.f32.mrb[0].mxu0
        %v2292 = vpop.f32.mrb[0].mxu0
        %v2293 = vadd.f32 %v2168, %v2292
        %v2294 = vpop.f32.mrb[0].mxu0
        %2295 = vmatprep.mubr.bf16.mxu0 0
        %2296 = vmatmul.mubr.bf16.gmra.mrb[0].mxu0 %v2196
        %v2297 = vpop.f32.mrb[0].mxu0
        %v2298 = vadd.f32 %v2168, %v2297
        %v2299 = vpop.f32.mrb[0].mxu0
        %v2300 = vpop.f32.mrb[0].mxu0
        %v2301 = vadd.f32 %v2168, %v2300
        %v2302 = vpop.f32.mrb[0].mxu0
        %2303 = vmatprep.mubr.bf16.mxu0 0
        %2304 = vmatmul.mubr.bf16.gmra.mrb[0].mxu0 %v2199
        %v2305 = vpop.f32.mrb[0].mxu0
        %v2306 = vadd.f32 %v2168, %v2305
        %v2307 = vpop.f32.mrb[0].mxu0
        %v2308 = vpop.f32.mrb[0].mxu0
        %v2309 = vadd.f32 %v2168, %v2308
        %v2310 = vpop.f32.mrb[0].mxu0
        %2311 = vmatprep.mubr.bf16.mxu0 0
        %2312 = vmatmul.mubr.bf16.gmra.mrb[0].mxu0 %v2202
        %v2313 = vpop.f32.mrb[0].mxu0
        %v2314 = vadd.f32 %v2168, %v2313
        %v2315 = vpop.f32.mrb[0].mxu0
        %v2316 = vpop.f32.mrb[0].mxu0
        %v2317 = vadd.f32 %v2168, %v2316
        %v2318 = vpop.f32.mrb[0].mxu0
        %2319 = vmatprep.mubr.bf16.mxu0 0
        %2320 = vmatmul.mubr.bf16.gmra.mrb[0].mxu0 %v2205
        %v2321 = vpop.f32.mrb[0].mxu0
        %v2322 = vadd.f32 %v2168, %v2321
        %v2323 = vpop.f32.mrb[0].mxu0
        %v2324 = vpop.f32.mrb[0].mxu0
        %v2325 = vadd.f32 %v2168, %v2324
        %v2326 = vpop.f32.mrb[0].mxu0
        %2327 = vmatprep.mubr.bf16.mxu0 0
        %2328 = vmatmul.mubr.bf16.gmra.mrb[0].mxu0 %v2208
        %v2329 = vpop.f32.mrb[0].mxu0
        %v2330 = vadd.f32 %v2168, %v2329
        %v2331 = vpop.f32.mrb[0].mxu0
        %v2332 = vpop.f32.mrb[0].mxu0
        %v2333 = vadd.f32 %v2168, %v2332
        %v2334 = vpop.f32.mrb[0].mxu0
        %2335 = vmatprep.mubr.bf16.mxu0 0
        %2336 = vmatmul.mubr.bf16.gmra.mrb[0].mxu0 %v2211
        %v2337 = vpop.f32.mrb[0].mxu0
        %v2338 = vadd.f32 %v2168, %v2337
        %v2339 = vpop.f32.mrb[0].mxu0
        %v2340 = vpop.f32.mrb[0].mxu0
        %v2341 = vadd.f32 %v2168, %v2340
        %v2342 = vpop.f32.mrb[0].mxu0
        %2343 = vmatprep.mubr.bf16.mxu0 0
        %2344 = vmatmul.mubr.bf16.gmra.mrb[0].mxu0 %v2214
        %v2345 = vpop.f32.mrb[0].mxu0
        %v2346 = vadd.f32 %v2168, %v2345
        %v2347 = vpop.f32.mrb[0].mxu0
        %v2348 = vpop.f32.mrb[0].mxu0
        %v2349 = vadd.f32 %v2168, %v2348
        %v2350 = vpop.f32.mrb[0].mxu0
        %2351 = vmatprep.mubr.bf16.mxu0 0
        %2352 = vmatmul.mubr.bf16.gmra.mrb[0].mxu0 %v2217
        %v2353 = vpop.f32.mrb[0].mxu0
        %v2354 = vadd.f32 %v2168, %v2353
        %v2355 = vpop.f32.mrb[0].mxu0
        %v2356 = vpop.f32.mrb[0].mxu0
        %v2357 = vadd.f32 %v2168, %v2356
        %v2358 = vpop.f32.mrb[0].mxu0
        %2359 = vmatprep.mubr.bf16.mxu0 0
        %2360 = vmatmul.mubr.bf16.gmra.mrb[0].mxu0 %v2220
        %v2361 = vpop.f32.mrb[0].mxu0
        %v2362 = vadd.f32 %v2168, %v2361
        %v2363 = vpop.f32.mrb[0].mxu0
        %v2364 = vpop.f32.mrb[0].mxu0
        %v2365 = vadd.f32 %v2168, %v2364
        %v2366 = vpop.f32.mrb[0].mxu0
        %2367 = vmatprep.mubr.bf16.mxu0 0
        %2368 = vmatmul.mubr.bf16.gmra.mrb[0].mxu0 %v2223
        %v2369 = vpop.f32.mrb[0].mxu0
        %v2370 = vadd.f32 %v2168, %v2369
        %v2371 = vpop.f32.mrb[0].mxu0
        %v2372 = vpop.f32.mrb[0].mxu0
        %v2373 = vadd.f32 %v2168, %v2372
        %v2374 = vpop.f32.mrb[0].mxu0
        %2375 = vmatprep.mubr.bf16.mxu0 0
        %2376 = vmatmul.mubr.bf16.gmra.mrb[0].mxu0 %v2226
        %v2377 = vpop.f32.mrb[0].mxu0
        %v2378 = vadd.f32 %v2168, %v2377
        %v2379 = vpop.f32.mrb[0].mxu0
        %v2380 = vpop.f32.mrb[0].mxu0
        %v2381 = vadd.f32 %v2168, %v2380
        %v2382 = vpop.f32.mrb[0].mxu0
        %2383 = vmatprep.mubr.bf16.mxu0 0
        %2384 = vmatmul.mubr.bf16.gmra.mrb[0].mxu0 %v2229
        %v2385 = vpop.f32.mrb[0].mxu0
        %v2386 = vadd.f32 %v2168, %v2385
        %v2387 = vpop.f32.mrb[0].mxu0
        %v2388 = vpop.f32.mrb[0].mxu0
        %v2389 = vadd.f32 %v2168, %v2388
        %v2390 = vpop.f32.mrb[0].mxu0
        %2391 = vdwg.mxu0
        %v2392 = vmax.f32 %v2266, 0.0
        %v2393 = vmax.f32 %v2269, 0.0
        %v2394 = vmax.f32 %v2274, 0.0
        %v2395 = vmax.f32 %v2277, 0.0
        %v2396 = vmax.f32 %v2282, 0.0
        %v2397 = vmax.f32 %v2285, 0.0
        %v2398 = vmax.f32 %v2290, 0.0
        %v2399 = vmax.f32 %v2293, 0.0
        %v2400 = vmax.f32 %v2298, 0.0
        %v2401 = vmax.f32 %v2301, 0.0
        %v2402 = vmax.f32 %v2306, 0.0
        %v2403 = vmax.f32 %v2309, 0.0
        %v2404 = vmax.f32 %v2314, 0.0
        %v2405 = vmax.f32 %v2317, 0.0
        %v2406 = vmax.f32 %v2322, 0.0
        %v2407 = vmax.f32 %v2325, 0.0
        %v2408 = vmax.f32 %v2330, 0.0
        %v2409 = vmax.f32 %v2333, 0.0
        %v2410 = vmax.f32 %v2338, 0.0
        %v2411 = vmax.f32 %v2341, 0.0
        %v2412 = vmax.f32 %v2346, 0.0
        %v2413 = vmax.f32 %v2349, 0.0
        %v2414 = vmax.f32 %v2354, 0.0
        %v2415 = vmax.f32 %v2357, 0.0
        %v2416 = vmax.f32 %v2362, 0.0
        %v2417 = vmax.f32 %v2365, 0.0
        %v2418 = vmax.f32 %v2370, 0.0
        %v2419 = vmax.f32 %v2373, 0.0
        %v2420 = vmax.f32 %v2378, 0.0
        %v2421 = vmax.f32 %v2381, 0.0
        %v2422 = vmax.f32 %v2386, 0.0
        %v2423 = vmax.f32 %v2389, 0.0
        %v2425 = vlaneseq
        %v2426 = vshrl.u32 %v2425, 7
        %v2427 = vsub.s32 0, %v2426
        %v2428 = vrot.slane %v293, %v2427
        %v2430 = vmul.f32 %v2392, %v2428
        %v2431 = vmul.f32 %v2393, %v2428
        %v2432 = vmul.f32 %v2394, %v2428
        %v2433 = vmul.f32 %v2395, %v2428
        %v2434 = vmul.f32 %v2396, %v2428
        %v2435 = vmul.f32 %v2397, %v2428
        %v2436 = vmul.f32 %v2398, %v2428
        %v2437 = vmul.f32 %v2399, %v2428
        %v2438 = vmul.f32 %v2400, %v2428
        %v2439 = vmul.f32 %v2401, %v2428
        %v2440 = vmul.f32 %v2402, %v2428
        %v2441 = vmul.f32 %v2403, %v2428
        %v2442 = vmul.f32 %v2404, %v2428
        %v2443 = vmul.f32 %v2405, %v2428
        %v2444 = vmul.f32 %v2406, %v2428
        %v2445 = vmul.f32 %v2407, %v2428
        %v2446 = vmul.f32 %v2408, %v2428
        %v2447 = vmul.f32 %v2409, %v2428
        %v2448 = vmul.f32 %v2410, %v2428
        %v2449 = vmul.f32 %v2411, %v2428
        %v2450 = vmul.f32 %v2412, %v2428
        %v2451 = vmul.f32 %v2413, %v2428
        %v2452 = vmul.f32 %v2414, %v2428
        %v2453 = vmul.f32 %v2415, %v2428
        %v2454 = vmul.f32 %v2416, %v2428
        %v2455 = vmul.f32 %v2417, %v2428
        %v2456 = vmul.f32 %v2418, %v2428
        %v2457 = vmul.f32 %v2419, %v2428
        %v2458 = vmul.f32 %v2420, %v2428
        %v2459 = vmul.f32 %v2421, %v2428
        %v2460 = vmul.f32 %v2422, %v2428
        %v2461 = vmul.f32 %v2423, %v2428
        %vm2462 = vcmask 130048
        %v2463 = vsel %vm2462, %v2430, 0.0
        %2464 = vadd.xlane.f32.xlu0 %v2463
        %v2465 = vpop.xlane.xlu0 %2464
        %v2466 = vsel %vm2462, %v2431, 0.0
        %2467 = vadd.xlane.f32.xlu0 %v2466
        %v2468 = vpop.xlane.xlu0 %2467
        %v2469 = vsel %vm2462, %v2432, 0.0
        %2470 = vadd.xlane.f32.xlu0 %v2469
        %v2471 = vpop.xlane.xlu0 %2470
        %v2472 = vsel %vm2462, %v2433, 0.0
        %2473 = vadd.xlane.f32.xlu0 %v2472
        %v2474 = vpop.xlane.xlu0 %2473
        %v2475 = vsel %vm2462, %v2434, 0.0
        %2476 = vadd.xlane.f32.xlu0 %v2475
        %v2477 = vpop.xlane.xlu0 %2476
        %v2478 = vsel %vm2462, %v2435, 0.0
        %2479 = vadd.xlane.f32.xlu0 %v2478
        %v2480 = vpop.xlane.xlu0 %2479
        %v2481 = vsel %vm2462, %v2436, 0.0
        %2482 = vadd.xlane.f32.xlu0 %v2481
        %v2483 = vpop.xlane.xlu0 %2482
        %v2484 = vsel %vm2462, %v2437, 0.0
        %2485 = vadd.xlane.f32.xlu0 %v2484
        %v2486 = vpop.xlane.xlu0 %2485
        %v2487 = vsel %vm2462, %v2438, 0.0
        %2488 = vadd.xlane.f32.xlu0 %v2487
        %v2489 = vpop.xlane.xlu0 %2488
        %v2490 = vsel %vm2462, %v2439, 0.0
        %2491 = vadd.xlane.f32.xlu0 %v2490
        %v2492 = vpop.xlane.xlu0 %2491
        %v2493 = vsel %vm2462, %v2440, 0.0
        %2494 = vadd.xlane.f32.xlu0 %v2493
        %v2495 = vpop.xlane.xlu0 %2494
        %v2496 = vsel %vm2462, %v2441, 0.0
        %2497 = vadd.xlane.f32.xlu0 %v2496
        %v2498 = vpop.xlane.xlu0 %2497
        %v2499 = vsel %vm2462, %v2442, 0.0
        %2500 = vadd.xlane.f32.xlu0 %v2499
        %v2501 = vpop.xlane.xlu0 %2500
        %v2502 = vsel %vm2462, %v2443, 0.0
        %2503 = vadd.xlane.f32.xlu0 %v2502
        %v2504 = vpop.xlane.xlu0 %2503
        %v2505 = vsel %vm2462, %v2444, 0.0
        %2506 = vadd.xlane.f32.xlu0 %v2505
        %v2507 = vpop.xlane.xlu0 %2506
        %v2508 = vsel %vm2462, %v2445, 0.0
        %2509 = vadd.xlane.f32.xlu0 %v2508
        %v2510 = vpop.xlane.xlu0 %2509
        %v2511 = vsel %vm2462, %v2446, 0.0
        %2512 = vadd.xlane.f32.xlu0 %v2511
        %v2513 = vpop.xlane.xlu0 %2512
        %v2514 = vsel %vm2462, %v2447, 0.0
        %2515 = vadd.xlane.f32.xlu0 %v2514
        %v2516 = vpop.xlane.xlu0 %2515
        %v2517 = vsel %vm2462, %v2448, 0.0
        %2518 = vadd.xlane.f32.xlu0 %v2517
        %v2519 = vpop.xlane.xlu0 %2518
        %v2520 = vsel %vm2462, %v2449, 0.0
        %2521 = vadd.xlane.f32.xlu0 %v2520
        %v2522 = vpop.xlane.xlu0 %2521
        %v2523 = vsel %vm2462, %v2450, 0.0
        %2524 = vadd.xlane.f32.xlu0 %v2523
        %v2525 = vpop.xlane.xlu0 %2524
        %v2526 = vsel %vm2462, %v2451, 0.0
        %2527 = vadd.xlane.f32.xlu0 %v2526
        %v2528 = vpop.xlane.xlu0 %2527
        %v2529 = vsel %vm2462, %v2452, 0.0
        %2530 = vadd.xlane.f32.xlu0 %v2529
        %v2531 = vpop.xlane.xlu0 %2530
        %v2532 = vsel %vm2462, %v2453, 0.0
        %2533 = vadd.xlane.f32.xlu0 %v2532
        %v2534 = vpop.xlane.xlu0 %2533
        %v2535 = vsel %vm2462, %v2454, 0.0
        %2536 = vadd.xlane.f32.xlu0 %v2535
        %v2537 = vpop.xlane.xlu0 %2536
        %v2538 = vsel %vm2462, %v2455, 0.0
        %2539 = vadd.xlane.f32.xlu0 %v2538
        %v2540 = vpop.xlane.xlu0 %2539
        %v2541 = vsel %vm2462, %v2456, 0.0
        %2542 = vadd.xlane.f32.xlu0 %v2541
        %v2543 = vpop.xlane.xlu0 %2542
        %v2544 = vsel %vm2462, %v2457, 0.0
        %2545 = vadd.xlane.f32.xlu0 %v2544
        %v2546 = vpop.xlane.xlu0 %2545
        %v2547 = vsel %vm2462, %v2458, 0.0
        %2548 = vadd.xlane.f32.xlu0 %v2547
        %v2549 = vpop.xlane.xlu0 %2548
        %v2550 = vsel %vm2462, %v2459, 0.0
        %2551 = vadd.xlane.f32.xlu0 %v2550
        %v2552 = vpop.xlane.xlu0 %2551
        %v2553 = vsel %vm2462, %v2460, 0.0
        %2554 = vadd.xlane.f32.xlu0 %v2553
        %v2555 = vpop.xlane.xlu0 %2554
        %v2556 = vsel %vm2462, %v2461, 0.0
        %2557 = vadd.xlane.f32.xlu0 %v2556
        %v2558 = vpop.xlane.xlu0 %2557
        %v2559 = vstv %s294
        %v2560 = vadd.f32 %v2465, %v2559
        %v2561 = vadd.f32 %v2468, %v2559
        %v2562 = vadd.f32 %v2471, %v2559
        %v2563 = vadd.f32 %v2474, %v2559
        %v2564 = vadd.f32 %v2477, %v2559
        %v2565 = vadd.f32 %v2480, %v2559
        %v2566 = vadd.f32 %v2483, %v2559
        %v2567 = vadd.f32 %v2486, %v2559
        %v2568 = vadd.f32 %v2489, %v2559
        %v2569 = vadd.f32 %v2492, %v2559
        %v2570 = vadd.f32 %v2495, %v2559
        %v2571 = vadd.f32 %v2498, %v2559
        %v2572 = vadd.f32 %v2501, %v2559
        %v2573 = vadd.f32 %v2504, %v2559
        %v2574 = vadd.f32 %v2507, %v2559
        %v2575 = vadd.f32 %v2510, %v2559
        %v2576 = vadd.f32 %v2513, %v2559
        %v2577 = vadd.f32 %v2516, %v2559
        %v2578 = vadd.f32 %v2519, %v2559
        %v2579 = vadd.f32 %v2522, %v2559
        %v2580 = vadd.f32 %v2525, %v2559
        %v2581 = vadd.f32 %v2528, %v2559
        %v2582 = vadd.f32 %v2531, %v2559
        %v2583 = vadd.f32 %v2534, %v2559
        %v2584 = vadd.f32 %v2537, %v2559
        %v2585 = vadd.f32 %v2540, %v2559
        %v2586 = vadd.f32 %v2543, %v2559
        %v2587 = vadd.f32 %v2546, %v2559
        %v2588 = vadd.f32 %v2549, %v2559
        %v2589 = vadd.f32 %v2552, %v2559
        %v2590 = vadd.f32 %v2555, %v2559
        %v2591 = vadd.f32 %v2558, %v2559
        %v2624 = vlaneseq
        %v2625 = vshrl.u32 %v2624, 7
        %v2626 = vsub.s32 0, %v2625
        %v2627 = vrot.slane %v2560, %v2626
        %v2628 = vlaneseq
        %v2629 = vshrl.u32 %v2628, 7
        %v2630 = vsub.s32 1, %v2629
        %v2631 = vrot.slane %v2560, %v2630
        %v2632 = vlaneseq
        %v2633 = vshrl.u32 %v2632, 7
        %v2634 = vsub.s32 2, %v2633
        %v2635 = vrot.slane %v2560, %v2634
        %v2636 = vlaneseq
        %v2637 = vshrl.u32 %v2636, 7
        %v2638 = vsub.s32 3, %v2637
        %v2639 = vrot.slane %v2560, %v2638
        %v2640 = vlaneseq
        %v2641 = vshrl.u32 %v2640, 7
        %v2642 = vsub.s32 4, %v2641
        %v2643 = vrot.slane %v2560, %v2642
        %v2644 = vlaneseq
        %v2645 = vshrl.u32 %v2644, 7
        %v2646 = vsub.s32 5, %v2645
        %v2647 = vrot.slane %v2560, %v2646
        %v2648 = vlaneseq
        %v2649 = vshrl.u32 %v2648, 7
        %v2650 = vsub.s32 6, %v2649
        %v2651 = vrot.slane %v2560, %v2650
        %v2652 = vlaneseq
        %v2653 = vshrl.u32 %v2652, 7
        %v2654 = vsub.s32 7, %v2653
        %v2655 = vrot.slane %v2560, %v2654
        %v2656 = vlaneseq
        %v2657 = vshrl.u32 %v2656, 7
        %v2658 = vsub.s32 0, %v2657
        %v2659 = vrot.slane %v2561, %v2658
        %v2660 = vlaneseq
        %v2661 = vshrl.u32 %v2660, 7
        %v2662 = vsub.s32 1, %v2661
        %v2663 = vrot.slane %v2561, %v2662
        %v2664 = vlaneseq
        %v2665 = vshrl.u32 %v2664, 7
        %v2666 = vsub.s32 2, %v2665
        %v2667 = vrot.slane %v2561, %v2666
        %v2668 = vlaneseq
        %v2669 = vshrl.u32 %v2668, 7
        %v2670 = vsub.s32 3, %v2669
        %v2671 = vrot.slane %v2561, %v2670
        %v2672 = vlaneseq
        %v2673 = vshrl.u32 %v2672, 7
        %v2674 = vsub.s32 4, %v2673
        %v2675 = vrot.slane %v2561, %v2674
        %v2676 = vlaneseq
        %v2677 = vshrl.u32 %v2676, 7
        %v2678 = vsub.s32 5, %v2677
        %v2679 = vrot.slane %v2561, %v2678
        %v2680 = vlaneseq
        %v2681 = vshrl.u32 %v2680, 7
        %v2682 = vsub.s32 6, %v2681
        %v2683 = vrot.slane %v2561, %v2682
        %v2684 = vlaneseq
        %v2685 = vshrl.u32 %v2684, 7
        %v2686 = vsub.s32 7, %v2685
        %v2687 = vrot.slane %v2561, %v2686
        %v2688 = vlaneseq
        %v2689 = vshrl.u32 %v2688, 7
        %v2690 = vsub.s32 0, %v2689
        %v2691 = vrot.slane %v2562, %v2690
        %v2692 = vlaneseq
        %v2693 = vshrl.u32 %v2692, 7
        %v2694 = vsub.s32 1, %v2693
        %v2695 = vrot.slane %v2562, %v2694
        %v2696 = vlaneseq
        %v2697 = vshrl.u32 %v2696, 7
        %v2698 = vsub.s32 2, %v2697
        %v2699 = vrot.slane %v2562, %v2698
        %v2700 = vlaneseq
        %v2701 = vshrl.u32 %v2700, 7
        %v2702 = vsub.s32 3, %v2701
        %v2703 = vrot.slane %v2562, %v2702
        %v2704 = vlaneseq
        %v2705 = vshrl.u32 %v2704, 7
        %v2706 = vsub.s32 4, %v2705
        %v2707 = vrot.slane %v2562, %v2706
        %v2708 = vlaneseq
        %v2709 = vshrl.u32 %v2708, 7
        %v2710 = vsub.s32 5, %v2709
        %v2711 = vrot.slane %v2562, %v2710
        %v2712 = vlaneseq
        %v2713 = vshrl.u32 %v2712, 7
        %v2714 = vsub.s32 6, %v2713
        %v2715 = vrot.slane %v2562, %v2714
        %v2716 = vlaneseq
        %v2717 = vshrl.u32 %v2716, 7
        %v2718 = vsub.s32 7, %v2717
        %v2719 = vrot.slane %v2562, %v2718
        %v2720 = vlaneseq
        %v2721 = vshrl.u32 %v2720, 7
        %v2722 = vsub.s32 0, %v2721
        %v2723 = vrot.slane %v2563, %v2722
        %v2724 = vlaneseq
        %v2725 = vshrl.u32 %v2724, 7
        %v2726 = vsub.s32 1, %v2725
        %v2727 = vrot.slane %v2563, %v2726
        %v2728 = vlaneseq
        %v2729 = vshrl.u32 %v2728, 7
        %v2730 = vsub.s32 2, %v2729
        %v2731 = vrot.slane %v2563, %v2730
        %v2732 = vlaneseq
        %v2733 = vshrl.u32 %v2732, 7
        %v2734 = vsub.s32 3, %v2733
        %v2735 = vrot.slane %v2563, %v2734
        %v2736 = vlaneseq
        %v2737 = vshrl.u32 %v2736, 7
        %v2738 = vsub.s32 4, %v2737
        %v2739 = vrot.slane %v2563, %v2738
        %v2740 = vlaneseq
        %v2741 = vshrl.u32 %v2740, 7
        %v2742 = vsub.s32 5, %v2741
        %v2743 = vrot.slane %v2563, %v2742
        %v2744 = vlaneseq
        %v2745 = vshrl.u32 %v2744, 7
        %v2746 = vsub.s32 6, %v2745
        %v2747 = vrot.slane %v2563, %v2746
        %v2748 = vlaneseq
        %v2749 = vshrl.u32 %v2748, 7
        %v2750 = vsub.s32 7, %v2749
        %v2751 = vrot.slane %v2563, %v2750
        %v2752 = vlaneseq
        %v2753 = vshrl.u32 %v2752, 7
        %v2754 = vsub.s32 0, %v2753
        %v2755 = vrot.slane %v2564, %v2754
        %v2756 = vlaneseq
        %v2757 = vshrl.u32 %v2756, 7
        %v2758 = vsub.s32 1, %v2757
        %v2759 = vrot.slane %v2564, %v2758
        %v2760 = vlaneseq
        %v2761 = vshrl.u32 %v2760, 7
        %v2762 = vsub.s32 2, %v2761
        %v2763 = vrot.slane %v2564, %v2762
        %v2764 = vlaneseq
        %v2765 = vshrl.u32 %v2764, 7
        %v2766 = vsub.s32 3, %v2765
        %v2767 = vrot.slane %v2564, %v2766
        %v2768 = vlaneseq
        %v2769 = vshrl.u32 %v2768, 7
        %v2770 = vsub.s32 4, %v2769
        %v2771 = vrot.slane %v2564, %v2770
        %v2772 = vlaneseq
        %v2773 = vshrl.u32 %v2772, 7
        %v2774 = vsub.s32 5, %v2773
        %v2775 = vrot.slane %v2564, %v2774
        %v2776 = vlaneseq
        %v2777 = vshrl.u32 %v2776, 7
        %v2778 = vsub.s32 6, %v2777
        %v2779 = vrot.slane %v2564, %v2778
        %v2780 = vlaneseq
        %v2781 = vshrl.u32 %v2780, 7
        %v2782 = vsub.s32 7, %v2781
        %v2783 = vrot.slane %v2564, %v2782
        %v2784 = vlaneseq
        %v2785 = vshrl.u32 %v2784, 7
        %v2786 = vsub.s32 0, %v2785
        %v2787 = vrot.slane %v2565, %v2786
        %v2788 = vlaneseq
        %v2789 = vshrl.u32 %v2788, 7
        %v2790 = vsub.s32 1, %v2789
        %v2791 = vrot.slane %v2565, %v2790
        %v2792 = vlaneseq
        %v2793 = vshrl.u32 %v2792, 7
        %v2794 = vsub.s32 2, %v2793
        %v2795 = vrot.slane %v2565, %v2794
        %v2796 = vlaneseq
        %v2797 = vshrl.u32 %v2796, 7
        %v2798 = vsub.s32 3, %v2797
        %v2799 = vrot.slane %v2565, %v2798
        %v2800 = vlaneseq
        %v2801 = vshrl.u32 %v2800, 7
        %v2802 = vsub.s32 4, %v2801
        %v2803 = vrot.slane %v2565, %v2802
        %v2804 = vlaneseq
        %v2805 = vshrl.u32 %v2804, 7
        %v2806 = vsub.s32 5, %v2805
        %v2807 = vrot.slane %v2565, %v2806
        %v2808 = vlaneseq
        %v2809 = vshrl.u32 %v2808, 7
        %v2810 = vsub.s32 6, %v2809
        %v2811 = vrot.slane %v2565, %v2810
        %v2812 = vlaneseq
        %v2813 = vshrl.u32 %v2812, 7
        %v2814 = vsub.s32 7, %v2813
        %v2815 = vrot.slane %v2565, %v2814
        %v2816 = vlaneseq
        %v2817 = vshrl.u32 %v2816, 7
        %v2818 = vsub.s32 0, %v2817
        %v2819 = vrot.slane %v2566, %v2818
        %v2820 = vlaneseq
        %v2821 = vshrl.u32 %v2820, 7
        %v2822 = vsub.s32 1, %v2821
        %v2823 = vrot.slane %v2566, %v2822
        %v2824 = vlaneseq
        %v2825 = vshrl.u32 %v2824, 7
        %v2826 = vsub.s32 2, %v2825
        %v2827 = vrot.slane %v2566, %v2826
        %v2828 = vlaneseq
        %v2829 = vshrl.u32 %v2828, 7
        %v2830 = vsub.s32 3, %v2829
        %v2831 = vrot.slane %v2566, %v2830
        %v2832 = vlaneseq
        %v2833 = vshrl.u32 %v2832, 7
        %v2834 = vsub.s32 4, %v2833
        %v2835 = vrot.slane %v2566, %v2834
        %v2836 = vlaneseq
        %v2837 = vshrl.u32 %v2836, 7
        %v2838 = vsub.s32 5, %v2837
        %v2839 = vrot.slane %v2566, %v2838
        %v2840 = vlaneseq
        %v2841 = vshrl.u32 %v2840, 7
        %v2842 = vsub.s32 6, %v2841
        %v2843 = vrot.slane %v2566, %v2842
        %v2844 = vlaneseq
        %v2845 = vshrl.u32 %v2844, 7
        %v2846 = vsub.s32 7, %v2845
        %v2847 = vrot.slane %v2566, %v2846
        %v2848 = vlaneseq
        %v2849 = vshrl.u32 %v2848, 7
        %v2850 = vsub.s32 0, %v2849
        %v2851 = vrot.slane %v2567, %v2850
        %v2852 = vlaneseq
        %v2853 = vshrl.u32 %v2852, 7
        %v2854 = vsub.s32 1, %v2853
        %v2855 = vrot.slane %v2567, %v2854
        %v2856 = vlaneseq
        %v2857 = vshrl.u32 %v2856, 7
        %v2858 = vsub.s32 2, %v2857
        %v2859 = vrot.slane %v2567, %v2858
        %v2860 = vlaneseq
        %v2861 = vshrl.u32 %v2860, 7
        %v2862 = vsub.s32 3, %v2861
        %v2863 = vrot.slane %v2567, %v2862
        %v2864 = vlaneseq
        %v2865 = vshrl.u32 %v2864, 7
        %v2866 = vsub.s32 4, %v2865
        %v2867 = vrot.slane %v2567, %v2866
        %v2868 = vlaneseq
        %v2869 = vshrl.u32 %v2868, 7
        %v2870 = vsub.s32 5, %v2869
        %v2871 = vrot.slane %v2567, %v2870
        %v2872 = vlaneseq
        %v2873 = vshrl.u32 %v2872, 7
        %v2874 = vsub.s32 6, %v2873
        %v2875 = vrot.slane %v2567, %v2874
        %v2876 = vlaneseq
        %v2877 = vshrl.u32 %v2876, 7
        %v2878 = vsub.s32 7, %v2877
        %v2879 = vrot.slane %v2567, %v2878
        %v2880 = vlaneseq
        %v2881 = vshrl.u32 %v2880, 7
        %v2882 = vsub.s32 0, %v2881
        %v2883 = vrot.slane %v2568, %v2882
        %v2884 = vlaneseq
        %v2885 = vshrl.u32 %v2884, 7
        %v2886 = vsub.s32 1, %v2885
        %v2887 = vrot.slane %v2568, %v2886
        %v2888 = vlaneseq
        %v2889 = vshrl.u32 %v2888, 7
        %v2890 = vsub.s32 2, %v2889
        %v2891 = vrot.slane %v2568, %v2890
        %v2892 = vlaneseq
        %v2893 = vshrl.u32 %v2892, 7
        %v2894 = vsub.s32 3, %v2893
        %v2895 = vrot.slane %v2568, %v2894
        %v2896 = vlaneseq
        %v2897 = vshrl.u32 %v2896, 7
        %v2898 = vsub.s32 4, %v2897
        %v2899 = vrot.slane %v2568, %v2898
        %v2900 = vlaneseq
        %v2901 = vshrl.u32 %v2900, 7
        %v2902 = vsub.s32 5, %v2901
        %v2903 = vrot.slane %v2568, %v2902
        %v2904 = vlaneseq
        %v2905 = vshrl.u32 %v2904, 7
        %v2906 = vsub.s32 6, %v2905
        %v2907 = vrot.slane %v2568, %v2906
        %v2908 = vlaneseq
        %v2909 = vshrl.u32 %v2908, 7
        %v2910 = vsub.s32 7, %v2909
        %v2911 = vrot.slane %v2568, %v2910
        %v2912 = vlaneseq
        %v2913 = vshrl.u32 %v2912, 7
        %v2914 = vsub.s32 0, %v2913
        %v2915 = vrot.slane %v2569, %v2914
        %v2916 = vlaneseq
        %v2917 = vshrl.u32 %v2916, 7
        %v2918 = vsub.s32 1, %v2917
        %v2919 = vrot.slane %v2569, %v2918
        %v2920 = vlaneseq
        %v2921 = vshrl.u32 %v2920, 7
        %v2922 = vsub.s32 2, %v2921
        %v2923 = vrot.slane %v2569, %v2922
        %v2924 = vlaneseq
        %v2925 = vshrl.u32 %v2924, 7
        %v2926 = vsub.s32 3, %v2925
        %v2927 = vrot.slane %v2569, %v2926
        %v2928 = vlaneseq
        %v2929 = vshrl.u32 %v2928, 7
        %v2930 = vsub.s32 4, %v2929
        %v2931 = vrot.slane %v2569, %v2930
        %v2932 = vlaneseq
        %v2933 = vshrl.u32 %v2932, 7
        %v2934 = vsub.s32 5, %v2933
        %v2935 = vrot.slane %v2569, %v2934
        %v2936 = vlaneseq
        %v2937 = vshrl.u32 %v2936, 7
        %v2938 = vsub.s32 6, %v2937
        %v2939 = vrot.slane %v2569, %v2938
        %v2940 = vlaneseq
        %v2941 = vshrl.u32 %v2940, 7
        %v2942 = vsub.s32 7, %v2941
        %v2943 = vrot.slane %v2569, %v2942
        %v2944 = vlaneseq
        %v2945 = vshrl.u32 %v2944, 7
        %v2946 = vsub.s32 0, %v2945
        %v2947 = vrot.slane %v2570, %v2946
        %v2948 = vlaneseq
        %v2949 = vshrl.u32 %v2948, 7
        %v2950 = vsub.s32 1, %v2949
        %v2951 = vrot.slane %v2570, %v2950
        %v2952 = vlaneseq
        %v2953 = vshrl.u32 %v2952, 7
        %v2954 = vsub.s32 2, %v2953
        %v2955 = vrot.slane %v2570, %v2954
        %v2956 = vlaneseq
        %v2957 = vshrl.u32 %v2956, 7
        %v2958 = vsub.s32 3, %v2957
        %v2959 = vrot.slane %v2570, %v2958
        %v2960 = vlaneseq
        %v2961 = vshrl.u32 %v2960, 7
        %v2962 = vsub.s32 4, %v2961
        %v2963 = vrot.slane %v2570, %v2962
        %v2964 = vlaneseq
        %v2965 = vshrl.u32 %v2964, 7
        %v2966 = vsub.s32 5, %v2965
        %v2967 = vrot.slane %v2570, %v2966
        %v2968 = vlaneseq
        %v2969 = vshrl.u32 %v2968, 7
        %v2970 = vsub.s32 6, %v2969
        %v2971 = vrot.slane %v2570, %v2970
        %v2972 = vlaneseq
        %v2973 = vshrl.u32 %v2972, 7
        %v2974 = vsub.s32 7, %v2973
        %v2975 = vrot.slane %v2570, %v2974
        %v2976 = vlaneseq
        %v2977 = vshrl.u32 %v2976, 7
        %v2978 = vsub.s32 0, %v2977
        %v2979 = vrot.slane %v2571, %v2978
        %v2980 = vlaneseq
        %v2981 = vshrl.u32 %v2980, 7
        %v2982 = vsub.s32 1, %v2981
        %v2983 = vrot.slane %v2571, %v2982
        %v2984 = vlaneseq
        %v2985 = vshrl.u32 %v2984, 7
        %v2986 = vsub.s32 2, %v2985
        %v2987 = vrot.slane %v2571, %v2986
        %v2988 = vlaneseq
        %v2989 = vshrl.u32 %v2988, 7
        %v2990 = vsub.s32 3, %v2989
        %v2991 = vrot.slane %v2571, %v2990
        %v2992 = vlaneseq
        %v2993 = vshrl.u32 %v2992, 7
        %v2994 = vsub.s32 4, %v2993
        %v2995 = vrot.slane %v2571, %v2994
        %v2996 = vlaneseq
        %v2997 = vshrl.u32 %v2996, 7
        %v2998 = vsub.s32 5, %v2997
        %v2999 = vrot.slane %v2571, %v2998
        %v3000 = vlaneseq
        %v3001 = vshrl.u32 %v3000, 7
        %v3002 = vsub.s32 6, %v3001
        %v3003 = vrot.slane %v2571, %v3002
        %v3004 = vlaneseq
        %v3005 = vshrl.u32 %v3004, 7
        %v3006 = vsub.s32 7, %v3005
        %v3007 = vrot.slane %v2571, %v3006
        %v3008 = vlaneseq
        %v3009 = vshrl.u32 %v3008, 7
        %v3010 = vsub.s32 0, %v3009
        %v3011 = vrot.slane %v2572, %v3010
        %v3012 = vlaneseq
        %v3013 = vshrl.u32 %v3012, 7
        %v3014 = vsub.s32 1, %v3013
        %v3015 = vrot.slane %v2572, %v3014
        %v3016 = vlaneseq
        %v3017 = vshrl.u32 %v3016, 7
        %v3018 = vsub.s32 2, %v3017
        %v3019 = vrot.slane %v2572, %v3018
        %v3020 = vlaneseq
        %v3021 = vshrl.u32 %v3020, 7
        %v3022 = vsub.s32 3, %v3021
        %v3023 = vrot.slane %v2572, %v3022
        %v3024 = vlaneseq
        %v3025 = vshrl.u32 %v3024, 7
        %v3026 = vsub.s32 4, %v3025
        %v3027 = vrot.slane %v2572, %v3026
        %v3028 = vlaneseq
        %v3029 = vshrl.u32 %v3028, 7
        %v3030 = vsub.s32 5, %v3029
        %v3031 = vrot.slane %v2572, %v3030
        %v3032 = vlaneseq
        %v3033 = vshrl.u32 %v3032, 7
        %v3034 = vsub.s32 6, %v3033
        %v3035 = vrot.slane %v2572, %v3034
        %v3036 = vlaneseq
        %v3037 = vshrl.u32 %v3036, 7
        %v3038 = vsub.s32 7, %v3037
        %v3039 = vrot.slane %v2572, %v3038
        %v3040 = vlaneseq
        %v3041 = vshrl.u32 %v3040, 7
        %v3042 = vsub.s32 0, %v3041
        %v3043 = vrot.slane %v2573, %v3042
        %v3044 = vlaneseq
        %v3045 = vshrl.u32 %v3044, 7
        %v3046 = vsub.s32 1, %v3045
        %v3047 = vrot.slane %v2573, %v3046
        %v3048 = vlaneseq
        %v3049 = vshrl.u32 %v3048, 7
        %v3050 = vsub.s32 2, %v3049
        %v3051 = vrot.slane %v2573, %v3050
        %v3052 = vlaneseq
        %v3053 = vshrl.u32 %v3052, 7
        %v3054 = vsub.s32 3, %v3053
        %v3055 = vrot.slane %v2573, %v3054
        %v3056 = vlaneseq
        %v3057 = vshrl.u32 %v3056, 7
        %v3058 = vsub.s32 4, %v3057
        %v3059 = vrot.slane %v2573, %v3058
        %v3060 = vlaneseq
        %v3061 = vshrl.u32 %v3060, 7
        %v3062 = vsub.s32 5, %v3061
        %v3063 = vrot.slane %v2573, %v3062
        %v3064 = vlaneseq
        %v3065 = vshrl.u32 %v3064, 7
        %v3066 = vsub.s32 6, %v3065
        %v3067 = vrot.slane %v2573, %v3066
        %v3068 = vlaneseq
        %v3069 = vshrl.u32 %v3068, 7
        %v3070 = vsub.s32 7, %v3069
        %v3071 = vrot.slane %v2573, %v3070
        %v3072 = vlaneseq
        %v3073 = vshrl.u32 %v3072, 7
        %v3074 = vsub.s32 0, %v3073
        %v3075 = vrot.slane %v2574, %v3074
        %v3076 = vlaneseq
        %v3077 = vshrl.u32 %v3076, 7
        %v3078 = vsub.s32 1, %v3077
        %v3079 = vrot.slane %v2574, %v3078
        %v3080 = vlaneseq
        %v3081 = vshrl.u32 %v3080, 7
        %v3082 = vsub.s32 2, %v3081
        %v3083 = vrot.slane %v2574, %v3082
        %v3084 = vlaneseq
        %v3085 = vshrl.u32 %v3084, 7
        %v3086 = vsub.s32 3, %v3085
        %v3087 = vrot.slane %v2574, %v3086
        %v3088 = vlaneseq
        %v3089 = vshrl.u32 %v3088, 7
        %v3090 = vsub.s32 4, %v3089
        %v3091 = vrot.slane %v2574, %v3090
        %v3092 = vlaneseq
        %v3093 = vshrl.u32 %v3092, 7
        %v3094 = vsub.s32 5, %v3093
        %v3095 = vrot.slane %v2574, %v3094
        %v3096 = vlaneseq
        %v3097 = vshrl.u32 %v3096, 7
        %v3098 = vsub.s32 6, %v3097
        %v3099 = vrot.slane %v2574, %v3098
        %v3100 = vlaneseq
        %v3101 = vshrl.u32 %v3100, 7
        %v3102 = vsub.s32 7, %v3101
        %v3103 = vrot.slane %v2574, %v3102
        %v3104 = vlaneseq
        %v3105 = vshrl.u32 %v3104, 7
        %v3106 = vsub.s32 0, %v3105
        %v3107 = vrot.slane %v2575, %v3106
        %v3108 = vlaneseq
        %v3109 = vshrl.u32 %v3108, 7
        %v3110 = vsub.s32 1, %v3109
        %v3111 = vrot.slane %v2575, %v3110
        %v3112 = vlaneseq
        %v3113 = vshrl.u32 %v3112, 7
        %v3114 = vsub.s32 2, %v3113
        %v3115 = vrot.slane %v2575, %v3114
        %v3116 = vlaneseq
        %v3117 = vshrl.u32 %v3116, 7
        %v3118 = vsub.s32 3, %v3117
        %v3119 = vrot.slane %v2575, %v3118
        %v3120 = vlaneseq
        %v3121 = vshrl.u32 %v3120, 7
        %v3122 = vsub.s32 4, %v3121
        %v3123 = vrot.slane %v2575, %v3122
        %v3124 = vlaneseq
        %v3125 = vshrl.u32 %v3124, 7
        %v3126 = vsub.s32 5, %v3125
        %v3127 = vrot.slane %v2575, %v3126
        %v3128 = vlaneseq
        %v3129 = vshrl.u32 %v3128, 7
        %v3130 = vsub.s32 6, %v3129
        %v3131 = vrot.slane %v2575, %v3130
        %v3132 = vlaneseq
        %v3133 = vshrl.u32 %v3132, 7
        %v3134 = vsub.s32 7, %v3133
        %v3135 = vrot.slane %v2575, %v3134
        %v3136 = vlaneseq
        %v3137 = vshrl.u32 %v3136, 7
        %v3138 = vsub.s32 0, %v3137
        %v3139 = vrot.slane %v2576, %v3138
        %v3140 = vlaneseq
        %v3141 = vshrl.u32 %v3140, 7
        %v3142 = vsub.s32 1, %v3141
        %v3143 = vrot.slane %v2576, %v3142
        %v3144 = vlaneseq
        %v3145 = vshrl.u32 %v3144, 7
        %v3146 = vsub.s32 2, %v3145
        %v3147 = vrot.slane %v2576, %v3146
        %v3148 = vlaneseq
        %v3149 = vshrl.u32 %v3148, 7
        %v3150 = vsub.s32 3, %v3149
        %v3151 = vrot.slane %v2576, %v3150
        %v3152 = vlaneseq
        %v3153 = vshrl.u32 %v3152, 7
        %v3154 = vsub.s32 4, %v3153
        %v3155 = vrot.slane %v2576, %v3154
        %v3156 = vlaneseq
        %v3157 = vshrl.u32 %v3156, 7
        %v3158 = vsub.s32 5, %v3157
        %v3159 = vrot.slane %v2576, %v3158
        %v3160 = vlaneseq
        %v3161 = vshrl.u32 %v3160, 7
        %v3162 = vsub.s32 6, %v3161
        %v3163 = vrot.slane %v2576, %v3162
        %v3164 = vlaneseq
        %v3165 = vshrl.u32 %v3164, 7
        %v3166 = vsub.s32 7, %v3165
        %v3167 = vrot.slane %v2576, %v3166
        %v3168 = vlaneseq
        %v3169 = vshrl.u32 %v3168, 7
        %v3170 = vsub.s32 0, %v3169
        %v3171 = vrot.slane %v2577, %v3170
        %v3172 = vlaneseq
        %v3173 = vshrl.u32 %v3172, 7
        %v3174 = vsub.s32 1, %v3173
        %v3175 = vrot.slane %v2577, %v3174
        %v3176 = vlaneseq
        %v3177 = vshrl.u32 %v3176, 7
        %v3178 = vsub.s32 2, %v3177
        %v3179 = vrot.slane %v2577, %v3178
        %v3180 = vlaneseq
        %v3181 = vshrl.u32 %v3180, 7
        %v3182 = vsub.s32 3, %v3181
        %v3183 = vrot.slane %v2577, %v3182
        %v3184 = vlaneseq
        %v3185 = vshrl.u32 %v3184, 7
        %v3186 = vsub.s32 4, %v3185
        %v3187 = vrot.slane %v2577, %v3186
        %v3188 = vlaneseq
        %v3189 = vshrl.u32 %v3188, 7
        %v3190 = vsub.s32 5, %v3189
        %v3191 = vrot.slane %v2577, %v3190
        %v3192 = vlaneseq
        %v3193 = vshrl.u32 %v3192, 7
        %v3194 = vsub.s32 6, %v3193
        %v3195 = vrot.slane %v2577, %v3194
        %v3196 = vlaneseq
        %v3197 = vshrl.u32 %v3196, 7
        %v3198 = vsub.s32 7, %v3197
        %v3199 = vrot.slane %v2577, %v3198
        %v3200 = vlaneseq
        %v3201 = vshrl.u32 %v3200, 7
        %v3202 = vsub.s32 0, %v3201
        %v3203 = vrot.slane %v2578, %v3202
        %v3204 = vlaneseq
        %v3205 = vshrl.u32 %v3204, 7
        %v3206 = vsub.s32 1, %v3205
        %v3207 = vrot.slane %v2578, %v3206
        %v3208 = vlaneseq
        %v3209 = vshrl.u32 %v3208, 7
        %v3210 = vsub.s32 2, %v3209
        %v3211 = vrot.slane %v2578, %v3210
        %v3212 = vlaneseq
        %v3213 = vshrl.u32 %v3212, 7
        %v3214 = vsub.s32 3, %v3213
        %v3215 = vrot.slane %v2578, %v3214
        %v3216 = vlaneseq
        %v3217 = vshrl.u32 %v3216, 7
        %v3218 = vsub.s32 4, %v3217
        %v3219 = vrot.slane %v2578, %v3218
        %v3220 = vlaneseq
        %v3221 = vshrl.u32 %v3220, 7
        %v3222 = vsub.s32 5, %v3221
        %v3223 = vrot.slane %v2578, %v3222
        %v3224 = vlaneseq
        %v3225 = vshrl.u32 %v3224, 7
        %v3226 = vsub.s32 6, %v3225
        %v3227 = vrot.slane %v2578, %v3226
        %v3228 = vlaneseq
        %v3229 = vshrl.u32 %v3228, 7
        %v3230 = vsub.s32 7, %v3229
        %v3231 = vrot.slane %v2578, %v3230
        %v3232 = vlaneseq
        %v3233 = vshrl.u32 %v3232, 7
        %v3234 = vsub.s32 0, %v3233
        %v3235 = vrot.slane %v2579, %v3234
        %v3236 = vlaneseq
        %v3237 = vshrl.u32 %v3236, 7
        %v3238 = vsub.s32 1, %v3237
        %v3239 = vrot.slane %v2579, %v3238
        %v3240 = vlaneseq
        %v3241 = vshrl.u32 %v3240, 7
        %v3242 = vsub.s32 2, %v3241
        %v3243 = vrot.slane %v2579, %v3242
        %v3244 = vlaneseq
        %v3245 = vshrl.u32 %v3244, 7
        %v3246 = vsub.s32 3, %v3245
        %v3247 = vrot.slane %v2579, %v3246
        %v3248 = vlaneseq
        %v3249 = vshrl.u32 %v3248, 7
        %v3250 = vsub.s32 4, %v3249
        %v3251 = vrot.slane %v2579, %v3250
        %v3252 = vlaneseq
        %v3253 = vshrl.u32 %v3252, 7
        %v3254 = vsub.s32 5, %v3253
        %v3255 = vrot.slane %v2579, %v3254
        %v3256 = vlaneseq
        %v3257 = vshrl.u32 %v3256, 7
        %v3258 = vsub.s32 6, %v3257
        %v3259 = vrot.slane %v2579, %v3258
        %v3260 = vlaneseq
        %v3261 = vshrl.u32 %v3260, 7
        %v3262 = vsub.s32 7, %v3261
        %v3263 = vrot.slane %v2579, %v3262
        %v3264 = vlaneseq
        %v3265 = vshrl.u32 %v3264, 7
        %v3266 = vsub.s32 0, %v3265
        %v3267 = vrot.slane %v2580, %v3266
        %v3268 = vlaneseq
        %v3269 = vshrl.u32 %v3268, 7
        %v3270 = vsub.s32 1, %v3269
        %v3271 = vrot.slane %v2580, %v3270
        %v3272 = vlaneseq
        %v3273 = vshrl.u32 %v3272, 7
        %v3274 = vsub.s32 2, %v3273
        %v3275 = vrot.slane %v2580, %v3274
        %v3276 = vlaneseq
        %v3277 = vshrl.u32 %v3276, 7
        %v3278 = vsub.s32 3, %v3277
        %v3279 = vrot.slane %v2580, %v3278
        %v3280 = vlaneseq
        %v3281 = vshrl.u32 %v3280, 7
        %v3282 = vsub.s32 4, %v3281
        %v3283 = vrot.slane %v2580, %v3282
        %v3284 = vlaneseq
        %v3285 = vshrl.u32 %v3284, 7
        %v3286 = vsub.s32 5, %v3285
        %v3287 = vrot.slane %v2580, %v3286
        %v3288 = vlaneseq
        %v3289 = vshrl.u32 %v3288, 7
        %v3290 = vsub.s32 6, %v3289
        %v3291 = vrot.slane %v2580, %v3290
        %v3292 = vlaneseq
        %v3293 = vshrl.u32 %v3292, 7
        %v3294 = vsub.s32 7, %v3293
        %v3295 = vrot.slane %v2580, %v3294
        %v3296 = vlaneseq
        %v3297 = vshrl.u32 %v3296, 7
        %v3298 = vsub.s32 0, %v3297
        %v3299 = vrot.slane %v2581, %v3298
        %v3300 = vlaneseq
        %v3301 = vshrl.u32 %v3300, 7
        %v3302 = vsub.s32 1, %v3301
        %v3303 = vrot.slane %v2581, %v3302
        %v3304 = vlaneseq
        %v3305 = vshrl.u32 %v3304, 7
        %v3306 = vsub.s32 2, %v3305
        %v3307 = vrot.slane %v2581, %v3306
        %v3308 = vlaneseq
        %v3309 = vshrl.u32 %v3308, 7
        %v3310 = vsub.s32 3, %v3309
        %v3311 = vrot.slane %v2581, %v3310
        %v3312 = vlaneseq
        %v3313 = vshrl.u32 %v3312, 7
        %v3314 = vsub.s32 4, %v3313
        %v3315 = vrot.slane %v2581, %v3314
        %v3316 = vlaneseq
        %v3317 = vshrl.u32 %v3316, 7
        %v3318 = vsub.s32 5, %v3317
        %v3319 = vrot.slane %v2581, %v3318
        %v3320 = vlaneseq
        %v3321 = vshrl.u32 %v3320, 7
        %v3322 = vsub.s32 6, %v3321
        %v3323 = vrot.slane %v2581, %v3322
        %v3324 = vlaneseq
        %v3325 = vshrl.u32 %v3324, 7
        %v3326 = vsub.s32 7, %v3325
        %v3327 = vrot.slane %v2581, %v3326
        %v3328 = vlaneseq
        %v3329 = vshrl.u32 %v3328, 7
        %v3330 = vsub.s32 0, %v3329
        %v3331 = vrot.slane %v2582, %v3330
        %v3332 = vlaneseq
        %v3333 = vshrl.u32 %v3332, 7
        %v3334 = vsub.s32 1, %v3333
        %v3335 = vrot.slane %v2582, %v3334
        %v3336 = vlaneseq
        %v3337 = vshrl.u32 %v3336, 7
        %v3338 = vsub.s32 2, %v3337
        %v3339 = vrot.slane %v2582, %v3338
        %v3340 = vlaneseq
        %v3341 = vshrl.u32 %v3340, 7
        %v3342 = vsub.s32 3, %v3341
        %v3343 = vrot.slane %v2582, %v3342
        %v3344 = vlaneseq
        %v3345 = vshrl.u32 %v3344, 7
        %v3346 = vsub.s32 4, %v3345
        %v3347 = vrot.slane %v2582, %v3346
        %v3348 = vlaneseq
        %v3349 = vshrl.u32 %v3348, 7
        %v3350 = vsub.s32 5, %v3349
        %v3351 = vrot.slane %v2582, %v3350
        %v3352 = vlaneseq
        %v3353 = vshrl.u32 %v3352, 7
        %v3354 = vsub.s32 6, %v3353
        %v3355 = vrot.slane %v2582, %v3354
        %v3356 = vlaneseq
        %v3357 = vshrl.u32 %v3356, 7
        %v3358 = vsub.s32 7, %v3357
        %v3359 = vrot.slane %v2582, %v3358
        %v3360 = vlaneseq
        %v3361 = vshrl.u32 %v3360, 7
        %v3362 = vsub.s32 0, %v3361
        %v3363 = vrot.slane %v2583, %v3362
        %v3364 = vlaneseq
        %v3365 = vshrl.u32 %v3364, 7
        %v3366 = vsub.s32 1, %v3365
        %v3367 = vrot.slane %v2583, %v3366
        %v3368 = vlaneseq
        %v3369 = vshrl.u32 %v3368, 7
        %v3370 = vsub.s32 2, %v3369
        %v3371 = vrot.slane %v2583, %v3370
        %v3372 = vlaneseq
        %v3373 = vshrl.u32 %v3372, 7
        %v3374 = vsub.s32 3, %v3373
        %v3375 = vrot.slane %v2583, %v3374
        %v3376 = vlaneseq
        %v3377 = vshrl.u32 %v3376, 7
        %v3378 = vsub.s32 4, %v3377
        %v3379 = vrot.slane %v2583, %v3378
        %v3380 = vlaneseq
        %v3381 = vshrl.u32 %v3380, 7
        %v3382 = vsub.s32 5, %v3381
        %v3383 = vrot.slane %v2583, %v3382
        %v3384 = vlaneseq
        %v3385 = vshrl.u32 %v3384, 7
        %v3386 = vsub.s32 6, %v3385
        %v3387 = vrot.slane %v2583, %v3386
        %v3388 = vlaneseq
        %v3389 = vshrl.u32 %v3388, 7
        %v3390 = vsub.s32 7, %v3389
        %v3391 = vrot.slane %v2583, %v3390
        %v3392 = vlaneseq
        %v3393 = vshrl.u32 %v3392, 7
        %v3394 = vsub.s32 0, %v3393
        %v3395 = vrot.slane %v2584, %v3394
        %v3396 = vlaneseq
        %v3397 = vshrl.u32 %v3396, 7
        %v3398 = vsub.s32 1, %v3397
        %v3399 = vrot.slane %v2584, %v3398
        %v3400 = vlaneseq
        %v3401 = vshrl.u32 %v3400, 7
        %v3402 = vsub.s32 2, %v3401
        %v3403 = vrot.slane %v2584, %v3402
        %v3404 = vlaneseq
        %v3405 = vshrl.u32 %v3404, 7
        %v3406 = vsub.s32 3, %v3405
        %v3407 = vrot.slane %v2584, %v3406
        %v3408 = vlaneseq
        %v3409 = vshrl.u32 %v3408, 7
        %v3410 = vsub.s32 4, %v3409
        %v3411 = vrot.slane %v2584, %v3410
        %v3412 = vlaneseq
        %v3413 = vshrl.u32 %v3412, 7
        %v3414 = vsub.s32 5, %v3413
        %v3415 = vrot.slane %v2584, %v3414
        %v3416 = vlaneseq
        %v3417 = vshrl.u32 %v3416, 7
        %v3418 = vsub.s32 6, %v3417
        %v3419 = vrot.slane %v2584, %v3418
        %v3420 = vlaneseq
        %v3421 = vshrl.u32 %v3420, 7
        %v3422 = vsub.s32 7, %v3421
        %v3423 = vrot.slane %v2584, %v3422
        %v3424 = vlaneseq
        %v3425 = vshrl.u32 %v3424, 7
        %v3426 = vsub.s32 0, %v3425
        %v3427 = vrot.slane %v2585, %v3426
        %v3428 = vlaneseq
        %v3429 = vshrl.u32 %v3428, 7
        %v3430 = vsub.s32 1, %v3429
        %v3431 = vrot.slane %v2585, %v3430
        %v3432 = vlaneseq
        %v3433 = vshrl.u32 %v3432, 7
        %v3434 = vsub.s32 2, %v3433
        %v3435 = vrot.slane %v2585, %v3434
        %v3436 = vlaneseq
        %v3437 = vshrl.u32 %v3436, 7
        %v3438 = vsub.s32 3, %v3437
        %v3439 = vrot.slane %v2585, %v3438
        %v3440 = vlaneseq
        %v3441 = vshrl.u32 %v3440, 7
        %v3442 = vsub.s32 4, %v3441
        %v3443 = vrot.slane %v2585, %v3442
        %v3444 = vlaneseq
        %v3445 = vshrl.u32 %v3444, 7
        %v3446 = vsub.s32 5, %v3445
        %v3447 = vrot.slane %v2585, %v3446
        %v3448 = vlaneseq
        %v3449 = vshrl.u32 %v3448, 7
        %v3450 = vsub.s32 6, %v3449
        %v3451 = vrot.slane %v2585, %v3450
        %v3452 = vlaneseq
        %v3453 = vshrl.u32 %v3452, 7
        %v3454 = vsub.s32 7, %v3453
        %v3455 = vrot.slane %v2585, %v3454
        %v3456 = vlaneseq
        %v3457 = vshrl.u32 %v3456, 7
        %v3458 = vsub.s32 0, %v3457
        %v3459 = vrot.slane %v2586, %v3458
        %v3460 = vlaneseq
        %v3461 = vshrl.u32 %v3460, 7
        %v3462 = vsub.s32 1, %v3461
        %v3463 = vrot.slane %v2586, %v3462
        %v3464 = vlaneseq
        %v3465 = vshrl.u32 %v3464, 7
        %v3466 = vsub.s32 2, %v3465
        %v3467 = vrot.slane %v2586, %v3466
        %v3468 = vlaneseq
        %v3469 = vshrl.u32 %v3468, 7
        %v3470 = vsub.s32 3, %v3469
        %v3471 = vrot.slane %v2586, %v3470
        %v3472 = vlaneseq
        %v3473 = vshrl.u32 %v3472, 7
        %v3474 = vsub.s32 4, %v3473
        %v3475 = vrot.slane %v2586, %v3474
        %v3476 = vlaneseq
        %v3477 = vshrl.u32 %v3476, 7
        %v3478 = vsub.s32 5, %v3477
        %v3479 = vrot.slane %v2586, %v3478
        %v3480 = vlaneseq
        %v3481 = vshrl.u32 %v3480, 7
        %v3482 = vsub.s32 6, %v3481
        %v3483 = vrot.slane %v2586, %v3482
        %v3484 = vlaneseq
        %v3485 = vshrl.u32 %v3484, 7
        %v3486 = vsub.s32 7, %v3485
        %v3487 = vrot.slane %v2586, %v3486
        %v3488 = vlaneseq
        %v3489 = vshrl.u32 %v3488, 7
        %v3490 = vsub.s32 0, %v3489
        %v3491 = vrot.slane %v2587, %v3490
        %v3492 = vlaneseq
        %v3493 = vshrl.u32 %v3492, 7
        %v3494 = vsub.s32 1, %v3493
        %v3495 = vrot.slane %v2587, %v3494
        %v3496 = vlaneseq
        %v3497 = vshrl.u32 %v3496, 7
        %v3498 = vsub.s32 2, %v3497
        %v3499 = vrot.slane %v2587, %v3498
        %v3500 = vlaneseq
        %v3501 = vshrl.u32 %v3500, 7
        %v3502 = vsub.s32 3, %v3501
        %v3503 = vrot.slane %v2587, %v3502
        %v3504 = vlaneseq
        %v3505 = vshrl.u32 %v3504, 7
        %v3506 = vsub.s32 4, %v3505
        %v3507 = vrot.slane %v2587, %v3506
        %v3508 = vlaneseq
        %v3509 = vshrl.u32 %v3508, 7
        %v3510 = vsub.s32 5, %v3509
        %v3511 = vrot.slane %v2587, %v3510
        %v3512 = vlaneseq
        %v3513 = vshrl.u32 %v3512, 7
        %v3514 = vsub.s32 6, %v3513
        %v3515 = vrot.slane %v2587, %v3514
        %v3516 = vlaneseq
        %v3517 = vshrl.u32 %v3516, 7
        %v3518 = vsub.s32 7, %v3517
        %v3519 = vrot.slane %v2587, %v3518
        %v3520 = vlaneseq
        %v3521 = vshrl.u32 %v3520, 7
        %v3522 = vsub.s32 0, %v3521
        %v3523 = vrot.slane %v2588, %v3522
        %v3524 = vlaneseq
        %v3525 = vshrl.u32 %v3524, 7
        %v3526 = vsub.s32 1, %v3525
        %v3527 = vrot.slane %v2588, %v3526
        %v3528 = vlaneseq
        %v3529 = vshrl.u32 %v3528, 7
        %v3530 = vsub.s32 2, %v3529
        %v3531 = vrot.slane %v2588, %v3530
        %v3532 = vlaneseq
        %v3533 = vshrl.u32 %v3532, 7
        %v3534 = vsub.s32 3, %v3533
        %v3535 = vrot.slane %v2588, %v3534
        %v3536 = vlaneseq
        %v3537 = vshrl.u32 %v3536, 7
        %v3538 = vsub.s32 4, %v3537
        %v3539 = vrot.slane %v2588, %v3538
        %v3540 = vlaneseq
        %v3541 = vshrl.u32 %v3540, 7
        %v3542 = vsub.s32 5, %v3541
        %v3543 = vrot.slane %v2588, %v3542
        %v3544 = vlaneseq
        %v3545 = vshrl.u32 %v3544, 7
        %v3546 = vsub.s32 6, %v3545
        %v3547 = vrot.slane %v2588, %v3546
        %v3548 = vlaneseq
        %v3549 = vshrl.u32 %v3548, 7
        %v3550 = vsub.s32 7, %v3549
        %v3551 = vrot.slane %v2588, %v3550
        %v3552 = vlaneseq
        %v3553 = vshrl.u32 %v3552, 7
        %v3554 = vsub.s32 0, %v3553
        %v3555 = vrot.slane %v2589, %v3554
        %v3556 = vlaneseq
        %v3557 = vshrl.u32 %v3556, 7
        %v3558 = vsub.s32 1, %v3557
        %v3559 = vrot.slane %v2589, %v3558
        %v3560 = vlaneseq
        %v3561 = vshrl.u32 %v3560, 7
        %v3562 = vsub.s32 2, %v3561
        %v3563 = vrot.slane %v2589, %v3562
        %v3564 = vlaneseq
        %v3565 = vshrl.u32 %v3564, 7
        %v3566 = vsub.s32 3, %v3565
        %v3567 = vrot.slane %v2589, %v3566
        %v3568 = vlaneseq
        %v3569 = vshrl.u32 %v3568, 7
        %v3570 = vsub.s32 4, %v3569
        %v3571 = vrot.slane %v2589, %v3570
        %v3572 = vlaneseq
        %v3573 = vshrl.u32 %v3572, 7
        %v3574 = vsub.s32 5, %v3573
        %v3575 = vrot.slane %v2589, %v3574
        %v3576 = vlaneseq
        %v3577 = vshrl.u32 %v3576, 7
        %v3578 = vsub.s32 6, %v3577
        %v3579 = vrot.slane %v2589, %v3578
        %v3580 = vlaneseq
        %v3581 = vshrl.u32 %v3580, 7
        %v3582 = vsub.s32 7, %v3581
        %v3583 = vrot.slane %v2589, %v3582
        %v3584 = vlaneseq
        %v3585 = vshrl.u32 %v3584, 7
        %v3586 = vsub.s32 0, %v3585
        %v3587 = vrot.slane %v2590, %v3586
        %v3588 = vlaneseq
        %v3589 = vshrl.u32 %v3588, 7
        %v3590 = vsub.s32 1, %v3589
        %v3591 = vrot.slane %v2590, %v3590
        %v3592 = vlaneseq
        %v3593 = vshrl.u32 %v3592, 7
        %v3594 = vsub.s32 2, %v3593
        %v3595 = vrot.slane %v2590, %v3594
        %v3596 = vlaneseq
        %v3597 = vshrl.u32 %v3596, 7
        %v3598 = vsub.s32 3, %v3597
        %v3599 = vrot.slane %v2590, %v3598
        %v3600 = vlaneseq
        %v3601 = vshrl.u32 %v3600, 7
        %v3602 = vsub.s32 4, %v3601
        %v3603 = vrot.slane %v2590, %v3602
        %v3604 = vlaneseq
        %v3605 = vshrl.u32 %v3604, 7
        %v3606 = vsub.s32 5, %v3605
        %v3607 = vrot.slane %v2590, %v3606
        %v3608 = vlaneseq
        %v3609 = vshrl.u32 %v3608, 7
        %v3610 = vsub.s32 6, %v3609
        %v3611 = vrot.slane %v2590, %v3610
        %v3612 = vlaneseq
        %v3613 = vshrl.u32 %v3612, 7
        %v3614 = vsub.s32 7, %v3613
        %v3615 = vrot.slane %v2590, %v3614
        %v3616 = vlaneseq
        %v3617 = vshrl.u32 %v3616, 7
        %v3618 = vsub.s32 0, %v3617
        %v3619 = vrot.slane %v2591, %v3618
        %v3620 = vlaneseq
        %v3621 = vshrl.u32 %v3620, 7
        %v3622 = vsub.s32 1, %v3621
        %v3623 = vrot.slane %v2591, %v3622
        %v3624 = vlaneseq
        %v3625 = vshrl.u32 %v3624, 7
        %v3626 = vsub.s32 2, %v3625
        %v3627 = vrot.slane %v2591, %v3626
        %v3628 = vlaneseq
        %v3629 = vshrl.u32 %v3628, 7
        %v3630 = vsub.s32 3, %v3629
        %v3631 = vrot.slane %v2591, %v3630
        %v3632 = vlaneseq
        %v3633 = vshrl.u32 %v3632, 7
        %v3634 = vsub.s32 4, %v3633
        %v3635 = vrot.slane %v2591, %v3634
        %v3636 = vlaneseq
        %v3637 = vshrl.u32 %v3636, 7
        %v3638 = vsub.s32 5, %v3637
        %v3639 = vrot.slane %v2591, %v3638
        %v3640 = vlaneseq
        %v3641 = vshrl.u32 %v3640, 7
        %v3642 = vsub.s32 6, %v3641
        %v3643 = vrot.slane %v2591, %v3642
        %v3644 = vlaneseq
        %v3645 = vshrl.u32 %v3644, 7
        %v3646 = vsub.s32 7, %v3645
        %v3647 = vrot.slane %v2591, %v3646
        %v3648 = vcombine.low %v2627, %v2631
        %v3649 = vcombine.low %v2635, %v2639
        %v3650 = vcombine.low %v2643, %v2647
        %v3651 = vcombine.low %v2651, %v2655
        %v3653 = vunpack.c.l.s4 1966171168
        %v3654 = vunpack.c.0.s8 %v3653
        %v3655 = vlaneseq
        %v3656 = vshrl.u32 %v3655, 7
        %v3657 = vsub.s32 %v3654, %v3656
        %v3658 = vrot.slane %v3648, %v3657
        %v3660 = vunpack.c.l.s4 1966171168
        %v3661 = vunpack.c.0.s8 %v3660
        %v3662 = vlaneseq
        %v3663 = vshrl.u32 %v3662, 7
        %v3664 = vsub.s32 %v3661, %v3663
        %v3665 = vrot.slane %v3649, %v3664
        %v3667 = vunpack.c.l.s4 1966171168
        %v3668 = vunpack.c.0.s8 %v3667
        %v3669 = vlaneseq
        %v3670 = vshrl.u32 %v3669, 7
        %v3671 = vsub.s32 %v3668, %v3670
        %v3672 = vrot.slane %v3650, %v3671
        %v3674 = vunpack.c.l.s4 1966171168
        %v3675 = vunpack.c.0.s8 %v3674
        %v3676 = vlaneseq
        %v3677 = vshrl.u32 %v3676, 7
        %v3678 = vsub.s32 %v3675, %v3677
        %v3679 = vrot.slane %v3651, %v3678
        %v3680 = vcombine.low %v3658, %v3665
        %v3681 = vcombine.low %v3672, %v3679
        %v3683 = vunpack.c.l.s4 1966171168
        %v3684 = vunpack.c.0.s8 %v3683
        %v3685 = vlaneseq
        %v3686 = vshrl.u32 %v3685, 7
        %v3687 = vsub.s32 %v3684, %v3686
        %v3688 = vrot.slane %v3680, %v3687
        %v3690 = vunpack.c.l.s4 1966171168
        %v3691 = vunpack.c.0.s8 %v3690
        %v3692 = vlaneseq
        %v3693 = vshrl.u32 %v3692, 7
        %v3694 = vsub.s32 %v3691, %v3693
        %v3695 = vrot.slane %v3681, %v3694
        %v3696 = vcombine.low %v3688, %v3695
        %v3697 = vcombine.low %v2659, %v2663
        %v3698 = vcombine.low %v2667, %v2671
        %v3699 = vcombine.low %v2675, %v2679
        %v3700 = vcombine.low %v2683, %v2687
        %v3702 = vunpack.c.l.s4 1966171168
        %v3703 = vunpack.c.0.s8 %v3702
        %v3704 = vlaneseq
        %v3705 = vshrl.u32 %v3704, 7
        %v3706 = vsub.s32 %v3703, %v3705
        %v3707 = vrot.slane %v3697, %v3706
        %v3709 = vunpack.c.l.s4 1966171168
        %v3710 = vunpack.c.0.s8 %v3709
        %v3711 = vlaneseq
        %v3712 = vshrl.u32 %v3711, 7
        %v3713 = vsub.s32 %v3710, %v3712
        %v3714 = vrot.slane %v3698, %v3713
        %v3716 = vunpack.c.l.s4 1966171168
        %v3717 = vunpack.c.0.s8 %v3716
        %v3718 = vlaneseq
        %v3719 = vshrl.u32 %v3718, 7
        %v3720 = vsub.s32 %v3717, %v3719
        %v3721 = vrot.slane %v3699, %v3720
        %v3723 = vunpack.c.l.s4 1966171168
        %v3724 = vunpack.c.0.s8 %v3723
        %v3725 = vlaneseq
        %v3726 = vshrl.u32 %v3725, 7
        %v3727 = vsub.s32 %v3724, %v3726
        %v3728 = vrot.slane %v3700, %v3727
        %v3729 = vcombine.low %v3707, %v3714
        %v3730 = vcombine.low %v3721, %v3728
        %v3732 = vunpack.c.l.s4 1966171168
        %v3733 = vunpack.c.0.s8 %v3732
        %v3734 = vlaneseq
        %v3735 = vshrl.u32 %v3734, 7
        %v3736 = vsub.s32 %v3733, %v3735
        %v3737 = vrot.slane %v3729, %v3736
        %v3739 = vunpack.c.l.s4 1966171168
        %v3740 = vunpack.c.0.s8 %v3739
        %v3741 = vlaneseq
        %v3742 = vshrl.u32 %v3741, 7
        %v3743 = vsub.s32 %v3740, %v3742
        %v3744 = vrot.slane %v3730, %v3743
        %v3745 = vcombine.low %v3737, %v3744
        %v3746 = vcombine.low %v2691, %v2695
        %v3747 = vcombine.low %v2699, %v2703
        %v3748 = vcombine.low %v2707, %v2711
        %v3749 = vcombine.low %v2715, %v2719
        %v3751 = vunpack.c.l.s4 1966171168
        %v3752 = vunpack.c.0.s8 %v3751
        %v3753 = vlaneseq
        %v3754 = vshrl.u32 %v3753, 7
        %v3755 = vsub.s32 %v3752, %v3754
        %v3756 = vrot.slane %v3746, %v3755
        %v3758 = vunpack.c.l.s4 1966171168
        %v3759 = vunpack.c.0.s8 %v3758
        %v3760 = vlaneseq
        %v3761 = vshrl.u32 %v3760, 7
        %v3762 = vsub.s32 %v3759, %v3761
        %v3763 = vrot.slane %v3747, %v3762
        %v3765 = vunpack.c.l.s4 1966171168
        %v3766 = vunpack.c.0.s8 %v3765
        %v3767 = vlaneseq
        %v3768 = vshrl.u32 %v3767, 7
        %v3769 = vsub.s32 %v3766, %v3768
        %v3770 = vrot.slane %v3748, %v3769
        %v3772 = vunpack.c.l.s4 1966171168
        %v3773 = vunpack.c.0.s8 %v3772
        %v3774 = vlaneseq
        %v3775 = vshrl.u32 %v3774, 7
        %v3776 = vsub.s32 %v3773, %v3775
        %v3777 = vrot.slane %v3749, %v3776
        %v3778 = vcombine.low %v3756, %v3763
        %v3779 = vcombine.low %v3770, %v3777
        %v3781 = vunpack.c.l.s4 1966171168
        %v3782 = vunpack.c.0.s8 %v3781
        %v3783 = vlaneseq
        %v3784 = vshrl.u32 %v3783, 7
        %v3785 = vsub.s32 %v3782, %v3784
        %v3786 = vrot.slane %v3778, %v3785
        %v3788 = vunpack.c.l.s4 1966171168
        %v3789 = vunpack.c.0.s8 %v3788
        %v3790 = vlaneseq
        %v3791 = vshrl.u32 %v3790, 7
        %v3792 = vsub.s32 %v3789, %v3791
        %v3793 = vrot.slane %v3779, %v3792
        %v3794 = vcombine.low %v3786, %v3793
        %v3795 = vcombine.low %v2723, %v2727
        %v3796 = vcombine.low %v2731, %v2735
        %v3797 = vcombine.low %v2739, %v2743
        %v3798 = vcombine.low %v2747, %v2751
        %v3800 = vunpack.c.l.s4 1966171168
        %v3801 = vunpack.c.0.s8 %v3800
        %v3802 = vlaneseq
        %v3803 = vshrl.u32 %v3802, 7
        %v3804 = vsub.s32 %v3801, %v3803
        %v3805 = vrot.slane %v3795, %v3804
        %v3807 = vunpack.c.l.s4 1966171168
        %v3808 = vunpack.c.0.s8 %v3807
        %v3809 = vlaneseq
        %v3810 = vshrl.u32 %v3809, 7
        %v3811 = vsub.s32 %v3808, %v3810
        %v3812 = vrot.slane %v3796, %v3811
        %v3814 = vunpack.c.l.s4 1966171168
        %v3815 = vunpack.c.0.s8 %v3814
        %v3816 = vlaneseq
        %v3817 = vshrl.u32 %v3816, 7
        %v3818 = vsub.s32 %v3815, %v3817
        %v3819 = vrot.slane %v3797, %v3818
        %v3821 = vunpack.c.l.s4 1966171168
        %v3822 = vunpack.c.0.s8 %v3821
        %v3823 = vlaneseq
        %v3824 = vshrl.u32 %v3823, 7
        %v3825 = vsub.s32 %v3822, %v3824
        %v3826 = vrot.slane %v3798, %v3825
        %v3827 = vcombine.low %v3805, %v3812
        %v3828 = vcombine.low %v3819, %v3826
        %v3830 = vunpack.c.l.s4 1966171168
        %v3831 = vunpack.c.0.s8 %v3830
        %v3832 = vlaneseq
        %v3833 = vshrl.u32 %v3832, 7
        %v3834 = vsub.s32 %v3831, %v3833
        %v3835 = vrot.slane %v3827, %v3834
        %v3837 = vunpack.c.l.s4 1966171168
        %v3838 = vunpack.c.0.s8 %v3837
        %v3839 = vlaneseq
        %v3840 = vshrl.u32 %v3839, 7
        %v3841 = vsub.s32 %v3838, %v3840
        %v3842 = vrot.slane %v3828, %v3841
        %v3843 = vcombine.low %v3835, %v3842
        %v3844 = vcombine.low %v2755, %v2759
        %v3845 = vcombine.low %v2763, %v2767
        %v3846 = vcombine.low %v2771, %v2775
        %v3847 = vcombine.low %v2779, %v2783
        %v3849 = vunpack.c.l.s4 1966171168
        %v3850 = vunpack.c.0.s8 %v3849
        %v3851 = vlaneseq
        %v3852 = vshrl.u32 %v3851, 7
        %v3853 = vsub.s32 %v3850, %v3852
        %v3854 = vrot.slane %v3844, %v3853
        %v3856 = vunpack.c.l.s4 1966171168
        %v3857 = vunpack.c.0.s8 %v3856
        %v3858 = vlaneseq
        %v3859 = vshrl.u32 %v3858, 7
        %v3860 = vsub.s32 %v3857, %v3859
        %v3861 = vrot.slane %v3845, %v3860
        %v3863 = vunpack.c.l.s4 1966171168
        %v3864 = vunpack.c.0.s8 %v3863
        %v3865 = vlaneseq
        %v3866 = vshrl.u32 %v3865, 7
        %v3867 = vsub.s32 %v3864, %v3866
        %v3868 = vrot.slane %v3846, %v3867
        %v3870 = vunpack.c.l.s4 1966171168
        %v3871 = vunpack.c.0.s8 %v3870
        %v3872 = vlaneseq
        %v3873 = vshrl.u32 %v3872, 7
        %v3874 = vsub.s32 %v3871, %v3873
        %v3875 = vrot.slane %v3847, %v3874
        %v3876 = vcombine.low %v3854, %v3861
        %v3877 = vcombine.low %v3868, %v3875
        %v3879 = vunpack.c.l.s4 1966171168
        %v3880 = vunpack.c.0.s8 %v3879
        %v3881 = vlaneseq
        %v3882 = vshrl.u32 %v3881, 7
        %v3883 = vsub.s32 %v3880, %v3882
        %v3884 = vrot.slane %v3876, %v3883
        %v3886 = vunpack.c.l.s4 1966171168
        %v3887 = vunpack.c.0.s8 %v3886
        %v3888 = vlaneseq
        %v3889 = vshrl.u32 %v3888, 7
        %v3890 = vsub.s32 %v3887, %v3889
        %v3891 = vrot.slane %v3877, %v3890
        %v3892 = vcombine.low %v3884, %v3891
        %v3893 = vcombine.low %v2787, %v2791
        %v3894 = vcombine.low %v2795, %v2799
        %v3895 = vcombine.low %v2803, %v2807
        %v3896 = vcombine.low %v2811, %v2815
        %v3898 = vunpack.c.l.s4 1966171168
        %v3899 = vunpack.c.0.s8 %v3898
        %v3900 = vlaneseq
        %v3901 = vshrl.u32 %v3900, 7
        %v3902 = vsub.s32 %v3899, %v3901
        %v3903 = vrot.slane %v3893, %v3902
        %v3905 = vunpack.c.l.s4 1966171168
        %v3906 = vunpack.c.0.s8 %v3905
        %v3907 = vlaneseq
        %v3908 = vshrl.u32 %v3907, 7
        %v3909 = vsub.s32 %v3906, %v3908
        %v3910 = vrot.slane %v3894, %v3909
        %v3912 = vunpack.c.l.s4 1966171168
        %v3913 = vunpack.c.0.s8 %v3912
        %v3914 = vlaneseq
        %v3915 = vshrl.u32 %v3914, 7
        %v3916 = vsub.s32 %v3913, %v3915
        %v3917 = vrot.slane %v3895, %v3916
        %v3919 = vunpack.c.l.s4 1966171168
        %v3920 = vunpack.c.0.s8 %v3919
        %v3921 = vlaneseq
        %v3922 = vshrl.u32 %v3921, 7
        %v3923 = vsub.s32 %v3920, %v3922
        %v3924 = vrot.slane %v3896, %v3923
        %v3925 = vcombine.low %v3903, %v3910
        %v3926 = vcombine.low %v3917, %v3924
        %v3928 = vunpack.c.l.s4 1966171168
        %v3929 = vunpack.c.0.s8 %v3928
        %v3930 = vlaneseq
        %v3931 = vshrl.u32 %v3930, 7
        %v3932 = vsub.s32 %v3929, %v3931
        %v3933 = vrot.slane %v3925, %v3932
        %v3935 = vunpack.c.l.s4 1966171168
        %v3936 = vunpack.c.0.s8 %v3935
        %v3937 = vlaneseq
        %v3938 = vshrl.u32 %v3937, 7
        %v3939 = vsub.s32 %v3936, %v3938
        %v3940 = vrot.slane %v3926, %v3939
        %v3941 = vcombine.low %v3933, %v3940
        %v3942 = vcombine.low %v2819, %v2823
        %v3943 = vcombine.low %v2827, %v2831
        %v3944 = vcombine.low %v2835, %v2839
        %v3945 = vcombine.low %v2843, %v2847
        %v3947 = vunpack.c.l.s4 1966171168
        %v3948 = vunpack.c.0.s8 %v3947
        %v3949 = vlaneseq
        %v3950 = vshrl.u32 %v3949, 7
        %v3951 = vsub.s32 %v3948, %v3950
        %v3952 = vrot.slane %v3942, %v3951
        %v3954 = vunpack.c.l.s4 1966171168
        %v3955 = vunpack.c.0.s8 %v3954
        %v3956 = vlaneseq
        %v3957 = vshrl.u32 %v3956, 7
        %v3958 = vsub.s32 %v3955, %v3957
        %v3959 = vrot.slane %v3943, %v3958
        %v3961 = vunpack.c.l.s4 1966171168
        %v3962 = vunpack.c.0.s8 %v3961
        %v3963 = vlaneseq
        %v3964 = vshrl.u32 %v3963, 7
        %v3965 = vsub.s32 %v3962, %v3964
        %v3966 = vrot.slane %v3944, %v3965
        %v3968 = vunpack.c.l.s4 1966171168
        %v3969 = vunpack.c.0.s8 %v3968
        %v3970 = vlaneseq
        %v3971 = vshrl.u32 %v3970, 7
        %v3972 = vsub.s32 %v3969, %v3971
        %v3973 = vrot.slane %v3945, %v3972
        %v3974 = vcombine.low %v3952, %v3959
        %v3975 = vcombine.low %v3966, %v3973
        %v3977 = vunpack.c.l.s4 1966171168
        %v3978 = vunpack.c.0.s8 %v3977
        %v3979 = vlaneseq
        %v3980 = vshrl.u32 %v3979, 7
        %v3981 = vsub.s32 %v3978, %v3980
        %v3982 = vrot.slane %v3974, %v3981
        %v3984 = vunpack.c.l.s4 1966171168
        %v3985 = vunpack.c.0.s8 %v3984
        %v3986 = vlaneseq
        %v3987 = vshrl.u32 %v3986, 7
        %v3988 = vsub.s32 %v3985, %v3987
        %v3989 = vrot.slane %v3975, %v3988
        %v3990 = vcombine.low %v3982, %v3989
        %v3991 = vcombine.low %v2851, %v2855
        %v3992 = vcombine.low %v2859, %v2863
        %v3993 = vcombine.low %v2867, %v2871
        %v3994 = vcombine.low %v2875, %v2879
        %v3996 = vunpack.c.l.s4 1966171168
        %v3997 = vunpack.c.0.s8 %v3996
        %v3998 = vlaneseq
        %v3999 = vshrl.u32 %v3998, 7
        %v4000 = vsub.s32 %v3997, %v3999
        %v4001 = vrot.slane %v3991, %v4000
        %v4003 = vunpack.c.l.s4 1966171168
        %v4004 = vunpack.c.0.s8 %v4003
        %v4005 = vlaneseq
        %v4006 = vshrl.u32 %v4005, 7
        %v4007 = vsub.s32 %v4004, %v4006
        %v4008 = vrot.slane %v3992, %v4007
        %v4010 = vunpack.c.l.s4 1966171168
        %v4011 = vunpack.c.0.s8 %v4010
        %v4012 = vlaneseq
        %v4013 = vshrl.u32 %v4012, 7
        %v4014 = vsub.s32 %v4011, %v4013
        %v4015 = vrot.slane %v3993, %v4014
        %v4017 = vunpack.c.l.s4 1966171168
        %v4018 = vunpack.c.0.s8 %v4017
        %v4019 = vlaneseq
        %v4020 = vshrl.u32 %v4019, 7
        %v4021 = vsub.s32 %v4018, %v4020
        %v4022 = vrot.slane %v3994, %v4021
        %v4023 = vcombine.low %v4001, %v4008
        %v4024 = vcombine.low %v4015, %v4022
        %v4026 = vunpack.c.l.s4 1966171168
        %v4027 = vunpack.c.0.s8 %v4026
        %v4028 = vlaneseq
        %v4029 = vshrl.u32 %v4028, 7
        %v4030 = vsub.s32 %v4027, %v4029
        %v4031 = vrot.slane %v4023, %v4030
        %v4033 = vunpack.c.l.s4 1966171168
        %v4034 = vunpack.c.0.s8 %v4033
        %v4035 = vlaneseq
        %v4036 = vshrl.u32 %v4035, 7
        %v4037 = vsub.s32 %v4034, %v4036
        %v4038 = vrot.slane %v4024, %v4037
        %v4039 = vcombine.low %v4031, %v4038
        %v4040 = vcombine.low %v2883, %v2887
        %v4041 = vcombine.low %v2891, %v2895
        %v4042 = vcombine.low %v2899, %v2903
        %v4043 = vcombine.low %v2907, %v2911
        %v4045 = vunpack.c.l.s4 1966171168
        %v4046 = vunpack.c.0.s8 %v4045
        %v4047 = vlaneseq
        %v4048 = vshrl.u32 %v4047, 7
        %v4049 = vsub.s32 %v4046, %v4048
        %v4050 = vrot.slane %v4040, %v4049
        %v4052 = vunpack.c.l.s4 1966171168
        %v4053 = vunpack.c.0.s8 %v4052
        %v4054 = vlaneseq
        %v4055 = vshrl.u32 %v4054, 7
        %v4056 = vsub.s32 %v4053, %v4055
        %v4057 = vrot.slane %v4041, %v4056
        %v4059 = vunpack.c.l.s4 1966171168
        %v4060 = vunpack.c.0.s8 %v4059
        %v4061 = vlaneseq
        %v4062 = vshrl.u32 %v4061, 7
        %v4063 = vsub.s32 %v4060, %v4062
        %v4064 = vrot.slane %v4042, %v4063
        %v4066 = vunpack.c.l.s4 1966171168
        %v4067 = vunpack.c.0.s8 %v4066
        %v4068 = vlaneseq
        %v4069 = vshrl.u32 %v4068, 7
        %v4070 = vsub.s32 %v4067, %v4069
        %v4071 = vrot.slane %v4043, %v4070
        %v4072 = vcombine.low %v4050, %v4057
        %v4073 = vcombine.low %v4064, %v4071
        %v4075 = vunpack.c.l.s4 1966171168
        %v4076 = vunpack.c.0.s8 %v4075
        %v4077 = vlaneseq
        %v4078 = vshrl.u32 %v4077, 7
        %v4079 = vsub.s32 %v4076, %v4078
        %v4080 = vrot.slane %v4072, %v4079
        %v4082 = vunpack.c.l.s4 1966171168
        %v4083 = vunpack.c.0.s8 %v4082
        %v4084 = vlaneseq
        %v4085 = vshrl.u32 %v4084, 7
        %v4086 = vsub.s32 %v4083, %v4085
        %v4087 = vrot.slane %v4073, %v4086
        %v4088 = vcombine.low %v4080, %v4087
        %v4089 = vcombine.low %v2915, %v2919
        %v4090 = vcombine.low %v2923, %v2927
        %v4091 = vcombine.low %v2931, %v2935
        %v4092 = vcombine.low %v2939, %v2943
        %v4094 = vunpack.c.l.s4 1966171168
        %v4095 = vunpack.c.0.s8 %v4094
        %v4096 = vlaneseq
        %v4097 = vshrl.u32 %v4096, 7
        %v4098 = vsub.s32 %v4095, %v4097
        %v4099 = vrot.slane %v4089, %v4098
        %v4101 = vunpack.c.l.s4 1966171168
        %v4102 = vunpack.c.0.s8 %v4101
        %v4103 = vlaneseq
        %v4104 = vshrl.u32 %v4103, 7
        %v4105 = vsub.s32 %v4102, %v4104
        %v4106 = vrot.slane %v4090, %v4105
        %v4108 = vunpack.c.l.s4 1966171168
        %v4109 = vunpack.c.0.s8 %v4108
        %v4110 = vlaneseq
        %v4111 = vshrl.u32 %v4110, 7
        %v4112 = vsub.s32 %v4109, %v4111
        %v4113 = vrot.slane %v4091, %v4112
        %v4115 = vunpack.c.l.s4 1966171168
        %v4116 = vunpack.c.0.s8 %v4115
        %v4117 = vlaneseq
        %v4118 = vshrl.u32 %v4117, 7
        %v4119 = vsub.s32 %v4116, %v4118
        %v4120 = vrot.slane %v4092, %v4119
        %v4121 = vcombine.low %v4099, %v4106
        %v4122 = vcombine.low %v4113, %v4120
        %v4124 = vunpack.c.l.s4 1966171168
        %v4125 = vunpack.c.0.s8 %v4124
        %v4126 = vlaneseq
        %v4127 = vshrl.u32 %v4126, 7
        %v4128 = vsub.s32 %v4125, %v4127
        %v4129 = vrot.slane %v4121, %v4128
        %v4131 = vunpack.c.l.s4 1966171168
        %v4132 = vunpack.c.0.s8 %v4131
        %v4133 = vlaneseq
        %v4134 = vshrl.u32 %v4133, 7
        %v4135 = vsub.s32 %v4132, %v4134
        %v4136 = vrot.slane %v4122, %v4135
        %v4137 = vcombine.low %v4129, %v4136
        %v4138 = vcombine.low %v2947, %v2951
        %v4139 = vcombine.low %v2955, %v2959
        %v4140 = vcombine.low %v2963, %v2967
        %v4141 = vcombine.low %v2971, %v2975
        %v4143 = vunpack.c.l.s4 1966171168
        %v4144 = vunpack.c.0.s8 %v4143
        %v4145 = vlaneseq
        %v4146 = vshrl.u32 %v4145, 7
        %v4147 = vsub.s32 %v4144, %v4146
        %v4148 = vrot.slane %v4138, %v4147
        %v4150 = vunpack.c.l.s4 1966171168
        %v4151 = vunpack.c.0.s8 %v4150
        %v4152 = vlaneseq
        %v4153 = vshrl.u32 %v4152, 7
        %v4154 = vsub.s32 %v4151, %v4153
        %v4155 = vrot.slane %v4139, %v4154
        %v4157 = vunpack.c.l.s4 1966171168
        %v4158 = vunpack.c.0.s8 %v4157
        %v4159 = vlaneseq
        %v4160 = vshrl.u32 %v4159, 7
        %v4161 = vsub.s32 %v4158, %v4160
        %v4162 = vrot.slane %v4140, %v4161
        %v4164 = vunpack.c.l.s4 1966171168
        %v4165 = vunpack.c.0.s8 %v4164
        %v4166 = vlaneseq
        %v4167 = vshrl.u32 %v4166, 7
        %v4168 = vsub.s32 %v4165, %v4167
        %v4169 = vrot.slane %v4141, %v4168
        %v4170 = vcombine.low %v4148, %v4155
        %v4171 = vcombine.low %v4162, %v4169
        %v4173 = vunpack.c.l.s4 1966171168
        %v4174 = vunpack.c.0.s8 %v4173
        %v4175 = vlaneseq
        %v4176 = vshrl.u32 %v4175, 7
        %v4177 = vsub.s32 %v4174, %v4176
        %v4178 = vrot.slane %v4170, %v4177
        %v4180 = vunpack.c.l.s4 1966171168
        %v4181 = vunpack.c.0.s8 %v4180
        %v4182 = vlaneseq
        %v4183 = vshrl.u32 %v4182, 7
        %v4184 = vsub.s32 %v4181, %v4183
        %v4185 = vrot.slane %v4171, %v4184
        %v4186 = vcombine.low %v4178, %v4185
        %v4187 = vcombine.low %v2979, %v2983
        %v4188 = vcombine.low %v2987, %v2991
        %v4189 = vcombine.low %v2995, %v2999
        %v4190 = vcombine.low %v3003, %v3007
        %v4192 = vunpack.c.l.s4 1966171168
        %v4193 = vunpack.c.0.s8 %v4192
        %v4194 = vlaneseq
        %v4195 = vshrl.u32 %v4194, 7
        %v4196 = vsub.s32 %v4193, %v4195
        %v4197 = vrot.slane %v4187, %v4196
        %v4199 = vunpack.c.l.s4 1966171168
        %v4200 = vunpack.c.0.s8 %v4199
        %v4201 = vlaneseq
        %v4202 = vshrl.u32 %v4201, 7
        %v4203 = vsub.s32 %v4200, %v4202
        %v4204 = vrot.slane %v4188, %v4203
        %v4206 = vunpack.c.l.s4 1966171168
        %v4207 = vunpack.c.0.s8 %v4206
        %v4208 = vlaneseq
        %v4209 = vshrl.u32 %v4208, 7
        %v4210 = vsub.s32 %v4207, %v4209
        %v4211 = vrot.slane %v4189, %v4210
        %v4213 = vunpack.c.l.s4 1966171168
        %v4214 = vunpack.c.0.s8 %v4213
        %v4215 = vlaneseq
        %v4216 = vshrl.u32 %v4215, 7
        %v4217 = vsub.s32 %v4214, %v4216
        %v4218 = vrot.slane %v4190, %v4217
        %v4219 = vcombine.low %v4197, %v4204
        %v4220 = vcombine.low %v4211, %v4218
        %v4222 = vunpack.c.l.s4 1966171168
        %v4223 = vunpack.c.0.s8 %v4222
        %v4224 = vlaneseq
        %v4225 = vshrl.u32 %v4224, 7
        %v4226 = vsub.s32 %v4223, %v4225
        %v4227 = vrot.slane %v4219, %v4226
        %v4229 = vunpack.c.l.s4 1966171168
        %v4230 = vunpack.c.0.s8 %v4229
        %v4231 = vlaneseq
        %v4232 = vshrl.u32 %v4231, 7
        %v4233 = vsub.s32 %v4230, %v4232
        %v4234 = vrot.slane %v4220, %v4233
        %v4235 = vcombine.low %v4227, %v4234
        %v4236 = vcombine.low %v3011, %v3015
        %v4237 = vcombine.low %v3019, %v3023
        %v4238 = vcombine.low %v3027, %v3031
        %v4239 = vcombine.low %v3035, %v3039
        %v4241 = vunpack.c.l.s4 1966171168
        %v4242 = vunpack.c.0.s8 %v4241
        %v4243 = vlaneseq
        %v4244 = vshrl.u32 %v4243, 7
        %v4245 = vsub.s32 %v4242, %v4244
        %v4246 = vrot.slane %v4236, %v4245
        %v4248 = vunpack.c.l.s4 1966171168
        %v4249 = vunpack.c.0.s8 %v4248
        %v4250 = vlaneseq
        %v4251 = vshrl.u32 %v4250, 7
        %v4252 = vsub.s32 %v4249, %v4251
        %v4253 = vrot.slane %v4237, %v4252
        %v4255 = vunpack.c.l.s4 1966171168
        %v4256 = vunpack.c.0.s8 %v4255
        %v4257 = vlaneseq
        %v4258 = vshrl.u32 %v4257, 7
        %v4259 = vsub.s32 %v4256, %v4258
        %v4260 = vrot.slane %v4238, %v4259
        %v4262 = vunpack.c.l.s4 1966171168
        %v4263 = vunpack.c.0.s8 %v4262
        %v4264 = vlaneseq
        %v4265 = vshrl.u32 %v4264, 7
        %v4266 = vsub.s32 %v4263, %v4265
        %v4267 = vrot.slane %v4239, %v4266
        %v4268 = vcombine.low %v4246, %v4253
        %v4269 = vcombine.low %v4260, %v4267
        %v4271 = vunpack.c.l.s4 1966171168
        %v4272 = vunpack.c.0.s8 %v4271
        %v4273 = vlaneseq
        %v4274 = vshrl.u32 %v4273, 7
        %v4275 = vsub.s32 %v4272, %v4274
        %v4276 = vrot.slane %v4268, %v4275
        %v4278 = vunpack.c.l.s4 1966171168
        %v4279 = vunpack.c.0.s8 %v4278
        %v4280 = vlaneseq
        %v4281 = vshrl.u32 %v4280, 7
        %v4282 = vsub.s32 %v4279, %v4281
        %v4283 = vrot.slane %v4269, %v4282
        %v4284 = vcombine.low %v4276, %v4283
        %v4285 = vcombine.low %v3043, %v3047
        %v4286 = vcombine.low %v3051, %v3055
        %v4287 = vcombine.low %v3059, %v3063
        %v4288 = vcombine.low %v3067, %v3071
        %v4290 = vunpack.c.l.s4 1966171168
        %v4291 = vunpack.c.0.s8 %v4290
        %v4292 = vlaneseq
        %v4293 = vshrl.u32 %v4292, 7
        %v4294 = vsub.s32 %v4291, %v4293
        %v4295 = vrot.slane %v4285, %v4294
        %v4297 = vunpack.c.l.s4 1966171168
        %v4298 = vunpack.c.0.s8 %v4297
        %v4299 = vlaneseq
        %v4300 = vshrl.u32 %v4299, 7
        %v4301 = vsub.s32 %v4298, %v4300
        %v4302 = vrot.slane %v4286, %v4301
        %v4304 = vunpack.c.l.s4 1966171168
        %v4305 = vunpack.c.0.s8 %v4304
        %v4306 = vlaneseq
        %v4307 = vshrl.u32 %v4306, 7
        %v4308 = vsub.s32 %v4305, %v4307
        %v4309 = vrot.slane %v4287, %v4308
        %v4311 = vunpack.c.l.s4 1966171168
        %v4312 = vunpack.c.0.s8 %v4311
        %v4313 = vlaneseq
        %v4314 = vshrl.u32 %v4313, 7
        %v4315 = vsub.s32 %v4312, %v4314
        %v4316 = vrot.slane %v4288, %v4315
        %v4317 = vcombine.low %v4295, %v4302
        %v4318 = vcombine.low %v4309, %v4316
        %v4320 = vunpack.c.l.s4 1966171168
        %v4321 = vunpack.c.0.s8 %v4320
        %v4322 = vlaneseq
        %v4323 = vshrl.u32 %v4322, 7
        %v4324 = vsub.s32 %v4321, %v4323
        %v4325 = vrot.slane %v4317, %v4324
        %v4327 = vunpack.c.l.s4 1966171168
        %v4328 = vunpack.c.0.s8 %v4327
        %v4329 = vlaneseq
        %v4330 = vshrl.u32 %v4329, 7
        %v4331 = vsub.s32 %v4328, %v4330
        %v4332 = vrot.slane %v4318, %v4331
        %v4333 = vcombine.low %v4325, %v4332
        %v4334 = vcombine.low %v3075, %v3079
        %v4335 = vcombine.low %v3083, %v3087
        %v4336 = vcombine.low %v3091, %v3095
        %v4337 = vcombine.low %v3099, %v3103
        %v4339 = vunpack.c.l.s4 1966171168
        %v4340 = vunpack.c.0.s8 %v4339
        %v4341 = vlaneseq
        %v4342 = vshrl.u32 %v4341, 7
        %v4343 = vsub.s32 %v4340, %v4342
        %v4344 = vrot.slane %v4334, %v4343
        %v4346 = vunpack.c.l.s4 1966171168
        %v4347 = vunpack.c.0.s8 %v4346
        %v4348 = vlaneseq
        %v4349 = vshrl.u32 %v4348, 7
        %v4350 = vsub.s32 %v4347, %v4349
        %v4351 = vrot.slane %v4335, %v4350
        %v4353 = vunpack.c.l.s4 1966171168
        %v4354 = vunpack.c.0.s8 %v4353
        %v4355 = vlaneseq
        %v4356 = vshrl.u32 %v4355, 7
        %v4357 = vsub.s32 %v4354, %v4356
        %v4358 = vrot.slane %v4336, %v4357
        %v4360 = vunpack.c.l.s4 1966171168
        %v4361 = vunpack.c.0.s8 %v4360
        %v4362 = vlaneseq
        %v4363 = vshrl.u32 %v4362, 7
        %v4364 = vsub.s32 %v4361, %v4363
        %v4365 = vrot.slane %v4337, %v4364
        %v4366 = vcombine.low %v4344, %v4351
        %v4367 = vcombine.low %v4358, %v4365
        %v4369 = vunpack.c.l.s4 1966171168
        %v4370 = vunpack.c.0.s8 %v4369
        %v4371 = vlaneseq
        %v4372 = vshrl.u32 %v4371, 7
        %v4373 = vsub.s32 %v4370, %v4372
        %v4374 = vrot.slane %v4366, %v4373
        %v4376 = vunpack.c.l.s4 1966171168
        %v4377 = vunpack.c.0.s8 %v4376
        %v4378 = vlaneseq
        %v4379 = vshrl.u32 %v4378, 7
        %v4380 = vsub.s32 %v4377, %v4379
        %v4381 = vrot.slane %v4367, %v4380
        %v4382 = vcombine.low %v4374, %v4381
        %v4383 = vcombine.low %v3107, %v3111
        %v4384 = vcombine.low %v3115, %v3119
        %v4385 = vcombine.low %v3123, %v3127
        %v4386 = vcombine.low %v3131, %v3135
        %v4388 = vunpack.c.l.s4 1966171168
        %v4389 = vunpack.c.0.s8 %v4388
        %v4390 = vlaneseq
        %v4391 = vshrl.u32 %v4390, 7
        %v4392 = vsub.s32 %v4389, %v4391
        %v4393 = vrot.slane %v4383, %v4392
        %v4395 = vunpack.c.l.s4 1966171168
        %v4396 = vunpack.c.0.s8 %v4395
        %v4397 = vlaneseq
        %v4398 = vshrl.u32 %v4397, 7
        %v4399 = vsub.s32 %v4396, %v4398
        %v4400 = vrot.slane %v4384, %v4399
        %v4402 = vunpack.c.l.s4 1966171168
        %v4403 = vunpack.c.0.s8 %v4402
        %v4404 = vlaneseq
        %v4405 = vshrl.u32 %v4404, 7
        %v4406 = vsub.s32 %v4403, %v4405
        %v4407 = vrot.slane %v4385, %v4406
        %v4409 = vunpack.c.l.s4 1966171168
        %v4410 = vunpack.c.0.s8 %v4409
        %v4411 = vlaneseq
        %v4412 = vshrl.u32 %v4411, 7
        %v4413 = vsub.s32 %v4410, %v4412
        %v4414 = vrot.slane %v4386, %v4413
        %v4415 = vcombine.low %v4393, %v4400
        %v4416 = vcombine.low %v4407, %v4414
        %v4418 = vunpack.c.l.s4 1966171168
        %v4419 = vunpack.c.0.s8 %v4418
        %v4420 = vlaneseq
        %v4421 = vshrl.u32 %v4420, 7
        %v4422 = vsub.s32 %v4419, %v4421
        %v4423 = vrot.slane %v4415, %v4422
        %v4425 = vunpack.c.l.s4 1966171168
        %v4426 = vunpack.c.0.s8 %v4425
        %v4427 = vlaneseq
        %v4428 = vshrl.u32 %v4427, 7
        %v4429 = vsub.s32 %v4426, %v4428
        %v4430 = vrot.slane %v4416, %v4429
        %v4431 = vcombine.low %v4423, %v4430
        %v4432 = vcombine.low %v3139, %v3143
        %v4433 = vcombine.low %v3147, %v3151
        %v4434 = vcombine.low %v3155, %v3159
        %v4435 = vcombine.low %v3163, %v3167
        %v4437 = vunpack.c.l.s4 1966171168
        %v4438 = vunpack.c.0.s8 %v4437
        %v4439 = vlaneseq
        %v4440 = vshrl.u32 %v4439, 7
        %v4441 = vsub.s32 %v4438, %v4440
        %v4442 = vrot.slane %v4432, %v4441
        %v4444 = vunpack.c.l.s4 1966171168
        %v4445 = vunpack.c.0.s8 %v4444
        %v4446 = vlaneseq
        %v4447 = vshrl.u32 %v4446, 7
        %v4448 = vsub.s32 %v4445, %v4447
        %v4449 = vrot.slane %v4433, %v4448
        %v4451 = vunpack.c.l.s4 1966171168
        %v4452 = vunpack.c.0.s8 %v4451
        %v4453 = vlaneseq
        %v4454 = vshrl.u32 %v4453, 7
        %v4455 = vsub.s32 %v4452, %v4454
        %v4456 = vrot.slane %v4434, %v4455
        %v4458 = vunpack.c.l.s4 1966171168
        %v4459 = vunpack.c.0.s8 %v4458
        %v4460 = vlaneseq
        %v4461 = vshrl.u32 %v4460, 7
        %v4462 = vsub.s32 %v4459, %v4461
        %v4463 = vrot.slane %v4435, %v4462
        %v4464 = vcombine.low %v4442, %v4449
        %v4465 = vcombine.low %v4456, %v4463
        %v4467 = vunpack.c.l.s4 1966171168
        %v4468 = vunpack.c.0.s8 %v4467
        %v4469 = vlaneseq
        %v4470 = vshrl.u32 %v4469, 7
        %v4471 = vsub.s32 %v4468, %v4470
        %v4472 = vrot.slane %v4464, %v4471
        %v4474 = vunpack.c.l.s4 1966171168
        %v4475 = vunpack.c.0.s8 %v4474
        %v4476 = vlaneseq
        %v4477 = vshrl.u32 %v4476, 7
        %v4478 = vsub.s32 %v4475, %v4477
        %v4479 = vrot.slane %v4465, %v4478
        %v4480 = vcombine.low %v4472, %v4479
        %v4481 = vcombine.low %v3171, %v3175
        %v4482 = vcombine.low %v3179, %v3183
        %v4483 = vcombine.low %v3187, %v3191
        %v4484 = vcombine.low %v3195, %v3199
        %v4486 = vunpack.c.l.s4 1966171168
        %v4487 = vunpack.c.0.s8 %v4486
        %v4488 = vlaneseq
        %v4489 = vshrl.u32 %v4488, 7
        %v4490 = vsub.s32 %v4487, %v4489
        %v4491 = vrot.slane %v4481, %v4490
        %v4493 = vunpack.c.l.s4 1966171168
        %v4494 = vunpack.c.0.s8 %v4493
        %v4495 = vlaneseq
        %v4496 = vshrl.u32 %v4495, 7
        %v4497 = vsub.s32 %v4494, %v4496
        %v4498 = vrot.slane %v4482, %v4497
        %v4500 = vunpack.c.l.s4 1966171168
        %v4501 = vunpack.c.0.s8 %v4500
        %v4502 = vlaneseq
        %v4503 = vshrl.u32 %v4502, 7
        %v4504 = vsub.s32 %v4501, %v4503
        %v4505 = vrot.slane %v4483, %v4504
        %v4507 = vunpack.c.l.s4 1966171168
        %v4508 = vunpack.c.0.s8 %v4507
        %v4509 = vlaneseq
        %v4510 = vshrl.u32 %v4509, 7
        %v4511 = vsub.s32 %v4508, %v4510
        %v4512 = vrot.slane %v4484, %v4511
        %v4513 = vcombine.low %v4491, %v4498
        %v4514 = vcombine.low %v4505, %v4512
        %v4516 = vunpack.c.l.s4 1966171168
        %v4517 = vunpack.c.0.s8 %v4516
        %v4518 = vlaneseq
        %v4519 = vshrl.u32 %v4518, 7
        %v4520 = vsub.s32 %v4517, %v4519
        %v4521 = vrot.slane %v4513, %v4520
        %v4523 = vunpack.c.l.s4 1966171168
        %v4524 = vunpack.c.0.s8 %v4523
        %v4525 = vlaneseq
        %v4526 = vshrl.u32 %v4525, 7
        %v4527 = vsub.s32 %v4524, %v4526
        %v4528 = vrot.slane %v4514, %v4527
        %v4529 = vcombine.low %v4521, %v4528
        %v4530 = vcombine.low %v3203, %v3207
        %v4531 = vcombine.low %v3211, %v3215
        %v4532 = vcombine.low %v3219, %v3223
        %v4533 = vcombine.low %v3227, %v3231
        %v4535 = vunpack.c.l.s4 1966171168
        %v4536 = vunpack.c.0.s8 %v4535
        %v4537 = vlaneseq
        %v4538 = vshrl.u32 %v4537, 7
        %v4539 = vsub.s32 %v4536, %v4538
        %v4540 = vrot.slane %v4530, %v4539
        %v4542 = vunpack.c.l.s4 1966171168
        %v4543 = vunpack.c.0.s8 %v4542
        %v4544 = vlaneseq
        %v4545 = vshrl.u32 %v4544, 7
        %v4546 = vsub.s32 %v4543, %v4545
        %v4547 = vrot.slane %v4531, %v4546
        %v4549 = vunpack.c.l.s4 1966171168
        %v4550 = vunpack.c.0.s8 %v4549
        %v4551 = vlaneseq
        %v4552 = vshrl.u32 %v4551, 7
        %v4553 = vsub.s32 %v4550, %v4552
        %v4554 = vrot.slane %v4532, %v4553
        %v4556 = vunpack.c.l.s4 1966171168
        %v4557 = vunpack.c.0.s8 %v4556
        %v4558 = vlaneseq
        %v4559 = vshrl.u32 %v4558, 7
        %v4560 = vsub.s32 %v4557, %v4559
        %v4561 = vrot.slane %v4533, %v4560
        %v4562 = vcombine.low %v4540, %v4547
        %v4563 = vcombine.low %v4554, %v4561
        %v4565 = vunpack.c.l.s4 1966171168
        %v4566 = vunpack.c.0.s8 %v4565
        %v4567 = vlaneseq
        %v4568 = vshrl.u32 %v4567, 7
        %v4569 = vsub.s32 %v4566, %v4568
        %v4570 = vrot.slane %v4562, %v4569
        %v4572 = vunpack.c.l.s4 1966171168
        %v4573 = vunpack.c.0.s8 %v4572
        %v4574 = vlaneseq
        %v4575 = vshrl.u32 %v4574, 7
        %v4576 = vsub.s32 %v4573, %v4575
        %v4577 = vrot.slane %v4563, %v4576
        %v4578 = vcombine.low %v4570, %v4577
        %v4579 = vcombine.low %v3235, %v3239
        %v4580 = vcombine.low %v3243, %v3247
        %v4581 = vcombine.low %v3251, %v3255
        %v4582 = vcombine.low %v3259, %v3263
        %v4584 = vunpack.c.l.s4 1966171168
        %v4585 = vunpack.c.0.s8 %v4584
        %v4586 = vlaneseq
        %v4587 = vshrl.u32 %v4586, 7
        %v4588 = vsub.s32 %v4585, %v4587
        %v4589 = vrot.slane %v4579, %v4588
        %v4591 = vunpack.c.l.s4 1966171168
        %v4592 = vunpack.c.0.s8 %v4591
        %v4593 = vlaneseq
        %v4594 = vshrl.u32 %v4593, 7
        %v4595 = vsub.s32 %v4592, %v4594
        %v4596 = vrot.slane %v4580, %v4595
        %v4598 = vunpack.c.l.s4 1966171168
        %v4599 = vunpack.c.0.s8 %v4598
        %v4600 = vlaneseq
        %v4601 = vshrl.u32 %v4600, 7
        %v4602 = vsub.s32 %v4599, %v4601
        %v4603 = vrot.slane %v4581, %v4602
        %v4605 = vunpack.c.l.s4 1966171168
        %v4606 = vunpack.c.0.s8 %v4605
        %v4607 = vlaneseq
        %v4608 = vshrl.u32 %v4607, 7
        %v4609 = vsub.s32 %v4606, %v4608
        %v4610 = vrot.slane %v4582, %v4609
        %v4611 = vcombine.low %v4589, %v4596
        %v4612 = vcombine.low %v4603, %v4610
        %v4614 = vunpack.c.l.s4 1966171168
        %v4615 = vunpack.c.0.s8 %v4614
        %v4616 = vlaneseq
        %v4617 = vshrl.u32 %v4616, 7
        %v4618 = vsub.s32 %v4615, %v4617
        %v4619 = vrot.slane %v4611, %v4618
        %v4621 = vunpack.c.l.s4 1966171168
        %v4622 = vunpack.c.0.s8 %v4621
        %v4623 = vlaneseq
        %v4624 = vshrl.u32 %v4623, 7
        %v4625 = vsub.s32 %v4622, %v4624
        %v4626 = vrot.slane %v4612, %v4625
        %v4627 = vcombine.low %v4619, %v4626
        %v4628 = vcombine.low %v3267, %v3271
        %v4629 = vcombine.low %v3275, %v3279
        %v4630 = vcombine.low %v3283, %v3287
        %v4631 = vcombine.low %v3291, %v3295
        %v4633 = vunpack.c.l.s4 1966171168
        %v4634 = vunpack.c.0.s8 %v4633
        %v4635 = vlaneseq
        %v4636 = vshrl.u32 %v4635, 7
        %v4637 = vsub.s32 %v4634, %v4636
        %v4638 = vrot.slane %v4628, %v4637
        %v4640 = vunpack.c.l.s4 1966171168
        %v4641 = vunpack.c.0.s8 %v4640
        %v4642 = vlaneseq
        %v4643 = vshrl.u32 %v4642, 7
        %v4644 = vsub.s32 %v4641, %v4643
        %v4645 = vrot.slane %v4629, %v4644
        %v4647 = vunpack.c.l.s4 1966171168
        %v4648 = vunpack.c.0.s8 %v4647
        %v4649 = vlaneseq
        %v4650 = vshrl.u32 %v4649, 7
        %v4651 = vsub.s32 %v4648, %v4650
        %v4652 = vrot.slane %v4630, %v4651
        %v4654 = vunpack.c.l.s4 1966171168
        %v4655 = vunpack.c.0.s8 %v4654
        %v4656 = vlaneseq
        %v4657 = vshrl.u32 %v4656, 7
        %v4658 = vsub.s32 %v4655, %v4657
        %v4659 = vrot.slane %v4631, %v4658
        %v4660 = vcombine.low %v4638, %v4645
        %v4661 = vcombine.low %v4652, %v4659
        %v4663 = vunpack.c.l.s4 1966171168
        %v4664 = vunpack.c.0.s8 %v4663
        %v4665 = vlaneseq
        %v4666 = vshrl.u32 %v4665, 7
        %v4667 = vsub.s32 %v4664, %v4666
        %v4668 = vrot.slane %v4660, %v4667
        %v4670 = vunpack.c.l.s4 1966171168
        %v4671 = vunpack.c.0.s8 %v4670
        %v4672 = vlaneseq
        %v4673 = vshrl.u32 %v4672, 7
        %v4674 = vsub.s32 %v4671, %v4673
        %v4675 = vrot.slane %v4661, %v4674
        %v4676 = vcombine.low %v4668, %v4675
        %v4677 = vcombine.low %v3299, %v3303
        %v4678 = vcombine.low %v3307, %v3311
        %v4679 = vcombine.low %v3315, %v3319
        %v4680 = vcombine.low %v3323, %v3327
        %v4682 = vunpack.c.l.s4 1966171168
        %v4683 = vunpack.c.0.s8 %v4682
        %v4684 = vlaneseq
        %v4685 = vshrl.u32 %v4684, 7
        %v4686 = vsub.s32 %v4683, %v4685
        %v4687 = vrot.slane %v4677, %v4686
        %v4689 = vunpack.c.l.s4 1966171168
        %v4690 = vunpack.c.0.s8 %v4689
        %v4691 = vlaneseq
        %v4692 = vshrl.u32 %v4691, 7
        %v4693 = vsub.s32 %v4690, %v4692
        %v4694 = vrot.slane %v4678, %v4693
        %v4696 = vunpack.c.l.s4 1966171168
        %v4697 = vunpack.c.0.s8 %v4696
        %v4698 = vlaneseq
        %v4699 = vshrl.u32 %v4698, 7
        %v4700 = vsub.s32 %v4697, %v4699
        %v4701 = vrot.slane %v4679, %v4700
        %v4703 = vunpack.c.l.s4 1966171168
        %v4704 = vunpack.c.0.s8 %v4703
        %v4705 = vlaneseq
        %v4706 = vshrl.u32 %v4705, 7
        %v4707 = vsub.s32 %v4704, %v4706
        %v4708 = vrot.slane %v4680, %v4707
        %v4709 = vcombine.low %v4687, %v4694
        %v4710 = vcombine.low %v4701, %v4708
        %v4712 = vunpack.c.l.s4 1966171168
        %v4713 = vunpack.c.0.s8 %v4712
        %v4714 = vlaneseq
        %v4715 = vshrl.u32 %v4714, 7
        %v4716 = vsub.s32 %v4713, %v4715
        %v4717 = vrot.slane %v4709, %v4716
        %v4719 = vunpack.c.l.s4 1966171168
        %v4720 = vunpack.c.0.s8 %v4719
        %v4721 = vlaneseq
        %v4722 = vshrl.u32 %v4721, 7
        %v4723 = vsub.s32 %v4720, %v4722
        %v4724 = vrot.slane %v4710, %v4723
        %v4725 = vcombine.low %v4717, %v4724
        %v4726 = vcombine.low %v3331, %v3335
        %v4727 = vcombine.low %v3339, %v3343
        %v4728 = vcombine.low %v3347, %v3351
        %v4729 = vcombine.low %v3355, %v3359
        %v4731 = vunpack.c.l.s4 1966171168
        %v4732 = vunpack.c.0.s8 %v4731
        %v4733 = vlaneseq
        %v4734 = vshrl.u32 %v4733, 7
        %v4735 = vsub.s32 %v4732, %v4734
        %v4736 = vrot.slane %v4726, %v4735
        %v4738 = vunpack.c.l.s4 1966171168
        %v4739 = vunpack.c.0.s8 %v4738
        %v4740 = vlaneseq
        %v4741 = vshrl.u32 %v4740, 7
        %v4742 = vsub.s32 %v4739, %v4741
        %v4743 = vrot.slane %v4727, %v4742
        %v4745 = vunpack.c.l.s4 1966171168
        %v4746 = vunpack.c.0.s8 %v4745
        %v4747 = vlaneseq
        %v4748 = vshrl.u32 %v4747, 7
        %v4749 = vsub.s32 %v4746, %v4748
        %v4750 = vrot.slane %v4728, %v4749
        %v4752 = vunpack.c.l.s4 1966171168
        %v4753 = vunpack.c.0.s8 %v4752
        %v4754 = vlaneseq
        %v4755 = vshrl.u32 %v4754, 7
        %v4756 = vsub.s32 %v4753, %v4755
        %v4757 = vrot.slane %v4729, %v4756
        %v4758 = vcombine.low %v4736, %v4743
        %v4759 = vcombine.low %v4750, %v4757
        %v4761 = vunpack.c.l.s4 1966171168
        %v4762 = vunpack.c.0.s8 %v4761
        %v4763 = vlaneseq
        %v4764 = vshrl.u32 %v4763, 7
        %v4765 = vsub.s32 %v4762, %v4764
        %v4766 = vrot.slane %v4758, %v4765
        %v4768 = vunpack.c.l.s4 1966171168
        %v4769 = vunpack.c.0.s8 %v4768
        %v4770 = vlaneseq
        %v4771 = vshrl.u32 %v4770, 7
        %v4772 = vsub.s32 %v4769, %v4771
        %v4773 = vrot.slane %v4759, %v4772
        %v4774 = vcombine.low %v4766, %v4773
        %v4775 = vcombine.low %v3363, %v3367
        %v4776 = vcombine.low %v3371, %v3375
        %v4777 = vcombine.low %v3379, %v3383
        %v4778 = vcombine.low %v3387, %v3391
        %v4780 = vunpack.c.l.s4 1966171168
        %v4781 = vunpack.c.0.s8 %v4780
        %v4782 = vlaneseq
        %v4783 = vshrl.u32 %v4782, 7
        %v4784 = vsub.s32 %v4781, %v4783
        %v4785 = vrot.slane %v4775, %v4784
        %v4787 = vunpack.c.l.s4 1966171168
        %v4788 = vunpack.c.0.s8 %v4787
        %v4789 = vlaneseq
        %v4790 = vshrl.u32 %v4789, 7
        %v4791 = vsub.s32 %v4788, %v4790
        %v4792 = vrot.slane %v4776, %v4791
        %v4794 = vunpack.c.l.s4 1966171168
        %v4795 = vunpack.c.0.s8 %v4794
        %v4796 = vlaneseq
        %v4797 = vshrl.u32 %v4796, 7
        %v4798 = vsub.s32 %v4795, %v4797
        %v4799 = vrot.slane %v4777, %v4798
        %v4801 = vunpack.c.l.s4 1966171168
        %v4802 = vunpack.c.0.s8 %v4801
        %v4803 = vlaneseq
        %v4804 = vshrl.u32 %v4803, 7
        %v4805 = vsub.s32 %v4802, %v4804
        %v4806 = vrot.slane %v4778, %v4805
        %v4807 = vcombine.low %v4785, %v4792
        %v4808 = vcombine.low %v4799, %v4806
        %v4810 = vunpack.c.l.s4 1966171168
        %v4811 = vunpack.c.0.s8 %v4810
        %v4812 = vlaneseq
        %v4813 = vshrl.u32 %v4812, 7
        %v4814 = vsub.s32 %v4811, %v4813
        %v4815 = vrot.slane %v4807, %v4814
        %v4817 = vunpack.c.l.s4 1966171168
        %v4818 = vunpack.c.0.s8 %v4817
        %v4819 = vlaneseq
        %v4820 = vshrl.u32 %v4819, 7
        %v4821 = vsub.s32 %v4818, %v4820
        %v4822 = vrot.slane %v4808, %v4821
        %v4823 = vcombine.low %v4815, %v4822
        %v4824 = vcombine.low %v3395, %v3399
        %v4825 = vcombine.low %v3403, %v3407
        %v4826 = vcombine.low %v3411, %v3415
        %v4827 = vcombine.low %v3419, %v3423
        %v4829 = vunpack.c.l.s4 1966171168
        %v4830 = vunpack.c.0.s8 %v4829
        %v4831 = vlaneseq
        %v4832 = vshrl.u32 %v4831, 7
        %v4833 = vsub.s32 %v4830, %v4832
        %v4834 = vrot.slane %v4824, %v4833
        %v4836 = vunpack.c.l.s4 1966171168
        %v4837 = vunpack.c.0.s8 %v4836
        %v4838 = vlaneseq
        %v4839 = vshrl.u32 %v4838, 7
        %v4840 = vsub.s32 %v4837, %v4839
        %v4841 = vrot.slane %v4825, %v4840
        %v4843 = vunpack.c.l.s4 1966171168
        %v4844 = vunpack.c.0.s8 %v4843
        %v4845 = vlaneseq
        %v4846 = vshrl.u32 %v4845, 7
        %v4847 = vsub.s32 %v4844, %v4846
        %v4848 = vrot.slane %v4826, %v4847
        %v4850 = vunpack.c.l.s4 1966171168
        %v4851 = vunpack.c.0.s8 %v4850
        %v4852 = vlaneseq
        %v4853 = vshrl.u32 %v4852, 7
        %v4854 = vsub.s32 %v4851, %v4853
        %v4855 = vrot.slane %v4827, %v4854
        %v4856 = vcombine.low %v4834, %v4841
        %v4857 = vcombine.low %v4848, %v4855
        %v4859 = vunpack.c.l.s4 1966171168
        %v4860 = vunpack.c.0.s8 %v4859
        %v4861 = vlaneseq
        %v4862 = vshrl.u32 %v4861, 7
        %v4863 = vsub.s32 %v4860, %v4862
        %v4864 = vrot.slane %v4856, %v4863
        %v4866 = vunpack.c.l.s4 1966171168
        %v4867 = vunpack.c.0.s8 %v4866
        %v4868 = vlaneseq
        %v4869 = vshrl.u32 %v4868, 7
        %v4870 = vsub.s32 %v4867, %v4869
        %v4871 = vrot.slane %v4857, %v4870
        %v4872 = vcombine.low %v4864, %v4871
        %v4873 = vcombine.low %v3427, %v3431
        %v4874 = vcombine.low %v3435, %v3439
        %v4875 = vcombine.low %v3443, %v3447
        %v4876 = vcombine.low %v3451, %v3455
        %v4878 = vunpack.c.l.s4 1966171168
        %v4879 = vunpack.c.0.s8 %v4878
        %v4880 = vlaneseq
        %v4881 = vshrl.u32 %v4880, 7
        %v4882 = vsub.s32 %v4879, %v4881
        %v4883 = vrot.slane %v4873, %v4882
        %v4885 = vunpack.c.l.s4 1966171168
        %v4886 = vunpack.c.0.s8 %v4885
        %v4887 = vlaneseq
        %v4888 = vshrl.u32 %v4887, 7
        %v4889 = vsub.s32 %v4886, %v4888
        %v4890 = vrot.slane %v4874, %v4889
        %v4892 = vunpack.c.l.s4 1966171168
        %v4893 = vunpack.c.0.s8 %v4892
        %v4894 = vlaneseq
        %v4895 = vshrl.u32 %v4894, 7
        %v4896 = vsub.s32 %v4893, %v4895
        %v4897 = vrot.slane %v4875, %v4896
        %v4899 = vunpack.c.l.s4 1966171168
        %v4900 = vunpack.c.0.s8 %v4899
        %v4901 = vlaneseq
        %v4902 = vshrl.u32 %v4901, 7
        %v4903 = vsub.s32 %v4900, %v4902
        %v4904 = vrot.slane %v4876, %v4903
        %v4905 = vcombine.low %v4883, %v4890
        %v4906 = vcombine.low %v4897, %v4904
        %v4908 = vunpack.c.l.s4 1966171168
        %v4909 = vunpack.c.0.s8 %v4908
        %v4910 = vlaneseq
        %v4911 = vshrl.u32 %v4910, 7
        %v4912 = vsub.s32 %v4909, %v4911
        %v4913 = vrot.slane %v4905, %v4912
        %v4915 = vunpack.c.l.s4 1966171168
        %v4916 = vunpack.c.0.s8 %v4915
        %v4917 = vlaneseq
        %v4918 = vshrl.u32 %v4917, 7
        %v4919 = vsub.s32 %v4916, %v4918
        %v4920 = vrot.slane %v4906, %v4919
        %v4921 = vcombine.low %v4913, %v4920
        %v4922 = vcombine.low %v3459, %v3463
        %v4923 = vcombine.low %v3467, %v3471
        %v4924 = vcombine.low %v3475, %v3479
        %v4925 = vcombine.low %v3483, %v3487
        %v4927 = vunpack.c.l.s4 1966171168
        %v4928 = vunpack.c.0.s8 %v4927
        %v4929 = vlaneseq
        %v4930 = vshrl.u32 %v4929, 7
        %v4931 = vsub.s32 %v4928, %v4930
        %v4932 = vrot.slane %v4922, %v4931
        %v4934 = vunpack.c.l.s4 1966171168
        %v4935 = vunpack.c.0.s8 %v4934
        %v4936 = vlaneseq
        %v4937 = vshrl.u32 %v4936, 7
        %v4938 = vsub.s32 %v4935, %v4937
        %v4939 = vrot.slane %v4923, %v4938
        %v4941 = vunpack.c.l.s4 1966171168
        %v4942 = vunpack.c.0.s8 %v4941
        %v4943 = vlaneseq
        %v4944 = vshrl.u32 %v4943, 7
        %v4945 = vsub.s32 %v4942, %v4944
        %v4946 = vrot.slane %v4924, %v4945
        %v4948 = vunpack.c.l.s4 1966171168
        %v4949 = vunpack.c.0.s8 %v4948
        %v4950 = vlaneseq
        %v4951 = vshrl.u32 %v4950, 7
        %v4952 = vsub.s32 %v4949, %v4951
        %v4953 = vrot.slane %v4925, %v4952
        %v4954 = vcombine.low %v4932, %v4939
        %v4955 = vcombine.low %v4946, %v4953
        %v4957 = vunpack.c.l.s4 1966171168
        %v4958 = vunpack.c.0.s8 %v4957
        %v4959 = vlaneseq
        %v4960 = vshrl.u32 %v4959, 7
        %v4961 = vsub.s32 %v4958, %v4960
        %v4962 = vrot.slane %v4954, %v4961
        %v4964 = vunpack.c.l.s4 1966171168
        %v4965 = vunpack.c.0.s8 %v4964
        %v4966 = vlaneseq
        %v4967 = vshrl.u32 %v4966, 7
        %v4968 = vsub.s32 %v4965, %v4967
        %v4969 = vrot.slane %v4955, %v4968
        %v4970 = vcombine.low %v4962, %v4969
        %v4971 = vcombine.low %v3491, %v3495
        %v4972 = vcombine.low %v3499, %v3503
        %v4973 = vcombine.low %v3507, %v3511
        %v4974 = vcombine.low %v3515, %v3519
        %v4976 = vunpack.c.l.s4 1966171168
        %v4977 = vunpack.c.0.s8 %v4976
        %v4978 = vlaneseq
        %v4979 = vshrl.u32 %v4978, 7
        %v4980 = vsub.s32 %v4977, %v4979
        %v4981 = vrot.slane %v4971, %v4980
        %v4983 = vunpack.c.l.s4 1966171168
        %v4984 = vunpack.c.0.s8 %v4983
        %v4985 = vlaneseq
        %v4986 = vshrl.u32 %v4985, 7
        %v4987 = vsub.s32 %v4984, %v4986
        %v4988 = vrot.slane %v4972, %v4987
        %v4990 = vunpack.c.l.s4 1966171168
        %v4991 = vunpack.c.0.s8 %v4990
        %v4992 = vlaneseq
        %v4993 = vshrl.u32 %v4992, 7
        %v4994 = vsub.s32 %v4991, %v4993
        %v4995 = vrot.slane %v4973, %v4994
        %v4997 = vunpack.c.l.s4 1966171168
        %v4998 = vunpack.c.0.s8 %v4997
        %v4999 = vlaneseq
        %v5000 = vshrl.u32 %v4999, 7
        %v5001 = vsub.s32 %v4998, %v5000
        %v5002 = vrot.slane %v4974, %v5001
        %v5003 = vcombine.low %v4981, %v4988
        %v5004 = vcombine.low %v4995, %v5002
        %v5006 = vunpack.c.l.s4 1966171168
        %v5007 = vunpack.c.0.s8 %v5006
        %v5008 = vlaneseq
        %v5009 = vshrl.u32 %v5008, 7
        %v5010 = vsub.s32 %v5007, %v5009
        %v5011 = vrot.slane %v5003, %v5010
        %v5013 = vunpack.c.l.s4 1966171168
        %v5014 = vunpack.c.0.s8 %v5013
        %v5015 = vlaneseq
        %v5016 = vshrl.u32 %v5015, 7
        %v5017 = vsub.s32 %v5014, %v5016
        %v5018 = vrot.slane %v5004, %v5017
        %v5019 = vcombine.low %v5011, %v5018
        %v5020 = vcombine.low %v3523, %v3527
        %v5021 = vcombine.low %v3531, %v3535
        %v5022 = vcombine.low %v3539, %v3543
        %v5023 = vcombine.low %v3547, %v3551
        %v5025 = vunpack.c.l.s4 1966171168
        %v5026 = vunpack.c.0.s8 %v5025
        %v5027 = vlaneseq
        %v5028 = vshrl.u32 %v5027, 7
        %v5029 = vsub.s32 %v5026, %v5028
        %v5030 = vrot.slane %v5020, %v5029
        %v5032 = vunpack.c.l.s4 1966171168
        %v5033 = vunpack.c.0.s8 %v5032
        %v5034 = vlaneseq
        %v5035 = vshrl.u32 %v5034, 7
        %v5036 = vsub.s32 %v5033, %v5035
        %v5037 = vrot.slane %v5021, %v5036
        %v5039 = vunpack.c.l.s4 1966171168
        %v5040 = vunpack.c.0.s8 %v5039
        %v5041 = vlaneseq
        %v5042 = vshrl.u32 %v5041, 7
        %v5043 = vsub.s32 %v5040, %v5042
        %v5044 = vrot.slane %v5022, %v5043
        %v5046 = vunpack.c.l.s4 1966171168
        %v5047 = vunpack.c.0.s8 %v5046
        %v5048 = vlaneseq
        %v5049 = vshrl.u32 %v5048, 7
        %v5050 = vsub.s32 %v5047, %v5049
        %v5051 = vrot.slane %v5023, %v5050
        %v5052 = vcombine.low %v5030, %v5037
        %v5053 = vcombine.low %v5044, %v5051
        %v5055 = vunpack.c.l.s4 1966171168
        %v5056 = vunpack.c.0.s8 %v5055
        %v5057 = vlaneseq
        %v5058 = vshrl.u32 %v5057, 7
        %v5059 = vsub.s32 %v5056, %v5058
        %v5060 = vrot.slane %v5052, %v5059
        %v5062 = vunpack.c.l.s4 1966171168
        %v5063 = vunpack.c.0.s8 %v5062
        %v5064 = vlaneseq
        %v5065 = vshrl.u32 %v5064, 7
        %v5066 = vsub.s32 %v5063, %v5065
        %v5067 = vrot.slane %v5053, %v5066
        %v5068 = vcombine.low %v5060, %v5067
        %v5069 = vcombine.low %v3555, %v3559
        %v5070 = vcombine.low %v3563, %v3567
        %v5071 = vcombine.low %v3571, %v3575
        %v5072 = vcombine.low %v3579, %v3583
        %v5074 = vunpack.c.l.s4 1966171168
        %v5075 = vunpack.c.0.s8 %v5074
        %v5076 = vlaneseq
        %v5077 = vshrl.u32 %v5076, 7
        %v5078 = vsub.s32 %v5075, %v5077
        %v5079 = vrot.slane %v5069, %v5078
        %v5081 = vunpack.c.l.s4 1966171168
        %v5082 = vunpack.c.0.s8 %v5081
        %v5083 = vlaneseq
        %v5084 = vshrl.u32 %v5083, 7
        %v5085 = vsub.s32 %v5082, %v5084
        %v5086 = vrot.slane %v5070, %v5085
        %v5088 = vunpack.c.l.s4 1966171168
        %v5089 = vunpack.c.0.s8 %v5088
        %v5090 = vlaneseq
        %v5091 = vshrl.u32 %v5090, 7
        %v5092 = vsub.s32 %v5089, %v5091
        %v5093 = vrot.slane %v5071, %v5092
        %v5095 = vunpack.c.l.s4 1966171168
        %v5096 = vunpack.c.0.s8 %v5095
        %v5097 = vlaneseq
        %v5098 = vshrl.u32 %v5097, 7
        %v5099 = vsub.s32 %v5096, %v5098
        %v5100 = vrot.slane %v5072, %v5099
        %v5101 = vcombine.low %v5079, %v5086
        %v5102 = vcombine.low %v5093, %v5100
        %v5104 = vunpack.c.l.s4 1966171168
        %v5105 = vunpack.c.0.s8 %v5104
        %v5106 = vlaneseq
        %v5107 = vshrl.u32 %v5106, 7
        %v5108 = vsub.s32 %v5105, %v5107
        %v5109 = vrot.slane %v5101, %v5108
        %v5111 = vunpack.c.l.s4 1966171168
        %v5112 = vunpack.c.0.s8 %v5111
        %v5113 = vlaneseq
        %v5114 = vshrl.u32 %v5113, 7
        %v5115 = vsub.s32 %v5112, %v5114
        %v5116 = vrot.slane %v5102, %v5115
        %v5117 = vcombine.low %v5109, %v5116
        %v5118 = vcombine.low %v3587, %v3591
        %v5119 = vcombine.low %v3595, %v3599
        %v5120 = vcombine.low %v3603, %v3607
        %v5121 = vcombine.low %v3611, %v3615
        %v5123 = vunpack.c.l.s4 1966171168
        %v5124 = vunpack.c.0.s8 %v5123
        %v5125 = vlaneseq
        %v5126 = vshrl.u32 %v5125, 7
        %v5127 = vsub.s32 %v5124, %v5126
        %v5128 = vrot.slane %v5118, %v5127
        %v5130 = vunpack.c.l.s4 1966171168
        %v5131 = vunpack.c.0.s8 %v5130
        %v5132 = vlaneseq
        %v5133 = vshrl.u32 %v5132, 7
        %v5134 = vsub.s32 %v5131, %v5133
        %v5135 = vrot.slane %v5119, %v5134
        %v5137 = vunpack.c.l.s4 1966171168
        %v5138 = vunpack.c.0.s8 %v5137
        %v5139 = vlaneseq
        %v5140 = vshrl.u32 %v5139, 7
        %v5141 = vsub.s32 %v5138, %v5140
        %v5142 = vrot.slane %v5120, %v5141
        %v5144 = vunpack.c.l.s4 1966171168
        %v5145 = vunpack.c.0.s8 %v5144
        %v5146 = vlaneseq
        %v5147 = vshrl.u32 %v5146, 7
        %v5148 = vsub.s32 %v5145, %v5147
        %v5149 = vrot.slane %v5121, %v5148
        %v5150 = vcombine.low %v5128, %v5135
        %v5151 = vcombine.low %v5142, %v5149
        %v5153 = vunpack.c.l.s4 1966171168
        %v5154 = vunpack.c.0.s8 %v5153
        %v5155 = vlaneseq
        %v5156 = vshrl.u32 %v5155, 7
        %v5157 = vsub.s32 %v5154, %v5156
        %v5158 = vrot.slane %v5150, %v5157
        %v5160 = vunpack.c.l.s4 1966171168
        %v5161 = vunpack.c.0.s8 %v5160
        %v5162 = vlaneseq
        %v5163 = vshrl.u32 %v5162, 7
        %v5164 = vsub.s32 %v5161, %v5163
        %v5165 = vrot.slane %v5151, %v5164
        %v5166 = vcombine.low %v5158, %v5165
        %v5167 = vcombine.low %v3619, %v3623
        %v5168 = vcombine.low %v3627, %v3631
        %v5169 = vcombine.low %v3635, %v3639
        %v5170 = vcombine.low %v3643, %v3647
        %v5172 = vunpack.c.l.s4 1966171168
        %v5173 = vunpack.c.0.s8 %v5172
        %v5174 = vlaneseq
        %v5175 = vshrl.u32 %v5174, 7
        %v5176 = vsub.s32 %v5173, %v5175
        %v5177 = vrot.slane %v5167, %v5176
        %v5179 = vunpack.c.l.s4 1966171168
        %v5180 = vunpack.c.0.s8 %v5179
        %v5181 = vlaneseq
        %v5182 = vshrl.u32 %v5181, 7
        %v5183 = vsub.s32 %v5180, %v5182
        %v5184 = vrot.slane %v5168, %v5183
        %v5186 = vunpack.c.l.s4 1966171168
        %v5187 = vunpack.c.0.s8 %v5186
        %v5188 = vlaneseq
        %v5189 = vshrl.u32 %v5188, 7
        %v5190 = vsub.s32 %v5187, %v5189
        %v5191 = vrot.slane %v5169, %v5190
        %v5193 = vunpack.c.l.s4 1966171168
        %v5194 = vunpack.c.0.s8 %v5193
        %v5195 = vlaneseq
        %v5196 = vshrl.u32 %v5195, 7
        %v5197 = vsub.s32 %v5194, %v5196
        %v5198 = vrot.slane %v5170, %v5197
        %v5199 = vcombine.low %v5177, %v5184
        %v5200 = vcombine.low %v5191, %v5198
        %v5202 = vunpack.c.l.s4 1966171168
        %v5203 = vunpack.c.0.s8 %v5202
        %v5204 = vlaneseq
        %v5205 = vshrl.u32 %v5204, 7
        %v5206 = vsub.s32 %v5203, %v5205
        %v5207 = vrot.slane %v5199, %v5206
        %v5209 = vunpack.c.l.s4 1966171168
        %v5210 = vunpack.c.0.s8 %v5209
        %v5211 = vlaneseq
        %v5212 = vshrl.u32 %v5211, 7
        %v5213 = vsub.s32 %v5210, %v5212
        %v5214 = vrot.slane %v5200, %v5213
        %v5215 = vcombine.low %v5207, %v5214
        %5216 = vset.pattern.permute.xlu0 0
        %5217 = vperm.xlu0 %5216, %v3696
        %v5218 = vpop.permute.xlu0 %5217
        %5219 = vset.pattern.permute.xlu0 0
        %5220 = vperm.xlu0 %5219, %v3745
        %v5221 = vpop.permute.xlu0 %5220
        %5222 = vset.pattern.permute.xlu0 0
        %5223 = vperm.xlu0 %5222, %v3794
        %v5224 = vpop.permute.xlu0 %5223
        %5225 = vset.pattern.permute.xlu0 0
        %5226 = vperm.xlu0 %5225, %v3843
        %v5227 = vpop.permute.xlu0 %5226
        %5228 = vset.pattern.permute.xlu0 0
        %5229 = vperm.xlu0 %5228, %v3892
        %v5230 = vpop.permute.xlu0 %5229
        %5231 = vset.pattern.permute.xlu0 0
        %5232 = vperm.xlu0 %5231, %v3941
        %v5233 = vpop.permute.xlu0 %5232
        %5234 = vset.pattern.permute.xlu0 0
        %5235 = vperm.xlu0 %5234, %v3990
        %v5236 = vpop.permute.xlu0 %5235
        %5237 = vset.pattern.permute.xlu0 0
        %5238 = vperm.xlu0 %5237, %v4039
        %v5239 = vpop.permute.xlu0 %5238
        %5240 = vset.pattern.permute.xlu0 0
        %5241 = vperm.xlu0 %5240, %v4088
        %v5242 = vpop.permute.xlu0 %5241
        %5243 = vset.pattern.permute.xlu0 0
        %5244 = vperm.xlu0 %5243, %v4137
        %v5245 = vpop.permute.xlu0 %5244
        %5246 = vset.pattern.permute.xlu0 0
        %5247 = vperm.xlu0 %5246, %v4186
        %v5248 = vpop.permute.xlu0 %5247
        %5249 = vset.pattern.permute.xlu0 0
        %5250 = vperm.xlu0 %5249, %v4235
        %v5251 = vpop.permute.xlu0 %5250
        %5252 = vset.pattern.permute.xlu0 0
        %5253 = vperm.xlu0 %5252, %v4284
        %v5254 = vpop.permute.xlu0 %5253
        %5255 = vset.pattern.permute.xlu0 0
        %5256 = vperm.xlu0 %5255, %v4333
        %v5257 = vpop.permute.xlu0 %5256
        %5258 = vset.pattern.permute.xlu0 0
        %5259 = vperm.xlu0 %5258, %v4382
        %v5260 = vpop.permute.xlu0 %5259
        %5261 = vset.pattern.permute.xlu0 0
        %5262 = vperm.xlu0 %5261, %v4431
        %v5263 = vpop.permute.xlu0 %5262
        %5264 = vset.pattern.permute.xlu0 0
        %5265 = vperm.xlu0 %5264, %v4480
        %v5266 = vpop.permute.xlu0 %5265
        %5267 = vset.pattern.permute.xlu0 0
        %5268 = vperm.xlu0 %5267, %v4529
        %v5269 = vpop.permute.xlu0 %5268
        %5270 = vset.pattern.permute.xlu0 0
        %5271 = vperm.xlu0 %5270, %v4578
        %v5272 = vpop.permute.xlu0 %5271
        %5273 = vset.pattern.permute.xlu0 0
        %5274 = vperm.xlu0 %5273, %v4627
        %v5275 = vpop.permute.xlu0 %5274
        %5276 = vset.pattern.permute.xlu0 0
        %5277 = vperm.xlu0 %5276, %v4676
        %v5278 = vpop.permute.xlu0 %5277
        %5279 = vset.pattern.permute.xlu0 0
        %5280 = vperm.xlu0 %5279, %v4725
        %v5281 = vpop.permute.xlu0 %5280
        %5282 = vset.pattern.permute.xlu0 0
        %5283 = vperm.xlu0 %5282, %v4774
        %v5284 = vpop.permute.xlu0 %5283
        %5285 = vset.pattern.permute.xlu0 0
        %5286 = vperm.xlu0 %5285, %v4823
        %v5287 = vpop.permute.xlu0 %5286
        %5288 = vset.pattern.permute.xlu0 0
        %5289 = vperm.xlu0 %5288, %v4872
        %v5290 = vpop.permute.xlu0 %5289
        %5291 = vset.pattern.permute.xlu0 0
        %5292 = vperm.xlu0 %5291, %v4921
        %v5293 = vpop.permute.xlu0 %5292
        %5294 = vset.pattern.permute.xlu0 0
        %5295 = vperm.xlu0 %5294, %v4970
        %v5296 = vpop.permute.xlu0 %5295
        %5297 = vset.pattern.permute.xlu0 0
        %5298 = vperm.xlu0 %5297, %v5019
        %v5299 = vpop.permute.xlu0 %5298
        %5300 = vset.pattern.permute.xlu0 0
        %5301 = vperm.xlu0 %5300, %v5068
        %v5302 = vpop.permute.xlu0 %5301
        %5303 = vset.pattern.permute.xlu0 0
        %5304 = vperm.xlu0 %5303, %v5117
        %v5305 = vpop.permute.xlu0 %5304
        %5306 = vset.pattern.permute.xlu0 0
        %5307 = vperm.xlu0 %5306, %v5166
        %v5308 = vpop.permute.xlu0 %5307
        %5309 = vset.pattern.permute.xlu0 0
        %5310 = vperm.xlu0 %5309, %v5215
        %v5311 = vpop.permute.xlu0 %5310
        %v5312 = vlaneseq
        %v5313 = vshrl.u32 %v5312, 7
        %v5314 = vsub.s32 %v328, %v5313
        %v5315 = vrot.slane %v5218, %v5314
        %v5316 = vadd.s32 %v328, 4294967288
        %v5317 = vlaneseq
        %v5318 = vshrl.u32 %v5317, 7
        %v5319 = vsub.s32 %v5316, %v5318
        %v5320 = vrot.slane %v5221, %v5319
        %vm5321 = vcmask 130112
        %v5322 = vsel %vm5321, %v5320, %v5315
        %v5323 = vadd.s32 %v328, 4294967280
        %v5324 = vlaneseq
        %v5325 = vshrl.u32 %v5324, 7
        %v5326 = vsub.s32 %v5323, %v5325
        %v5327 = vrot.slane %v5224, %v5326
        %vm5328 = vcmask 195712
        %v5329 = vsel %vm5328, %v5327, %v5322
        %v5330 = vadd.s32 %v328, 4294967272
        %v5331 = vlaneseq
        %v5332 = vshrl.u32 %v5331, 7
        %v5333 = vsub.s32 %v5330, %v5332
        %v5334 = vrot.slane %v5227, %v5333
        %vm5335 = vcmask 261312
        %v5336 = vsel %vm5335, %v5334, %v5329
        %v5337 = vadd.s32 %v328, 4294967264
        %v5338 = vlaneseq
        %v5339 = vshrl.u32 %v5338, 7
        %v5340 = vsub.s32 %v5337, %v5339
        %v5341 = vrot.slane %v5230, %v5340
        %vm5342 = vcmask 326912
        %v5343 = vsel %vm5342, %v5341, %v5336
        %v5344 = vadd.s32 %v328, 4294967256
        %v5345 = vlaneseq
        %v5346 = vshrl.u32 %v5345, 7
        %v5347 = vsub.s32 %v5344, %v5346
        %v5348 = vrot.slane %v5233, %v5347
        %vm5349 = vcmask 392512
        %v5350 = vsel %vm5349, %v5348, %v5343
        %v5351 = vadd.s32 %v328, 4294967248
        %v5352 = vlaneseq
        %v5353 = vshrl.u32 %v5352, 7
        %v5354 = vsub.s32 %v5351, %v5353
        %v5355 = vrot.slane %v5236, %v5354
        %vm5356 = vcmask 458112
        %v5357 = vsel %vm5356, %v5355, %v5350
        %v5358 = vadd.s32 %v328, 4294967240
        %v5359 = vlaneseq
        %v5360 = vshrl.u32 %v5359, 7
        %v5361 = vsub.s32 %v5358, %v5360
        %v5362 = vrot.slane %v5239, %v5361
        %vm5363 = vcmask 523712
        %v5364 = vsel %vm5363, %v5362, %v5357
        %v5365 = vadd.s32 %v328, 4294967232
        %v5366 = vlaneseq
        %v5367 = vshrl.u32 %v5366, 7
        %v5368 = vsub.s32 %v5365, %v5367
        %v5369 = vrot.slane %v5242, %v5368
        %vm5370 = vcmask 589312
        %v5371 = vsel %vm5370, %v5369, %v5364
        %v5372 = vadd.s32 %v328, 4294967224
        %v5373 = vlaneseq
        %v5374 = vshrl.u32 %v5373, 7
        %v5375 = vsub.s32 %v5372, %v5374
        %v5376 = vrot.slane %v5245, %v5375
        %vm5377 = vcmask 654912
        %v5378 = vsel %vm5377, %v5376, %v5371
        %v5379 = vadd.s32 %v328, 4294967216
        %v5380 = vlaneseq
        %v5381 = vshrl.u32 %v5380, 7
        %v5382 = vsub.s32 %v5379, %v5381
        %v5383 = vrot.slane %v5248, %v5382
        %vm5384 = vcmask 720512
        %v5385 = vsel %vm5384, %v5383, %v5378
        %v5386 = vadd.s32 %v328, 4294967208
        %v5387 = vlaneseq
        %v5388 = vshrl.u32 %v5387, 7
        %v5389 = vsub.s32 %v5386, %v5388
        %v5390 = vrot.slane %v5251, %v5389
        %vm5391 = vcmask 786112
        %v5392 = vsel %vm5391, %v5390, %v5385
        %v5393 = vadd.s32 %v328, 4294967200
        %v5394 = vlaneseq
        %v5395 = vshrl.u32 %v5394, 7
        %v5396 = vsub.s32 %v5393, %v5395
        %v5397 = vrot.slane %v5254, %v5396
        %vm5398 = vcmask 851712
        %v5399 = vsel %vm5398, %v5397, %v5392
        %v5400 = vadd.s32 %v328, 4294967192
        %v5401 = vlaneseq
        %v5402 = vshrl.u32 %v5401, 7
        %v5403 = vsub.s32 %v5400, %v5402
        %v5404 = vrot.slane %v5257, %v5403
        %vm5405 = vcmask 917312
        %v5406 = vsel %vm5405, %v5404, %v5399
        %v5407 = vadd.s32 %v328, 4294967184
        %v5408 = vlaneseq
        %v5409 = vshrl.u32 %v5408, 7
        %v5410 = vsub.s32 %v5407, %v5409
        %v5411 = vrot.slane %v5260, %v5410
        %vm5412 = vcmask 982912
        %v5413 = vsel %vm5412, %v5411, %v5406
        %v5414 = vadd.s32 %v328, 4294967176
        %v5415 = vlaneseq
        %v5416 = vshrl.u32 %v5415, 7
        %v5417 = vsub.s32 %v5414, %v5416
        %v5418 = vrot.slane %v5263, %v5417
        %vm5419 = vcmask 1048512
        %v5420 = vsel %vm5419, %v5418, %v5413
        %v5421 = vlaneseq
        %v5422 = vshrl.u32 %v5421, 7
        %v5423 = vsub.s32 %v328, %v5422
        %v5424 = vrot.slane %v5266, %v5423
        %v5425 = vlaneseq
        %v5426 = vshrl.u32 %v5425, 7
        %v5427 = vsub.s32 %v5316, %v5426
        %v5428 = vrot.slane %v5269, %v5427
        %v5429 = vsel %vm5321, %v5428, %v5424
        %v5430 = vlaneseq
        %v5431 = vshrl.u32 %v5430, 7
        %v5432 = vsub.s32 %v5323, %v5431
        %v5433 = vrot.slane %v5272, %v5432
        %v5434 = vsel %vm5328, %v5433, %v5429
        %v5435 = vlaneseq
        %v5436 = vshrl.u32 %v5435, 7
        %v5437 = vsub.s32 %v5330, %v5436
        %v5438 = vrot.slane %v5275, %v5437
        %v5439 = vsel %vm5335, %v5438, %v5434
        %v5440 = vlaneseq
        %v5441 = vshrl.u32 %v5440, 7
        %v5442 = vsub.s32 %v5337, %v5441
        %v5443 = vrot.slane %v5278, %v5442
        %v5444 = vsel %vm5342, %v5443, %v5439
        %v5445 = vlaneseq
        %v5446 = vshrl.u32 %v5445, 7
        %v5447 = vsub.s32 %v5344, %v5446
        %v5448 = vrot.slane %v5281, %v5447
        %v5449 = vsel %vm5349, %v5448, %v5444
        %v5450 = vlaneseq
        %v5451 = vshrl.u32 %v5450, 7
        %v5452 = vsub.s32 %v5351, %v5451
        %v5453 = vrot.slane %v5284, %v5452
        %v5454 = vsel %vm5356, %v5453, %v5449
        %v5455 = vlaneseq
        %v5456 = vshrl.u32 %v5455, 7
        %v5457 = vsub.s32 %v5358, %v5456
        %v5458 = vrot.slane %v5287, %v5457
        %v5459 = vsel %vm5363, %v5458, %v5454
        %v5460 = vlaneseq
        %v5461 = vshrl.u32 %v5460, 7
        %v5462 = vsub.s32 %v5365, %v5461
        %v5463 = vrot.slane %v5290, %v5462
        %v5464 = vsel %vm5370, %v5463, %v5459
        %v5465 = vlaneseq
        %v5466 = vshrl.u32 %v5465, 7
        %v5467 = vsub.s32 %v5372, %v5466
        %v5468 = vrot.slane %v5293, %v5467
        %v5469 = vsel %vm5377, %v5468, %v5464
        %v5470 = vlaneseq
        %v5471 = vshrl.u32 %v5470, 7
        %v5472 = vsub.s32 %v5379, %v5471
        %v5473 = vrot.slane %v5296, %v5472
        %v5474 = vsel %vm5384, %v5473, %v5469
        %v5475 = vlaneseq
        %v5476 = vshrl.u32 %v5475, 7
        %v5477 = vsub.s32 %v5386, %v5476
        %v5478 = vrot.slane %v5299, %v5477
        %v5479 = vsel %vm5391, %v5478, %v5474
        %v5480 = vlaneseq
        %v5481 = vshrl.u32 %v5480, 7
        %v5482 = vsub.s32 %v5393, %v5481
        %v5483 = vrot.slane %v5302, %v5482
        %v5484 = vsel %vm5398, %v5483, %v5479
        %v5485 = vlaneseq
        %v5486 = vshrl.u32 %v5485, 7
        %v5487 = vsub.s32 %v5400, %v5486
        %v5488 = vrot.slane %v5305, %v5487
        %v5489 = vsel %vm5405, %v5488, %v5484
        %v5490 = vlaneseq
        %v5491 = vshrl.u32 %v5490, 7
        %v5492 = vsub.s32 %v5407, %v5491
        %v5493 = vrot.slane %v5308, %v5492
        %v5494 = vsel %vm5412, %v5493, %v5489
        %v5495 = vlaneseq
        %v5496 = vshrl.u32 %v5495, 7
        %v5497 = vsub.s32 %v5414, %v5496
        %v5498 = vrot.slane %v5311, %v5497
        %v5499 = vsel %vm5419, %v5498, %v5494
        %v5500 = vcombine.low %v5420, %v5499
        %v5502 = vunpack.c.l.s4 1966171168
        %v5503 = vunpack.c.0.s8 %v5502
        %v5504 = vlaneseq
        %v5505 = vshrl.u32 %v5504, 7
        %v5506 = vsub.s32 %v5503, %v5505
        %v5507 = vrot.slane %v5500, %v5506
        %v5509 = vunpack.c.l.s4 1966171168
        %v5510 = vunpack.c.0.s8 %v5509
        %v5511 = vlaneseq
        %v5512 = vshrl.u32 %v5511, 7
        %v5513 = vsub.s32 %v5510, %v5512
        %v5514 = vrot.slane %v5507, %v5513
        %v5516 = vlaneseq
        %vm5517 = vcmp.ge.s32.totalorder %v5516, 0
        %vm5518 = vcmp.lt.s32.totalorder %v5516, 256
        %vm5519 = vmand %vm5517, %vm5518
        %5520 = vst.msk [vmem:[%s273] sm:$0x3] %vm5519, %v5514
        %v5521 = vld [vmem:[%s278 + $0x100] sm:$0xff]
        %v5522 = vld [vmem:[%s278 + $0x108] sm:$0xff]
        %v5523 = vld [vmem:[%s278 + $0x110] sm:$0xff]
        %v5524 = vld [vmem:[%s278 + $0x118] sm:$0xff]
        %v5525 = vld [vmem:[%s278 + $0x120] sm:$0xff]
        %v5526 = vld [vmem:[%s278 + $0x128] sm:$0xff]
        %v5527 = vld [vmem:[%s278 + $0x130] sm:$0xff]
        %v5528 = vld [vmem:[%s278 + $0x138] sm:$0xff]
        %v5529 = vld [vmem:[%s278 + $0x140] sm:$0xff]
        %v5530 = vld [vmem:[%s278 + $0x148] sm:$0xff]
        %v5531 = vld [vmem:[%s278 + $0x150] sm:$0xff]
        %v5532 = vld [vmem:[%s278 + $0x158] sm:$0xff]
        %v5533 = vld [vmem:[%s278 + $0x160] sm:$0xff]
        %v5534 = vld [vmem:[%s278 + $0x168] sm:$0xff]
        %v5535 = vld [vmem:[%s278 + $0x170] sm:$0xff]
        %v5536 = vld [vmem:[%s278 + $0x178] sm:$0xff]
        %v5537 = vld [vmem:[%s278 + $0x180] sm:$0xff]
        %v5538 = vld [vmem:[%s278 + $0x188] sm:$0xff]
        %v5539 = vld [vmem:[%s278 + $0x190] sm:$0xff]
        %v5540 = vld [vmem:[%s278 + $0x198] sm:$0xff]
        %v5541 = vld [vmem:[%s278 + $0x1a0] sm:$0xff]
        %v5542 = vld [vmem:[%s278 + $0x1a8] sm:$0xff]
        %v5543 = vld [vmem:[%s278 + $0x1b0] sm:$0xff]
        %v5544 = vld [vmem:[%s278 + $0x1b8] sm:$0xff]
        %v5545 = vld [vmem:[%s278 + $0x1c0] sm:$0xff]
        %v5546 = vld [vmem:[%s278 + $0x1c8] sm:$0xff]
        %v5547 = vld [vmem:[%s278 + $0x1d0] sm:$0xff]
        %v5548 = vld [vmem:[%s278 + $0x1d8] sm:$0xff]
        %v5549 = vld [vmem:[%s278 + $0x1e0] sm:$0xff]
        %v5550 = vld [vmem:[%s278 + $0x1e8] sm:$0xff]
        %v5551 = vld [vmem:[%s278 + $0x1f0] sm:$0xff]
        %v5552 = vld [vmem:[%s278 + $0x1f8] sm:$0xff]
        %5553 = vset.pattern.permute.xlu0 0
        %5554 = vperm.xlu0 %5553, %v5521
        %v5555 = vpop.permute.xlu0 %5554
        %5556 = vset.pattern.permute.xlu0 0
        %5557 = vperm.xlu0 %5556, %v5522
        %v5558 = vpop.permute.xlu0 %5557
        %5559 = vset.pattern.permute.xlu0 0
        %5560 = vperm.xlu0 %5559, %v5523
        %v5561 = vpop.permute.xlu0 %5560
        %5562 = vset.pattern.permute.xlu0 0
        %5563 = vperm.xlu0 %5562, %v5524
        %v5564 = vpop.permute.xlu0 %5563
        %5565 = vset.pattern.permute.xlu0 0
        %5566 = vperm.xlu0 %5565, %v5525
        %v5567 = vpop.permute.xlu0 %5566
        %5568 = vset.pattern.permute.xlu0 0
        %5569 = vperm.xlu0 %5568, %v5526
        %v5570 = vpop.permute.xlu0 %5569
        %5571 = vset.pattern.permute.xlu0 0
        %5572 = vperm.xlu0 %5571, %v5527
        %v5573 = vpop.permute.xlu0 %5572
        %5574 = vset.pattern.permute.xlu0 0
        %5575 = vperm.xlu0 %5574, %v5528
        %v5576 = vpop.permute.xlu0 %5575
        %5577 = vset.pattern.permute.xlu0 0
        %5578 = vperm.xlu0 %5577, %v5529
        %v5579 = vpop.permute.xlu0 %5578
        %5580 = vset.pattern.permute.xlu0 0
        %5581 = vperm.xlu0 %5580, %v5530
        %v5582 = vpop.permute.xlu0 %5581
        %5583 = vset.pattern.permute.xlu0 0
        %5584 = vperm.xlu0 %5583, %v5531
        %v5585 = vpop.permute.xlu0 %5584
        %5586 = vset.pattern.permute.xlu0 0
        %5587 = vperm.xlu0 %5586, %v5532
        %v5588 = vpop.permute.xlu0 %5587
        %5589 = vset.pattern.permute.xlu0 0
        %5590 = vperm.xlu0 %5589, %v5533
        %v5591 = vpop.permute.xlu0 %5590
        %5592 = vset.pattern.permute.xlu0 0
        %5593 = vperm.xlu0 %5592, %v5534
        %v5594 = vpop.permute.xlu0 %5593
        %5595 = vset.pattern.permute.xlu0 0
        %5596 = vperm.xlu0 %5595, %v5535
        %v5597 = vpop.permute.xlu0 %5596
        %5598 = vset.pattern.permute.xlu0 0
        %5599 = vperm.xlu0 %5598, %v5536
        %v5600 = vpop.permute.xlu0 %5599
        %5601 = vset.pattern.permute.xlu0 0
        %5602 = vperm.xlu0 %5601, %v5537
        %v5603 = vpop.permute.xlu0 %5602
        %5604 = vset.pattern.permute.xlu0 0
        %5605 = vperm.xlu0 %5604, %v5538
        %v5606 = vpop.permute.xlu0 %5605
        %5607 = vset.pattern.permute.xlu0 0
        %5608 = vperm.xlu0 %5607, %v5539
        %v5609 = vpop.permute.xlu0 %5608
        %5610 = vset.pattern.permute.xlu0 0
        %5611 = vperm.xlu0 %5610, %v5540
        %v5612 = vpop.permute.xlu0 %5611
        %5613 = vset.pattern.permute.xlu0 0
        %5614 = vperm.xlu0 %5613, %v5541
        %v5615 = vpop.permute.xlu0 %5614
        %5616 = vset.pattern.permute.xlu0 0
        %5617 = vperm.xlu0 %5616, %v5542
        %v5618 = vpop.permute.xlu0 %5617
        %5619 = vset.pattern.permute.xlu0 0
        %5620 = vperm.xlu0 %5619, %v5543
        %v5621 = vpop.permute.xlu0 %5620
        %5622 = vset.pattern.permute.xlu0 0
        %5623 = vperm.xlu0 %5622, %v5544
        %v5624 = vpop.permute.xlu0 %5623
        %5625 = vset.pattern.permute.xlu0 0
        %5626 = vperm.xlu0 %5625, %v5545
        %v5627 = vpop.permute.xlu0 %5626
        %5628 = vset.pattern.permute.xlu0 0
        %5629 = vperm.xlu0 %5628, %v5546
        %v5630 = vpop.permute.xlu0 %5629
        %5631 = vset.pattern.permute.xlu0 0
        %5632 = vperm.xlu0 %5631, %v5547
        %v5633 = vpop.permute.xlu0 %5632
        %5634 = vset.pattern.permute.xlu0 0
        %5635 = vperm.xlu0 %5634, %v5548
        %v5636 = vpop.permute.xlu0 %5635
        %5637 = vset.pattern.permute.xlu0 0
        %5638 = vperm.xlu0 %5637, %v5549
        %v5639 = vpop.permute.xlu0 %5638
        %5640 = vset.pattern.permute.xlu0 0
        %5641 = vperm.xlu0 %5640, %v5550
        %v5642 = vpop.permute.xlu0 %5641
        %5643 = vset.pattern.permute.xlu0 0
        %5644 = vperm.xlu0 %5643, %v5551
        %v5645 = vpop.permute.xlu0 %5644
        %5646 = vset.pattern.permute.xlu0 0
        %5647 = vperm.xlu0 %5646, %v5552
        %v5648 = vpop.permute.xlu0 %5647
        %vm5649 = vcmp.eq.s32.totalorder %v328, %v5555
        %vm5650 = vcmp.eq.s32.totalorder %v328, %v5558
        %vm5651 = vcmp.eq.s32.totalorder %v328, %v5561
        %vm5652 = vcmp.eq.s32.totalorder %v328, %v5564
        %vm5653 = vcmp.eq.s32.totalorder %v328, %v5567
        %vm5654 = vcmp.eq.s32.totalorder %v328, %v5570
        %vm5655 = vcmp.eq.s32.totalorder %v328, %v5573
        %vm5656 = vcmp.eq.s32.totalorder %v328, %v5576
        %vm5657 = vcmp.eq.s32.totalorder %v328, %v5579
        %vm5658 = vcmp.eq.s32.totalorder %v328, %v5582
        %vm5659 = vcmp.eq.s32.totalorder %v328, %v5585
        %vm5660 = vcmp.eq.s32.totalorder %v328, %v5588
        %vm5661 = vcmp.eq.s32.totalorder %v328, %v5591
        %vm5662 = vcmp.eq.s32.totalorder %v328, %v5594
        %vm5663 = vcmp.eq.s32.totalorder %v328, %v5597
        %vm5664 = vcmp.eq.s32.totalorder %v328, %v5600
        %vm5665 = vcmp.eq.s32.totalorder %v328, %v5603
        %vm5666 = vcmp.eq.s32.totalorder %v328, %v5606
        %vm5667 = vcmp.eq.s32.totalorder %v328, %v5609
        %vm5668 = vcmp.eq.s32.totalorder %v328, %v5612
        %vm5669 = vcmp.eq.s32.totalorder %v328, %v5615
        %vm5670 = vcmp.eq.s32.totalorder %v328, %v5618
        %vm5671 = vcmp.eq.s32.totalorder %v328, %v5621
        %vm5672 = vcmp.eq.s32.totalorder %v328, %v5624
        %vm5673 = vcmp.eq.s32.totalorder %v328, %v5627
        %vm5674 = vcmp.eq.s32.totalorder %v328, %v5630
        %vm5675 = vcmp.eq.s32.totalorder %v328, %v5633
        %vm5676 = vcmp.eq.s32.totalorder %v328, %v5636
        %vm5677 = vcmp.eq.s32.totalorder %v328, %v5639
        %vm5678 = vcmp.eq.s32.totalorder %v328, %v5642
        %vm5679 = vcmp.eq.s32.totalorder %v328, %v5645
        %vm5680 = vcmp.eq.s32.totalorder %v328, %v5648
        %v5681 = vadd.s32 %v5521, 5
        %v5682 = vadd.s32 %v5522, 5
        %v5683 = vadd.s32 %v5523, 5
        %v5684 = vadd.s32 %v5524, 5
        %v5685 = vadd.s32 %v5525, 5
        %v5686 = vadd.s32 %v5526, 5
        %v5687 = vadd.s32 %v5527, 5
        %v5688 = vadd.s32 %v5528, 5
        %v5689 = vadd.s32 %v5529, 5
        %v5690 = vadd.s32 %v5530, 5
        %v5691 = vadd.s32 %v5531, 5
        %v5692 = vadd.s32 %v5532, 5
        %v5693 = vadd.s32 %v5533, 5
        %v5694 = vadd.s32 %v5534, 5
        %v5695 = vadd.s32 %v5535, 5
        %v5696 = vadd.s32 %v5536, 5
        %v5697 = vadd.s32 %v5537, 5
        %v5698 = vadd.s32 %v5538, 5
        %v5699 = vadd.s32 %v5539, 5
        %v5700 = vadd.s32 %v5540, 5
        %v5701 = vadd.s32 %v5541, 5
        %v5702 = vadd.s32 %v5542, 5
        %v5703 = vadd.s32 %v5543, 5
        %v5704 = vadd.s32 %v5544, 5
        %v5705 = vadd.s32 %v5545, 5
        %v5706 = vadd.s32 %v5546, 5
        %v5707 = vadd.s32 %v5547, 5
        %v5708 = vadd.s32 %v5548, 5
        %v5709 = vadd.s32 %v5549, 5
        %v5710 = vadd.s32 %v5550, 5
        %v5711 = vadd.s32 %v5551, 5
        %v5712 = vadd.s32 %v5552, 5
        %5713 = vset.pattern.permute.xlu0 1
        %5714 = vperm.xlu0 %5713, %v5681
        %v5715 = vpop.permute.xlu0 %5714
        %5716 = vset.pattern.permute.xlu0 1
        %5717 = vperm.xlu0 %5716, %v5682
        %v5718 = vpop.permute.xlu0 %5717
        %5719 = vset.pattern.permute.xlu0 1
        %5720 = vperm.xlu0 %5719, %v5683
        %v5721 = vpop.permute.xlu0 %5720
        %5722 = vset.pattern.permute.xlu0 1
        %5723 = vperm.xlu0 %5722, %v5684
        %v5724 = vpop.permute.xlu0 %5723
        %5725 = vset.pattern.permute.xlu0 1
        %5726 = vperm.xlu0 %5725, %v5685
        %v5727 = vpop.permute.xlu0 %5726
        %5728 = vset.pattern.permute.xlu0 1
        %5729 = vperm.xlu0 %5728, %v5686
        %v5730 = vpop.permute.xlu0 %5729
        %5731 = vset.pattern.permute.xlu0 1
        %5732 = vperm.xlu0 %5731, %v5687
        %v5733 = vpop.permute.xlu0 %5732
        %5734 = vset.pattern.permute.xlu0 1
        %5735 = vperm.xlu0 %5734, %v5688
        %v5736 = vpop.permute.xlu0 %5735
        %5737 = vset.pattern.permute.xlu0 1
        %5738 = vperm.xlu0 %5737, %v5689
        %v5739 = vpop.permute.xlu0 %5738
        %5740 = vset.pattern.permute.xlu0 1
        %5741 = vperm.xlu0 %5740, %v5690
        %v5742 = vpop.permute.xlu0 %5741
        %5743 = vset.pattern.permute.xlu0 1
        %5744 = vperm.xlu0 %5743, %v5691
        %v5745 = vpop.permute.xlu0 %5744
        %5746 = vset.pattern.permute.xlu0 1
        %5747 = vperm.xlu0 %5746, %v5692
        %v5748 = vpop.permute.xlu0 %5747
        %5749 = vset.pattern.permute.xlu0 1
        %5750 = vperm.xlu0 %5749, %v5693
        %v5751 = vpop.permute.xlu0 %5750
        %5752 = vset.pattern.permute.xlu0 1
        %5753 = vperm.xlu0 %5752, %v5694
        %v5754 = vpop.permute.xlu0 %5753
        %5755 = vset.pattern.permute.xlu0 1
        %5756 = vperm.xlu0 %5755, %v5695
        %v5757 = vpop.permute.xlu0 %5756
        %5758 = vset.pattern.permute.xlu0 1
        %5759 = vperm.xlu0 %5758, %v5696
        %v5760 = vpop.permute.xlu0 %5759
        %5761 = vset.pattern.permute.xlu0 1
        %5762 = vperm.xlu0 %5761, %v5697
        %v5763 = vpop.permute.xlu0 %5762
        %5764 = vset.pattern.permute.xlu0 1
        %5765 = vperm.xlu0 %5764, %v5698
        %v5766 = vpop.permute.xlu0 %5765
        %5767 = vset.pattern.permute.xlu0 1
        %5768 = vperm.xlu0 %5767, %v5699
        %v5769 = vpop.permute.xlu0 %5768
        %5770 = vset.pattern.permute.xlu0 1
        %5771 = vperm.xlu0 %5770, %v5700
        %v5772 = vpop.permute.xlu0 %5771
        %5773 = vset.pattern.permute.xlu0 1
        %5774 = vperm.xlu0 %5773, %v5701
        %v5775 = vpop.permute.xlu0 %5774
        %5776 = vset.pattern.permute.xlu0 1
        %5777 = vperm.xlu0 %5776, %v5702
        %v5778 = vpop.permute.xlu0 %5777
        %5779 = vset.pattern.permute.xlu0 1
        %5780 = vperm.xlu0 %5779, %v5703
        %v5781 = vpop.permute.xlu0 %5780
        %5782 = vset.pattern.permute.xlu0 1
        %5783 = vperm.xlu0 %5782, %v5704
        %v5784 = vpop.permute.xlu0 %5783
        %5785 = vset.pattern.permute.xlu0 1
        %5786 = vperm.xlu0 %5785, %v5705
        %v5787 = vpop.permute.xlu0 %5786
        %5788 = vset.pattern.permute.xlu0 1
        %5789 = vperm.xlu0 %5788, %v5706
        %v5790 = vpop.permute.xlu0 %5789
        %5791 = vset.pattern.permute.xlu0 1
        %5792 = vperm.xlu0 %5791, %v5707
        %v5793 = vpop.permute.xlu0 %5792
        %5794 = vset.pattern.permute.xlu0 1
        %5795 = vperm.xlu0 %5794, %v5708
        %v5796 = vpop.permute.xlu0 %5795
        %5797 = vset.pattern.permute.xlu0 1
        %5798 = vperm.xlu0 %5797, %v5709
        %v5799 = vpop.permute.xlu0 %5798
        %5800 = vset.pattern.permute.xlu0 1
        %5801 = vperm.xlu0 %5800, %v5710
        %v5802 = vpop.permute.xlu0 %5801
        %5803 = vset.pattern.permute.xlu0 1
        %5804 = vperm.xlu0 %5803, %v5711
        %v5805 = vpop.permute.xlu0 %5804
        %5806 = vset.pattern.permute.xlu0 1
        %5807 = vperm.xlu0 %5806, %v5712
        %v5808 = vpop.permute.xlu0 %5807
        %vm5809 = vcmp.eq.s32.totalorder %v328, %v5715
        %vm5810 = vcmp.eq.s32.totalorder %v328, %v5718
        %vm5811 = vcmp.eq.s32.totalorder %v328, %v5721
        %vm5812 = vcmp.eq.s32.totalorder %v328, %v5724
        %vm5813 = vcmp.eq.s32.totalorder %v328, %v5727
        %vm5814 = vcmp.eq.s32.totalorder %v328, %v5730
        %vm5815 = vcmp.eq.s32.totalorder %v328, %v5733
        %vm5816 = vcmp.eq.s32.totalorder %v328, %v5736
        %vm5817 = vcmp.eq.s32.totalorder %v328, %v5739
        %vm5818 = vcmp.eq.s32.totalorder %v328, %v5742
        %vm5819 = vcmp.eq.s32.totalorder %v328, %v5745
        %vm5820 = vcmp.eq.s32.totalorder %v328, %v5748
        %vm5821 = vcmp.eq.s32.totalorder %v328, %v5751
        %vm5822 = vcmp.eq.s32.totalorder %v328, %v5754
        %vm5823 = vcmp.eq.s32.totalorder %v328, %v5757
        %vm5824 = vcmp.eq.s32.totalorder %v328, %v5760
        %vm5825 = vcmp.eq.s32.totalorder %v328, %v5763
        %vm5826 = vcmp.eq.s32.totalorder %v328, %v5766
        %vm5827 = vcmp.eq.s32.totalorder %v328, %v5769
        %vm5828 = vcmp.eq.s32.totalorder %v328, %v5772
        %vm5829 = vcmp.eq.s32.totalorder %v328, %v5775
        %vm5830 = vcmp.eq.s32.totalorder %v328, %v5778
        %vm5831 = vcmp.eq.s32.totalorder %v328, %v5781
        %vm5832 = vcmp.eq.s32.totalorder %v328, %v5784
        %vm5833 = vcmp.eq.s32.totalorder %v328, %v5787
        %vm5834 = vcmp.eq.s32.totalorder %v328, %v5790
        %vm5835 = vcmp.eq.s32.totalorder %v328, %v5793
        %vm5836 = vcmp.eq.s32.totalorder %v328, %v5796
        %vm5837 = vcmp.eq.s32.totalorder %v328, %v5799
        %vm5838 = vcmp.eq.s32.totalorder %v328, %v5802
        %vm5839 = vcmp.eq.s32.totalorder %v328, %v5805
        %vm5840 = vcmp.eq.s32.totalorder %v328, %v5808
        %vm5841 = vmor %vm5649, %vm5809
        %vm5842 = vmor %vm5650, %vm5810
        %vm5843 = vmor %vm5651, %vm5811
        %vm5844 = vmor %vm5652, %vm5812
        %vm5845 = vmor %vm5653, %vm5813
        %vm5846 = vmor %vm5654, %vm5814
        %vm5847 = vmor %vm5655, %vm5815
        %vm5848 = vmor %vm5656, %vm5816
        %vm5849 = vmor %vm5657, %vm5817
        %vm5850 = vmor %vm5658, %vm5818
        %vm5851 = vmor %vm5659, %vm5819
        %vm5852 = vmor %vm5660, %vm5820
        %vm5853 = vmor %vm5661, %vm5821
        %vm5854 = vmor %vm5662, %vm5822
        %vm5855 = vmor %vm5663, %vm5823
        %vm5856 = vmor %vm5664, %vm5824
        %vm5857 = vmor %vm5665, %vm5825
        %vm5858 = vmor %vm5666, %vm5826
        %vm5859 = vmor %vm5667, %vm5827
        %vm5860 = vmor %vm5668, %vm5828
        %vm5861 = vmor %vm5669, %vm5829
        %vm5862 = vmor %vm5670, %vm5830
        %vm5863 = vmor %vm5671, %vm5831
        %vm5864 = vmor %vm5672, %vm5832
        %vm5865 = vmor %vm5673, %vm5833
        %vm5866 = vmor %vm5674, %vm5834
        %vm5867 = vmor %vm5675, %vm5835
        %vm5868 = vmor %vm5676, %vm5836
        %vm5869 = vmor %vm5677, %vm5837
        %vm5870 = vmor %vm5678, %vm5838
        %vm5871 = vmor %vm5679, %vm5839
        %vm5872 = vmor %vm5680, %vm5840
        %v5873 = vadd.s32 %v5521, 10
        %v5874 = vadd.s32 %v5522, 10
        %v5875 = vadd.s32 %v5523, 10
        %v5876 = vadd.s32 %v5524, 10
        %v5877 = vadd.s32 %v5525, 10
        %v5878 = vadd.s32 %v5526, 10
        %v5879 = vadd.s32 %v5527, 10
        %v5880 = vadd.s32 %v5528, 10
        %v5881 = vadd.s32 %v5529, 10
        %v5882 = vadd.s32 %v5530, 10
        %v5883 = vadd.s32 %v5531, 10
        %v5884 = vadd.s32 %v5532, 10
        %v5885 = vadd.s32 %v5533, 10
        %v5886 = vadd.s32 %v5534, 10
        %v5887 = vadd.s32 %v5535, 10
        %v5888 = vadd.s32 %v5536, 10
        %v5889 = vadd.s32 %v5537, 10
        %v5890 = vadd.s32 %v5538, 10
        %v5891 = vadd.s32 %v5539, 10
        %v5892 = vadd.s32 %v5540, 10
        %v5893 = vadd.s32 %v5541, 10
        %v5894 = vadd.s32 %v5542, 10
        %v5895 = vadd.s32 %v5543, 10
        %v5896 = vadd.s32 %v5544, 10
        %v5897 = vadd.s32 %v5545, 10
        %v5898 = vadd.s32 %v5546, 10
        %v5899 = vadd.s32 %v5547, 10
        %v5900 = vadd.s32 %v5548, 10
        %v5901 = vadd.s32 %v5549, 10
        %v5902 = vadd.s32 %v5550, 10
        %v5903 = vadd.s32 %v5551, 10
        %v5904 = vadd.s32 %v5552, 10
        %5905 = vset.pattern.permute.xlu0 2
        %5906 = vperm.xlu0 %5905, %v5873
        %v5907 = vpop.permute.xlu0 %5906
        %5908 = vset.pattern.permute.xlu0 2
        %5909 = vperm.xlu0 %5908, %v5874
        %v5910 = vpop.permute.xlu0 %5909
        %5911 = vset.pattern.permute.xlu0 2
        %5912 = vperm.xlu0 %5911, %v5875
        %v5913 = vpop.permute.xlu0 %5912
        %5914 = vset.pattern.permute.xlu0 2
        %5915 = vperm.xlu0 %5914, %v5876
        %v5916 = vpop.permute.xlu0 %5915
        %5917 = vset.pattern.permute.xlu0 2
        %5918 = vperm.xlu0 %5917, %v5877
        %v5919 = vpop.permute.xlu0 %5918
        %5920 = vset.pattern.permute.xlu0 2
        %5921 = vperm.xlu0 %5920, %v5878
        %v5922 = vpop.permute.xlu0 %5921
        %5923 = vset.pattern.permute.xlu0 2
        %5924 = vperm.xlu0 %5923, %v5879
        %v5925 = vpop.permute.xlu0 %5924
        %5926 = vset.pattern.permute.xlu0 2
        %5927 = vperm.xlu0 %5926, %v5880
        %v5928 = vpop.permute.xlu0 %5927
        %5929 = vset.pattern.permute.xlu0 2
        %5930 = vperm.xlu0 %5929, %v5881
        %v5931 = vpop.permute.xlu0 %5930
        %5932 = vset.pattern.permute.xlu0 2
        %5933 = vperm.xlu0 %5932, %v5882
        %v5934 = vpop.permute.xlu0 %5933
        %5935 = vset.pattern.permute.xlu0 2
        %5936 = vperm.xlu0 %5935, %v5883
        %v5937 = vpop.permute.xlu0 %5936
        %5938 = vset.pattern.permute.xlu0 2
        %5939 = vperm.xlu0 %5938, %v5884
        %v5940 = vpop.permute.xlu0 %5939
        %5941 = vset.pattern.permute.xlu0 2
        %5942 = vperm.xlu0 %5941, %v5885
        %v5943 = vpop.permute.xlu0 %5942
        %5944 = vset.pattern.permute.xlu0 2
        %5945 = vperm.xlu0 %5944, %v5886
        %v5946 = vpop.permute.xlu0 %5945
        %5947 = vset.pattern.permute.xlu0 2
        %5948 = vperm.xlu0 %5947, %v5887
        %v5949 = vpop.permute.xlu0 %5948
        %5950 = vset.pattern.permute.xlu0 2
        %5951 = vperm.xlu0 %5950, %v5888
        %v5952 = vpop.permute.xlu0 %5951
        %5953 = vset.pattern.permute.xlu0 2
        %5954 = vperm.xlu0 %5953, %v5889
        %v5955 = vpop.permute.xlu0 %5954
        %5956 = vset.pattern.permute.xlu0 2
        %5957 = vperm.xlu0 %5956, %v5890
        %v5958 = vpop.permute.xlu0 %5957
        %5959 = vset.pattern.permute.xlu0 2
        %5960 = vperm.xlu0 %5959, %v5891
        %v5961 = vpop.permute.xlu0 %5960
        %5962 = vset.pattern.permute.xlu0 2
        %5963 = vperm.xlu0 %5962, %v5892
        %v5964 = vpop.permute.xlu0 %5963
        %5965 = vset.pattern.permute.xlu0 2
        %5966 = vperm.xlu0 %5965, %v5893
        %v5967 = vpop.permute.xlu0 %5966
        %5968 = vset.pattern.permute.xlu0 2
        %5969 = vperm.xlu0 %5968, %v5894
        %v5970 = vpop.permute.xlu0 %5969
        %5971 = vset.pattern.permute.xlu0 2
        %5972 = vperm.xlu0 %5971, %v5895
        %v5973 = vpop.permute.xlu0 %5972
        %5974 = vset.pattern.permute.xlu0 2
        %5975 = vperm.xlu0 %5974, %v5896
        %v5976 = vpop.permute.xlu0 %5975
        %5977 = vset.pattern.permute.xlu0 2
        %5978 = vperm.xlu0 %5977, %v5897
        %v5979 = vpop.permute.xlu0 %5978
        %5980 = vset.pattern.permute.xlu0 2
        %5981 = vperm.xlu0 %5980, %v5898
        %v5982 = vpop.permute.xlu0 %5981
        %5983 = vset.pattern.permute.xlu0 2
        %5984 = vperm.xlu0 %5983, %v5899
        %v5985 = vpop.permute.xlu0 %5984
        %5986 = vset.pattern.permute.xlu0 2
        %5987 = vperm.xlu0 %5986, %v5900
        %v5988 = vpop.permute.xlu0 %5987
        %5989 = vset.pattern.permute.xlu0 2
        %5990 = vperm.xlu0 %5989, %v5901
        %v5991 = vpop.permute.xlu0 %5990
        %5992 = vset.pattern.permute.xlu0 2
        %5993 = vperm.xlu0 %5992, %v5902
        %v5994 = vpop.permute.xlu0 %5993
        %5995 = vset.pattern.permute.xlu0 2
        %5996 = vperm.xlu0 %5995, %v5903
        %v5997 = vpop.permute.xlu0 %5996
        %5998 = vset.pattern.permute.xlu0 2
        %5999 = vperm.xlu0 %5998, %v5904
        %v6000 = vpop.permute.xlu0 %5999
        %vm6001 = vcmp.eq.s32.totalorder %v328, %v5907
        %vm6002 = vcmp.eq.s32.totalorder %v328, %v5910
        %vm6003 = vcmp.eq.s32.totalorder %v328, %v5913
        %vm6004 = vcmp.eq.s32.totalorder %v328, %v5916
        %vm6005 = vcmp.eq.s32.totalorder %v328, %v5919
        %vm6006 = vcmp.eq.s32.totalorder %v328, %v5922
        %vm6007 = vcmp.eq.s32.totalorder %v328, %v5925
        %vm6008 = vcmp.eq.s32.totalorder %v328, %v5928
        %vm6009 = vcmp.eq.s32.totalorder %v328, %v5931
        %vm6010 = vcmp.eq.s32.totalorder %v328, %v5934
        %vm6011 = vcmp.eq.s32.totalorder %v328, %v5937
        %vm6012 = vcmp.eq.s32.totalorder %v328, %v5940
        %vm6013 = vcmp.eq.s32.totalorder %v328, %v5943
        %vm6014 = vcmp.eq.s32.totalorder %v328, %v5946
        %vm6015 = vcmp.eq.s32.totalorder %v328, %v5949
        %vm6016 = vcmp.eq.s32.totalorder %v328, %v5952
        %vm6017 = vcmp.eq.s32.totalorder %v328, %v5955
        %vm6018 = vcmp.eq.s32.totalorder %v328, %v5958
        %vm6019 = vcmp.eq.s32.totalorder %v328, %v5961
        %vm6020 = vcmp.eq.s32.totalorder %v328, %v5964
        %vm6021 = vcmp.eq.s32.totalorder %v328, %v5967
        %vm6022 = vcmp.eq.s32.totalorder %v328, %v5970
        %vm6023 = vcmp.eq.s32.totalorder %v328, %v5973
        %vm6024 = vcmp.eq.s32.totalorder %v328, %v5976
        %vm6025 = vcmp.eq.s32.totalorder %v328, %v5979
        %vm6026 = vcmp.eq.s32.totalorder %v328, %v5982
        %vm6027 = vcmp.eq.s32.totalorder %v328, %v5985
        %vm6028 = vcmp.eq.s32.totalorder %v328, %v5988
        %vm6029 = vcmp.eq.s32.totalorder %v328, %v5991
        %vm6030 = vcmp.eq.s32.totalorder %v328, %v5994
        %vm6031 = vcmp.eq.s32.totalorder %v328, %v5997
        %vm6032 = vcmp.eq.s32.totalorder %v328, %v6000
        %vm6033 = vmor %vm5841, %vm6001
        %vm6034 = vmor %vm5842, %vm6002
        %vm6035 = vmor %vm5843, %vm6003
        %vm6036 = vmor %vm5844, %vm6004
        %vm6037 = vmor %vm5845, %vm6005
        %vm6038 = vmor %vm5846, %vm6006
        %vm6039 = vmor %vm5847, %vm6007
        %vm6040 = vmor %vm5848, %vm6008
        %vm6041 = vmor %vm5849, %vm6009
        %vm6042 = vmor %vm5850, %vm6010
        %vm6043 = vmor %vm5851, %vm6011
        %vm6044 = vmor %vm5852, %vm6012
        %vm6045 = vmor %vm5853, %vm6013
        %vm6046 = vmor %vm5854, %vm6014
        %vm6047 = vmor %vm5855, %vm6015
        %vm6048 = vmor %vm5856, %vm6016
        %vm6049 = vmor %vm5857, %vm6017
        %vm6050 = vmor %vm5858, %vm6018
        %vm6051 = vmor %vm5859, %vm6019
        %vm6052 = vmor %vm5860, %vm6020
        %vm6053 = vmor %vm5861, %vm6021
        %vm6054 = vmor %vm5862, %vm6022
        %vm6055 = vmor %vm5863, %vm6023
        %vm6056 = vmor %vm5864, %vm6024
        %vm6057 = vmor %vm5865, %vm6025
        %vm6058 = vmor %vm5866, %vm6026
        %vm6059 = vmor %vm5867, %vm6027
        %vm6060 = vmor %vm5868, %vm6028
        %vm6061 = vmor %vm5869, %vm6029
        %vm6062 = vmor %vm5870, %vm6030
        %vm6063 = vmor %vm5871, %vm6031
        %vm6064 = vmor %vm5872, %vm6032
        %v6065 = vadd.s32 %v5521, 15
        %v6066 = vadd.s32 %v5522, 15
        %v6067 = vadd.s32 %v5523, 15
        %v6068 = vadd.s32 %v5524, 15
        %v6069 = vadd.s32 %v5525, 15
        %v6070 = vadd.s32 %v5526, 15
        %v6071 = vadd.s32 %v5527, 15
        %v6072 = vadd.s32 %v5528, 15
        %v6073 = vadd.s32 %v5529, 15
        %v6074 = vadd.s32 %v5530, 15
        %v6075 = vadd.s32 %v5531, 15
        %v6076 = vadd.s32 %v5532, 15
        %v6077 = vadd.s32 %v5533, 15
        %v6078 = vadd.s32 %v5534, 15
        %v6079 = vadd.s32 %v5535, 15
        %v6080 = vadd.s32 %v5536, 15
        %v6081 = vadd.s32 %v5537, 15
        %v6082 = vadd.s32 %v5538, 15
        %v6083 = vadd.s32 %v5539, 15
        %v6084 = vadd.s32 %v5540, 15
        %v6085 = vadd.s32 %v5541, 15
        %v6086 = vadd.s32 %v5542, 15
        %v6087 = vadd.s32 %v5543, 15
        %v6088 = vadd.s32 %v5544, 15
        %v6089 = vadd.s32 %v5545, 15
        %v6090 = vadd.s32 %v5546, 15
        %v6091 = vadd.s32 %v5547, 15
        %v6092 = vadd.s32 %v5548, 15
        %v6093 = vadd.s32 %v5549, 15
        %v6094 = vadd.s32 %v5550, 15
        %v6095 = vadd.s32 %v5551, 15
        %v6096 = vadd.s32 %v5552, 15
        %6097 = vset.pattern.permute.xlu0 3
        %6098 = vperm.xlu0 %6097, %v6065
        %v6099 = vpop.permute.xlu0 %6098
        %6100 = vset.pattern.permute.xlu0 3
        %6101 = vperm.xlu0 %6100, %v6066
        %v6102 = vpop.permute.xlu0 %6101
        %6103 = vset.pattern.permute.xlu0 3
        %6104 = vperm.xlu0 %6103, %v6067
        %v6105 = vpop.permute.xlu0 %6104
        %6106 = vset.pattern.permute.xlu0 3
        %6107 = vperm.xlu0 %6106, %v6068
        %v6108 = vpop.permute.xlu0 %6107
        %6109 = vset.pattern.permute.xlu0 3
        %6110 = vperm.xlu0 %6109, %v6069
        %v6111 = vpop.permute.xlu0 %6110
        %6112 = vset.pattern.permute.xlu0 3
        %6113 = vperm.xlu0 %6112, %v6070
        %v6114 = vpop.permute.xlu0 %6113
        %6115 = vset.pattern.permute.xlu0 3
        %6116 = vperm.xlu0 %6115, %v6071
        %v6117 = vpop.permute.xlu0 %6116
        %6118 = vset.pattern.permute.xlu0 3
        %6119 = vperm.xlu0 %6118, %v6072
        %v6120 = vpop.permute.xlu0 %6119
        %6121 = vset.pattern.permute.xlu0 3
        %6122 = vperm.xlu0 %6121, %v6073
        %v6123 = vpop.permute.xlu0 %6122
        %6124 = vset.pattern.permute.xlu0 3
        %6125 = vperm.xlu0 %6124, %v6074
        %v6126 = vpop.permute.xlu0 %6125
        %6127 = vset.pattern.permute.xlu0 3
        %6128 = vperm.xlu0 %6127, %v6075
        %v6129 = vpop.permute.xlu0 %6128
        %6130 = vset.pattern.permute.xlu0 3
        %6131 = vperm.xlu0 %6130, %v6076
        %v6132 = vpop.permute.xlu0 %6131
        %6133 = vset.pattern.permute.xlu0 3
        %6134 = vperm.xlu0 %6133, %v6077
        %v6135 = vpop.permute.xlu0 %6134
        %6136 = vset.pattern.permute.xlu0 3
        %6137 = vperm.xlu0 %6136, %v6078
        %v6138 = vpop.permute.xlu0 %6137
        %6139 = vset.pattern.permute.xlu0 3
        %6140 = vperm.xlu0 %6139, %v6079
        %v6141 = vpop.permute.xlu0 %6140
        %6142 = vset.pattern.permute.xlu0 3
        %6143 = vperm.xlu0 %6142, %v6080
        %v6144 = vpop.permute.xlu0 %6143
        %6145 = vset.pattern.permute.xlu0 3
        %6146 = vperm.xlu0 %6145, %v6081
        %v6147 = vpop.permute.xlu0 %6146
        %6148 = vset.pattern.permute.xlu0 3
        %6149 = vperm.xlu0 %6148, %v6082
        %v6150 = vpop.permute.xlu0 %6149
        %6151 = vset.pattern.permute.xlu0 3
        %6152 = vperm.xlu0 %6151, %v6083
        %v6153 = vpop.permute.xlu0 %6152
        %6154 = vset.pattern.permute.xlu0 3
        %6155 = vperm.xlu0 %6154, %v6084
        %v6156 = vpop.permute.xlu0 %6155
        %6157 = vset.pattern.permute.xlu0 3
        %6158 = vperm.xlu0 %6157, %v6085
        %v6159 = vpop.permute.xlu0 %6158
        %6160 = vset.pattern.permute.xlu0 3
        %6161 = vperm.xlu0 %6160, %v6086
        %v6162 = vpop.permute.xlu0 %6161
        %6163 = vset.pattern.permute.xlu0 3
        %6164 = vperm.xlu0 %6163, %v6087
        %v6165 = vpop.permute.xlu0 %6164
        %6166 = vset.pattern.permute.xlu0 3
        %6167 = vperm.xlu0 %6166, %v6088
        %v6168 = vpop.permute.xlu0 %6167
        %6169 = vset.pattern.permute.xlu0 3
        %6170 = vperm.xlu0 %6169, %v6089
        %v6171 = vpop.permute.xlu0 %6170
        %6172 = vset.pattern.permute.xlu0 3
        %6173 = vperm.xlu0 %6172, %v6090
        %v6174 = vpop.permute.xlu0 %6173
        %6175 = vset.pattern.permute.xlu0 3
        %6176 = vperm.xlu0 %6175, %v6091
        %v6177 = vpop.permute.xlu0 %6176
        %6178 = vset.pattern.permute.xlu0 3
        %6179 = vperm.xlu0 %6178, %v6092
        %v6180 = vpop.permute.xlu0 %6179
        %6181 = vset.pattern.permute.xlu0 3
        %6182 = vperm.xlu0 %6181, %v6093
        %v6183 = vpop.permute.xlu0 %6182
        %6184 = vset.pattern.permute.xlu0 3
        %6185 = vperm.xlu0 %6184, %v6094
        %v6186 = vpop.permute.xlu0 %6185
        %6187 = vset.pattern.permute.xlu0 3
        %6188 = vperm.xlu0 %6187, %v6095
        %v6189 = vpop.permute.xlu0 %6188
        %6190 = vset.pattern.permute.xlu0 3
        %6191 = vperm.xlu0 %6190, %v6096
        %v6192 = vpop.permute.xlu0 %6191
        %vm6193 = vcmp.eq.s32.totalorder %v328, %v6099
        %vm6194 = vcmp.eq.s32.totalorder %v328, %v6102
        %vm6195 = vcmp.eq.s32.totalorder %v328, %v6105
        %vm6196 = vcmp.eq.s32.totalorder %v328, %v6108
        %vm6197 = vcmp.eq.s32.totalorder %v328, %v6111
        %vm6198 = vcmp.eq.s32.totalorder %v328, %v6114
        %vm6199 = vcmp.eq.s32.totalorder %v328, %v6117
        %vm6200 = vcmp.eq.s32.totalorder %v328, %v6120
        %vm6201 = vcmp.eq.s32.totalorder %v328, %v6123
        %vm6202 = vcmp.eq.s32.totalorder %v328, %v6126
        %vm6203 = vcmp.eq.s32.totalorder %v328, %v6129
        %vm6204 = vcmp.eq.s32.totalorder %v328, %v6132
        %vm6205 = vcmp.eq.s32.totalorder %v328, %v6135
        %vm6206 = vcmp.eq.s32.totalorder %v328, %v6138
        %vm6207 = vcmp.eq.s32.totalorder %v328, %v6141
        %vm6208 = vcmp.eq.s32.totalorder %v328, %v6144
        %vm6209 = vcmp.eq.s32.totalorder %v328, %v6147
        %vm6210 = vcmp.eq.s32.totalorder %v328, %v6150
        %vm6211 = vcmp.eq.s32.totalorder %v328, %v6153
        %vm6212 = vcmp.eq.s32.totalorder %v328, %v6156
        %vm6213 = vcmp.eq.s32.totalorder %v328, %v6159
        %vm6214 = vcmp.eq.s32.totalorder %v328, %v6162
        %vm6215 = vcmp.eq.s32.totalorder %v328, %v6165
        %vm6216 = vcmp.eq.s32.totalorder %v328, %v6168
        %vm6217 = vcmp.eq.s32.totalorder %v328, %v6171
        %vm6218 = vcmp.eq.s32.totalorder %v328, %v6174
        %vm6219 = vcmp.eq.s32.totalorder %v328, %v6177
        %vm6220 = vcmp.eq.s32.totalorder %v328, %v6180
        %vm6221 = vcmp.eq.s32.totalorder %v328, %v6183
        %vm6222 = vcmp.eq.s32.totalorder %v328, %v6186
        %vm6223 = vcmp.eq.s32.totalorder %v328, %v6189
        %vm6224 = vcmp.eq.s32.totalorder %v328, %v6192
        %vm6225 = vmor %vm6033, %vm6193
        %vm6226 = vmor %vm6034, %vm6194
        %vm6227 = vmor %vm6035, %vm6195
        %vm6228 = vmor %vm6036, %vm6196
        %vm6229 = vmor %vm6037, %vm6197
        %vm6230 = vmor %vm6038, %vm6198
        %vm6231 = vmor %vm6039, %vm6199
        %vm6232 = vmor %vm6040, %vm6200
        %vm6233 = vmor %vm6041, %vm6201
        %vm6234 = vmor %vm6042, %vm6202
        %vm6235 = vmor %vm6043, %vm6203
        %vm6236 = vmor %vm6044, %vm6204
        %vm6237 = vmor %vm6045, %vm6205
        %vm6238 = vmor %vm6046, %vm6206
        %vm6239 = vmor %vm6047, %vm6207
        %vm6240 = vmor %vm6048, %vm6208
        %vm6241 = vmor %vm6049, %vm6209
        %vm6242 = vmor %vm6050, %vm6210
        %vm6243 = vmor %vm6051, %vm6211
        %vm6244 = vmor %vm6052, %vm6212
        %vm6245 = vmor %vm6053, %vm6213
        %vm6246 = vmor %vm6054, %vm6214
        %vm6247 = vmor %vm6055, %vm6215
        %vm6248 = vmor %vm6056, %vm6216
        %vm6249 = vmor %vm6057, %vm6217
        %vm6250 = vmor %vm6058, %vm6218
        %vm6251 = vmor %vm6059, %vm6219
        %vm6252 = vmor %vm6060, %vm6220
        %vm6253 = vmor %vm6061, %vm6221
        %vm6254 = vmor %vm6062, %vm6222
        %vm6255 = vmor %vm6063, %vm6223
        %vm6256 = vmor %vm6064, %vm6224
        %v6257 = vadd.s32 %v5521, 20
        %v6258 = vadd.s32 %v5522, 20
        %v6259 = vadd.s32 %v5523, 20
        %v6260 = vadd.s32 %v5524, 20
        %v6261 = vadd.s32 %v5525, 20
        %v6262 = vadd.s32 %v5526, 20
        %v6263 = vadd.s32 %v5527, 20
        %v6264 = vadd.s32 %v5528, 20
        %v6265 = vadd.s32 %v5529, 20
        %v6266 = vadd.s32 %v5530, 20
        %v6267 = vadd.s32 %v5531, 20
        %v6268 = vadd.s32 %v5532, 20
        %v6269 = vadd.s32 %v5533, 20
        %v6270 = vadd.s32 %v5534, 20
        %v6271 = vadd.s32 %v5535, 20
        %v6272 = vadd.s32 %v5536, 20
        %v6273 = vadd.s32 %v5537, 20
        %v6274 = vadd.s32 %v5538, 20
        %v6275 = vadd.s32 %v5539, 20
        %v6276 = vadd.s32 %v5540, 20
        %v6277 = vadd.s32 %v5541, 20
        %v6278 = vadd.s32 %v5542, 20
        %v6279 = vadd.s32 %v5543, 20
        %v6280 = vadd.s32 %v5544, 20
        %v6281 = vadd.s32 %v5545, 20
        %v6282 = vadd.s32 %v5546, 20
        %v6283 = vadd.s32 %v5547, 20
        %v6284 = vadd.s32 %v5548, 20
        %v6285 = vadd.s32 %v5549, 20
        %v6286 = vadd.s32 %v5550, 20
        %v6287 = vadd.s32 %v5551, 20
        %v6288 = vadd.s32 %v5552, 20
        %6289 = vset.pattern.permute.xlu0 4
        %6290 = vperm.xlu0 %6289, %v6257
        %v6291 = vpop.permute.xlu0 %6290
        %6292 = vset.pattern.permute.xlu0 4
        %6293 = vperm.xlu0 %6292, %v6258
        %v6294 = vpop.permute.xlu0 %6293
        %6295 = vset.pattern.permute.xlu0 4
        %6296 = vperm.xlu0 %6295, %v6259
        %v6297 = vpop.permute.xlu0 %6296
        %6298 = vset.pattern.permute.xlu0 4
        %6299 = vperm.xlu0 %6298, %v6260
        %v6300 = vpop.permute.xlu0 %6299
        %6301 = vset.pattern.permute.xlu0 4
        %6302 = vperm.xlu0 %6301, %v6261
        %v6303 = vpop.permute.xlu0 %6302
        %6304 = vset.pattern.permute.xlu0 4
        %6305 = vperm.xlu0 %6304, %v6262
        %v6306 = vpop.permute.xlu0 %6305
        %6307 = vset.pattern.permute.xlu0 4
        %6308 = vperm.xlu0 %6307, %v6263
        %v6309 = vpop.permute.xlu0 %6308
        %6310 = vset.pattern.permute.xlu0 4
        %6311 = vperm.xlu0 %6310, %v6264
        %v6312 = vpop.permute.xlu0 %6311
        %6313 = vset.pattern.permute.xlu0 4
        %6314 = vperm.xlu0 %6313, %v6265
        %v6315 = vpop.permute.xlu0 %6314
        %6316 = vset.pattern.permute.xlu0 4
        %6317 = vperm.xlu0 %6316, %v6266
        %v6318 = vpop.permute.xlu0 %6317
        %6319 = vset.pattern.permute.xlu0 4
        %6320 = vperm.xlu0 %6319, %v6267
        %v6321 = vpop.permute.xlu0 %6320
        %6322 = vset.pattern.permute.xlu0 4
        %6323 = vperm.xlu0 %6322, %v6268
        %v6324 = vpop.permute.xlu0 %6323
        %6325 = vset.pattern.permute.xlu0 4
        %6326 = vperm.xlu0 %6325, %v6269
        %v6327 = vpop.permute.xlu0 %6326
        %6328 = vset.pattern.permute.xlu0 4
        %6329 = vperm.xlu0 %6328, %v6270
        %v6330 = vpop.permute.xlu0 %6329
        %6331 = vset.pattern.permute.xlu0 4
        %6332 = vperm.xlu0 %6331, %v6271
        %v6333 = vpop.permute.xlu0 %6332
        %6334 = vset.pattern.permute.xlu0 4
        %6335 = vperm.xlu0 %6334, %v6272
        %v6336 = vpop.permute.xlu0 %6335
        %6337 = vset.pattern.permute.xlu0 4
        %6338 = vperm.xlu0 %6337, %v6273
        %v6339 = vpop.permute.xlu0 %6338
        %6340 = vset.pattern.permute.xlu0 4
        %6341 = vperm.xlu0 %6340, %v6274
        %v6342 = vpop.permute.xlu0 %6341
        %6343 = vset.pattern.permute.xlu0 4
        %6344 = vperm.xlu0 %6343, %v6275
        %v6345 = vpop.permute.xlu0 %6344
        %6346 = vset.pattern.permute.xlu0 4
        %6347 = vperm.xlu0 %6346, %v6276
        %v6348 = vpop.permute.xlu0 %6347
        %6349 = vset.pattern.permute.xlu0 4
        %6350 = vperm.xlu0 %6349, %v6277
        %v6351 = vpop.permute.xlu0 %6350
        %6352 = vset.pattern.permute.xlu0 4
        %6353 = vperm.xlu0 %6352, %v6278
        %v6354 = vpop.permute.xlu0 %6353
        %6355 = vset.pattern.permute.xlu0 4
        %6356 = vperm.xlu0 %6355, %v6279
        %v6357 = vpop.permute.xlu0 %6356
        %6358 = vset.pattern.permute.xlu0 4
        %6359 = vperm.xlu0 %6358, %v6280
        %v6360 = vpop.permute.xlu0 %6359
        %6361 = vset.pattern.permute.xlu0 4
        %6362 = vperm.xlu0 %6361, %v6281
        %v6363 = vpop.permute.xlu0 %6362
        %6364 = vset.pattern.permute.xlu0 4
        %6365 = vperm.xlu0 %6364, %v6282
        %v6366 = vpop.permute.xlu0 %6365
        %6367 = vset.pattern.permute.xlu0 4
        %6368 = vperm.xlu0 %6367, %v6283
        %v6369 = vpop.permute.xlu0 %6368
        %6370 = vset.pattern.permute.xlu0 4
        %6371 = vperm.xlu0 %6370, %v6284
        %v6372 = vpop.permute.xlu0 %6371
        %6373 = vset.pattern.permute.xlu0 4
        %6374 = vperm.xlu0 %6373, %v6285
        %v6375 = vpop.permute.xlu0 %6374
        %6376 = vset.pattern.permute.xlu0 4
        %6377 = vperm.xlu0 %6376, %v6286
        %v6378 = vpop.permute.xlu0 %6377
        %6379 = vset.pattern.permute.xlu0 4
        %6380 = vperm.xlu0 %6379, %v6287
        %v6381 = vpop.permute.xlu0 %6380
        %6382 = vset.pattern.permute.xlu0 4
        %6383 = vperm.xlu0 %6382, %v6288
        %v6384 = vpop.permute.xlu0 %6383
        %vm6385 = vcmp.eq.s32.totalorder %v328, %v6291
        %vm6386 = vcmp.eq.s32.totalorder %v328, %v6294
        %vm6387 = vcmp.eq.s32.totalorder %v328, %v6297
        %vm6388 = vcmp.eq.s32.totalorder %v328, %v6300
        %vm6389 = vcmp.eq.s32.totalorder %v328, %v6303
        %vm6390 = vcmp.eq.s32.totalorder %v328, %v6306
        %vm6391 = vcmp.eq.s32.totalorder %v328, %v6309
        %vm6392 = vcmp.eq.s32.totalorder %v328, %v6312
        %vm6393 = vcmp.eq.s32.totalorder %v328, %v6315
        %vm6394 = vcmp.eq.s32.totalorder %v328, %v6318
        %vm6395 = vcmp.eq.s32.totalorder %v328, %v6321
        %vm6396 = vcmp.eq.s32.totalorder %v328, %v6324
        %vm6397 = vcmp.eq.s32.totalorder %v328, %v6327
        %vm6398 = vcmp.eq.s32.totalorder %v328, %v6330
        %vm6399 = vcmp.eq.s32.totalorder %v328, %v6333
        %vm6400 = vcmp.eq.s32.totalorder %v328, %v6336
        %vm6401 = vcmp.eq.s32.totalorder %v328, %v6339
        %vm6402 = vcmp.eq.s32.totalorder %v328, %v6342
        %vm6403 = vcmp.eq.s32.totalorder %v328, %v6345
        %vm6404 = vcmp.eq.s32.totalorder %v328, %v6348
        %vm6405 = vcmp.eq.s32.totalorder %v328, %v6351
        %vm6406 = vcmp.eq.s32.totalorder %v328, %v6354
        %vm6407 = vcmp.eq.s32.totalorder %v328, %v6357
        %vm6408 = vcmp.eq.s32.totalorder %v328, %v6360
        %vm6409 = vcmp.eq.s32.totalorder %v328, %v6363
        %vm6410 = vcmp.eq.s32.totalorder %v328, %v6366
        %vm6411 = vcmp.eq.s32.totalorder %v328, %v6369
        %vm6412 = vcmp.eq.s32.totalorder %v328, %v6372
        %vm6413 = vcmp.eq.s32.totalorder %v328, %v6375
        %vm6414 = vcmp.eq.s32.totalorder %v328, %v6378
        %vm6415 = vcmp.eq.s32.totalorder %v328, %v6381
        %vm6416 = vcmp.eq.s32.totalorder %v328, %v6384
        %vm6417 = vmor %vm6225, %vm6385
        %vm6418 = vmor %vm6226, %vm6386
        %vm6419 = vmor %vm6227, %vm6387
        %vm6420 = vmor %vm6228, %vm6388
        %vm6421 = vmor %vm6229, %vm6389
        %vm6422 = vmor %vm6230, %vm6390
        %vm6423 = vmor %vm6231, %vm6391
        %vm6424 = vmor %vm6232, %vm6392
        %vm6425 = vmor %vm6233, %vm6393
        %vm6426 = vmor %vm6234, %vm6394
        %vm6427 = vmor %vm6235, %vm6395
        %vm6428 = vmor %vm6236, %vm6396
        %vm6429 = vmor %vm6237, %vm6397
        %vm6430 = vmor %vm6238, %vm6398
        %vm6431 = vmor %vm6239, %vm6399
        %vm6432 = vmor %vm6240, %vm6400
        %vm6433 = vmor %vm6241, %vm6401
        %vm6434 = vmor %vm6242, %vm6402
        %vm6435 = vmor %vm6243, %vm6403
        %vm6436 = vmor %vm6244, %vm6404
        %vm6437 = vmor %vm6245, %vm6405
        %vm6438 = vmor %vm6246, %vm6406
        %vm6439 = vmor %vm6247, %vm6407
        %vm6440 = vmor %vm6248, %vm6408
        %vm6441 = vmor %vm6249, %vm6409
        %vm6442 = vmor %vm6250, %vm6410
        %vm6443 = vmor %vm6251, %vm6411
        %vm6444 = vmor %vm6252, %vm6412
        %vm6445 = vmor %vm6253, %vm6413
        %vm6446 = vmor %vm6254, %vm6414
        %vm6447 = vmor %vm6255, %vm6415
        %vm6448 = vmor %vm6256, %vm6416
        %v6449 = vadd.s32 %v5521, 25
        %v6450 = vadd.s32 %v5522, 25
        %v6451 = vadd.s32 %v5523, 25
        %v6452 = vadd.s32 %v5524, 25
        %v6453 = vadd.s32 %v5525, 25
        %v6454 = vadd.s32 %v5526, 25
        %v6455 = vadd.s32 %v5527, 25
        %v6456 = vadd.s32 %v5528, 25
        %v6457 = vadd.s32 %v5529, 25
        %v6458 = vadd.s32 %v5530, 25
        %v6459 = vadd.s32 %v5531, 25
        %v6460 = vadd.s32 %v5532, 25
        %v6461 = vadd.s32 %v5533, 25
        %v6462 = vadd.s32 %v5534, 25
        %v6463 = vadd.s32 %v5535, 25
        %v6464 = vadd.s32 %v5536, 25
        %v6465 = vadd.s32 %v5537, 25
        %v6466 = vadd.s32 %v5538, 25
        %v6467 = vadd.s32 %v5539, 25
        %v6468 = vadd.s32 %v5540, 25
        %v6469 = vadd.s32 %v5541, 25
        %v6470 = vadd.s32 %v5542, 25
        %v6471 = vadd.s32 %v5543, 25
        %v6472 = vadd.s32 %v5544, 25
        %v6473 = vadd.s32 %v5545, 25
        %v6474 = vadd.s32 %v5546, 25
        %v6475 = vadd.s32 %v5547, 25
        %v6476 = vadd.s32 %v5548, 25
        %v6477 = vadd.s32 %v5549, 25
        %v6478 = vadd.s32 %v5550, 25
        %v6479 = vadd.s32 %v5551, 25
        %v6480 = vadd.s32 %v5552, 25
        %6481 = vset.pattern.permute.xlu0 5
        %6482 = vperm.xlu0 %6481, %v6449
        %v6483 = vpop.permute.xlu0 %6482
        %6484 = vset.pattern.permute.xlu0 5
        %6485 = vperm.xlu0 %6484, %v6450
        %v6486 = vpop.permute.xlu0 %6485
        %6487 = vset.pattern.permute.xlu0 5
        %6488 = vperm.xlu0 %6487, %v6451
        %v6489 = vpop.permute.xlu0 %6488
        %6490 = vset.pattern.permute.xlu0 5
        %6491 = vperm.xlu0 %6490, %v6452
        %v6492 = vpop.permute.xlu0 %6491
        %6493 = vset.pattern.permute.xlu0 5
        %6494 = vperm.xlu0 %6493, %v6453
        %v6495 = vpop.permute.xlu0 %6494
        %6496 = vset.pattern.permute.xlu0 5
        %6497 = vperm.xlu0 %6496, %v6454
        %v6498 = vpop.permute.xlu0 %6497
        %6499 = vset.pattern.permute.xlu0 5
        %6500 = vperm.xlu0 %6499, %v6455
        %v6501 = vpop.permute.xlu0 %6500
        %6502 = vset.pattern.permute.xlu0 5
        %6503 = vperm.xlu0 %6502, %v6456
        %v6504 = vpop.permute.xlu0 %6503
        %6505 = vset.pattern.permute.xlu0 5
        %6506 = vperm.xlu0 %6505, %v6457
        %v6507 = vpop.permute.xlu0 %6506
        %6508 = vset.pattern.permute.xlu0 5
        %6509 = vperm.xlu0 %6508, %v6458
        %v6510 = vpop.permute.xlu0 %6509
        %6511 = vset.pattern.permute.xlu0 5
        %6512 = vperm.xlu0 %6511, %v6459
        %v6513 = vpop.permute.xlu0 %6512
        %6514 = vset.pattern.permute.xlu0 5
        %6515 = vperm.xlu0 %6514, %v6460
        %v6516 = vpop.permute.xlu0 %6515
        %6517 = vset.pattern.permute.xlu0 5
        %6518 = vperm.xlu0 %6517, %v6461
        %v6519 = vpop.permute.xlu0 %6518
        %6520 = vset.pattern.permute.xlu0 5
        %6521 = vperm.xlu0 %6520, %v6462
        %v6522 = vpop.permute.xlu0 %6521
        %6523 = vset.pattern.permute.xlu0 5
        %6524 = vperm.xlu0 %6523, %v6463
        %v6525 = vpop.permute.xlu0 %6524
        %6526 = vset.pattern.permute.xlu0 5
        %6527 = vperm.xlu0 %6526, %v6464
        %v6528 = vpop.permute.xlu0 %6527
        %6529 = vset.pattern.permute.xlu0 5
        %6530 = vperm.xlu0 %6529, %v6465
        %v6531 = vpop.permute.xlu0 %6530
        %6532 = vset.pattern.permute.xlu0 5
        %6533 = vperm.xlu0 %6532, %v6466
        %v6534 = vpop.permute.xlu0 %6533
        %6535 = vset.pattern.permute.xlu0 5
        %6536 = vperm.xlu0 %6535, %v6467
        %v6537 = vpop.permute.xlu0 %6536
        %6538 = vset.pattern.permute.xlu0 5
        %6539 = vperm.xlu0 %6538, %v6468
        %v6540 = vpop.permute.xlu0 %6539
        %6541 = vset.pattern.permute.xlu0 5
        %6542 = vperm.xlu0 %6541, %v6469
        %v6543 = vpop.permute.xlu0 %6542
        %6544 = vset.pattern.permute.xlu0 5
        %6545 = vperm.xlu0 %6544, %v6470
        %v6546 = vpop.permute.xlu0 %6545
        %6547 = vset.pattern.permute.xlu0 5
        %6548 = vperm.xlu0 %6547, %v6471
        %v6549 = vpop.permute.xlu0 %6548
        %6550 = vset.pattern.permute.xlu0 5
        %6551 = vperm.xlu0 %6550, %v6472
        %v6552 = vpop.permute.xlu0 %6551
        %6553 = vset.pattern.permute.xlu0 5
        %6554 = vperm.xlu0 %6553, %v6473
        %v6555 = vpop.permute.xlu0 %6554
        %6556 = vset.pattern.permute.xlu0 5
        %6557 = vperm.xlu0 %6556, %v6474
        %v6558 = vpop.permute.xlu0 %6557
        %6559 = vset.pattern.permute.xlu0 5
        %6560 = vperm.xlu0 %6559, %v6475
        %v6561 = vpop.permute.xlu0 %6560
        %6562 = vset.pattern.permute.xlu0 5
        %6563 = vperm.xlu0 %6562, %v6476
        %v6564 = vpop.permute.xlu0 %6563
        %6565 = vset.pattern.permute.xlu0 5
        %6566 = vperm.xlu0 %6565, %v6477
        %v6567 = vpop.permute.xlu0 %6566
        %6568 = vset.pattern.permute.xlu0 5
        %6569 = vperm.xlu0 %6568, %v6478
        %v6570 = vpop.permute.xlu0 %6569
        %6571 = vset.pattern.permute.xlu0 5
        %6572 = vperm.xlu0 %6571, %v6479
        %v6573 = vpop.permute.xlu0 %6572
        %6574 = vset.pattern.permute.xlu0 5
        %6575 = vperm.xlu0 %6574, %v6480
        %v6576 = vpop.permute.xlu0 %6575
        %vm6577 = vcmp.eq.s32.totalorder %v328, %v6483
        %vm6578 = vcmp.eq.s32.totalorder %v328, %v6486
        %vm6579 = vcmp.eq.s32.totalorder %v328, %v6489
        %vm6580 = vcmp.eq.s32.totalorder %v328, %v6492
        %vm6581 = vcmp.eq.s32.totalorder %v328, %v6495
        %vm6582 = vcmp.eq.s32.totalorder %v328, %v6498
        %vm6583 = vcmp.eq.s32.totalorder %v328, %v6501
        %vm6584 = vcmp.eq.s32.totalorder %v328, %v6504
        %vm6585 = vcmp.eq.s32.totalorder %v328, %v6507
        %vm6586 = vcmp.eq.s32.totalorder %v328, %v6510
        %vm6587 = vcmp.eq.s32.totalorder %v328, %v6513
        %vm6588 = vcmp.eq.s32.totalorder %v328, %v6516
        %vm6589 = vcmp.eq.s32.totalorder %v328, %v6519
        %vm6590 = vcmp.eq.s32.totalorder %v328, %v6522
        %vm6591 = vcmp.eq.s32.totalorder %v328, %v6525
        %vm6592 = vcmp.eq.s32.totalorder %v328, %v6528
        %vm6593 = vcmp.eq.s32.totalorder %v328, %v6531
        %vm6594 = vcmp.eq.s32.totalorder %v328, %v6534
        %vm6595 = vcmp.eq.s32.totalorder %v328, %v6537
        %vm6596 = vcmp.eq.s32.totalorder %v328, %v6540
        %vm6597 = vcmp.eq.s32.totalorder %v328, %v6543
        %vm6598 = vcmp.eq.s32.totalorder %v328, %v6546
        %vm6599 = vcmp.eq.s32.totalorder %v328, %v6549
        %vm6600 = vcmp.eq.s32.totalorder %v328, %v6552
        %vm6601 = vcmp.eq.s32.totalorder %v328, %v6555
        %vm6602 = vcmp.eq.s32.totalorder %v328, %v6558
        %vm6603 = vcmp.eq.s32.totalorder %v328, %v6561
        %vm6604 = vcmp.eq.s32.totalorder %v328, %v6564
        %vm6605 = vcmp.eq.s32.totalorder %v328, %v6567
        %vm6606 = vcmp.eq.s32.totalorder %v328, %v6570
        %vm6607 = vcmp.eq.s32.totalorder %v328, %v6573
        %vm6608 = vcmp.eq.s32.totalorder %v328, %v6576
        %vm6609 = vmor %vm6417, %vm6577
        %vm6610 = vmor %vm6418, %vm6578
        %vm6611 = vmor %vm6419, %vm6579
        %vm6612 = vmor %vm6420, %vm6580
        %vm6613 = vmor %vm6421, %vm6581
        %vm6614 = vmor %vm6422, %vm6582
        %vm6615 = vmor %vm6423, %vm6583
        %vm6616 = vmor %vm6424, %vm6584
        %vm6617 = vmor %vm6425, %vm6585
        %vm6618 = vmor %vm6426, %vm6586
        %vm6619 = vmor %vm6427, %vm6587
        %vm6620 = vmor %vm6428, %vm6588
        %vm6621 = vmor %vm6429, %vm6589
        %vm6622 = vmor %vm6430, %vm6590
        %vm6623 = vmor %vm6431, %vm6591
        %vm6624 = vmor %vm6432, %vm6592
        %vm6625 = vmor %vm6433, %vm6593
        %vm6626 = vmor %vm6434, %vm6594
        %vm6627 = vmor %vm6435, %vm6595
        %vm6628 = vmor %vm6436, %vm6596
        %vm6629 = vmor %vm6437, %vm6597
        %vm6630 = vmor %vm6438, %vm6598
        %vm6631 = vmor %vm6439, %vm6599
        %vm6632 = vmor %vm6440, %vm6600
        %vm6633 = vmor %vm6441, %vm6601
        %vm6634 = vmor %vm6442, %vm6602
        %vm6635 = vmor %vm6443, %vm6603
        %vm6636 = vmor %vm6444, %vm6604
        %vm6637 = vmor %vm6445, %vm6605
        %vm6638 = vmor %vm6446, %vm6606
        %vm6639 = vmor %vm6447, %vm6607
        %vm6640 = vmor %vm6448, %vm6608
        %v6641 = vadd.s32 %v5521, 30
        %v6642 = vadd.s32 %v5522, 30
        %v6643 = vadd.s32 %v5523, 30
        %v6644 = vadd.s32 %v5524, 30
        %v6645 = vadd.s32 %v5525, 30
        %v6646 = vadd.s32 %v5526, 30
        %v6647 = vadd.s32 %v5527, 30
        %v6648 = vadd.s32 %v5528, 30
        %v6649 = vadd.s32 %v5529, 30
        %v6650 = vadd.s32 %v5530, 30
        %v6651 = vadd.s32 %v5531, 30
        %v6652 = vadd.s32 %v5532, 30
        %v6653 = vadd.s32 %v5533, 30
        %v6654 = vadd.s32 %v5534, 30
        %v6655 = vadd.s32 %v5535, 30
        %v6656 = vadd.s32 %v5536, 30
        %v6657 = vadd.s32 %v5537, 30
        %v6658 = vadd.s32 %v5538, 30
        %v6659 = vadd.s32 %v5539, 30
        %v6660 = vadd.s32 %v5540, 30
        %v6661 = vadd.s32 %v5541, 30
        %v6662 = vadd.s32 %v5542, 30
        %v6663 = vadd.s32 %v5543, 30
        %v6664 = vadd.s32 %v5544, 30
        %v6665 = vadd.s32 %v5545, 30
        %v6666 = vadd.s32 %v5546, 30
        %v6667 = vadd.s32 %v5547, 30
        %v6668 = vadd.s32 %v5548, 30
        %v6669 = vadd.s32 %v5549, 30
        %v6670 = vadd.s32 %v5550, 30
        %v6671 = vadd.s32 %v5551, 30
        %v6672 = vadd.s32 %v5552, 30
        %6673 = vset.pattern.permute.xlu0 6
        %6674 = vperm.xlu0 %6673, %v6641
        %v6675 = vpop.permute.xlu0 %6674
        %6676 = vset.pattern.permute.xlu0 6
        %6677 = vperm.xlu0 %6676, %v6642
        %v6678 = vpop.permute.xlu0 %6677
        %6679 = vset.pattern.permute.xlu0 6
        %6680 = vperm.xlu0 %6679, %v6643
        %v6681 = vpop.permute.xlu0 %6680
        %6682 = vset.pattern.permute.xlu0 6
        %6683 = vperm.xlu0 %6682, %v6644
        %v6684 = vpop.permute.xlu0 %6683
        %6685 = vset.pattern.permute.xlu0 6
        %6686 = vperm.xlu0 %6685, %v6645
        %v6687 = vpop.permute.xlu0 %6686
        %6688 = vset.pattern.permute.xlu0 6
        %6689 = vperm.xlu0 %6688, %v6646
        %v6690 = vpop.permute.xlu0 %6689
        %6691 = vset.pattern.permute.xlu0 6
        %6692 = vperm.xlu0 %6691, %v6647
        %v6693 = vpop.permute.xlu0 %6692
        %6694 = vset.pattern.permute.xlu0 6
        %6695 = vperm.xlu0 %6694, %v6648
        %v6696 = vpop.permute.xlu0 %6695
        %6697 = vset.pattern.permute.xlu0 6
        %6698 = vperm.xlu0 %6697, %v6649
        %v6699 = vpop.permute.xlu0 %6698
        %6700 = vset.pattern.permute.xlu0 6
        %6701 = vperm.xlu0 %6700, %v6650
        %v6702 = vpop.permute.xlu0 %6701
        %6703 = vset.pattern.permute.xlu0 6
        %6704 = vperm.xlu0 %6703, %v6651
        %v6705 = vpop.permute.xlu0 %6704
        %6706 = vset.pattern.permute.xlu0 6
        %6707 = vperm.xlu0 %6706, %v6652
        %v6708 = vpop.permute.xlu0 %6707
        %6709 = vset.pattern.permute.xlu0 6
        %6710 = vperm.xlu0 %6709, %v6653
        %v6711 = vpop.permute.xlu0 %6710
        %6712 = vset.pattern.permute.xlu0 6
        %6713 = vperm.xlu0 %6712, %v6654
        %v6714 = vpop.permute.xlu0 %6713
        %6715 = vset.pattern.permute.xlu0 6
        %6716 = vperm.xlu0 %6715, %v6655
        %v6717 = vpop.permute.xlu0 %6716
        %6718 = vset.pattern.permute.xlu0 6
        %6719 = vperm.xlu0 %6718, %v6656
        %v6720 = vpop.permute.xlu0 %6719
        %6721 = vset.pattern.permute.xlu0 6
        %6722 = vperm.xlu0 %6721, %v6657
        %v6723 = vpop.permute.xlu0 %6722
        %6724 = vset.pattern.permute.xlu0 6
        %6725 = vperm.xlu0 %6724, %v6658
        %v6726 = vpop.permute.xlu0 %6725
        %6727 = vset.pattern.permute.xlu0 6
        %6728 = vperm.xlu0 %6727, %v6659
        %v6729 = vpop.permute.xlu0 %6728
        %6730 = vset.pattern.permute.xlu0 6
        %6731 = vperm.xlu0 %6730, %v6660
        %v6732 = vpop.permute.xlu0 %6731
        %6733 = vset.pattern.permute.xlu0 6
        %6734 = vperm.xlu0 %6733, %v6661
        %v6735 = vpop.permute.xlu0 %6734
        %6736 = vset.pattern.permute.xlu0 6
        %6737 = vperm.xlu0 %6736, %v6662
        %v6738 = vpop.permute.xlu0 %6737
        %6739 = vset.pattern.permute.xlu0 6
        %6740 = vperm.xlu0 %6739, %v6663
        %v6741 = vpop.permute.xlu0 %6740
        %6742 = vset.pattern.permute.xlu0 6
        %6743 = vperm.xlu0 %6742, %v6664
        %v6744 = vpop.permute.xlu0 %6743
        %6745 = vset.pattern.permute.xlu0 6
        %6746 = vperm.xlu0 %6745, %v6665
        %v6747 = vpop.permute.xlu0 %6746
        %6748 = vset.pattern.permute.xlu0 6
        %6749 = vperm.xlu0 %6748, %v6666
        %v6750 = vpop.permute.xlu0 %6749
        %6751 = vset.pattern.permute.xlu0 6
        %6752 = vperm.xlu0 %6751, %v6667
        %v6753 = vpop.permute.xlu0 %6752
        %6754 = vset.pattern.permute.xlu0 6
        %6755 = vperm.xlu0 %6754, %v6668
        %v6756 = vpop.permute.xlu0 %6755
        %6757 = vset.pattern.permute.xlu0 6
        %6758 = vperm.xlu0 %6757, %v6669
        %v6759 = vpop.permute.xlu0 %6758
        %6760 = vset.pattern.permute.xlu0 6
        %6761 = vperm.xlu0 %6760, %v6670
        %v6762 = vpop.permute.xlu0 %6761
        %6763 = vset.pattern.permute.xlu0 6
        %6764 = vperm.xlu0 %6763, %v6671
        %v6765 = vpop.permute.xlu0 %6764
        %6766 = vset.pattern.permute.xlu0 6
        %6767 = vperm.xlu0 %6766, %v6672
        %v6768 = vpop.permute.xlu0 %6767
        %vm6769 = vcmp.eq.s32.totalorder %v328, %v6675
        %vm6770 = vcmp.eq.s32.totalorder %v328, %v6678
        %vm6771 = vcmp.eq.s32.totalorder %v328, %v6681
        %vm6772 = vcmp.eq.s32.totalorder %v328, %v6684
        %vm6773 = vcmp.eq.s32.totalorder %v328, %v6687
        %vm6774 = vcmp.eq.s32.totalorder %v328, %v6690
        %vm6775 = vcmp.eq.s32.totalorder %v328, %v6693
        %vm6776 = vcmp.eq.s32.totalorder %v328, %v6696
        %vm6777 = vcmp.eq.s32.totalorder %v328, %v6699
        %vm6778 = vcmp.eq.s32.totalorder %v328, %v6702
        %vm6779 = vcmp.eq.s32.totalorder %v328, %v6705
        %vm6780 = vcmp.eq.s32.totalorder %v328, %v6708
        %vm6781 = vcmp.eq.s32.totalorder %v328, %v6711
        %vm6782 = vcmp.eq.s32.totalorder %v328, %v6714
        %vm6783 = vcmp.eq.s32.totalorder %v328, %v6717
        %vm6784 = vcmp.eq.s32.totalorder %v328, %v6720
        %vm6785 = vcmp.eq.s32.totalorder %v328, %v6723
        %vm6786 = vcmp.eq.s32.totalorder %v328, %v6726
        %vm6787 = vcmp.eq.s32.totalorder %v328, %v6729
        %vm6788 = vcmp.eq.s32.totalorder %v328, %v6732
        %vm6789 = vcmp.eq.s32.totalorder %v328, %v6735
        %vm6790 = vcmp.eq.s32.totalorder %v328, %v6738
        %vm6791 = vcmp.eq.s32.totalorder %v328, %v6741
        %vm6792 = vcmp.eq.s32.totalorder %v328, %v6744
        %vm6793 = vcmp.eq.s32.totalorder %v328, %v6747
        %vm6794 = vcmp.eq.s32.totalorder %v328, %v6750
        %vm6795 = vcmp.eq.s32.totalorder %v328, %v6753
        %vm6796 = vcmp.eq.s32.totalorder %v328, %v6756
        %vm6797 = vcmp.eq.s32.totalorder %v328, %v6759
        %vm6798 = vcmp.eq.s32.totalorder %v328, %v6762
        %vm6799 = vcmp.eq.s32.totalorder %v328, %v6765
        %vm6800 = vcmp.eq.s32.totalorder %v328, %v6768
        %vm6801 = vmor %vm6609, %vm6769
        %vm6802 = vmor %vm6610, %vm6770
        %vm6803 = vmor %vm6611, %vm6771
        %vm6804 = vmor %vm6612, %vm6772
        %vm6805 = vmor %vm6613, %vm6773
        %vm6806 = vmor %vm6614, %vm6774
        %vm6807 = vmor %vm6615, %vm6775
        %vm6808 = vmor %vm6616, %vm6776
        %vm6809 = vmor %vm6617, %vm6777
        %vm6810 = vmor %vm6618, %vm6778
        %vm6811 = vmor %vm6619, %vm6779
        %vm6812 = vmor %vm6620, %vm6780
        %vm6813 = vmor %vm6621, %vm6781
        %vm6814 = vmor %vm6622, %vm6782
        %vm6815 = vmor %vm6623, %vm6783
        %vm6816 = vmor %vm6624, %vm6784
        %vm6817 = vmor %vm6625, %vm6785
        %vm6818 = vmor %vm6626, %vm6786
        %vm6819 = vmor %vm6627, %vm6787
        %vm6820 = vmor %vm6628, %vm6788
        %vm6821 = vmor %vm6629, %vm6789
        %vm6822 = vmor %vm6630, %vm6790
        %vm6823 = vmor %vm6631, %vm6791
        %vm6824 = vmor %vm6632, %vm6792
        %vm6825 = vmor %vm6633, %vm6793
        %vm6826 = vmor %vm6634, %vm6794
        %vm6827 = vmor %vm6635, %vm6795
        %vm6828 = vmor %vm6636, %vm6796
        %vm6829 = vmor %vm6637, %vm6797
        %vm6830 = vmor %vm6638, %vm6798
        %vm6831 = vmor %vm6639, %vm6799
        %vm6832 = vmor %vm6640, %vm6800
        %v6833 = vadd.s32 %v5521, 35
        %v6834 = vadd.s32 %v5522, 35
        %v6835 = vadd.s32 %v5523, 35
        %v6836 = vadd.s32 %v5524, 35
        %v6837 = vadd.s32 %v5525, 35
        %v6838 = vadd.s32 %v5526, 35
        %v6839 = vadd.s32 %v5527, 35
        %v6840 = vadd.s32 %v5528, 35
        %v6841 = vadd.s32 %v5529, 35
        %v6842 = vadd.s32 %v5530, 35
        %v6843 = vadd.s32 %v5531, 35
        %v6844 = vadd.s32 %v5532, 35
        %v6845 = vadd.s32 %v5533, 35
        %v6846 = vadd.s32 %v5534, 35
        %v6847 = vadd.s32 %v5535, 35
        %v6848 = vadd.s32 %v5536, 35
        %v6849 = vadd.s32 %v5537, 35
        %v6850 = vadd.s32 %v5538, 35
        %v6851 = vadd.s32 %v5539, 35
        %v6852 = vadd.s32 %v5540, 35
        %v6853 = vadd.s32 %v5541, 35
        %v6854 = vadd.s32 %v5542, 35
        %v6855 = vadd.s32 %v5543, 35
        %v6856 = vadd.s32 %v5544, 35
        %v6857 = vadd.s32 %v5545, 35
        %v6858 = vadd.s32 %v5546, 35
        %v6859 = vadd.s32 %v5547, 35
        %v6860 = vadd.s32 %v5548, 35
        %v6861 = vadd.s32 %v5549, 35
        %v6862 = vadd.s32 %v5550, 35
        %v6863 = vadd.s32 %v5551, 35
        %v6864 = vadd.s32 %v5552, 35
        %6865 = vset.pattern.permute.xlu0 7
        %6866 = vperm.xlu0 %6865, %v6833
        %v6867 = vpop.permute.xlu0 %6866
        %6868 = vset.pattern.permute.xlu0 7
        %6869 = vperm.xlu0 %6868, %v6834
        %v6870 = vpop.permute.xlu0 %6869
        %6871 = vset.pattern.permute.xlu0 7
        %6872 = vperm.xlu0 %6871, %v6835
        %v6873 = vpop.permute.xlu0 %6872
        %6874 = vset.pattern.permute.xlu0 7
        %6875 = vperm.xlu0 %6874, %v6836
        %v6876 = vpop.permute.xlu0 %6875
        %6877 = vset.pattern.permute.xlu0 7
        %6878 = vperm.xlu0 %6877, %v6837
        %v6879 = vpop.permute.xlu0 %6878
        %6880 = vset.pattern.permute.xlu0 7
        %6881 = vperm.xlu0 %6880, %v6838
        %v6882 = vpop.permute.xlu0 %6881
        %6883 = vset.pattern.permute.xlu0 7
        %6884 = vperm.xlu0 %6883, %v6839
        %v6885 = vpop.permute.xlu0 %6884
        %6886 = vset.pattern.permute.xlu0 7
        %6887 = vperm.xlu0 %6886, %v6840
        %v6888 = vpop.permute.xlu0 %6887
        %6889 = vset.pattern.permute.xlu0 7
        %6890 = vperm.xlu0 %6889, %v6841
        %v6891 = vpop.permute.xlu0 %6890
        %6892 = vset.pattern.permute.xlu0 7
        %6893 = vperm.xlu0 %6892, %v6842
        %v6894 = vpop.permute.xlu0 %6893
        %6895 = vset.pattern.permute.xlu0 7
        %6896 = vperm.xlu0 %6895, %v6843
        %v6897 = vpop.permute.xlu0 %6896
        %6898 = vset.pattern.permute.xlu0 7
        %6899 = vperm.xlu0 %6898, %v6844
        %v6900 = vpop.permute.xlu0 %6899
        %6901 = vset.pattern.permute.xlu0 7
        %6902 = vperm.xlu0 %6901, %v6845
        %v6903 = vpop.permute.xlu0 %6902
        %6904 = vset.pattern.permute.xlu0 7
        %6905 = vperm.xlu0 %6904, %v6846
        %v6906 = vpop.permute.xlu0 %6905
        %6907 = vset.pattern.permute.xlu0 7
        %6908 = vperm.xlu0 %6907, %v6847
        %v6909 = vpop.permute.xlu0 %6908
        %6910 = vset.pattern.permute.xlu0 7
        %6911 = vperm.xlu0 %6910, %v6848
        %v6912 = vpop.permute.xlu0 %6911
        %6913 = vset.pattern.permute.xlu0 7
        %6914 = vperm.xlu0 %6913, %v6849
        %v6915 = vpop.permute.xlu0 %6914
        %6916 = vset.pattern.permute.xlu0 7
        %6917 = vperm.xlu0 %6916, %v6850
        %v6918 = vpop.permute.xlu0 %6917
        %6919 = vset.pattern.permute.xlu0 7
        %6920 = vperm.xlu0 %6919, %v6851
        %v6921 = vpop.permute.xlu0 %6920
        %6922 = vset.pattern.permute.xlu0 7
        %6923 = vperm.xlu0 %6922, %v6852
        %v6924 = vpop.permute.xlu0 %6923
        %6925 = vset.pattern.permute.xlu0 7
        %6926 = vperm.xlu0 %6925, %v6853
        %v6927 = vpop.permute.xlu0 %6926
        %6928 = vset.pattern.permute.xlu0 7
        %6929 = vperm.xlu0 %6928, %v6854
        %v6930 = vpop.permute.xlu0 %6929
        %6931 = vset.pattern.permute.xlu0 7
        %6932 = vperm.xlu0 %6931, %v6855
        %v6933 = vpop.permute.xlu0 %6932
        %6934 = vset.pattern.permute.xlu0 7
        %6935 = vperm.xlu0 %6934, %v6856
        %v6936 = vpop.permute.xlu0 %6935
        %6937 = vset.pattern.permute.xlu0 7
        %6938 = vperm.xlu0 %6937, %v6857
        %v6939 = vpop.permute.xlu0 %6938
        %6940 = vset.pattern.permute.xlu0 7
        %6941 = vperm.xlu0 %6940, %v6858
        %v6942 = vpop.permute.xlu0 %6941
        %6943 = vset.pattern.permute.xlu0 7
        %6944 = vperm.xlu0 %6943, %v6859
        %v6945 = vpop.permute.xlu0 %6944
        %6946 = vset.pattern.permute.xlu0 7
        %6947 = vperm.xlu0 %6946, %v6860
        %v6948 = vpop.permute.xlu0 %6947
        %6949 = vset.pattern.permute.xlu0 7
        %6950 = vperm.xlu0 %6949, %v6861
        %v6951 = vpop.permute.xlu0 %6950
        %6952 = vset.pattern.permute.xlu0 7
        %6953 = vperm.xlu0 %6952, %v6862
        %v6954 = vpop.permute.xlu0 %6953
        %6955 = vset.pattern.permute.xlu0 7
        %6956 = vperm.xlu0 %6955, %v6863
        %v6957 = vpop.permute.xlu0 %6956
        %6958 = vset.pattern.permute.xlu0 7
        %6959 = vperm.xlu0 %6958, %v6864
        %v6960 = vpop.permute.xlu0 %6959
        %vm6961 = vcmp.eq.s32.totalorder %v328, %v6867
        %vm6962 = vcmp.eq.s32.totalorder %v328, %v6870
        %vm6963 = vcmp.eq.s32.totalorder %v328, %v6873
        %vm6964 = vcmp.eq.s32.totalorder %v328, %v6876
        %vm6965 = vcmp.eq.s32.totalorder %v328, %v6879
        %vm6966 = vcmp.eq.s32.totalorder %v328, %v6882
        %vm6967 = vcmp.eq.s32.totalorder %v328, %v6885
        %vm6968 = vcmp.eq.s32.totalorder %v328, %v6888
        %vm6969 = vcmp.eq.s32.totalorder %v328, %v6891
        %vm6970 = vcmp.eq.s32.totalorder %v328, %v6894
        %vm6971 = vcmp.eq.s32.totalorder %v328, %v6897
        %vm6972 = vcmp.eq.s32.totalorder %v328, %v6900
        %vm6973 = vcmp.eq.s32.totalorder %v328, %v6903
        %vm6974 = vcmp.eq.s32.totalorder %v328, %v6906
        %vm6975 = vcmp.eq.s32.totalorder %v328, %v6909
        %vm6976 = vcmp.eq.s32.totalorder %v328, %v6912
        %vm6977 = vcmp.eq.s32.totalorder %v328, %v6915
        %vm6978 = vcmp.eq.s32.totalorder %v328, %v6918
        %vm6979 = vcmp.eq.s32.totalorder %v328, %v6921
        %vm6980 = vcmp.eq.s32.totalorder %v328, %v6924
        %vm6981 = vcmp.eq.s32.totalorder %v328, %v6927
        %vm6982 = vcmp.eq.s32.totalorder %v328, %v6930
        %vm6983 = vcmp.eq.s32.totalorder %v328, %v6933
        %vm6984 = vcmp.eq.s32.totalorder %v328, %v6936
        %vm6985 = vcmp.eq.s32.totalorder %v328, %v6939
        %vm6986 = vcmp.eq.s32.totalorder %v328, %v6942
        %vm6987 = vcmp.eq.s32.totalorder %v328, %v6945
        %vm6988 = vcmp.eq.s32.totalorder %v328, %v6948
        %vm6989 = vcmp.eq.s32.totalorder %v328, %v6951
        %vm6990 = vcmp.eq.s32.totalorder %v328, %v6954
        %vm6991 = vcmp.eq.s32.totalorder %v328, %v6957
        %vm6992 = vcmp.eq.s32.totalorder %v328, %v6960
        %vm6993 = vmor %vm6801, %vm6961
        %vm6994 = vmor %vm6802, %vm6962
        %vm6995 = vmor %vm6803, %vm6963
        %vm6996 = vmor %vm6804, %vm6964
        %vm6997 = vmor %vm6805, %vm6965
        %vm6998 = vmor %vm6806, %vm6966
        %vm6999 = vmor %vm6807, %vm6967
        %vm7000 = vmor %vm6808, %vm6968
        %vm7001 = vmor %vm6809, %vm6969
        %vm7002 = vmor %vm6810, %vm6970
        %vm7003 = vmor %vm6811, %vm6971
        %vm7004 = vmor %vm6812, %vm6972
        %vm7005 = vmor %vm6813, %vm6973
        %vm7006 = vmor %vm6814, %vm6974
        %vm7007 = vmor %vm6815, %vm6975
        %vm7008 = vmor %vm6816, %vm6976
        %vm7009 = vmor %vm6817, %vm6977
        %vm7010 = vmor %vm6818, %vm6978
        %vm7011 = vmor %vm6819, %vm6979
        %vm7012 = vmor %vm6820, %vm6980
        %vm7013 = vmor %vm6821, %vm6981
        %vm7014 = vmor %vm6822, %vm6982
        %vm7015 = vmor %vm6823, %vm6983
        %vm7016 = vmor %vm6824, %vm6984
        %vm7017 = vmor %vm6825, %vm6985
        %vm7018 = vmor %vm6826, %vm6986
        %vm7019 = vmor %vm6827, %vm6987
        %vm7020 = vmor %vm6828, %vm6988
        %vm7021 = vmor %vm6829, %vm6989
        %vm7022 = vmor %vm6830, %vm6990
        %vm7023 = vmor %vm6831, %vm6991
        %vm7024 = vmor %vm6832, %vm6992
        %v7025 = vsel %vm6993, 1, 0
        %v7026 = vsel %vm6994, 1, 0
        %v7027 = vsel %vm6995, 1, 0
        %v7028 = vsel %vm6996, 1, 0
        %v7029 = vsel %vm6997, 1, 0
        %v7030 = vsel %vm6998, 1, 0
        %v7031 = vsel %vm6999, 1, 0
        %v7032 = vsel %vm7000, 1, 0
        %v7033 = vsel %vm7001, 1, 0
        %v7034 = vsel %vm7002, 1, 0
        %v7035 = vsel %vm7003, 1, 0
        %v7036 = vsel %vm7004, 1, 0
        %v7037 = vsel %vm7005, 1, 0
        %v7038 = vsel %vm7006, 1, 0
        %v7039 = vsel %vm7007, 1, 0
        %v7040 = vsel %vm7008, 1, 0
        %v7041 = vsel %vm7009, 1, 0
        %v7042 = vsel %vm7010, 1, 0
        %v7043 = vsel %vm7011, 1, 0
        %v7044 = vsel %vm7012, 1, 0
        %v7045 = vsel %vm7013, 1, 0
        %v7046 = vsel %vm7014, 1, 0
        %v7047 = vsel %vm7015, 1, 0
        %v7048 = vsel %vm7016, 1, 0
        %v7049 = vsel %vm7017, 1, 0
        %v7050 = vsel %vm7018, 1, 0
        %v7051 = vsel %vm7019, 1, 0
        %v7052 = vsel %vm7020, 1, 0
        %v7053 = vsel %vm7021, 1, 0
        %v7054 = vsel %vm7022, 1, 0
        %v7055 = vsel %vm7023, 1, 0
        %v7056 = vsel %vm7024, 1, 0
        %v7057 = vcvt.s32.f32 %v7025
        %v7058 = vcvt.s32.f32 %v7026
        %v7059 = vcvt.s32.f32 %v7027
        %v7060 = vcvt.s32.f32 %v7028
        %v7061 = vcvt.s32.f32 %v7029
        %v7062 = vcvt.s32.f32 %v7030
        %v7063 = vcvt.s32.f32 %v7031
        %v7064 = vcvt.s32.f32 %v7032
        %v7065 = vcvt.s32.f32 %v7033
        %v7066 = vcvt.s32.f32 %v7034
        %v7067 = vcvt.s32.f32 %v7035
        %v7068 = vcvt.s32.f32 %v7036
        %v7069 = vcvt.s32.f32 %v7037
        %v7070 = vcvt.s32.f32 %v7038
        %v7071 = vcvt.s32.f32 %v7039
        %v7072 = vcvt.s32.f32 %v7040
        %v7073 = vcvt.s32.f32 %v7041
        %v7074 = vcvt.s32.f32 %v7042
        %v7075 = vcvt.s32.f32 %v7043
        %v7076 = vcvt.s32.f32 %v7044
        %v7077 = vcvt.s32.f32 %v7045
        %v7078 = vcvt.s32.f32 %v7046
        %v7079 = vcvt.s32.f32 %v7047
        %v7080 = vcvt.s32.f32 %v7048
        %v7081 = vcvt.s32.f32 %v7049
        %v7082 = vcvt.s32.f32 %v7050
        %v7083 = vcvt.s32.f32 %v7051
        %v7084 = vcvt.s32.f32 %v7052
        %v7085 = vcvt.s32.f32 %v7053
        %v7086 = vcvt.s32.f32 %v7054
        %v7087 = vcvt.s32.f32 %v7055
        %v7088 = vcvt.s32.f32 %v7056
        %v7089 = vpack.c.bf16 %v7058, %v7057
        %v7090 = vpack.c.bf16 %v7060, %v7059
        %v7091 = vpack.c.bf16 %v7062, %v7061
        %v7092 = vpack.c.bf16 %v7064, %v7063
        %v7093 = vpack.c.bf16 %v7066, %v7065
        %v7094 = vpack.c.bf16 %v7068, %v7067
        %v7095 = vpack.c.bf16 %v7070, %v7069
        %v7096 = vpack.c.bf16 %v7072, %v7071
        %v7097 = vpack.c.bf16 %v7074, %v7073
        %v7098 = vpack.c.bf16 %v7076, %v7075
        %v7099 = vpack.c.bf16 %v7078, %v7077
        %v7100 = vpack.c.bf16 %v7080, %v7079
        %v7101 = vpack.c.bf16 %v7082, %v7081
        %v7102 = vpack.c.bf16 %v7084, %v7083
        %v7103 = vpack.c.bf16 %v7086, %v7085
        %v7104 = vpack.c.bf16 %v7088, %v7087
        %v7106 = vsel %vm1902, %v7089, 0
        %v7109 = vsel %vm1902, %v7090, 0
        %v7112 = vsel %vm1902, %v7091, 0
        %v7115 = vsel %vm1902, %v7092, 0
        %v7118 = vsel %vm1902, %v7093, 0
        %v7121 = vsel %vm1902, %v7094, 0
        %v7124 = vsel %vm1902, %v7095, 0
        %v7127 = vsel %vm1902, %v7096, 0
        %v7130 = vsel %vm1902, %v7097, 0
        %v7133 = vsel %vm1902, %v7098, 0
        %v7136 = vsel %vm1902, %v7099, 0
        %v7139 = vsel %vm1902, %v7100, 0
        %v7142 = vsel %vm1902, %v7101, 0
        %v7145 = vsel %vm1902, %v7102, 0
        %v7148 = vsel %vm1902, %v7103, 0
        %v7151 = vsel %vm1902, %v7104, 0
        %7153 = vmatprep.subr.bf16.mxu0 0
        %7154 = vmatpush1.bf16.msra.mxu0 %v1897
        %7155 = vmatprep.subr.bf16.mxu0 0
        %7156 = vmatpush1.bf16.msra.mxu0 %v1898
        %7157 = vmatprep.subr.bf16.mxu0 0
        %7158 = vmatpush1.bf16.msra.mxu0 %v1953
        %7159 = vmatprep.subr.bf16.mxu0 0
        %7160 = vmatpush1.bf16.msra.mxu0 0
        %7161 = vmatprep.subr.bf16.mxu0 0
        %7162 = vmatpush1.bf16.msra.mxu0 0
        %7163 = vmatprep.subr.bf16.mxu0 0
        %7164 = vmatpush1.bf16.msra.mxu0 0
        %7165 = vmatprep.subr.bf16.mxu0 0
        %7166 = vmatpush1.bf16.msra.mxu0 0
        %7167 = vmatprep.subr.bf16.mxu0 0
        %7168 = vmatpush1.bf16.msra.mxu0 0
        %7169 = vmatprep.subr.bf16.mxu0 0
        %7170 = vmatpush1.bf16.msra.mxu0 0
        %7171 = vmatprep.subr.bf16.mxu0 0
        %7172 = vmatpush1.bf16.msra.mxu0 0
        %7173 = vmatprep.subr.bf16.mxu0 0
        %7174 = vmatpush1.bf16.msra.mxu0 0
        %7175 = vmatprep.subr.bf16.mxu0 0
        %7176 = vmatpush1.bf16.msra.mxu0 0
        %7177 = vmatprep.subr.bf16.mxu0 0
        %7178 = vmatpush1.bf16.msra.mxu0 0
        %7179 = vmatprep.subr.bf16.mxu0 0
        %7180 = vmatpush1.bf16.msra.mxu0 0
        %7181 = vmatprep.subr.bf16.mxu0 0
        %7182 = vmatpush1.bf16.msra.mxu0 0
        %7183 = vmatprep.subr.bf16.mxu0 0
        %7184 = vmatpush1.bf16.msra.mxu0 0
        %7185 = vmatprep.mubr.bf16.mxu0 0
        %7186 = vmatmul.mubr.bf16.gmra.mrb[0].mxu0 %v7106
        %v7187 = vpop.f32.mrb[0].mxu0
        %v7188 = vadd.f32 %v1885, %v7187
        %v7189 = vpop.f32.mrb[0].mxu0
        %v7190 = vpop.f32.mrb[0].mxu0
        %v7191 = vadd.f32 %v1885, %v7190
        %v7192 = vpop.f32.mrb[0].mxu0
        %7193 = vmatprep.mubr.bf16.mxu0 0
        %7194 = vmatmul.mubr.bf16.gmra.mrb[0].mxu0 %v7109
        %v7195 = vpop.f32.mrb[0].mxu0
        %v7196 = vadd.f32 %v1885, %v7195
        %v7197 = vpop.f32.mrb[0].mxu0
        %v7198 = vpop.f32.mrb[0].mxu0
        %v7199 = vadd.f32 %v1885, %v7198
        %v7200 = vpop.f32.mrb[0].mxu0
        %7201 = vmatprep.mubr.bf16.mxu0 0
        %7202 = vmatmul.mubr.bf16.gmra.mrb[0].mxu0 %v7112
        %v7203 = vpop.f32.mrb[0].mxu0
        %v7204 = vadd.f32 %v1885, %v7203
        %v7205 = vpop.f32.mrb[0].mxu0
        %v7206 = vpop.f32.mrb[0].mxu0
        %v7207 = vadd.f32 %v1885, %v7206
        %v7208 = vpop.f32.mrb[0].mxu0
        %7209 = vmatprep.mubr.bf16.mxu0 0
        %7210 = vmatmul.mubr.bf16.gmra.mrb[0].mxu0 %v7115
        %v7211 = vpop.f32.mrb[0].mxu0
        %v7212 = vadd.f32 %v1885, %v7211
        %v7213 = vpop.f32.mrb[0].mxu0
        %v7214 = vpop.f32.mrb[0].mxu0
        %v7215 = vadd.f32 %v1885, %v7214
        %v7216 = vpop.f32.mrb[0].mxu0
        %7217 = vmatprep.mubr.bf16.mxu0 0
        %7218 = vmatmul.mubr.bf16.gmra.mrb[0].mxu0 %v7118
        %v7219 = vpop.f32.mrb[0].mxu0
        %v7220 = vadd.f32 %v1885, %v7219
        %v7221 = vpop.f32.mrb[0].mxu0
        %v7222 = vpop.f32.mrb[0].mxu0
        %v7223 = vadd.f32 %v1885, %v7222
        %v7224 = vpop.f32.mrb[0].mxu0
        %7225 = vmatprep.mubr.bf16.mxu0 0
        %7226 = vmatmul.mubr.bf16.gmra.mrb[0].mxu0 %v7121
        %v7227 = vpop.f32.mrb[0].mxu0
        %v7228 = vadd.f32 %v1885, %v7227
        %v7229 = vpop.f32.mrb[0].mxu0
        %v7230 = vpop.f32.mrb[0].mxu0
        %v7231 = vadd.f32 %v1885, %v7230
        %v7232 = vpop.f32.mrb[0].mxu0
        %7233 = vmatprep.mubr.bf16.mxu0 0
        %7234 = vmatmul.mubr.bf16.gmra.mrb[0].mxu0 %v7124
        %v7235 = vpop.f32.mrb[0].mxu0
        %v7236 = vadd.f32 %v1885, %v7235
        %v7237 = vpop.f32.mrb[0].mxu0
        %v7238 = vpop.f32.mrb[0].mxu0
        %v7239 = vadd.f32 %v1885, %v7238
        %v7240 = vpop.f32.mrb[0].mxu0
        %7241 = vmatprep.mubr.bf16.mxu0 0
        %7242 = vmatmul.mubr.bf16.gmra.mrb[0].mxu0 %v7127
        %v7243 = vpop.f32.mrb[0].mxu0
        %v7244 = vadd.f32 %v1885, %v7243
        %v7245 = vpop.f32.mrb[0].mxu0
        %v7246 = vpop.f32.mrb[0].mxu0
        %v7247 = vadd.f32 %v1885, %v7246
        %v7248 = vpop.f32.mrb[0].mxu0
        %7249 = vmatprep.mubr.bf16.mxu0 0
        %7250 = vmatmul.mubr.bf16.gmra.mrb[0].mxu0 %v7130
        %v7251 = vpop.f32.mrb[0].mxu0
        %v7252 = vadd.f32 %v1885, %v7251
        %v7253 = vpop.f32.mrb[0].mxu0
        %v7254 = vpop.f32.mrb[0].mxu0
        %v7255 = vadd.f32 %v1885, %v7254
        %v7256 = vpop.f32.mrb[0].mxu0
        %7257 = vmatprep.mubr.bf16.mxu0 0
        %7258 = vmatmul.mubr.bf16.gmra.mrb[0].mxu0 %v7133
        %v7259 = vpop.f32.mrb[0].mxu0
        %v7260 = vadd.f32 %v1885, %v7259
        %v7261 = vpop.f32.mrb[0].mxu0
        %v7262 = vpop.f32.mrb[0].mxu0
        %v7263 = vadd.f32 %v1885, %v7262
        %v7264 = vpop.f32.mrb[0].mxu0
        %7265 = vmatprep.mubr.bf16.mxu0 0
        %7266 = vmatmul.mubr.bf16.gmra.mrb[0].mxu0 %v7136
        %v7267 = vpop.f32.mrb[0].mxu0
        %v7268 = vadd.f32 %v1885, %v7267
        %v7269 = vpop.f32.mrb[0].mxu0
        %v7270 = vpop.f32.mrb[0].mxu0
        %v7271 = vadd.f32 %v1885, %v7270
        %v7272 = vpop.f32.mrb[0].mxu0
        %7273 = vmatprep.mubr.bf16.mxu0 0
        %7274 = vmatmul.mubr.bf16.gmra.mrb[0].mxu0 %v7139
        %v7275 = vpop.f32.mrb[0].mxu0
        %v7276 = vadd.f32 %v1885, %v7275
        %v7277 = vpop.f32.mrb[0].mxu0
        %v7278 = vpop.f32.mrb[0].mxu0
        %v7279 = vadd.f32 %v1885, %v7278
        %v7280 = vpop.f32.mrb[0].mxu0
        %7281 = vmatprep.mubr.bf16.mxu0 0
        %7282 = vmatmul.mubr.bf16.gmra.mrb[0].mxu0 %v7142
        %v7283 = vpop.f32.mrb[0].mxu0
        %v7284 = vadd.f32 %v1885, %v7283
        %v7285 = vpop.f32.mrb[0].mxu0
        %v7286 = vpop.f32.mrb[0].mxu0
        %v7287 = vadd.f32 %v1885, %v7286
        %v7288 = vpop.f32.mrb[0].mxu0
        %7289 = vmatprep.mubr.bf16.mxu0 0
        %7290 = vmatmul.mubr.bf16.gmra.mrb[0].mxu0 %v7145
        %v7291 = vpop.f32.mrb[0].mxu0
        %v7292 = vadd.f32 %v1885, %v7291
        %v7293 = vpop.f32.mrb[0].mxu0
        %v7294 = vpop.f32.mrb[0].mxu0
        %v7295 = vadd.f32 %v1885, %v7294
        %v7296 = vpop.f32.mrb[0].mxu0
        %7297 = vmatprep.mubr.bf16.mxu0 0
        %7298 = vmatmul.mubr.bf16.gmra.mrb[0].mxu0 %v7148
        %v7299 = vpop.f32.mrb[0].mxu0
        %v7300 = vadd.f32 %v1885, %v7299
        %v7301 = vpop.f32.mrb[0].mxu0
        %v7302 = vpop.f32.mrb[0].mxu0
        %v7303 = vadd.f32 %v1885, %v7302
        %v7304 = vpop.f32.mrb[0].mxu0
        %7305 = vmatprep.mubr.bf16.mxu0 0
        %7306 = vmatmul.mubr.bf16.gmra.mrb[0].mxu0 %v7151
        %v7307 = vpop.f32.mrb[0].mxu0
        %v7308 = vadd.f32 %v1885, %v7307
        %v7309 = vpop.f32.mrb[0].mxu0
        %v7310 = vpop.f32.mrb[0].mxu0
        %v7311 = vadd.f32 %v1885, %v7310
        %v7312 = vpop.f32.mrb[0].mxu0
        %7313 = vdwg.mxu0
        %v7314 = vmax.f32 %v7188, 0.0
        %v7315 = vmax.f32 %v7191, 0.0
        %v7316 = vmax.f32 %v7196, 0.0
        %v7317 = vmax.f32 %v7199, 0.0
        %v7318 = vmax.f32 %v7204, 0.0
        %v7319 = vmax.f32 %v7207, 0.0
        %v7320 = vmax.f32 %v7212, 0.0
        %v7321 = vmax.f32 %v7215, 0.0
        %v7322 = vmax.f32 %v7220, 0.0
        %v7323 = vmax.f32 %v7223, 0.0
        %v7324 = vmax.f32 %v7228, 0.0
        %v7325 = vmax.f32 %v7231, 0.0
        %v7326 = vmax.f32 %v7236, 0.0
        %v7327 = vmax.f32 %v7239, 0.0
        %v7328 = vmax.f32 %v7244, 0.0
        %v7329 = vmax.f32 %v7247, 0.0
        %v7330 = vmax.f32 %v7252, 0.0
        %v7331 = vmax.f32 %v7255, 0.0
        %v7332 = vmax.f32 %v7260, 0.0
        %v7333 = vmax.f32 %v7263, 0.0
        %v7334 = vmax.f32 %v7268, 0.0
        %v7335 = vmax.f32 %v7271, 0.0
        %v7336 = vmax.f32 %v7276, 0.0
        %v7337 = vmax.f32 %v7279, 0.0
        %v7338 = vmax.f32 %v7284, 0.0
        %v7339 = vmax.f32 %v7287, 0.0
        %v7340 = vmax.f32 %v7292, 0.0
        %v7341 = vmax.f32 %v7295, 0.0
        %v7342 = vmax.f32 %v7300, 0.0
        %v7343 = vmax.f32 %v7303, 0.0
        %v7344 = vmax.f32 %v7308, 0.0
        %v7345 = vmax.f32 %v7311, 0.0
        %v7346 = vpack.c.bf16 %v7315, %v7314
        %v7347 = vpack.c.bf16 %v7317, %v7316
        %v7348 = vpack.c.bf16 %v7319, %v7318
        %v7349 = vpack.c.bf16 %v7321, %v7320
        %v7350 = vpack.c.bf16 %v7323, %v7322
        %v7351 = vpack.c.bf16 %v7325, %v7324
        %v7352 = vpack.c.bf16 %v7327, %v7326
        %v7353 = vpack.c.bf16 %v7329, %v7328
        %v7354 = vpack.c.bf16 %v7331, %v7330
        %v7355 = vpack.c.bf16 %v7333, %v7332
        %v7356 = vpack.c.bf16 %v7335, %v7334
        %v7357 = vpack.c.bf16 %v7337, %v7336
        %v7358 = vpack.c.bf16 %v7339, %v7338
        %v7359 = vpack.c.bf16 %v7341, %v7340
        %v7360 = vpack.c.bf16 %v7343, %v7342
        %v7361 = vpack.c.bf16 %v7345, %v7344
        %v7363 = vsel %vm2182, %v7346, 0
        %v7366 = vsel %vm2182, %v7347, 0
        %v7369 = vsel %vm2182, %v7348, 0
        %v7372 = vsel %vm2182, %v7349, 0
        %v7375 = vsel %vm2182, %v7350, 0
        %v7378 = vsel %vm2182, %v7351, 0
        %v7381 = vsel %vm2182, %v7352, 0
        %v7384 = vsel %vm2182, %v7353, 0
        %v7387 = vsel %vm2182, %v7354, 0
        %v7390 = vsel %vm2182, %v7355, 0
        %v7393 = vsel %vm2182, %v7356, 0
        %v7396 = vsel %vm2182, %v7357, 0
        %v7399 = vsel %vm2182, %v7358, 0
        %v7402 = vsel %vm2182, %v7359, 0
        %v7405 = vsel %vm2182, %v7360, 0
        %v7408 = vsel %vm2182, %v7361, 0
        %7410 = vmatprep.subr.bf16.mxu0 0
        %7411 = vmatpush1.bf16.msra.mxu0 %v2178
        %7412 = vmatprep.subr.bf16.mxu0 0
        %7413 = vmatpush1.bf16.msra.mxu0 %v2179
        %7414 = vmatprep.subr.bf16.mxu0 0
        %7415 = vmatpush1.bf16.msra.mxu0 0
        %7416 = vmatprep.subr.bf16.mxu0 0
        %7417 = vmatpush1.bf16.msra.mxu0 0
        %7418 = vmatprep.subr.bf16.mxu0 0
        %7419 = vmatpush1.bf16.msra.mxu0 0
        %7420 = vmatprep.subr.bf16.mxu0 0
        %7421 = vmatpush1.bf16.msra.mxu0 0
        %7422 = vmatprep.subr.bf16.mxu0 0
        %7423 = vmatpush1.bf16.msra.mxu0 0
        %7424 = vmatprep.subr.bf16.mxu0 0
        %7425 = vmatpush1.bf16.msra.mxu0 0
        %7426 = vmatprep.subr.bf16.mxu0 0
        %7427 = vmatpush1.bf16.msra.mxu0 0
        %7428 = vmatprep.subr.bf16.mxu0 0
        %7429 = vmatpush1.bf16.msra.mxu0 0
        %7430 = vmatprep.subr.bf16.mxu0 0
        %7431 = vmatpush1.bf16.msra.mxu0 0
        %7432 = vmatprep.subr.bf16.mxu0 0
        %7433 = vmatpush1.bf16.msra.mxu0 0
        %7434 = vmatprep.subr.bf16.mxu0 0
        %7435 = vmatpush1.bf16.msra.mxu0 0
        %7436 = vmatprep.subr.bf16.mxu0 0
        %7437 = vmatpush1.bf16.msra.mxu0 0
        %7438 = vmatprep.subr.bf16.mxu0 0
        %7439 = vmatpush1.bf16.msra.mxu0 0
        %7440 = vmatprep.subr.bf16.mxu0 0
        %7441 = vmatpush1.bf16.msra.mxu0 0
        %7442 = vmatprep.mubr.bf16.mxu0 0
        %7443 = vmatmul.mubr.bf16.gmra.mrb[0].mxu0 %v7363
        %v7444 = vpop.f32.mrb[0].mxu0
        %v7445 = vadd.f32 %v2168, %v7444
        %v7446 = vpop.f32.mrb[0].mxu0
        %v7447 = vpop.f32.mrb[0].mxu0
        %v7448 = vadd.f32 %v2168, %v7447
        %v7449 = vpop.f32.mrb[0].mxu0
        %7450 = vmatprep.mubr.bf16.mxu0 0
        %7451 = vmatmul.mubr.bf16.gmra.mrb[0].mxu0 %v7366
        %v7452 = vpop.f32.mrb[0].mxu0
        %v7453 = vadd.f32 %v2168, %v7452
        %v7454 = vpop.f32.mrb[0].mxu0
        %v7455 = vpop.f32.mrb[0].mxu0
        %v7456 = vadd.f32 %v2168, %v7455
        %v7457 = vpop.f32.mrb[0].mxu0
        %7458 = vmatprep.mubr.bf16.mxu0 0
        %7459 = vmatmul.mubr.bf16.gmra.mrb[0].mxu0 %v7369
        %v7460 = vpop.f32.mrb[0].mxu0
        %v7461 = vadd.f32 %v2168, %v7460
        %v7462 = vpop.f32.mrb[0].mxu0
        %v7463 = vpop.f32.mrb[0].mxu0
        %v7464 = vadd.f32 %v2168, %v7463
        %v7465 = vpop.f32.mrb[0].mxu0
        %7466 = vmatprep.mubr.bf16.mxu0 0
        %7467 = vmatmul.mubr.bf16.gmra.mrb[0].mxu0 %v7372
        %v7468 = vpop.f32.mrb[0].mxu0
        %v7469 = vadd.f32 %v2168, %v7468
        %v7470 = vpop.f32.mrb[0].mxu0
        %v7471 = vpop.f32.mrb[0].mxu0
        %v7472 = vadd.f32 %v2168, %v7471
        %v7473 = vpop.f32.mrb[0].mxu0
        %7474 = vmatprep.mubr.bf16.mxu0 0
        %7475 = vmatmul.mubr.bf16.gmra.mrb[0].mxu0 %v7375
        %v7476 = vpop.f32.mrb[0].mxu0
        %v7477 = vadd.f32 %v2168, %v7476
        %v7478 = vpop.f32.mrb[0].mxu0
        %v7479 = vpop.f32.mrb[0].mxu0
        %v7480 = vadd.f32 %v2168, %v7479
        %v7481 = vpop.f32.mrb[0].mxu0
        %7482 = vmatprep.mubr.bf16.mxu0 0
        %7483 = vmatmul.mubr.bf16.gmra.mrb[0].mxu0 %v7378
        %v7484 = vpop.f32.mrb[0].mxu0
        %v7485 = vadd.f32 %v2168, %v7484
        %v7486 = vpop.f32.mrb[0].mxu0
        %v7487 = vpop.f32.mrb[0].mxu0
        %v7488 = vadd.f32 %v2168, %v7487
        %v7489 = vpop.f32.mrb[0].mxu0
        %7490 = vmatprep.mubr.bf16.mxu0 0
        %7491 = vmatmul.mubr.bf16.gmra.mrb[0].mxu0 %v7381
        %v7492 = vpop.f32.mrb[0].mxu0
        %v7493 = vadd.f32 %v2168, %v7492
        %v7494 = vpop.f32.mrb[0].mxu0
        %v7495 = vpop.f32.mrb[0].mxu0
        %v7496 = vadd.f32 %v2168, %v7495
        %v7497 = vpop.f32.mrb[0].mxu0
        %7498 = vmatprep.mubr.bf16.mxu0 0
        %7499 = vmatmul.mubr.bf16.gmra.mrb[0].mxu0 %v7384
        %v7500 = vpop.f32.mrb[0].mxu0
        %v7501 = vadd.f32 %v2168, %v7500
        %v7502 = vpop.f32.mrb[0].mxu0
        %v7503 = vpop.f32.mrb[0].mxu0
        %v7504 = vadd.f32 %v2168, %v7503
        %v7505 = vpop.f32.mrb[0].mxu0
        %7506 = vmatprep.mubr.bf16.mxu0 0
        %7507 = vmatmul.mubr.bf16.gmra.mrb[0].mxu0 %v7387
        %v7508 = vpop.f32.mrb[0].mxu0
        %v7509 = vadd.f32 %v2168, %v7508
        %v7510 = vpop.f32.mrb[0].mxu0
        %v7511 = vpop.f32.mrb[0].mxu0
        %v7512 = vadd.f32 %v2168, %v7511
        %v7513 = vpop.f32.mrb[0].mxu0
        %7514 = vmatprep.mubr.bf16.mxu0 0
        %7515 = vmatmul.mubr.bf16.gmra.mrb[0].mxu0 %v7390
        %v7516 = vpop.f32.mrb[0].mxu0
        %v7517 = vadd.f32 %v2168, %v7516
        %v7518 = vpop.f32.mrb[0].mxu0
        %v7519 = vpop.f32.mrb[0].mxu0
        %v7520 = vadd.f32 %v2168, %v7519
        %v7521 = vpop.f32.mrb[0].mxu0
        %7522 = vmatprep.mubr.bf16.mxu0 0
        %7523 = vmatmul.mubr.bf16.gmra.mrb[0].mxu0 %v7393
        %v7524 = vpop.f32.mrb[0].mxu0
        %v7525 = vadd.f32 %v2168, %v7524
        %v7526 = vpop.f32.mrb[0].mxu0
        %v7527 = vpop.f32.mrb[0].mxu0
        %v7528 = vadd.f32 %v2168, %v7527
        %v7529 = vpop.f32.mrb[0].mxu0
        %7530 = vmatprep.mubr.bf16.mxu0 0
        %7531 = vmatmul.mubr.bf16.gmra.mrb[0].mxu0 %v7396
        %v7532 = vpop.f32.mrb[0].mxu0
        %v7533 = vadd.f32 %v2168, %v7532
        %v7534 = vpop.f32.mrb[0].mxu0
        %v7535 = vpop.f32.mrb[0].mxu0
        %v7536 = vadd.f32 %v2168, %v7535
        %v7537 = vpop.f32.mrb[0].mxu0
        %7538 = vmatprep.mubr.bf16.mxu0 0
        %7539 = vmatmul.mubr.bf16.gmra.mrb[0].mxu0 %v7399
        %v7540 = vpop.f32.mrb[0].mxu0
        %v7541 = vadd.f32 %v2168, %v7540
        %v7542 = vpop.f32.mrb[0].mxu0
        %v7543 = vpop.f32.mrb[0].mxu0
        %v7544 = vadd.f32 %v2168, %v7543
        %v7545 = vpop.f32.mrb[0].mxu0
        %7546 = vmatprep.mubr.bf16.mxu0 0
        %7547 = vmatmul.mubr.bf16.gmra.mrb[0].mxu0 %v7402
        %v7548 = vpop.f32.mrb[0].mxu0
        %v7549 = vadd.f32 %v2168, %v7548
        %v7550 = vpop.f32.mrb[0].mxu0
        %v7551 = vpop.f32.mrb[0].mxu0
        %v7552 = vadd.f32 %v2168, %v7551
        %v7553 = vpop.f32.mrb[0].mxu0
        %7554 = vmatprep.mubr.bf16.mxu0 0
        %7555 = vmatmul.mubr.bf16.gmra.mrb[0].mxu0 %v7405
        %v7556 = vpop.f32.mrb[0].mxu0
        %v7557 = vadd.f32 %v2168, %v7556
        %v7558 = vpop.f32.mrb[0].mxu0
        %v7559 = vpop.f32.mrb[0].mxu0
        %v7560 = vadd.f32 %v2168, %v7559
        %v7561 = vpop.f32.mrb[0].mxu0
        %7562 = vmatprep.mubr.bf16.mxu0 0
        %7563 = vmatmul.mubr.bf16.gmra.mrb[0].mxu0 %v7408
        %v7564 = vpop.f32.mrb[0].mxu0
        %v7565 = vadd.f32 %v2168, %v7564
        %v7566 = vpop.f32.mrb[0].mxu0
        %v7567 = vpop.f32.mrb[0].mxu0
        %v7568 = vadd.f32 %v2168, %v7567
        %v7569 = vpop.f32.mrb[0].mxu0
        %7570 = vdwg.mxu0
        %v7571 = vmax.f32 %v7445, 0.0
        %v7572 = vmax.f32 %v7448, 0.0
        %v7573 = vmax.f32 %v7453, 0.0
        %v7574 = vmax.f32 %v7456, 0.0
        %v7575 = vmax.f32 %v7461, 0.0
        %v7576 = vmax.f32 %v7464, 0.0
        %v7577 = vmax.f32 %v7469, 0.0
        %v7578 = vmax.f32 %v7472, 0.0
        %v7579 = vmax.f32 %v7477, 0.0
        %v7580 = vmax.f32 %v7480, 0.0
        %v7581 = vmax.f32 %v7485, 0.0
        %v7582 = vmax.f32 %v7488, 0.0
        %v7583 = vmax.f32 %v7493, 0.0
        %v7584 = vmax.f32 %v7496, 0.0
        %v7585 = vmax.f32 %v7501, 0.0
        %v7586 = vmax.f32 %v7504, 0.0
        %v7587 = vmax.f32 %v7509, 0.0
        %v7588 = vmax.f32 %v7512, 0.0
        %v7589 = vmax.f32 %v7517, 0.0
        %v7590 = vmax.f32 %v7520, 0.0
        %v7591 = vmax.f32 %v7525, 0.0
        %v7592 = vmax.f32 %v7528, 0.0
        %v7593 = vmax.f32 %v7533, 0.0
        %v7594 = vmax.f32 %v7536, 0.0
        %v7595 = vmax.f32 %v7541, 0.0
        %v7596 = vmax.f32 %v7544, 0.0
        %v7597 = vmax.f32 %v7549, 0.0
        %v7598 = vmax.f32 %v7552, 0.0
        %v7599 = vmax.f32 %v7557, 0.0
        %v7600 = vmax.f32 %v7560, 0.0
        %v7601 = vmax.f32 %v7565, 0.0
        %v7602 = vmax.f32 %v7568, 0.0
        %v7603 = vmul.f32 %v7571, %v2428
        %v7604 = vmul.f32 %v7572, %v2428
        %v7605 = vmul.f32 %v7573, %v2428
        %v7606 = vmul.f32 %v7574, %v2428
        %v7607 = vmul.f32 %v7575, %v2428
        %v7608 = vmul.f32 %v7576, %v2428
        %v7609 = vmul.f32 %v7577, %v2428
        %v7610 = vmul.f32 %v7578, %v2428
        %v7611 = vmul.f32 %v7579, %v2428
        %v7612 = vmul.f32 %v7580, %v2428
        %v7613 = vmul.f32 %v7581, %v2428
        %v7614 = vmul.f32 %v7582, %v2428
        %v7615 = vmul.f32 %v7583, %v2428
        %v7616 = vmul.f32 %v7584, %v2428
        %v7617 = vmul.f32 %v7585, %v2428
        %v7618 = vmul.f32 %v7586, %v2428
        %v7619 = vmul.f32 %v7587, %v2428
        %v7620 = vmul.f32 %v7588, %v2428
        %v7621 = vmul.f32 %v7589, %v2428
        %v7622 = vmul.f32 %v7590, %v2428
        %v7623 = vmul.f32 %v7591, %v2428
        %v7624 = vmul.f32 %v7592, %v2428
        %v7625 = vmul.f32 %v7593, %v2428
        %v7626 = vmul.f32 %v7594, %v2428
        %v7627 = vmul.f32 %v7595, %v2428
        %v7628 = vmul.f32 %v7596, %v2428
        %v7629 = vmul.f32 %v7597, %v2428
        %v7630 = vmul.f32 %v7598, %v2428
        %v7631 = vmul.f32 %v7599, %v2428
        %v7632 = vmul.f32 %v7600, %v2428
        %v7633 = vmul.f32 %v7601, %v2428
        %v7634 = vmul.f32 %v7602, %v2428
        %v7635 = vsel %vm2462, %v7603, 0.0
        %7636 = vadd.xlane.f32.xlu0 %v7635
        %v7637 = vpop.xlane.xlu0 %7636
        %v7638 = vsel %vm2462, %v7604, 0.0
        %7639 = vadd.xlane.f32.xlu0 %v7638
        %v7640 = vpop.xlane.xlu0 %7639
        %v7641 = vsel %vm2462, %v7605, 0.0
        %7642 = vadd.xlane.f32.xlu0 %v7641
        %v7643 = vpop.xlane.xlu0 %7642
        %v7644 = vsel %vm2462, %v7606, 0.0
        %7645 = vadd.xlane.f32.xlu0 %v7644
        %v7646 = vpop.xlane.xlu0 %7645
        %v7647 = vsel %vm2462, %v7607, 0.0
        %7648 = vadd.xlane.f32.xlu0 %v7647
        %v7649 = vpop.xlane.xlu0 %7648
        %v7650 = vsel %vm2462, %v7608, 0.0
        %7651 = vadd.xlane.f32.xlu0 %v7650
        %v7652 = vpop.xlane.xlu0 %7651
        %v7653 = vsel %vm2462, %v7609, 0.0
        %7654 = vadd.xlane.f32.xlu0 %v7653
        %v7655 = vpop.xlane.xlu0 %7654
        %v7656 = vsel %vm2462, %v7610, 0.0
        %7657 = vadd.xlane.f32.xlu0 %v7656
        %v7658 = vpop.xlane.xlu0 %7657
        %v7659 = vsel %vm2462, %v7611, 0.0
        %7660 = vadd.xlane.f32.xlu0 %v7659
        %v7661 = vpop.xlane.xlu0 %7660
        %v7662 = vsel %vm2462, %v7612, 0.0
        %7663 = vadd.xlane.f32.xlu0 %v7662
        %v7664 = vpop.xlane.xlu0 %7663
        %v7665 = vsel %vm2462, %v7613, 0.0
        %7666 = vadd.xlane.f32.xlu0 %v7665
        %v7667 = vpop.xlane.xlu0 %7666
        %v7668 = vsel %vm2462, %v7614, 0.0
        %7669 = vadd.xlane.f32.xlu0 %v7668
        %v7670 = vpop.xlane.xlu0 %7669
        %v7671 = vsel %vm2462, %v7615, 0.0
        %7672 = vadd.xlane.f32.xlu0 %v7671
        %v7673 = vpop.xlane.xlu0 %7672
        %v7674 = vsel %vm2462, %v7616, 0.0
        %7675 = vadd.xlane.f32.xlu0 %v7674
        %v7676 = vpop.xlane.xlu0 %7675
        %v7677 = vsel %vm2462, %v7617, 0.0
        %7678 = vadd.xlane.f32.xlu0 %v7677
        %v7679 = vpop.xlane.xlu0 %7678
        %v7680 = vsel %vm2462, %v7618, 0.0
        %7681 = vadd.xlane.f32.xlu0 %v7680
        %v7682 = vpop.xlane.xlu0 %7681
        %v7683 = vsel %vm2462, %v7619, 0.0
        %7684 = vadd.xlane.f32.xlu0 %v7683
        %v7685 = vpop.xlane.xlu0 %7684
        %v7686 = vsel %vm2462, %v7620, 0.0
        %7687 = vadd.xlane.f32.xlu0 %v7686
        %v7688 = vpop.xlane.xlu0 %7687
        %v7689 = vsel %vm2462, %v7621, 0.0
        %7690 = vadd.xlane.f32.xlu0 %v7689
        %v7691 = vpop.xlane.xlu0 %7690
        %v7692 = vsel %vm2462, %v7622, 0.0
        %7693 = vadd.xlane.f32.xlu0 %v7692
        %v7694 = vpop.xlane.xlu0 %7693
        %v7695 = vsel %vm2462, %v7623, 0.0
        %7696 = vadd.xlane.f32.xlu0 %v7695
        %v7697 = vpop.xlane.xlu0 %7696
        %v7698 = vsel %vm2462, %v7624, 0.0
        %7699 = vadd.xlane.f32.xlu0 %v7698
        %v7700 = vpop.xlane.xlu0 %7699
        %v7701 = vsel %vm2462, %v7625, 0.0
        %7702 = vadd.xlane.f32.xlu0 %v7701
        %v7703 = vpop.xlane.xlu0 %7702
        %v7704 = vsel %vm2462, %v7626, 0.0
        %7705 = vadd.xlane.f32.xlu0 %v7704
        %v7706 = vpop.xlane.xlu0 %7705
        %v7707 = vsel %vm2462, %v7627, 0.0
        %7708 = vadd.xlane.f32.xlu0 %v7707
        %v7709 = vpop.xlane.xlu0 %7708
        %v7710 = vsel %vm2462, %v7628, 0.0
        %7711 = vadd.xlane.f32.xlu0 %v7710
        %v7712 = vpop.xlane.xlu0 %7711
        %v7713 = vsel %vm2462, %v7629, 0.0
        %7714 = vadd.xlane.f32.xlu0 %v7713
        %v7715 = vpop.xlane.xlu0 %7714
        %v7716 = vsel %vm2462, %v7630, 0.0
        %7717 = vadd.xlane.f32.xlu0 %v7716
        %v7718 = vpop.xlane.xlu0 %7717
        %v7719 = vsel %vm2462, %v7631, 0.0
        %7720 = vadd.xlane.f32.xlu0 %v7719
        %v7721 = vpop.xlane.xlu0 %7720
        %v7722 = vsel %vm2462, %v7632, 0.0
        %7723 = vadd.xlane.f32.xlu0 %v7722
        %v7724 = vpop.xlane.xlu0 %7723
        %v7725 = vsel %vm2462, %v7633, 0.0
        %7726 = vadd.xlane.f32.xlu0 %v7725
        %v7727 = vpop.xlane.xlu0 %7726
        %v7728 = vsel %vm2462, %v7634, 0.0
        %7729 = vadd.xlane.f32.xlu0 %v7728
        %v7730 = vpop.xlane.xlu0 %7729
        %v7731 = vadd.f32 %v7637, %v2559
        %v7732 = vadd.f32 %v7640, %v2559
        %v7733 = vadd.f32 %v7643, %v2559
        %v7734 = vadd.f32 %v7646, %v2559
        %v7735 = vadd.f32 %v7649, %v2559
        %v7736 = vadd.f32 %v7652, %v2559
        %v7737 = vadd.f32 %v7655, %v2559
        %v7738 = vadd.f32 %v7658, %v2559
        %v7739 = vadd.f32 %v7661, %v2559
        %v7740 = vadd.f32 %v7664, %v2559
        %v7741 = vadd.f32 %v7667, %v2559
        %v7742 = vadd.f32 %v7670, %v2559
        %v7743 = vadd.f32 %v7673, %v2559
        %v7744 = vadd.f32 %v7676, %v2559
        %v7745 = vadd.f32 %v7679, %v2559
        %v7746 = vadd.f32 %v7682, %v2559
        %v7747 = vadd.f32 %v7685, %v2559
        %v7748 = vadd.f32 %v7688, %v2559
        %v7749 = vadd.f32 %v7691, %v2559
        %v7750 = vadd.f32 %v7694, %v2559
        %v7751 = vadd.f32 %v7697, %v2559
        %v7752 = vadd.f32 %v7700, %v2559
        %v7753 = vadd.f32 %v7703, %v2559
        %v7754 = vadd.f32 %v7706, %v2559
        %v7755 = vadd.f32 %v7709, %v2559
        %v7756 = vadd.f32 %v7712, %v2559
        %v7757 = vadd.f32 %v7715, %v2559
        %v7758 = vadd.f32 %v7718, %v2559
        %v7759 = vadd.f32 %v7721, %v2559
        %v7760 = vadd.f32 %v7724, %v2559
        %v7761 = vadd.f32 %v7727, %v2559
        %v7762 = vadd.f32 %v7730, %v2559
        %v7795 = vlaneseq
        %v7796 = vshrl.u32 %v7795, 7
        %v7797 = vsub.s32 0, %v7796
        %v7798 = vrot.slane %v7731, %v7797
        %v7799 = vlaneseq
        %v7800 = vshrl.u32 %v7799, 7
        %v7801 = vsub.s32 1, %v7800
        %v7802 = vrot.slane %v7731, %v7801
        %v7803 = vlaneseq
        %v7804 = vshrl.u32 %v7803, 7
        %v7805 = vsub.s32 2, %v7804
        %v7806 = vrot.slane %v7731, %v7805
        %v7807 = vlaneseq
        %v7808 = vshrl.u32 %v7807, 7
        %v7809 = vsub.s32 3, %v7808
        %v7810 = vrot.slane %v7731, %v7809
        %v7811 = vlaneseq
        %v7812 = vshrl.u32 %v7811, 7
        %v7813 = vsub.s32 4, %v7812
        %v7814 = vrot.slane %v7731, %v7813
        %v7815 = vlaneseq
        %v7816 = vshrl.u32 %v7815, 7
        %v7817 = vsub.s32 5, %v7816
        %v7818 = vrot.slane %v7731, %v7817
        %v7819 = vlaneseq
        %v7820 = vshrl.u32 %v7819, 7
        %v7821 = vsub.s32 6, %v7820
        %v7822 = vrot.slane %v7731, %v7821
        %v7823 = vlaneseq
        %v7824 = vshrl.u32 %v7823, 7
        %v7825 = vsub.s32 7, %v7824
        %v7826 = vrot.slane %v7731, %v7825
        %v7827 = vlaneseq
        %v7828 = vshrl.u32 %v7827, 7
        %v7829 = vsub.s32 0, %v7828
        %v7830 = vrot.slane %v7732, %v7829
        %v7831 = vlaneseq
        %v7832 = vshrl.u32 %v7831, 7
        %v7833 = vsub.s32 1, %v7832
        %v7834 = vrot.slane %v7732, %v7833
        %v7835 = vlaneseq
        %v7836 = vshrl.u32 %v7835, 7
        %v7837 = vsub.s32 2, %v7836
        %v7838 = vrot.slane %v7732, %v7837
        %v7839 = vlaneseq
        %v7840 = vshrl.u32 %v7839, 7
        %v7841 = vsub.s32 3, %v7840
        %v7842 = vrot.slane %v7732, %v7841
        %v7843 = vlaneseq
        %v7844 = vshrl.u32 %v7843, 7
        %v7845 = vsub.s32 4, %v7844
        %v7846 = vrot.slane %v7732, %v7845
        %v7847 = vlaneseq
        %v7848 = vshrl.u32 %v7847, 7
        %v7849 = vsub.s32 5, %v7848
        %v7850 = vrot.slane %v7732, %v7849
        %v7851 = vlaneseq
        %v7852 = vshrl.u32 %v7851, 7
        %v7853 = vsub.s32 6, %v7852
        %v7854 = vrot.slane %v7732, %v7853
        %v7855 = vlaneseq
        %v7856 = vshrl.u32 %v7855, 7
        %v7857 = vsub.s32 7, %v7856
        %v7858 = vrot.slane %v7732, %v7857
        %v7859 = vlaneseq
        %v7860 = vshrl.u32 %v7859, 7
        %v7861 = vsub.s32 0, %v7860
        %v7862 = vrot.slane %v7733, %v7861
        %v7863 = vlaneseq
        %v7864 = vshrl.u32 %v7863, 7
        %v7865 = vsub.s32 1, %v7864
        %v7866 = vrot.slane %v7733, %v7865
        %v7867 = vlaneseq
        %v7868 = vshrl.u32 %v7867, 7
        %v7869 = vsub.s32 2, %v7868
        %v7870 = vrot.slane %v7733, %v7869
        %v7871 = vlaneseq
        %v7872 = vshrl.u32 %v7871, 7
        %v7873 = vsub.s32 3, %v7872
        %v7874 = vrot.slane %v7733, %v7873
        %v7875 = vlaneseq
        %v7876 = vshrl.u32 %v7875, 7
        %v7877 = vsub.s32 4, %v7876
        %v7878 = vrot.slane %v7733, %v7877
        %v7879 = vlaneseq
        %v7880 = vshrl.u32 %v7879, 7
        %v7881 = vsub.s32 5, %v7880
        %v7882 = vrot.slane %v7733, %v7881
        %v7883 = vlaneseq
        %v7884 = vshrl.u32 %v7883, 7
        %v7885 = vsub.s32 6, %v7884
        %v7886 = vrot.slane %v7733, %v7885
        %v7887 = vlaneseq
        %v7888 = vshrl.u32 %v7887, 7
        %v7889 = vsub.s32 7, %v7888
        %v7890 = vrot.slane %v7733, %v7889
        %v7891 = vlaneseq
        %v7892 = vshrl.u32 %v7891, 7
        %v7893 = vsub.s32 0, %v7892
        %v7894 = vrot.slane %v7734, %v7893
        %v7895 = vlaneseq
        %v7896 = vshrl.u32 %v7895, 7
        %v7897 = vsub.s32 1, %v7896
        %v7898 = vrot.slane %v7734, %v7897
        %v7899 = vlaneseq
        %v7900 = vshrl.u32 %v7899, 7
        %v7901 = vsub.s32 2, %v7900
        %v7902 = vrot.slane %v7734, %v7901
        %v7903 = vlaneseq
        %v7904 = vshrl.u32 %v7903, 7
        %v7905 = vsub.s32 3, %v7904
        %v7906 = vrot.slane %v7734, %v7905
        %v7907 = vlaneseq
        %v7908 = vshrl.u32 %v7907, 7
        %v7909 = vsub.s32 4, %v7908
        %v7910 = vrot.slane %v7734, %v7909
        %v7911 = vlaneseq
        %v7912 = vshrl.u32 %v7911, 7
        %v7913 = vsub.s32 5, %v7912
        %v7914 = vrot.slane %v7734, %v7913
        %v7915 = vlaneseq
        %v7916 = vshrl.u32 %v7915, 7
        %v7917 = vsub.s32 6, %v7916
        %v7918 = vrot.slane %v7734, %v7917
        %v7919 = vlaneseq
        %v7920 = vshrl.u32 %v7919, 7
        %v7921 = vsub.s32 7, %v7920
        %v7922 = vrot.slane %v7734, %v7921
        %v7923 = vlaneseq
        %v7924 = vshrl.u32 %v7923, 7
        %v7925 = vsub.s32 0, %v7924
        %v7926 = vrot.slane %v7735, %v7925
        %v7927 = vlaneseq
        %v7928 = vshrl.u32 %v7927, 7
        %v7929 = vsub.s32 1, %v7928
        %v7930 = vrot.slane %v7735, %v7929
        %v7931 = vlaneseq
        %v7932 = vshrl.u32 %v7931, 7
        %v7933 = vsub.s32 2, %v7932
        %v7934 = vrot.slane %v7735, %v7933
        %v7935 = vlaneseq
        %v7936 = vshrl.u32 %v7935, 7
        %v7937 = vsub.s32 3, %v7936
        %v7938 = vrot.slane %v7735, %v7937
        %v7939 = vlaneseq
        %v7940 = vshrl.u32 %v7939, 7
        %v7941 = vsub.s32 4, %v7940
        %v7942 = vrot.slane %v7735, %v7941
        %v7943 = vlaneseq
        %v7944 = vshrl.u32 %v7943, 7
        %v7945 = vsub.s32 5, %v7944
        %v7946 = vrot.slane %v7735, %v7945
        %v7947 = vlaneseq
        %v7948 = vshrl.u32 %v7947, 7
        %v7949 = vsub.s32 6, %v7948
        %v7950 = vrot.slane %v7735, %v7949
        %v7951 = vlaneseq
        %v7952 = vshrl.u32 %v7951, 7
        %v7953 = vsub.s32 7, %v7952
        %v7954 = vrot.slane %v7735, %v7953
        %v7955 = vlaneseq
        %v7956 = vshrl.u32 %v7955, 7
        %v7957 = vsub.s32 0, %v7956
        %v7958 = vrot.slane %v7736, %v7957
        %v7959 = vlaneseq
        %v7960 = vshrl.u32 %v7959, 7
        %v7961 = vsub.s32 1, %v7960
        %v7962 = vrot.slane %v7736, %v7961
        %v7963 = vlaneseq
        %v7964 = vshrl.u32 %v7963, 7
        %v7965 = vsub.s32 2, %v7964
        %v7966 = vrot.slane %v7736, %v7965
        %v7967 = vlaneseq
        %v7968 = vshrl.u32 %v7967, 7
        %v7969 = vsub.s32 3, %v7968
        %v7970 = vrot.slane %v7736, %v7969
        %v7971 = vlaneseq
        %v7972 = vshrl.u32 %v7971, 7
        %v7973 = vsub.s32 4, %v7972
        %v7974 = vrot.slane %v7736, %v7973
        %v7975 = vlaneseq
        %v7976 = vshrl.u32 %v7975, 7
        %v7977 = vsub.s32 5, %v7976
        %v7978 = vrot.slane %v7736, %v7977
        %v7979 = vlaneseq
        %v7980 = vshrl.u32 %v7979, 7
        %v7981 = vsub.s32 6, %v7980
        %v7982 = vrot.slane %v7736, %v7981
        %v7983 = vlaneseq
        %v7984 = vshrl.u32 %v7983, 7
        %v7985 = vsub.s32 7, %v7984
        %v7986 = vrot.slane %v7736, %v7985
        %v7987 = vlaneseq
        %v7988 = vshrl.u32 %v7987, 7
        %v7989 = vsub.s32 0, %v7988
        %v7990 = vrot.slane %v7737, %v7989
        %v7991 = vlaneseq
        %v7992 = vshrl.u32 %v7991, 7
        %v7993 = vsub.s32 1, %v7992
        %v7994 = vrot.slane %v7737, %v7993
        %v7995 = vlaneseq
        %v7996 = vshrl.u32 %v7995, 7
        %v7997 = vsub.s32 2, %v7996
        %v7998 = vrot.slane %v7737, %v7997
        %v7999 = vlaneseq
        %v8000 = vshrl.u32 %v7999, 7
        %v8001 = vsub.s32 3, %v8000
        %v8002 = vrot.slane %v7737, %v8001
        %v8003 = vlaneseq
        %v8004 = vshrl.u32 %v8003, 7
        %v8005 = vsub.s32 4, %v8004
        %v8006 = vrot.slane %v7737, %v8005
        %v8007 = vlaneseq
        %v8008 = vshrl.u32 %v8007, 7
        %v8009 = vsub.s32 5, %v8008
        %v8010 = vrot.slane %v7737, %v8009
        %v8011 = vlaneseq
        %v8012 = vshrl.u32 %v8011, 7
        %v8013 = vsub.s32 6, %v8012
        %v8014 = vrot.slane %v7737, %v8013
        %v8015 = vlaneseq
        %v8016 = vshrl.u32 %v8015, 7
        %v8017 = vsub.s32 7, %v8016
        %v8018 = vrot.slane %v7737, %v8017
        %v8019 = vlaneseq
        %v8020 = vshrl.u32 %v8019, 7
        %v8021 = vsub.s32 0, %v8020
        %v8022 = vrot.slane %v7738, %v8021
        %v8023 = vlaneseq
        %v8024 = vshrl.u32 %v8023, 7
        %v8025 = vsub.s32 1, %v8024
        %v8026 = vrot.slane %v7738, %v8025
        %v8027 = vlaneseq
        %v8028 = vshrl.u32 %v8027, 7
        %v8029 = vsub.s32 2, %v8028
        %v8030 = vrot.slane %v7738, %v8029
        %v8031 = vlaneseq
        %v8032 = vshrl.u32 %v8031, 7
        %v8033 = vsub.s32 3, %v8032
        %v8034 = vrot.slane %v7738, %v8033
        %v8035 = vlaneseq
        %v8036 = vshrl.u32 %v8035, 7
        %v8037 = vsub.s32 4, %v8036
        %v8038 = vrot.slane %v7738, %v8037
        %v8039 = vlaneseq
        %v8040 = vshrl.u32 %v8039, 7
        %v8041 = vsub.s32 5, %v8040
        %v8042 = vrot.slane %v7738, %v8041
        %v8043 = vlaneseq
        %v8044 = vshrl.u32 %v8043, 7
        %v8045 = vsub.s32 6, %v8044
        %v8046 = vrot.slane %v7738, %v8045
        %v8047 = vlaneseq
        %v8048 = vshrl.u32 %v8047, 7
        %v8049 = vsub.s32 7, %v8048
        %v8050 = vrot.slane %v7738, %v8049
        %v8051 = vlaneseq
        %v8052 = vshrl.u32 %v8051, 7
        %v8053 = vsub.s32 0, %v8052
        %v8054 = vrot.slane %v7739, %v8053
        %v8055 = vlaneseq
        %v8056 = vshrl.u32 %v8055, 7
        %v8057 = vsub.s32 1, %v8056
        %v8058 = vrot.slane %v7739, %v8057
        %v8059 = vlaneseq
        %v8060 = vshrl.u32 %v8059, 7
        %v8061 = vsub.s32 2, %v8060
        %v8062 = vrot.slane %v7739, %v8061
        %v8063 = vlaneseq
        %v8064 = vshrl.u32 %v8063, 7
        %v8065 = vsub.s32 3, %v8064
        %v8066 = vrot.slane %v7739, %v8065
        %v8067 = vlaneseq
        %v8068 = vshrl.u32 %v8067, 7
        %v8069 = vsub.s32 4, %v8068
        %v8070 = vrot.slane %v7739, %v8069
        %v8071 = vlaneseq
        %v8072 = vshrl.u32 %v8071, 7
        %v8073 = vsub.s32 5, %v8072
        %v8074 = vrot.slane %v7739, %v8073
        %v8075 = vlaneseq
        %v8076 = vshrl.u32 %v8075, 7
        %v8077 = vsub.s32 6, %v8076
        %v8078 = vrot.slane %v7739, %v8077
        %v8079 = vlaneseq
        %v8080 = vshrl.u32 %v8079, 7
        %v8081 = vsub.s32 7, %v8080
        %v8082 = vrot.slane %v7739, %v8081
        %v8083 = vlaneseq
        %v8084 = vshrl.u32 %v8083, 7
        %v8085 = vsub.s32 0, %v8084
        %v8086 = vrot.slane %v7740, %v8085
        %v8087 = vlaneseq
        %v8088 = vshrl.u32 %v8087, 7
        %v8089 = vsub.s32 1, %v8088
        %v8090 = vrot.slane %v7740, %v8089
        %v8091 = vlaneseq
        %v8092 = vshrl.u32 %v8091, 7
        %v8093 = vsub.s32 2, %v8092
        %v8094 = vrot.slane %v7740, %v8093
        %v8095 = vlaneseq
        %v8096 = vshrl.u32 %v8095, 7
        %v8097 = vsub.s32 3, %v8096
        %v8098 = vrot.slane %v7740, %v8097
        %v8099 = vlaneseq
        %v8100 = vshrl.u32 %v8099, 7
        %v8101 = vsub.s32 4, %v8100
        %v8102 = vrot.slane %v7740, %v8101
        %v8103 = vlaneseq
        %v8104 = vshrl.u32 %v8103, 7
        %v8105 = vsub.s32 5, %v8104
        %v8106 = vrot.slane %v7740, %v8105
        %v8107 = vlaneseq
        %v8108 = vshrl.u32 %v8107, 7
        %v8109 = vsub.s32 6, %v8108
        %v8110 = vrot.slane %v7740, %v8109
        %v8111 = vlaneseq
        %v8112 = vshrl.u32 %v8111, 7
        %v8113 = vsub.s32 7, %v8112
        %v8114 = vrot.slane %v7740, %v8113
        %v8115 = vlaneseq
        %v8116 = vshrl.u32 %v8115, 7
        %v8117 = vsub.s32 0, %v8116
        %v8118 = vrot.slane %v7741, %v8117
        %v8119 = vlaneseq
        %v8120 = vshrl.u32 %v8119, 7
        %v8121 = vsub.s32 1, %v8120
        %v8122 = vrot.slane %v7741, %v8121
        %v8123 = vlaneseq
        %v8124 = vshrl.u32 %v8123, 7
        %v8125 = vsub.s32 2, %v8124
        %v8126 = vrot.slane %v7741, %v8125
        %v8127 = vlaneseq
        %v8128 = vshrl.u32 %v8127, 7
        %v8129 = vsub.s32 3, %v8128
        %v8130 = vrot.slane %v7741, %v8129
        %v8131 = vlaneseq
        %v8132 = vshrl.u32 %v8131, 7
        %v8133 = vsub.s32 4, %v8132
        %v8134 = vrot.slane %v7741, %v8133
        %v8135 = vlaneseq
        %v8136 = vshrl.u32 %v8135, 7
        %v8137 = vsub.s32 5, %v8136
        %v8138 = vrot.slane %v7741, %v8137
        %v8139 = vlaneseq
        %v8140 = vshrl.u32 %v8139, 7
        %v8141 = vsub.s32 6, %v8140
        %v8142 = vrot.slane %v7741, %v8141
        %v8143 = vlaneseq
        %v8144 = vshrl.u32 %v8143, 7
        %v8145 = vsub.s32 7, %v8144
        %v8146 = vrot.slane %v7741, %v8145
        %v8147 = vlaneseq
        %v8148 = vshrl.u32 %v8147, 7
        %v8149 = vsub.s32 0, %v8148
        %v8150 = vrot.slane %v7742, %v8149
        %v8151 = vlaneseq
        %v8152 = vshrl.u32 %v8151, 7
        %v8153 = vsub.s32 1, %v8152
        %v8154 = vrot.slane %v7742, %v8153
        %v8155 = vlaneseq
        %v8156 = vshrl.u32 %v8155, 7
        %v8157 = vsub.s32 2, %v8156
        %v8158 = vrot.slane %v7742, %v8157
        %v8159 = vlaneseq
        %v8160 = vshrl.u32 %v8159, 7
        %v8161 = vsub.s32 3, %v8160
        %v8162 = vrot.slane %v7742, %v8161
        %v8163 = vlaneseq
        %v8164 = vshrl.u32 %v8163, 7
        %v8165 = vsub.s32 4, %v8164
        %v8166 = vrot.slane %v7742, %v8165
        %v8167 = vlaneseq
        %v8168 = vshrl.u32 %v8167, 7
        %v8169 = vsub.s32 5, %v8168
        %v8170 = vrot.slane %v7742, %v8169
        %v8171 = vlaneseq
        %v8172 = vshrl.u32 %v8171, 7
        %v8173 = vsub.s32 6, %v8172
        %v8174 = vrot.slane %v7742, %v8173
        %v8175 = vlaneseq
        %v8176 = vshrl.u32 %v8175, 7
        %v8177 = vsub.s32 7, %v8176
        %v8178 = vrot.slane %v7742, %v8177
        %v8179 = vlaneseq
        %v8180 = vshrl.u32 %v8179, 7
        %v8181 = vsub.s32 0, %v8180
        %v8182 = vrot.slane %v7743, %v8181
        %v8183 = vlaneseq
        %v8184 = vshrl.u32 %v8183, 7
        %v8185 = vsub.s32 1, %v8184
        %v8186 = vrot.slane %v7743, %v8185
        %v8187 = vlaneseq
        %v8188 = vshrl.u32 %v8187, 7
        %v8189 = vsub.s32 2, %v8188
        %v8190 = vrot.slane %v7743, %v8189
        %v8191 = vlaneseq
        %v8192 = vshrl.u32 %v8191, 7
        %v8193 = vsub.s32 3, %v8192
        %v8194 = vrot.slane %v7743, %v8193
        %v8195 = vlaneseq
        %v8196 = vshrl.u32 %v8195, 7
        %v8197 = vsub.s32 4, %v8196
        %v8198 = vrot.slane %v7743, %v8197
        %v8199 = vlaneseq
        %v8200 = vshrl.u32 %v8199, 7
        %v8201 = vsub.s32 5, %v8200
        %v8202 = vrot.slane %v7743, %v8201
        %v8203 = vlaneseq
        %v8204 = vshrl.u32 %v8203, 7
        %v8205 = vsub.s32 6, %v8204
        %v8206 = vrot.slane %v7743, %v8205
        %v8207 = vlaneseq
        %v8208 = vshrl.u32 %v8207, 7
        %v8209 = vsub.s32 7, %v8208
        %v8210 = vrot.slane %v7743, %v8209
        %v8211 = vlaneseq
        %v8212 = vshrl.u32 %v8211, 7
        %v8213 = vsub.s32 0, %v8212
        %v8214 = vrot.slane %v7744, %v8213
        %v8215 = vlaneseq
        %v8216 = vshrl.u32 %v8215, 7
        %v8217 = vsub.s32 1, %v8216
        %v8218 = vrot.slane %v7744, %v8217
        %v8219 = vlaneseq
        %v8220 = vshrl.u32 %v8219, 7
        %v8221 = vsub.s32 2, %v8220
        %v8222 = vrot.slane %v7744, %v8221
        %v8223 = vlaneseq
        %v8224 = vshrl.u32 %v8223, 7
        %v8225 = vsub.s32 3, %v8224
        %v8226 = vrot.slane %v7744, %v8225
        %v8227 = vlaneseq
        %v8228 = vshrl.u32 %v8227, 7
        %v8229 = vsub.s32 4, %v8228
        %v8230 = vrot.slane %v7744, %v8229
        %v8231 = vlaneseq
        %v8232 = vshrl.u32 %v8231, 7
        %v8233 = vsub.s32 5, %v8232
        %v8234 = vrot.slane %v7744, %v8233
        %v8235 = vlaneseq
        %v8236 = vshrl.u32 %v8235, 7
        %v8237 = vsub.s32 6, %v8236
        %v8238 = vrot.slane %v7744, %v8237
        %v8239 = vlaneseq
        %v8240 = vshrl.u32 %v8239, 7
        %v8241 = vsub.s32 7, %v8240
        %v8242 = vrot.slane %v7744, %v8241
        %v8243 = vlaneseq
        %v8244 = vshrl.u32 %v8243, 7
        %v8245 = vsub.s32 0, %v8244
        %v8246 = vrot.slane %v7745, %v8245
        %v8247 = vlaneseq
        %v8248 = vshrl.u32 %v8247, 7
        %v8249 = vsub.s32 1, %v8248
        %v8250 = vrot.slane %v7745, %v8249
        %v8251 = vlaneseq
        %v8252 = vshrl.u32 %v8251, 7
        %v8253 = vsub.s32 2, %v8252
        %v8254 = vrot.slane %v7745, %v8253
        %v8255 = vlaneseq
        %v8256 = vshrl.u32 %v8255, 7
        %v8257 = vsub.s32 3, %v8256
        %v8258 = vrot.slane %v7745, %v8257
        %v8259 = vlaneseq
        %v8260 = vshrl.u32 %v8259, 7
        %v8261 = vsub.s32 4, %v8260
        %v8262 = vrot.slane %v7745, %v8261
        %v8263 = vlaneseq
        %v8264 = vshrl.u32 %v8263, 7
        %v8265 = vsub.s32 5, %v8264
        %v8266 = vrot.slane %v7745, %v8265
        %v8267 = vlaneseq
        %v8268 = vshrl.u32 %v8267, 7
        %v8269 = vsub.s32 6, %v8268
        %v8270 = vrot.slane %v7745, %v8269
        %v8271 = vlaneseq
        %v8272 = vshrl.u32 %v8271, 7
        %v8273 = vsub.s32 7, %v8272
        %v8274 = vrot.slane %v7745, %v8273
        %v8275 = vlaneseq
        %v8276 = vshrl.u32 %v8275, 7
        %v8277 = vsub.s32 0, %v8276
        %v8278 = vrot.slane %v7746, %v8277
        %v8279 = vlaneseq
        %v8280 = vshrl.u32 %v8279, 7
        %v8281 = vsub.s32 1, %v8280
        %v8282 = vrot.slane %v7746, %v8281
        %v8283 = vlaneseq
        %v8284 = vshrl.u32 %v8283, 7
        %v8285 = vsub.s32 2, %v8284
        %v8286 = vrot.slane %v7746, %v8285
        %v8287 = vlaneseq
        %v8288 = vshrl.u32 %v8287, 7
        %v8289 = vsub.s32 3, %v8288
        %v8290 = vrot.slane %v7746, %v8289
        %v8291 = vlaneseq
        %v8292 = vshrl.u32 %v8291, 7
        %v8293 = vsub.s32 4, %v8292
        %v8294 = vrot.slane %v7746, %v8293
        %v8295 = vlaneseq
        %v8296 = vshrl.u32 %v8295, 7
        %v8297 = vsub.s32 5, %v8296
        %v8298 = vrot.slane %v7746, %v8297
        %v8299 = vlaneseq
        %v8300 = vshrl.u32 %v8299, 7
        %v8301 = vsub.s32 6, %v8300
        %v8302 = vrot.slane %v7746, %v8301
        %v8303 = vlaneseq
        %v8304 = vshrl.u32 %v8303, 7
        %v8305 = vsub.s32 7, %v8304
        %v8306 = vrot.slane %v7746, %v8305
        %v8307 = vlaneseq
        %v8308 = vshrl.u32 %v8307, 7
        %v8309 = vsub.s32 0, %v8308
        %v8310 = vrot.slane %v7747, %v8309
        %v8311 = vlaneseq
        %v8312 = vshrl.u32 %v8311, 7
        %v8313 = vsub.s32 1, %v8312
        %v8314 = vrot.slane %v7747, %v8313
        %v8315 = vlaneseq
        %v8316 = vshrl.u32 %v8315, 7
        %v8317 = vsub.s32 2, %v8316
        %v8318 = vrot.slane %v7747, %v8317
        %v8319 = vlaneseq
        %v8320 = vshrl.u32 %v8319, 7
        %v8321 = vsub.s32 3, %v8320
        %v8322 = vrot.slane %v7747, %v8321
        %v8323 = vlaneseq
        %v8324 = vshrl.u32 %v8323, 7
        %v8325 = vsub.s32 4, %v8324
        %v8326 = vrot.slane %v7747, %v8325
        %v8327 = vlaneseq
        %v8328 = vshrl.u32 %v8327, 7
        %v8329 = vsub.s32 5, %v8328
        %v8330 = vrot.slane %v7747, %v8329
        %v8331 = vlaneseq
        %v8332 = vshrl.u32 %v8331, 7
        %v8333 = vsub.s32 6, %v8332
        %v8334 = vrot.slane %v7747, %v8333
        %v8335 = vlaneseq
        %v8336 = vshrl.u32 %v8335, 7
        %v8337 = vsub.s32 7, %v8336
        %v8338 = vrot.slane %v7747, %v8337
        %v8339 = vlaneseq
        %v8340 = vshrl.u32 %v8339, 7
        %v8341 = vsub.s32 0, %v8340
        %v8342 = vrot.slane %v7748, %v8341
        %v8343 = vlaneseq
        %v8344 = vshrl.u32 %v8343, 7
        %v8345 = vsub.s32 1, %v8344
        %v8346 = vrot.slane %v7748, %v8345
        %v8347 = vlaneseq
        %v8348 = vshrl.u32 %v8347, 7
        %v8349 = vsub.s32 2, %v8348
        %v8350 = vrot.slane %v7748, %v8349
        %v8351 = vlaneseq
        %v8352 = vshrl.u32 %v8351, 7
        %v8353 = vsub.s32 3, %v8352
        %v8354 = vrot.slane %v7748, %v8353
        %v8355 = vlaneseq
        %v8356 = vshrl.u32 %v8355, 7
        %v8357 = vsub.s32 4, %v8356
        %v8358 = vrot.slane %v7748, %v8357
        %v8359 = vlaneseq
        %v8360 = vshrl.u32 %v8359, 7
        %v8361 = vsub.s32 5, %v8360
        %v8362 = vrot.slane %v7748, %v8361
        %v8363 = vlaneseq
        %v8364 = vshrl.u32 %v8363, 7
        %v8365 = vsub.s32 6, %v8364
        %v8366 = vrot.slane %v7748, %v8365
        %v8367 = vlaneseq
        %v8368 = vshrl.u32 %v8367, 7
        %v8369 = vsub.s32 7, %v8368
        %v8370 = vrot.slane %v7748, %v8369
        %v8371 = vlaneseq
        %v8372 = vshrl.u32 %v8371, 7
        %v8373 = vsub.s32 0, %v8372
        %v8374 = vrot.slane %v7749, %v8373
        %v8375 = vlaneseq
        %v8376 = vshrl.u32 %v8375, 7
        %v8377 = vsub.s32 1, %v8376
        %v8378 = vrot.slane %v7749, %v8377
        %v8379 = vlaneseq
        %v8380 = vshrl.u32 %v8379, 7
        %v8381 = vsub.s32 2, %v8380
        %v8382 = vrot.slane %v7749, %v8381
        %v8383 = vlaneseq
        %v8384 = vshrl.u32 %v8383, 7
        %v8385 = vsub.s32 3, %v8384
        %v8386 = vrot.slane %v7749, %v8385
        %v8387 = vlaneseq
        %v8388 = vshrl.u32 %v8387, 7
        %v8389 = vsub.s32 4, %v8388
        %v8390 = vrot.slane %v7749, %v8389
        %v8391 = vlaneseq
        %v8392 = vshrl.u32 %v8391, 7
        %v8393 = vsub.s32 5, %v8392
        %v8394 = vrot.slane %v7749, %v8393
        %v8395 = vlaneseq
        %v8396 = vshrl.u32 %v8395, 7
        %v8397 = vsub.s32 6, %v8396
        %v8398 = vrot.slane %v7749, %v8397
        %v8399 = vlaneseq
        %v8400 = vshrl.u32 %v8399, 7
        %v8401 = vsub.s32 7, %v8400
        %v8402 = vrot.slane %v7749, %v8401
        %v8403 = vlaneseq
        %v8404 = vshrl.u32 %v8403, 7
        %v8405 = vsub.s32 0, %v8404
        %v8406 = vrot.slane %v7750, %v8405
        %v8407 = vlaneseq
        %v8408 = vshrl.u32 %v8407, 7
        %v8409 = vsub.s32 1, %v8408
        %v8410 = vrot.slane %v7750, %v8409
        %v8411 = vlaneseq
        %v8412 = vshrl.u32 %v8411, 7
        %v8413 = vsub.s32 2, %v8412
        %v8414 = vrot.slane %v7750, %v8413
        %v8415 = vlaneseq
        %v8416 = vshrl.u32 %v8415, 7
        %v8417 = vsub.s32 3, %v8416
        %v8418 = vrot.slane %v7750, %v8417
        %v8419 = vlaneseq
        %v8420 = vshrl.u32 %v8419, 7
        %v8421 = vsub.s32 4, %v8420
        %v8422 = vrot.slane %v7750, %v8421
        %v8423 = vlaneseq
        %v8424 = vshrl.u32 %v8423, 7
        %v8425 = vsub.s32 5, %v8424
        %v8426 = vrot.slane %v7750, %v8425
        %v8427 = vlaneseq
        %v8428 = vshrl.u32 %v8427, 7
        %v8429 = vsub.s32 6, %v8428
        %v8430 = vrot.slane %v7750, %v8429
        %v8431 = vlaneseq
        %v8432 = vshrl.u32 %v8431, 7
        %v8433 = vsub.s32 7, %v8432
        %v8434 = vrot.slane %v7750, %v8433
        %v8435 = vlaneseq
        %v8436 = vshrl.u32 %v8435, 7
        %v8437 = vsub.s32 0, %v8436
        %v8438 = vrot.slane %v7751, %v8437
        %v8439 = vlaneseq
        %v8440 = vshrl.u32 %v8439, 7
        %v8441 = vsub.s32 1, %v8440
        %v8442 = vrot.slane %v7751, %v8441
        %v8443 = vlaneseq
        %v8444 = vshrl.u32 %v8443, 7
        %v8445 = vsub.s32 2, %v8444
        %v8446 = vrot.slane %v7751, %v8445
        %v8447 = vlaneseq
        %v8448 = vshrl.u32 %v8447, 7
        %v8449 = vsub.s32 3, %v8448
        %v8450 = vrot.slane %v7751, %v8449
        %v8451 = vlaneseq
        %v8452 = vshrl.u32 %v8451, 7
        %v8453 = vsub.s32 4, %v8452
        %v8454 = vrot.slane %v7751, %v8453
        %v8455 = vlaneseq
        %v8456 = vshrl.u32 %v8455, 7
        %v8457 = vsub.s32 5, %v8456
        %v8458 = vrot.slane %v7751, %v8457
        %v8459 = vlaneseq
        %v8460 = vshrl.u32 %v8459, 7
        %v8461 = vsub.s32 6, %v8460
        %v8462 = vrot.slane %v7751, %v8461
        %v8463 = vlaneseq
        %v8464 = vshrl.u32 %v8463, 7
        %v8465 = vsub.s32 7, %v8464
        %v8466 = vrot.slane %v7751, %v8465
        %v8467 = vlaneseq
        %v8468 = vshrl.u32 %v8467, 7
        %v8469 = vsub.s32 0, %v8468
        %v8470 = vrot.slane %v7752, %v8469
        %v8471 = vlaneseq
        %v8472 = vshrl.u32 %v8471, 7
        %v8473 = vsub.s32 1, %v8472
        %v8474 = vrot.slane %v7752, %v8473
        %v8475 = vlaneseq
        %v8476 = vshrl.u32 %v8475, 7
        %v8477 = vsub.s32 2, %v8476
        %v8478 = vrot.slane %v7752, %v8477
        %v8479 = vlaneseq
        %v8480 = vshrl.u32 %v8479, 7
        %v8481 = vsub.s32 3, %v8480
        %v8482 = vrot.slane %v7752, %v8481
        %v8483 = vlaneseq
        %v8484 = vshrl.u32 %v8483, 7
        %v8485 = vsub.s32 4, %v8484
        %v8486 = vrot.slane %v7752, %v8485
        %v8487 = vlaneseq
        %v8488 = vshrl.u32 %v8487, 7
        %v8489 = vsub.s32 5, %v8488
        %v8490 = vrot.slane %v7752, %v8489
        %v8491 = vlaneseq
        %v8492 = vshrl.u32 %v8491, 7
        %v8493 = vsub.s32 6, %v8492
        %v8494 = vrot.slane %v7752, %v8493
        %v8495 = vlaneseq
        %v8496 = vshrl.u32 %v8495, 7
        %v8497 = vsub.s32 7, %v8496
        %v8498 = vrot.slane %v7752, %v8497
        %v8499 = vlaneseq
        %v8500 = vshrl.u32 %v8499, 7
        %v8501 = vsub.s32 0, %v8500
        %v8502 = vrot.slane %v7753, %v8501
        %v8503 = vlaneseq
        %v8504 = vshrl.u32 %v8503, 7
        %v8505 = vsub.s32 1, %v8504
        %v8506 = vrot.slane %v7753, %v8505
        %v8507 = vlaneseq
        %v8508 = vshrl.u32 %v8507, 7
        %v8509 = vsub.s32 2, %v8508
        %v8510 = vrot.slane %v7753, %v8509
        %v8511 = vlaneseq
        %v8512 = vshrl.u32 %v8511, 7
        %v8513 = vsub.s32 3, %v8512
        %v8514 = vrot.slane %v7753, %v8513
        %v8515 = vlaneseq
        %v8516 = vshrl.u32 %v8515, 7
        %v8517 = vsub.s32 4, %v8516
        %v8518 = vrot.slane %v7753, %v8517
        %v8519 = vlaneseq
        %v8520 = vshrl.u32 %v8519, 7
        %v8521 = vsub.s32 5, %v8520
        %v8522 = vrot.slane %v7753, %v8521
        %v8523 = vlaneseq
        %v8524 = vshrl.u32 %v8523, 7
        %v8525 = vsub.s32 6, %v8524
        %v8526 = vrot.slane %v7753, %v8525
        %v8527 = vlaneseq
        %v8528 = vshrl.u32 %v8527, 7
        %v8529 = vsub.s32 7, %v8528
        %v8530 = vrot.slane %v7753, %v8529
        %v8531 = vlaneseq
        %v8532 = vshrl.u32 %v8531, 7
        %v8533 = vsub.s32 0, %v8532
        %v8534 = vrot.slane %v7754, %v8533
        %v8535 = vlaneseq
        %v8536 = vshrl.u32 %v8535, 7
        %v8537 = vsub.s32 1, %v8536
        %v8538 = vrot.slane %v7754, %v8537
        %v8539 = vlaneseq
        %v8540 = vshrl.u32 %v8539, 7
        %v8541 = vsub.s32 2, %v8540
        %v8542 = vrot.slane %v7754, %v8541
        %v8543 = vlaneseq
        %v8544 = vshrl.u32 %v8543, 7
        %v8545 = vsub.s32 3, %v8544
        %v8546 = vrot.slane %v7754, %v8545
        %v8547 = vlaneseq
        %v8548 = vshrl.u32 %v8547, 7
        %v8549 = vsub.s32 4, %v8548
        %v8550 = vrot.slane %v7754, %v8549
        %v8551 = vlaneseq
        %v8552 = vshrl.u32 %v8551, 7
        %v8553 = vsub.s32 5, %v8552
        %v8554 = vrot.slane %v7754, %v8553
        %v8555 = vlaneseq
        %v8556 = vshrl.u32 %v8555, 7
        %v8557 = vsub.s32 6, %v8556
        %v8558 = vrot.slane %v7754, %v8557
        %v8559 = vlaneseq
        %v8560 = vshrl.u32 %v8559, 7
        %v8561 = vsub.s32 7, %v8560
        %v8562 = vrot.slane %v7754, %v8561
        %v8563 = vlaneseq
        %v8564 = vshrl.u32 %v8563, 7
        %v8565 = vsub.s32 0, %v8564
        %v8566 = vrot.slane %v7755, %v8565
        %v8567 = vlaneseq
        %v8568 = vshrl.u32 %v8567, 7
        %v8569 = vsub.s32 1, %v8568
        %v8570 = vrot.slane %v7755, %v8569
        %v8571 = vlaneseq
        %v8572 = vshrl.u32 %v8571, 7
        %v8573 = vsub.s32 2, %v8572
        %v8574 = vrot.slane %v7755, %v8573
        %v8575 = vlaneseq
        %v8576 = vshrl.u32 %v8575, 7
        %v8577 = vsub.s32 3, %v8576
        %v8578 = vrot.slane %v7755, %v8577
        %v8579 = vlaneseq
        %v8580 = vshrl.u32 %v8579, 7
        %v8581 = vsub.s32 4, %v8580
        %v8582 = vrot.slane %v7755, %v8581
        %v8583 = vlaneseq
        %v8584 = vshrl.u32 %v8583, 7
        %v8585 = vsub.s32 5, %v8584
        %v8586 = vrot.slane %v7755, %v8585
        %v8587 = vlaneseq
        %v8588 = vshrl.u32 %v8587, 7
        %v8589 = vsub.s32 6, %v8588
        %v8590 = vrot.slane %v7755, %v8589
        %v8591 = vlaneseq
        %v8592 = vshrl.u32 %v8591, 7
        %v8593 = vsub.s32 7, %v8592
        %v8594 = vrot.slane %v7755, %v8593
        %v8595 = vlaneseq
        %v8596 = vshrl.u32 %v8595, 7
        %v8597 = vsub.s32 0, %v8596
        %v8598 = vrot.slane %v7756, %v8597
        %v8599 = vlaneseq
        %v8600 = vshrl.u32 %v8599, 7
        %v8601 = vsub.s32 1, %v8600
        %v8602 = vrot.slane %v7756, %v8601
        %v8603 = vlaneseq
        %v8604 = vshrl.u32 %v8603, 7
        %v8605 = vsub.s32 2, %v8604
        %v8606 = vrot.slane %v7756, %v8605
        %v8607 = vlaneseq
        %v8608 = vshrl.u32 %v8607, 7
        %v8609 = vsub.s32 3, %v8608
        %v8610 = vrot.slane %v7756, %v8609
        %v8611 = vlaneseq
        %v8612 = vshrl.u32 %v8611, 7
        %v8613 = vsub.s32 4, %v8612
        %v8614 = vrot.slane %v7756, %v8613
        %v8615 = vlaneseq
        %v8616 = vshrl.u32 %v8615, 7
        %v8617 = vsub.s32 5, %v8616
        %v8618 = vrot.slane %v7756, %v8617
        %v8619 = vlaneseq
        %v8620 = vshrl.u32 %v8619, 7
        %v8621 = vsub.s32 6, %v8620
        %v8622 = vrot.slane %v7756, %v8621
        %v8623 = vlaneseq
        %v8624 = vshrl.u32 %v8623, 7
        %v8625 = vsub.s32 7, %v8624
        %v8626 = vrot.slane %v7756, %v8625
        %v8627 = vlaneseq
        %v8628 = vshrl.u32 %v8627, 7
        %v8629 = vsub.s32 0, %v8628
        %v8630 = vrot.slane %v7757, %v8629
        %v8631 = vlaneseq
        %v8632 = vshrl.u32 %v8631, 7
        %v8633 = vsub.s32 1, %v8632
        %v8634 = vrot.slane %v7757, %v8633
        %v8635 = vlaneseq
        %v8636 = vshrl.u32 %v8635, 7
        %v8637 = vsub.s32 2, %v8636
        %v8638 = vrot.slane %v7757, %v8637
        %v8639 = vlaneseq
        %v8640 = vshrl.u32 %v8639, 7
        %v8641 = vsub.s32 3, %v8640
        %v8642 = vrot.slane %v7757, %v8641
        %v8643 = vlaneseq
        %v8644 = vshrl.u32 %v8643, 7
        %v8645 = vsub.s32 4, %v8644
        %v8646 = vrot.slane %v7757, %v8645
        %v8647 = vlaneseq
        %v8648 = vshrl.u32 %v8647, 7
        %v8649 = vsub.s32 5, %v8648
        %v8650 = vrot.slane %v7757, %v8649
        %v8651 = vlaneseq
        %v8652 = vshrl.u32 %v8651, 7
        %v8653 = vsub.s32 6, %v8652
        %v8654 = vrot.slane %v7757, %v8653
        %v8655 = vlaneseq
        %v8656 = vshrl.u32 %v8655, 7
        %v8657 = vsub.s32 7, %v8656
        %v8658 = vrot.slane %v7757, %v8657
        %v8659 = vlaneseq
        %v8660 = vshrl.u32 %v8659, 7
        %v8661 = vsub.s32 0, %v8660
        %v8662 = vrot.slane %v7758, %v8661
        %v8663 = vlaneseq
        %v8664 = vshrl.u32 %v8663, 7
        %v8665 = vsub.s32 1, %v8664
        %v8666 = vrot.slane %v7758, %v8665
        %v8667 = vlaneseq
        %v8668 = vshrl.u32 %v8667, 7
        %v8669 = vsub.s32 2, %v8668
        %v8670 = vrot.slane %v7758, %v8669
        %v8671 = vlaneseq
        %v8672 = vshrl.u32 %v8671, 7
        %v8673 = vsub.s32 3, %v8672
        %v8674 = vrot.slane %v7758, %v8673
        %v8675 = vlaneseq
        %v8676 = vshrl.u32 %v8675, 7
        %v8677 = vsub.s32 4, %v8676
        %v8678 = vrot.slane %v7758, %v8677
        %v8679 = vlaneseq
        %v8680 = vshrl.u32 %v8679, 7
        %v8681 = vsub.s32 5, %v8680
        %v8682 = vrot.slane %v7758, %v8681
        %v8683 = vlaneseq
        %v8684 = vshrl.u32 %v8683, 7
        %v8685 = vsub.s32 6, %v8684
        %v8686 = vrot.slane %v7758, %v8685
        %v8687 = vlaneseq
        %v8688 = vshrl.u32 %v8687, 7
        %v8689 = vsub.s32 7, %v8688
        %v8690 = vrot.slane %v7758, %v8689
        %v8691 = vlaneseq
        %v8692 = vshrl.u32 %v8691, 7
        %v8693 = vsub.s32 0, %v8692
        %v8694 = vrot.slane %v7759, %v8693
        %v8695 = vlaneseq
        %v8696 = vshrl.u32 %v8695, 7
        %v8697 = vsub.s32 1, %v8696
        %v8698 = vrot.slane %v7759, %v8697
        %v8699 = vlaneseq
        %v8700 = vshrl.u32 %v8699, 7
        %v8701 = vsub.s32 2, %v8700
        %v8702 = vrot.slane %v7759, %v8701
        %v8703 = vlaneseq
        %v8704 = vshrl.u32 %v8703, 7
        %v8705 = vsub.s32 3, %v8704
        %v8706 = vrot.slane %v7759, %v8705
        %v8707 = vlaneseq
        %v8708 = vshrl.u32 %v8707, 7
        %v8709 = vsub.s32 4, %v8708
        %v8710 = vrot.slane %v7759, %v8709
        %v8711 = vlaneseq
        %v8712 = vshrl.u32 %v8711, 7
        %v8713 = vsub.s32 5, %v8712
        %v8714 = vrot.slane %v7759, %v8713
        %v8715 = vlaneseq
        %v8716 = vshrl.u32 %v8715, 7
        %v8717 = vsub.s32 6, %v8716
        %v8718 = vrot.slane %v7759, %v8717
        %v8719 = vlaneseq
        %v8720 = vshrl.u32 %v8719, 7
        %v8721 = vsub.s32 7, %v8720
        %v8722 = vrot.slane %v7759, %v8721
        %v8723 = vlaneseq
        %v8724 = vshrl.u32 %v8723, 7
        %v8725 = vsub.s32 0, %v8724
        %v8726 = vrot.slane %v7760, %v8725
        %v8727 = vlaneseq
        %v8728 = vshrl.u32 %v8727, 7
        %v8729 = vsub.s32 1, %v8728
        %v8730 = vrot.slane %v7760, %v8729
        %v8731 = vlaneseq
        %v8732 = vshrl.u32 %v8731, 7
        %v8733 = vsub.s32 2, %v8732
        %v8734 = vrot.slane %v7760, %v8733
        %v8735 = vlaneseq
        %v8736 = vshrl.u32 %v8735, 7
        %v8737 = vsub.s32 3, %v8736
        %v8738 = vrot.slane %v7760, %v8737
        %v8739 = vlaneseq
        %v8740 = vshrl.u32 %v8739, 7
        %v8741 = vsub.s32 4, %v8740
        %v8742 = vrot.slane %v7760, %v8741
        %v8743 = vlaneseq
        %v8744 = vshrl.u32 %v8743, 7
        %v8745 = vsub.s32 5, %v8744
        %v8746 = vrot.slane %v7760, %v8745
        %v8747 = vlaneseq
        %v8748 = vshrl.u32 %v8747, 7
        %v8749 = vsub.s32 6, %v8748
        %v8750 = vrot.slane %v7760, %v8749
        %v8751 = vlaneseq
        %v8752 = vshrl.u32 %v8751, 7
        %v8753 = vsub.s32 7, %v8752
        %v8754 = vrot.slane %v7760, %v8753
        %v8755 = vlaneseq
        %v8756 = vshrl.u32 %v8755, 7
        %v8757 = vsub.s32 0, %v8756
        %v8758 = vrot.slane %v7761, %v8757
        %v8759 = vlaneseq
        %v8760 = vshrl.u32 %v8759, 7
        %v8761 = vsub.s32 1, %v8760
        %v8762 = vrot.slane %v7761, %v8761
        %v8763 = vlaneseq
        %v8764 = vshrl.u32 %v8763, 7
        %v8765 = vsub.s32 2, %v8764
        %v8766 = vrot.slane %v7761, %v8765
        %v8767 = vlaneseq
        %v8768 = vshrl.u32 %v8767, 7
        %v8769 = vsub.s32 3, %v8768
        %v8770 = vrot.slane %v7761, %v8769
        %v8771 = vlaneseq
        %v8772 = vshrl.u32 %v8771, 7
        %v8773 = vsub.s32 4, %v8772
        %v8774 = vrot.slane %v7761, %v8773
        %v8775 = vlaneseq
        %v8776 = vshrl.u32 %v8775, 7
        %v8777 = vsub.s32 5, %v8776
        %v8778 = vrot.slane %v7761, %v8777
        %v8779 = vlaneseq
        %v8780 = vshrl.u32 %v8779, 7
        %v8781 = vsub.s32 6, %v8780
        %v8782 = vrot.slane %v7761, %v8781
        %v8783 = vlaneseq
        %v8784 = vshrl.u32 %v8783, 7
        %v8785 = vsub.s32 7, %v8784
        %v8786 = vrot.slane %v7761, %v8785
        %v8787 = vlaneseq
        %v8788 = vshrl.u32 %v8787, 7
        %v8789 = vsub.s32 0, %v8788
        %v8790 = vrot.slane %v7762, %v8789
        %v8791 = vlaneseq
        %v8792 = vshrl.u32 %v8791, 7
        %v8793 = vsub.s32 1, %v8792
        %v8794 = vrot.slane %v7762, %v8793
        %v8795 = vlaneseq
        %v8796 = vshrl.u32 %v8795, 7
        %v8797 = vsub.s32 2, %v8796
        %v8798 = vrot.slane %v7762, %v8797
        %v8799 = vlaneseq
        %v8800 = vshrl.u32 %v8799, 7
        %v8801 = vsub.s32 3, %v8800
        %v8802 = vrot.slane %v7762, %v8801
        %v8803 = vlaneseq
        %v8804 = vshrl.u32 %v8803, 7
        %v8805 = vsub.s32 4, %v8804
        %v8806 = vrot.slane %v7762, %v8805
        %v8807 = vlaneseq
        %v8808 = vshrl.u32 %v8807, 7
        %v8809 = vsub.s32 5, %v8808
        %v8810 = vrot.slane %v7762, %v8809
        %v8811 = vlaneseq
        %v8812 = vshrl.u32 %v8811, 7
        %v8813 = vsub.s32 6, %v8812
        %v8814 = vrot.slane %v7762, %v8813
        %v8815 = vlaneseq
        %v8816 = vshrl.u32 %v8815, 7
        %v8817 = vsub.s32 7, %v8816
        %v8818 = vrot.slane %v7762, %v8817
        %v8819 = vcombine.low %v7798, %v7802
        %v8820 = vcombine.low %v7806, %v7810
        %v8821 = vcombine.low %v7814, %v7818
        %v8822 = vcombine.low %v7822, %v7826
        %v8824 = vunpack.c.l.s4 1966171168
        %v8825 = vunpack.c.0.s8 %v8824
        %v8826 = vlaneseq
        %v8827 = vshrl.u32 %v8826, 7
        %v8828 = vsub.s32 %v8825, %v8827
        %v8829 = vrot.slane %v8819, %v8828
        %v8831 = vunpack.c.l.s4 1966171168
        %v8832 = vunpack.c.0.s8 %v8831
        %v8833 = vlaneseq
        %v8834 = vshrl.u32 %v8833, 7
        %v8835 = vsub.s32 %v8832, %v8834
        %v8836 = vrot.slane %v8820, %v8835
        %v8838 = vunpack.c.l.s4 1966171168
        %v8839 = vunpack.c.0.s8 %v8838
        %v8840 = vlaneseq
        %v8841 = vshrl.u32 %v8840, 7
        %v8842 = vsub.s32 %v8839, %v8841
        %v8843 = vrot.slane %v8821, %v8842
        %v8845 = vunpack.c.l.s4 1966171168
        %v8846 = vunpack.c.0.s8 %v8845
        %v8847 = vlaneseq
        %v8848 = vshrl.u32 %v8847, 7
        %v8849 = vsub.s32 %v8846, %v8848
        %v8850 = vrot.slane %v8822, %v8849
        %v8851 = vcombine.low %v8829, %v8836
        %v8852 = vcombine.low %v8843, %v8850
        %v8854 = vunpack.c.l.s4 1966171168
        %v8855 = vunpack.c.0.s8 %v8854
        %v8856 = vlaneseq
        %v8857 = vshrl.u32 %v8856, 7
        %v8858 = vsub.s32 %v8855, %v8857
        %v8859 = vrot.slane %v8851, %v8858
        %v8861 = vunpack.c.l.s4 1966171168
        %v8862 = vunpack.c.0.s8 %v8861
        %v8863 = vlaneseq
        %v8864 = vshrl.u32 %v8863, 7
        %v8865 = vsub.s32 %v8862, %v8864
        %v8866 = vrot.slane %v8852, %v8865
        %v8867 = vcombine.low %v8859, %v8866
        %v8868 = vcombine.low %v7830, %v7834
        %v8869 = vcombine.low %v7838, %v7842
        %v8870 = vcombine.low %v7846, %v7850
        %v8871 = vcombine.low %v7854, %v7858
        %v8873 = vunpack.c.l.s4 1966171168
        %v8874 = vunpack.c.0.s8 %v8873
        %v8875 = vlaneseq
        %v8876 = vshrl.u32 %v8875, 7
        %v8877 = vsub.s32 %v8874, %v8876
        %v8878 = vrot.slane %v8868, %v8877
        %v8880 = vunpack.c.l.s4 1966171168
        %v8881 = vunpack.c.0.s8 %v8880
        %v8882 = vlaneseq
        %v8883 = vshrl.u32 %v8882, 7
        %v8884 = vsub.s32 %v8881, %v8883
        %v8885 = vrot.slane %v8869, %v8884
        %v8887 = vunpack.c.l.s4 1966171168
        %v8888 = vunpack.c.0.s8 %v8887
        %v8889 = vlaneseq
        %v8890 = vshrl.u32 %v8889, 7
        %v8891 = vsub.s32 %v8888, %v8890
        %v8892 = vrot.slane %v8870, %v8891
        %v8894 = vunpack.c.l.s4 1966171168
        %v8895 = vunpack.c.0.s8 %v8894
        %v8896 = vlaneseq
        %v8897 = vshrl.u32 %v8896, 7
        %v8898 = vsub.s32 %v8895, %v8897
        %v8899 = vrot.slane %v8871, %v8898
        %v8900 = vcombine.low %v8878, %v8885
        %v8901 = vcombine.low %v8892, %v8899
        %v8903 = vunpack.c.l.s4 1966171168
        %v8904 = vunpack.c.0.s8 %v8903
        %v8905 = vlaneseq
        %v8906 = vshrl.u32 %v8905, 7
        %v8907 = vsub.s32 %v8904, %v8906
        %v8908 = vrot.slane %v8900, %v8907
        %v8910 = vunpack.c.l.s4 1966171168
        %v8911 = vunpack.c.0.s8 %v8910
        %v8912 = vlaneseq
        %v8913 = vshrl.u32 %v8912, 7
        %v8914 = vsub.s32 %v8911, %v8913
        %v8915 = vrot.slane %v8901, %v8914
        %v8916 = vcombine.low %v8908, %v8915
        %v8917 = vcombine.low %v7862, %v7866
        %v8918 = vcombine.low %v7870, %v7874
        %v8919 = vcombine.low %v7878, %v7882
        %v8920 = vcombine.low %v7886, %v7890
        %v8922 = vunpack.c.l.s4 1966171168
        %v8923 = vunpack.c.0.s8 %v8922
        %v8924 = vlaneseq
        %v8925 = vshrl.u32 %v8924, 7
        %v8926 = vsub.s32 %v8923, %v8925
        %v8927 = vrot.slane %v8917, %v8926
        %v8929 = vunpack.c.l.s4 1966171168
        %v8930 = vunpack.c.0.s8 %v8929
        %v8931 = vlaneseq
        %v8932 = vshrl.u32 %v8931, 7
        %v8933 = vsub.s32 %v8930, %v8932
        %v8934 = vrot.slane %v8918, %v8933
        %v8936 = vunpack.c.l.s4 1966171168
        %v8937 = vunpack.c.0.s8 %v8936
        %v8938 = vlaneseq
        %v8939 = vshrl.u32 %v8938, 7
        %v8940 = vsub.s32 %v8937, %v8939
        %v8941 = vrot.slane %v8919, %v8940
        %v8943 = vunpack.c.l.s4 1966171168
        %v8944 = vunpack.c.0.s8 %v8943
        %v8945 = vlaneseq
        %v8946 = vshrl.u32 %v8945, 7
        %v8947 = vsub.s32 %v8944, %v8946
        %v8948 = vrot.slane %v8920, %v8947
        %v8949 = vcombine.low %v8927, %v8934
        %v8950 = vcombine.low %v8941, %v8948
        %v8952 = vunpack.c.l.s4 1966171168
        %v8953 = vunpack.c.0.s8 %v8952
        %v8954 = vlaneseq
        %v8955 = vshrl.u32 %v8954, 7
        %v8956 = vsub.s32 %v8953, %v8955
        %v8957 = vrot.slane %v8949, %v8956
        %v8959 = vunpack.c.l.s4 1966171168
        %v8960 = vunpack.c.0.s8 %v8959
        %v8961 = vlaneseq
        %v8962 = vshrl.u32 %v8961, 7
        %v8963 = vsub.s32 %v8960, %v8962
        %v8964 = vrot.slane %v8950, %v8963
        %v8965 = vcombine.low %v8957, %v8964
        %v8966 = vcombine.low %v7894, %v7898
        %v8967 = vcombine.low %v7902, %v7906
        %v8968 = vcombine.low %v7910, %v7914
        %v8969 = vcombine.low %v7918, %v7922
        %v8971 = vunpack.c.l.s4 1966171168
        %v8972 = vunpack.c.0.s8 %v8971
        %v8973 = vlaneseq
        %v8974 = vshrl.u32 %v8973, 7
        %v8975 = vsub.s32 %v8972, %v8974
        %v8976 = vrot.slane %v8966, %v8975
        %v8978 = vunpack.c.l.s4 1966171168
        %v8979 = vunpack.c.0.s8 %v8978
        %v8980 = vlaneseq
        %v8981 = vshrl.u32 %v8980, 7
        %v8982 = vsub.s32 %v8979, %v8981
        %v8983 = vrot.slane %v8967, %v8982
        %v8985 = vunpack.c.l.s4 1966171168
        %v8986 = vunpack.c.0.s8 %v8985
        %v8987 = vlaneseq
        %v8988 = vshrl.u32 %v8987, 7
        %v8989 = vsub.s32 %v8986, %v8988
        %v8990 = vrot.slane %v8968, %v8989
        %v8992 = vunpack.c.l.s4 1966171168
        %v8993 = vunpack.c.0.s8 %v8992
        %v8994 = vlaneseq
        %v8995 = vshrl.u32 %v8994, 7
        %v8996 = vsub.s32 %v8993, %v8995
        %v8997 = vrot.slane %v8969, %v8996
        %v8998 = vcombine.low %v8976, %v8983
        %v8999 = vcombine.low %v8990, %v8997
        %v9001 = vunpack.c.l.s4 1966171168
        %v9002 = vunpack.c.0.s8 %v9001
        %v9003 = vlaneseq
        %v9004 = vshrl.u32 %v9003, 7
        %v9005 = vsub.s32 %v9002, %v9004
        %v9006 = vrot.slane %v8998, %v9005
        %v9008 = vunpack.c.l.s4 1966171168
        %v9009 = vunpack.c.0.s8 %v9008
        %v9010 = vlaneseq
        %v9011 = vshrl.u32 %v9010, 7
        %v9012 = vsub.s32 %v9009, %v9011
        %v9013 = vrot.slane %v8999, %v9012
        %v9014 = vcombine.low %v9006, %v9013
        %v9015 = vcombine.low %v7926, %v7930
        %v9016 = vcombine.low %v7934, %v7938
        %v9017 = vcombine.low %v7942, %v7946
        %v9018 = vcombine.low %v7950, %v7954
        %v9020 = vunpack.c.l.s4 1966171168
        %v9021 = vunpack.c.0.s8 %v9020
        %v9022 = vlaneseq
        %v9023 = vshrl.u32 %v9022, 7
        %v9024 = vsub.s32 %v9021, %v9023
        %v9025 = vrot.slane %v9015, %v9024
        %v9027 = vunpack.c.l.s4 1966171168
        %v9028 = vunpack.c.0.s8 %v9027
        %v9029 = vlaneseq
        %v9030 = vshrl.u32 %v9029, 7
        %v9031 = vsub.s32 %v9028, %v9030
        %v9032 = vrot.slane %v9016, %v9031
        %v9034 = vunpack.c.l.s4 1966171168
        %v9035 = vunpack.c.0.s8 %v9034
        %v9036 = vlaneseq
        %v9037 = vshrl.u32 %v9036, 7
        %v9038 = vsub.s32 %v9035, %v9037
        %v9039 = vrot.slane %v9017, %v9038
        %v9041 = vunpack.c.l.s4 1966171168
        %v9042 = vunpack.c.0.s8 %v9041
        %v9043 = vlaneseq
        %v9044 = vshrl.u32 %v9043, 7
        %v9045 = vsub.s32 %v9042, %v9044
        %v9046 = vrot.slane %v9018, %v9045
        %v9047 = vcombine.low %v9025, %v9032
        %v9048 = vcombine.low %v9039, %v9046
        %v9050 = vunpack.c.l.s4 1966171168
        %v9051 = vunpack.c.0.s8 %v9050
        %v9052 = vlaneseq
        %v9053 = vshrl.u32 %v9052, 7
        %v9054 = vsub.s32 %v9051, %v9053
        %v9055 = vrot.slane %v9047, %v9054
        %v9057 = vunpack.c.l.s4 1966171168
        %v9058 = vunpack.c.0.s8 %v9057
        %v9059 = vlaneseq
        %v9060 = vshrl.u32 %v9059, 7
        %v9061 = vsub.s32 %v9058, %v9060
        %v9062 = vrot.slane %v9048, %v9061
        %v9063 = vcombine.low %v9055, %v9062
        %v9064 = vcombine.low %v7958, %v7962
        %v9065 = vcombine.low %v7966, %v7970
        %v9066 = vcombine.low %v7974, %v7978
        %v9067 = vcombine.low %v7982, %v7986
        %v9069 = vunpack.c.l.s4 1966171168
        %v9070 = vunpack.c.0.s8 %v9069
        %v9071 = vlaneseq
        %v9072 = vshrl.u32 %v9071, 7
        %v9073 = vsub.s32 %v9070, %v9072
        %v9074 = vrot.slane %v9064, %v9073
        %v9076 = vunpack.c.l.s4 1966171168
        %v9077 = vunpack.c.0.s8 %v9076
        %v9078 = vlaneseq
        %v9079 = vshrl.u32 %v9078, 7
        %v9080 = vsub.s32 %v9077, %v9079
        %v9081 = vrot.slane %v9065, %v9080
        %v9083 = vunpack.c.l.s4 1966171168
        %v9084 = vunpack.c.0.s8 %v9083
        %v9085 = vlaneseq
        %v9086 = vshrl.u32 %v9085, 7
        %v9087 = vsub.s32 %v9084, %v9086
        %v9088 = vrot.slane %v9066, %v9087
        %v9090 = vunpack.c.l.s4 1966171168
        %v9091 = vunpack.c.0.s8 %v9090
        %v9092 = vlaneseq
        %v9093 = vshrl.u32 %v9092, 7
        %v9094 = vsub.s32 %v9091, %v9093
        %v9095 = vrot.slane %v9067, %v9094
        %v9096 = vcombine.low %v9074, %v9081
        %v9097 = vcombine.low %v9088, %v9095
        %v9099 = vunpack.c.l.s4 1966171168
        %v9100 = vunpack.c.0.s8 %v9099
        %v9101 = vlaneseq
        %v9102 = vshrl.u32 %v9101, 7
        %v9103 = vsub.s32 %v9100, %v9102
        %v9104 = vrot.slane %v9096, %v9103
        %v9106 = vunpack.c.l.s4 1966171168
        %v9107 = vunpack.c.0.s8 %v9106
        %v9108 = vlaneseq
        %v9109 = vshrl.u32 %v9108, 7
        %v9110 = vsub.s32 %v9107, %v9109
        %v9111 = vrot.slane %v9097, %v9110
        %v9112 = vcombine.low %v9104, %v9111
        %v9113 = vcombine.low %v7990, %v7994
        %v9114 = vcombine.low %v7998, %v8002
        %v9115 = vcombine.low %v8006, %v8010
        %v9116 = vcombine.low %v8014, %v8018
        %v9118 = vunpack.c.l.s4 1966171168
        %v9119 = vunpack.c.0.s8 %v9118
        %v9120 = vlaneseq
        %v9121 = vshrl.u32 %v9120, 7
        %v9122 = vsub.s32 %v9119, %v9121
        %v9123 = vrot.slane %v9113, %v9122
        %v9125 = vunpack.c.l.s4 1966171168
        %v9126 = vunpack.c.0.s8 %v9125
        %v9127 = vlaneseq
        %v9128 = vshrl.u32 %v9127, 7
        %v9129 = vsub.s32 %v9126, %v9128
        %v9130 = vrot.slane %v9114, %v9129
        %v9132 = vunpack.c.l.s4 1966171168
        %v9133 = vunpack.c.0.s8 %v9132
        %v9134 = vlaneseq
        %v9135 = vshrl.u32 %v9134, 7
        %v9136 = vsub.s32 %v9133, %v9135
        %v9137 = vrot.slane %v9115, %v9136
        %v9139 = vunpack.c.l.s4 1966171168
        %v9140 = vunpack.c.0.s8 %v9139
        %v9141 = vlaneseq
        %v9142 = vshrl.u32 %v9141, 7
        %v9143 = vsub.s32 %v9140, %v9142
        %v9144 = vrot.slane %v9116, %v9143
        %v9145 = vcombine.low %v9123, %v9130
        %v9146 = vcombine.low %v9137, %v9144
        %v9148 = vunpack.c.l.s4 1966171168
        %v9149 = vunpack.c.0.s8 %v9148
        %v9150 = vlaneseq
        %v9151 = vshrl.u32 %v9150, 7
        %v9152 = vsub.s32 %v9149, %v9151
        %v9153 = vrot.slane %v9145, %v9152
        %v9155 = vunpack.c.l.s4 1966171168
        %v9156 = vunpack.c.0.s8 %v9155
        %v9157 = vlaneseq
        %v9158 = vshrl.u32 %v9157, 7
        %v9159 = vsub.s32 %v9156, %v9158
        %v9160 = vrot.slane %v9146, %v9159
        %v9161 = vcombine.low %v9153, %v9160
        %v9162 = vcombine.low %v8022, %v8026
        %v9163 = vcombine.low %v8030, %v8034
        %v9164 = vcombine.low %v8038, %v8042
        %v9165 = vcombine.low %v8046, %v8050
        %v9167 = vunpack.c.l.s4 1966171168
        %v9168 = vunpack.c.0.s8 %v9167
        %v9169 = vlaneseq
        %v9170 = vshrl.u32 %v9169, 7
        %v9171 = vsub.s32 %v9168, %v9170
        %v9172 = vrot.slane %v9162, %v9171
        %v9174 = vunpack.c.l.s4 1966171168
        %v9175 = vunpack.c.0.s8 %v9174
        %v9176 = vlaneseq
        %v9177 = vshrl.u32 %v9176, 7
        %v9178 = vsub.s32 %v9175, %v9177
        %v9179 = vrot.slane %v9163, %v9178
        %v9181 = vunpack.c.l.s4 1966171168
        %v9182 = vunpack.c.0.s8 %v9181
        %v9183 = vlaneseq
        %v9184 = vshrl.u32 %v9183, 7
        %v9185 = vsub.s32 %v9182, %v9184
        %v9186 = vrot.slane %v9164, %v9185
        %v9188 = vunpack.c.l.s4 1966171168
        %v9189 = vunpack.c.0.s8 %v9188
        %v9190 = vlaneseq
        %v9191 = vshrl.u32 %v9190, 7
        %v9192 = vsub.s32 %v9189, %v9191
        %v9193 = vrot.slane %v9165, %v9192
        %v9194 = vcombine.low %v9172, %v9179
        %v9195 = vcombine.low %v9186, %v9193
        %v9197 = vunpack.c.l.s4 1966171168
        %v9198 = vunpack.c.0.s8 %v9197
        %v9199 = vlaneseq
        %v9200 = vshrl.u32 %v9199, 7
        %v9201 = vsub.s32 %v9198, %v9200
        %v9202 = vrot.slane %v9194, %v9201
        %v9204 = vunpack.c.l.s4 1966171168
        %v9205 = vunpack.c.0.s8 %v9204
        %v9206 = vlaneseq
        %v9207 = vshrl.u32 %v9206, 7
        %v9208 = vsub.s32 %v9205, %v9207
        %v9209 = vrot.slane %v9195, %v9208
        %v9210 = vcombine.low %v9202, %v9209
        %v9211 = vcombine.low %v8054, %v8058
        %v9212 = vcombine.low %v8062, %v8066
        %v9213 = vcombine.low %v8070, %v8074
        %v9214 = vcombine.low %v8078, %v8082
        %v9216 = vunpack.c.l.s4 1966171168
        %v9217 = vunpack.c.0.s8 %v9216
        %v9218 = vlaneseq
        %v9219 = vshrl.u32 %v9218, 7
        %v9220 = vsub.s32 %v9217, %v9219
        %v9221 = vrot.slane %v9211, %v9220
        %v9223 = vunpack.c.l.s4 1966171168
        %v9224 = vunpack.c.0.s8 %v9223
        %v9225 = vlaneseq
        %v9226 = vshrl.u32 %v9225, 7
        %v9227 = vsub.s32 %v9224, %v9226
        %v9228 = vrot.slane %v9212, %v9227
        %v9230 = vunpack.c.l.s4 1966171168
        %v9231 = vunpack.c.0.s8 %v9230
        %v9232 = vlaneseq
        %v9233 = vshrl.u32 %v9232, 7
        %v9234 = vsub.s32 %v9231, %v9233
        %v9235 = vrot.slane %v9213, %v9234
        %v9237 = vunpack.c.l.s4 1966171168
        %v9238 = vunpack.c.0.s8 %v9237
        %v9239 = vlaneseq
        %v9240 = vshrl.u32 %v9239, 7
        %v9241 = vsub.s32 %v9238, %v9240
        %v9242 = vrot.slane %v9214, %v9241
        %v9243 = vcombine.low %v9221, %v9228
        %v9244 = vcombine.low %v9235, %v9242
        %v9246 = vunpack.c.l.s4 1966171168
        %v9247 = vunpack.c.0.s8 %v9246
        %v9248 = vlaneseq
        %v9249 = vshrl.u32 %v9248, 7
        %v9250 = vsub.s32 %v9247, %v9249
        %v9251 = vrot.slane %v9243, %v9250
        %v9253 = vunpack.c.l.s4 1966171168
        %v9254 = vunpack.c.0.s8 %v9253
        %v9255 = vlaneseq
        %v9256 = vshrl.u32 %v9255, 7
        %v9257 = vsub.s32 %v9254, %v9256
        %v9258 = vrot.slane %v9244, %v9257
        %v9259 = vcombine.low %v9251, %v9258
        %v9260 = vcombine.low %v8086, %v8090
        %v9261 = vcombine.low %v8094, %v8098
        %v9262 = vcombine.low %v8102, %v8106
        %v9263 = vcombine.low %v8110, %v8114
        %v9265 = vunpack.c.l.s4 1966171168
        %v9266 = vunpack.c.0.s8 %v9265
        %v9267 = vlaneseq
        %v9268 = vshrl.u32 %v9267, 7
        %v9269 = vsub.s32 %v9266, %v9268
        %v9270 = vrot.slane %v9260, %v9269
        %v9272 = vunpack.c.l.s4 1966171168
        %v9273 = vunpack.c.0.s8 %v9272
        %v9274 = vlaneseq
        %v9275 = vshrl.u32 %v9274, 7
        %v9276 = vsub.s32 %v9273, %v9275
        %v9277 = vrot.slane %v9261, %v9276
        %v9279 = vunpack.c.l.s4 1966171168
        %v9280 = vunpack.c.0.s8 %v9279
        %v9281 = vlaneseq
        %v9282 = vshrl.u32 %v9281, 7
        %v9283 = vsub.s32 %v9280, %v9282
        %v9284 = vrot.slane %v9262, %v9283
        %v9286 = vunpack.c.l.s4 1966171168
        %v9287 = vunpack.c.0.s8 %v9286
        %v9288 = vlaneseq
        %v9289 = vshrl.u32 %v9288, 7
        %v9290 = vsub.s32 %v9287, %v9289
        %v9291 = vrot.slane %v9263, %v9290
        %v9292 = vcombine.low %v9270, %v9277
        %v9293 = vcombine.low %v9284, %v9291
        %v9295 = vunpack.c.l.s4 1966171168
        %v9296 = vunpack.c.0.s8 %v9295
        %v9297 = vlaneseq
        %v9298 = vshrl.u32 %v9297, 7
        %v9299 = vsub.s32 %v9296, %v9298
        %v9300 = vrot.slane %v9292, %v9299
        %v9302 = vunpack.c.l.s4 1966171168
        %v9303 = vunpack.c.0.s8 %v9302
        %v9304 = vlaneseq
        %v9305 = vshrl.u32 %v9304, 7
        %v9306 = vsub.s32 %v9303, %v9305
        %v9307 = vrot.slane %v9293, %v9306
        %v9308 = vcombine.low %v9300, %v9307
        %v9309 = vcombine.low %v8118, %v8122
        %v9310 = vcombine.low %v8126, %v8130
        %v9311 = vcombine.low %v8134, %v8138
        %v9312 = vcombine.low %v8142, %v8146
        %v9314 = vunpack.c.l.s4 1966171168
        %v9315 = vunpack.c.0.s8 %v9314
        %v9316 = vlaneseq
        %v9317 = vshrl.u32 %v9316, 7
        %v9318 = vsub.s32 %v9315, %v9317
        %v9319 = vrot.slane %v9309, %v9318
        %v9321 = vunpack.c.l.s4 1966171168
        %v9322 = vunpack.c.0.s8 %v9321
        %v9323 = vlaneseq
        %v9324 = vshrl.u32 %v9323, 7
        %v9325 = vsub.s32 %v9322, %v9324
        %v9326 = vrot.slane %v9310, %v9325
        %v9328 = vunpack.c.l.s4 1966171168
        %v9329 = vunpack.c.0.s8 %v9328
        %v9330 = vlaneseq
        %v9331 = vshrl.u32 %v9330, 7
        %v9332 = vsub.s32 %v9329, %v9331
        %v9333 = vrot.slane %v9311, %v9332
        %v9335 = vunpack.c.l.s4 1966171168
        %v9336 = vunpack.c.0.s8 %v9335
        %v9337 = vlaneseq
        %v9338 = vshrl.u32 %v9337, 7
        %v9339 = vsub.s32 %v9336, %v9338
        %v9340 = vrot.slane %v9312, %v9339
        %v9341 = vcombine.low %v9319, %v9326
        %v9342 = vcombine.low %v9333, %v9340
        %v9344 = vunpack.c.l.s4 1966171168
        %v9345 = vunpack.c.0.s8 %v9344
        %v9346 = vlaneseq
        %v9347 = vshrl.u32 %v9346, 7
        %v9348 = vsub.s32 %v9345, %v9347
        %v9349 = vrot.slane %v9341, %v9348
        %v9351 = vunpack.c.l.s4 1966171168
        %v9352 = vunpack.c.0.s8 %v9351
        %v9353 = vlaneseq
        %v9354 = vshrl.u32 %v9353, 7
        %v9355 = vsub.s32 %v9352, %v9354
        %v9356 = vrot.slane %v9342, %v9355
        %v9357 = vcombine.low %v9349, %v9356
        %v9358 = vcombine.low %v8150, %v8154
        %v9359 = vcombine.low %v8158, %v8162
        %v9360 = vcombine.low %v8166, %v8170
        %v9361 = vcombine.low %v8174, %v8178
        %v9363 = vunpack.c.l.s4 1966171168
        %v9364 = vunpack.c.0.s8 %v9363
        %v9365 = vlaneseq
        %v9366 = vshrl.u32 %v9365, 7
        %v9367 = vsub.s32 %v9364, %v9366
        %v9368 = vrot.slane %v9358, %v9367
        %v9370 = vunpack.c.l.s4 1966171168
        %v9371 = vunpack.c.0.s8 %v9370
        %v9372 = vlaneseq
        %v9373 = vshrl.u32 %v9372, 7
        %v9374 = vsub.s32 %v9371, %v9373
        %v9375 = vrot.slane %v9359, %v9374
        %v9377 = vunpack.c.l.s4 1966171168
        %v9378 = vunpack.c.0.s8 %v9377
        %v9379 = vlaneseq
        %v9380 = vshrl.u32 %v9379, 7
        %v9381 = vsub.s32 %v9378, %v9380
        %v9382 = vrot.slane %v9360, %v9381
        %v9384 = vunpack.c.l.s4 1966171168
        %v9385 = vunpack.c.0.s8 %v9384
        %v9386 = vlaneseq
        %v9387 = vshrl.u32 %v9386, 7
        %v9388 = vsub.s32 %v9385, %v9387
        %v9389 = vrot.slane %v9361, %v9388
        %v9390 = vcombine.low %v9368, %v9375
        %v9391 = vcombine.low %v9382, %v9389
        %v9393 = vunpack.c.l.s4 1966171168
        %v9394 = vunpack.c.0.s8 %v9393
        %v9395 = vlaneseq
        %v9396 = vshrl.u32 %v9395, 7
        %v9397 = vsub.s32 %v9394, %v9396
        %v9398 = vrot.slane %v9390, %v9397
        %v9400 = vunpack.c.l.s4 1966171168
        %v9401 = vunpack.c.0.s8 %v9400
        %v9402 = vlaneseq
        %v9403 = vshrl.u32 %v9402, 7
        %v9404 = vsub.s32 %v9401, %v9403
        %v9405 = vrot.slane %v9391, %v9404
        %v9406 = vcombine.low %v9398, %v9405
        %v9407 = vcombine.low %v8182, %v8186
        %v9408 = vcombine.low %v8190, %v8194
        %v9409 = vcombine.low %v8198, %v8202
        %v9410 = vcombine.low %v8206, %v8210
        %v9412 = vunpack.c.l.s4 1966171168
        %v9413 = vunpack.c.0.s8 %v9412
        %v9414 = vlaneseq
        %v9415 = vshrl.u32 %v9414, 7
        %v9416 = vsub.s32 %v9413, %v9415
        %v9417 = vrot.slane %v9407, %v9416
        %v9419 = vunpack.c.l.s4 1966171168
        %v9420 = vunpack.c.0.s8 %v9419
        %v9421 = vlaneseq
        %v9422 = vshrl.u32 %v9421, 7
        %v9423 = vsub.s32 %v9420, %v9422
        %v9424 = vrot.slane %v9408, %v9423
        %v9426 = vunpack.c.l.s4 1966171168
        %v9427 = vunpack.c.0.s8 %v9426
        %v9428 = vlaneseq
        %v9429 = vshrl.u32 %v9428, 7
        %v9430 = vsub.s32 %v9427, %v9429
        %v9431 = vrot.slane %v9409, %v9430
        %v9433 = vunpack.c.l.s4 1966171168
        %v9434 = vunpack.c.0.s8 %v9433
        %v9435 = vlaneseq
        %v9436 = vshrl.u32 %v9435, 7
        %v9437 = vsub.s32 %v9434, %v9436
        %v9438 = vrot.slane %v9410, %v9437
        %v9439 = vcombine.low %v9417, %v9424
        %v9440 = vcombine.low %v9431, %v9438
        %v9442 = vunpack.c.l.s4 1966171168
        %v9443 = vunpack.c.0.s8 %v9442
        %v9444 = vlaneseq
        %v9445 = vshrl.u32 %v9444, 7
        %v9446 = vsub.s32 %v9443, %v9445
        %v9447 = vrot.slane %v9439, %v9446
        %v9449 = vunpack.c.l.s4 1966171168
        %v9450 = vunpack.c.0.s8 %v9449
        %v9451 = vlaneseq
        %v9452 = vshrl.u32 %v9451, 7
        %v9453 = vsub.s32 %v9450, %v9452
        %v9454 = vrot.slane %v9440, %v9453
        %v9455 = vcombine.low %v9447, %v9454
        %v9456 = vcombine.low %v8214, %v8218
        %v9457 = vcombine.low %v8222, %v8226
        %v9458 = vcombine.low %v8230, %v8234
        %v9459 = vcombine.low %v8238, %v8242
        %v9461 = vunpack.c.l.s4 1966171168
        %v9462 = vunpack.c.0.s8 %v9461
        %v9463 = vlaneseq
        %v9464 = vshrl.u32 %v9463, 7
        %v9465 = vsub.s32 %v9462, %v9464
        %v9466 = vrot.slane %v9456, %v9465
        %v9468 = vunpack.c.l.s4 1966171168
        %v9469 = vunpack.c.0.s8 %v9468
        %v9470 = vlaneseq
        %v9471 = vshrl.u32 %v9470, 7
        %v9472 = vsub.s32 %v9469, %v9471
        %v9473 = vrot.slane %v9457, %v9472
        %v9475 = vunpack.c.l.s4 1966171168
        %v9476 = vunpack.c.0.s8 %v9475
        %v9477 = vlaneseq
        %v9478 = vshrl.u32 %v9477, 7
        %v9479 = vsub.s32 %v9476, %v9478
        %v9480 = vrot.slane %v9458, %v9479
        %v9482 = vunpack.c.l.s4 1966171168
        %v9483 = vunpack.c.0.s8 %v9482
        %v9484 = vlaneseq
        %v9485 = vshrl.u32 %v9484, 7
        %v9486 = vsub.s32 %v9483, %v9485
        %v9487 = vrot.slane %v9459, %v9486
        %v9488 = vcombine.low %v9466, %v9473
        %v9489 = vcombine.low %v9480, %v9487
        %v9491 = vunpack.c.l.s4 1966171168
        %v9492 = vunpack.c.0.s8 %v9491
        %v9493 = vlaneseq
        %v9494 = vshrl.u32 %v9493, 7
        %v9495 = vsub.s32 %v9492, %v9494
        %v9496 = vrot.slane %v9488, %v9495
        %v9498 = vunpack.c.l.s4 1966171168
        %v9499 = vunpack.c.0.s8 %v9498
        %v9500 = vlaneseq
        %v9501 = vshrl.u32 %v9500, 7
        %v9502 = vsub.s32 %v9499, %v9501
        %v9503 = vrot.slane %v9489, %v9502
        %v9504 = vcombine.low %v9496, %v9503
        %v9505 = vcombine.low %v8246, %v8250
        %v9506 = vcombine.low %v8254, %v8258
        %v9507 = vcombine.low %v8262, %v8266
        %v9508 = vcombine.low %v8270, %v8274
        %v9510 = vunpack.c.l.s4 1966171168
        %v9511 = vunpack.c.0.s8 %v9510
        %v9512 = vlaneseq
        %v9513 = vshrl.u32 %v9512, 7
        %v9514 = vsub.s32 %v9511, %v9513
        %v9515 = vrot.slane %v9505, %v9514
        %v9517 = vunpack.c.l.s4 1966171168
        %v9518 = vunpack.c.0.s8 %v9517
        %v9519 = vlaneseq
        %v9520 = vshrl.u32 %v9519, 7
        %v9521 = vsub.s32 %v9518, %v9520
        %v9522 = vrot.slane %v9506, %v9521
        %v9524 = vunpack.c.l.s4 1966171168
        %v9525 = vunpack.c.0.s8 %v9524
        %v9526 = vlaneseq
        %v9527 = vshrl.u32 %v9526, 7
        %v9528 = vsub.s32 %v9525, %v9527
        %v9529 = vrot.slane %v9507, %v9528
        %v9531 = vunpack.c.l.s4 1966171168
        %v9532 = vunpack.c.0.s8 %v9531
        %v9533 = vlaneseq
        %v9534 = vshrl.u32 %v9533, 7
        %v9535 = vsub.s32 %v9532, %v9534
        %v9536 = vrot.slane %v9508, %v9535
        %v9537 = vcombine.low %v9515, %v9522
        %v9538 = vcombine.low %v9529, %v9536
        %v9540 = vunpack.c.l.s4 1966171168
        %v9541 = vunpack.c.0.s8 %v9540
        %v9542 = vlaneseq
        %v9543 = vshrl.u32 %v9542, 7
        %v9544 = vsub.s32 %v9541, %v9543
        %v9545 = vrot.slane %v9537, %v9544
        %v9547 = vunpack.c.l.s4 1966171168
        %v9548 = vunpack.c.0.s8 %v9547
        %v9549 = vlaneseq
        %v9550 = vshrl.u32 %v9549, 7
        %v9551 = vsub.s32 %v9548, %v9550
        %v9552 = vrot.slane %v9538, %v9551
        %v9553 = vcombine.low %v9545, %v9552
        %v9554 = vcombine.low %v8278, %v8282
        %v9555 = vcombine.low %v8286, %v8290
        %v9556 = vcombine.low %v8294, %v8298
        %v9557 = vcombine.low %v8302, %v8306
        %v9559 = vunpack.c.l.s4 1966171168
        %v9560 = vunpack.c.0.s8 %v9559
        %v9561 = vlaneseq
        %v9562 = vshrl.u32 %v9561, 7
        %v9563 = vsub.s32 %v9560, %v9562
        %v9564 = vrot.slane %v9554, %v9563
        %v9566 = vunpack.c.l.s4 1966171168
        %v9567 = vunpack.c.0.s8 %v9566
        %v9568 = vlaneseq
        %v9569 = vshrl.u32 %v9568, 7
        %v9570 = vsub.s32 %v9567, %v9569
        %v9571 = vrot.slane %v9555, %v9570
        %v9573 = vunpack.c.l.s4 1966171168
        %v9574 = vunpack.c.0.s8 %v9573
        %v9575 = vlaneseq
        %v9576 = vshrl.u32 %v9575, 7
        %v9577 = vsub.s32 %v9574, %v9576
        %v9578 = vrot.slane %v9556, %v9577
        %v9580 = vunpack.c.l.s4 1966171168
        %v9581 = vunpack.c.0.s8 %v9580
        %v9582 = vlaneseq
        %v9583 = vshrl.u32 %v9582, 7
        %v9584 = vsub.s32 %v9581, %v9583
        %v9585 = vrot.slane %v9557, %v9584
        %v9586 = vcombine.low %v9564, %v9571
        %v9587 = vcombine.low %v9578, %v9585
        %v9589 = vunpack.c.l.s4 1966171168
        %v9590 = vunpack.c.0.s8 %v9589
        %v9591 = vlaneseq
        %v9592 = vshrl.u32 %v9591, 7
        %v9593 = vsub.s32 %v9590, %v9592
        %v9594 = vrot.slane %v9586, %v9593
        %v9596 = vunpack.c.l.s4 1966171168
        %v9597 = vunpack.c.0.s8 %v9596
        %v9598 = vlaneseq
        %v9599 = vshrl.u32 %v9598, 7
        %v9600 = vsub.s32 %v9597, %v9599
        %v9601 = vrot.slane %v9587, %v9600
        %v9602 = vcombine.low %v9594, %v9601
        %v9603 = vcombine.low %v8310, %v8314
        %v9604 = vcombine.low %v8318, %v8322
        %v9605 = vcombine.low %v8326, %v8330
        %v9606 = vcombine.low %v8334, %v8338
        %v9608 = vunpack.c.l.s4 1966171168
        %v9609 = vunpack.c.0.s8 %v9608
        %v9610 = vlaneseq
        %v9611 = vshrl.u32 %v9610, 7
        %v9612 = vsub.s32 %v9609, %v9611
        %v9613 = vrot.slane %v9603, %v9612
        %v9615 = vunpack.c.l.s4 1966171168
        %v9616 = vunpack.c.0.s8 %v9615
        %v9617 = vlaneseq
        %v9618 = vshrl.u32 %v9617, 7
        %v9619 = vsub.s32 %v9616, %v9618
        %v9620 = vrot.slane %v9604, %v9619
        %v9622 = vunpack.c.l.s4 1966171168
        %v9623 = vunpack.c.0.s8 %v9622
        %v9624 = vlaneseq
        %v9625 = vshrl.u32 %v9624, 7
        %v9626 = vsub.s32 %v9623, %v9625
        %v9627 = vrot.slane %v9605, %v9626
        %v9629 = vunpack.c.l.s4 1966171168
        %v9630 = vunpack.c.0.s8 %v9629
        %v9631 = vlaneseq
        %v9632 = vshrl.u32 %v9631, 7
        %v9633 = vsub.s32 %v9630, %v9632
        %v9634 = vrot.slane %v9606, %v9633
        %v9635 = vcombine.low %v9613, %v9620
        %v9636 = vcombine.low %v9627, %v9634
        %v9638 = vunpack.c.l.s4 1966171168
        %v9639 = vunpack.c.0.s8 %v9638
        %v9640 = vlaneseq
        %v9641 = vshrl.u32 %v9640, 7
        %v9642 = vsub.s32 %v9639, %v9641
        %v9643 = vrot.slane %v9635, %v9642
        %v9645 = vunpack.c.l.s4 1966171168
        %v9646 = vunpack.c.0.s8 %v9645
        %v9647 = vlaneseq
        %v9648 = vshrl.u32 %v9647, 7
        %v9649 = vsub.s32 %v9646, %v9648
        %v9650 = vrot.slane %v9636, %v9649
        %v9651 = vcombine.low %v9643, %v9650
        %v9652 = vcombine.low %v8342, %v8346
        %v9653 = vcombine.low %v8350, %v8354
        %v9654 = vcombine.low %v8358, %v8362
        %v9655 = vcombine.low %v8366, %v8370
        %v9657 = vunpack.c.l.s4 1966171168
        %v9658 = vunpack.c.0.s8 %v9657
        %v9659 = vlaneseq
        %v9660 = vshrl.u32 %v9659, 7
        %v9661 = vsub.s32 %v9658, %v9660
        %v9662 = vrot.slane %v9652, %v9661
        %v9664 = vunpack.c.l.s4 1966171168
        %v9665 = vunpack.c.0.s8 %v9664
        %v9666 = vlaneseq
        %v9667 = vshrl.u32 %v9666, 7
        %v9668 = vsub.s32 %v9665, %v9667
        %v9669 = vrot.slane %v9653, %v9668
        %v9671 = vunpack.c.l.s4 1966171168
        %v9672 = vunpack.c.0.s8 %v9671
        %v9673 = vlaneseq
        %v9674 = vshrl.u32 %v9673, 7
        %v9675 = vsub.s32 %v9672, %v9674
        %v9676 = vrot.slane %v9654, %v9675
        %v9678 = vunpack.c.l.s4 1966171168
        %v9679 = vunpack.c.0.s8 %v9678
        %v9680 = vlaneseq
        %v9681 = vshrl.u32 %v9680, 7
        %v9682 = vsub.s32 %v9679, %v9681
        %v9683 = vrot.slane %v9655, %v9682
        %v9684 = vcombine.low %v9662, %v9669
        %v9685 = vcombine.low %v9676, %v9683
        %v9687 = vunpack.c.l.s4 1966171168
        %v9688 = vunpack.c.0.s8 %v9687
        %v9689 = vlaneseq
        %v9690 = vshrl.u32 %v9689, 7
        %v9691 = vsub.s32 %v9688, %v9690
        %v9692 = vrot.slane %v9684, %v9691
        %v9694 = vunpack.c.l.s4 1966171168
        %v9695 = vunpack.c.0.s8 %v9694
        %v9696 = vlaneseq
        %v9697 = vshrl.u32 %v9696, 7
        %v9698 = vsub.s32 %v9695, %v9697
        %v9699 = vrot.slane %v9685, %v9698
        %v9700 = vcombine.low %v9692, %v9699
        %v9701 = vcombine.low %v8374, %v8378
        %v9702 = vcombine.low %v8382, %v8386
        %v9703 = vcombine.low %v8390, %v8394
        %v9704 = vcombine.low %v8398, %v8402
        %v9706 = vunpack.c.l.s4 1966171168
        %v9707 = vunpack.c.0.s8 %v9706
        %v9708 = vlaneseq
        %v9709 = vshrl.u32 %v9708, 7
        %v9710 = vsub.s32 %v9707, %v9709
        %v9711 = vrot.slane %v9701, %v9710
        %v9713 = vunpack.c.l.s4 1966171168
        %v9714 = vunpack.c.0.s8 %v9713
        %v9715 = vlaneseq
        %v9716 = vshrl.u32 %v9715, 7
        %v9717 = vsub.s32 %v9714, %v9716
        %v9718 = vrot.slane %v9702, %v9717
        %v9720 = vunpack.c.l.s4 1966171168
        %v9721 = vunpack.c.0.s8 %v9720
        %v9722 = vlaneseq
        %v9723 = vshrl.u32 %v9722, 7
        %v9724 = vsub.s32 %v9721, %v9723
        %v9725 = vrot.slane %v9703, %v9724
        %v9727 = vunpack.c.l.s4 1966171168
        %v9728 = vunpack.c.0.s8 %v9727
        %v9729 = vlaneseq
        %v9730 = vshrl.u32 %v9729, 7
        %v9731 = vsub.s32 %v9728, %v9730
        %v9732 = vrot.slane %v9704, %v9731
        %v9733 = vcombine.low %v9711, %v9718
        %v9734 = vcombine.low %v9725, %v9732
        %v9736 = vunpack.c.l.s4 1966171168
        %v9737 = vunpack.c.0.s8 %v9736
        %v9738 = vlaneseq
        %v9739 = vshrl.u32 %v9738, 7
        %v9740 = vsub.s32 %v9737, %v9739
        %v9741 = vrot.slane %v9733, %v9740
        %v9743 = vunpack.c.l.s4 1966171168
        %v9744 = vunpack.c.0.s8 %v9743
        %v9745 = vlaneseq
        %v9746 = vshrl.u32 %v9745, 7
        %v9747 = vsub.s32 %v9744, %v9746
        %v9748 = vrot.slane %v9734, %v9747
        %v9749 = vcombine.low %v9741, %v9748
        %v9750 = vcombine.low %v8406, %v8410
        %v9751 = vcombine.low %v8414, %v8418
        %v9752 = vcombine.low %v8422, %v8426
        %v9753 = vcombine.low %v8430, %v8434
        %v9755 = vunpack.c.l.s4 1966171168
        %v9756 = vunpack.c.0.s8 %v9755
        %v9757 = vlaneseq
        %v9758 = vshrl.u32 %v9757, 7
        %v9759 = vsub.s32 %v9756, %v9758
        %v9760 = vrot.slane %v9750, %v9759
        %v9762 = vunpack.c.l.s4 1966171168
        %v9763 = vunpack.c.0.s8 %v9762
        %v9764 = vlaneseq
        %v9765 = vshrl.u32 %v9764, 7
        %v9766 = vsub.s32 %v9763, %v9765
        %v9767 = vrot.slane %v9751, %v9766
        %v9769 = vunpack.c.l.s4 1966171168
        %v9770 = vunpack.c.0.s8 %v9769
        %v9771 = vlaneseq
        %v9772 = vshrl.u32 %v9771, 7
        %v9773 = vsub.s32 %v9770, %v9772
        %v9774 = vrot.slane %v9752, %v9773
        %v9776 = vunpack.c.l.s4 1966171168
        %v9777 = vunpack.c.0.s8 %v9776
        %v9778 = vlaneseq
        %v9779 = vshrl.u32 %v9778, 7
        %v9780 = vsub.s32 %v9777, %v9779
        %v9781 = vrot.slane %v9753, %v9780
        %v9782 = vcombine.low %v9760, %v9767
        %v9783 = vcombine.low %v9774, %v9781
        %v9785 = vunpack.c.l.s4 1966171168
        %v9786 = vunpack.c.0.s8 %v9785
        %v9787 = vlaneseq
        %v9788 = vshrl.u32 %v9787, 7
        %v9789 = vsub.s32 %v9786, %v9788
        %v9790 = vrot.slane %v9782, %v9789
        %v9792 = vunpack.c.l.s4 1966171168
        %v9793 = vunpack.c.0.s8 %v9792
        %v9794 = vlaneseq
        %v9795 = vshrl.u32 %v9794, 7
        %v9796 = vsub.s32 %v9793, %v9795
        %v9797 = vrot.slane %v9783, %v9796
        %v9798 = vcombine.low %v9790, %v9797
        %v9799 = vcombine.low %v8438, %v8442
        %v9800 = vcombine.low %v8446, %v8450
        %v9801 = vcombine.low %v8454, %v8458
        %v9802 = vcombine.low %v8462, %v8466
        %v9804 = vunpack.c.l.s4 1966171168
        %v9805 = vunpack.c.0.s8 %v9804
        %v9806 = vlaneseq
        %v9807 = vshrl.u32 %v9806, 7
        %v9808 = vsub.s32 %v9805, %v9807
        %v9809 = vrot.slane %v9799, %v9808
        %v9811 = vunpack.c.l.s4 1966171168
        %v9812 = vunpack.c.0.s8 %v9811
        %v9813 = vlaneseq
        %v9814 = vshrl.u32 %v9813, 7
        %v9815 = vsub.s32 %v9812, %v9814
        %v9816 = vrot.slane %v9800, %v9815
        %v9818 = vunpack.c.l.s4 1966171168
        %v9819 = vunpack.c.0.s8 %v9818
        %v9820 = vlaneseq
        %v9821 = vshrl.u32 %v9820, 7
        %v9822 = vsub.s32 %v9819, %v9821
        %v9823 = vrot.slane %v9801, %v9822
        %v9825 = vunpack.c.l.s4 1966171168
        %v9826 = vunpack.c.0.s8 %v9825
        %v9827 = vlaneseq
        %v9828 = vshrl.u32 %v9827, 7
        %v9829 = vsub.s32 %v9826, %v9828
        %v9830 = vrot.slane %v9802, %v9829
        %v9831 = vcombine.low %v9809, %v9816
        %v9832 = vcombine.low %v9823, %v9830
        %v9834 = vunpack.c.l.s4 1966171168
        %v9835 = vunpack.c.0.s8 %v9834
        %v9836 = vlaneseq
        %v9837 = vshrl.u32 %v9836, 7
        %v9838 = vsub.s32 %v9835, %v9837
        %v9839 = vrot.slane %v9831, %v9838
        %v9841 = vunpack.c.l.s4 1966171168
        %v9842 = vunpack.c.0.s8 %v9841
        %v9843 = vlaneseq
        %v9844 = vshrl.u32 %v9843, 7
        %v9845 = vsub.s32 %v9842, %v9844
        %v9846 = vrot.slane %v9832, %v9845
        %v9847 = vcombine.low %v9839, %v9846
        %v9848 = vcombine.low %v8470, %v8474
        %v9849 = vcombine.low %v8478, %v8482
        %v9850 = vcombine.low %v8486, %v8490
        %v9851 = vcombine.low %v8494, %v8498
        %v9853 = vunpack.c.l.s4 1966171168
        %v9854 = vunpack.c.0.s8 %v9853
        %v9855 = vlaneseq
        %v9856 = vshrl.u32 %v9855, 7
        %v9857 = vsub.s32 %v9854, %v9856
        %v9858 = vrot.slane %v9848, %v9857
        %v9860 = vunpack.c.l.s4 1966171168
        %v9861 = vunpack.c.0.s8 %v9860
        %v9862 = vlaneseq
        %v9863 = vshrl.u32 %v9862, 7
        %v9864 = vsub.s32 %v9861, %v9863
        %v9865 = vrot.slane %v9849, %v9864
        %v9867 = vunpack.c.l.s4 1966171168
        %v9868 = vunpack.c.0.s8 %v9867
        %v9869 = vlaneseq
        %v9870 = vshrl.u32 %v9869, 7
        %v9871 = vsub.s32 %v9868, %v9870
        %v9872 = vrot.slane %v9850, %v9871
        %v9874 = vunpack.c.l.s4 1966171168
        %v9875 = vunpack.c.0.s8 %v9874
        %v9876 = vlaneseq
        %v9877 = vshrl.u32 %v9876, 7
        %v9878 = vsub.s32 %v9875, %v9877
        %v9879 = vrot.slane %v9851, %v9878
        %v9880 = vcombine.low %v9858, %v9865
        %v9881 = vcombine.low %v9872, %v9879
        %v9883 = vunpack.c.l.s4 1966171168
        %v9884 = vunpack.c.0.s8 %v9883
        %v9885 = vlaneseq
        %v9886 = vshrl.u32 %v9885, 7
        %v9887 = vsub.s32 %v9884, %v9886
        %v9888 = vrot.slane %v9880, %v9887
        %v9890 = vunpack.c.l.s4 1966171168
        %v9891 = vunpack.c.0.s8 %v9890
        %v9892 = vlaneseq
        %v9893 = vshrl.u32 %v9892, 7
        %v9894 = vsub.s32 %v9891, %v9893
        %v9895 = vrot.slane %v9881, %v9894
        %v9896 = vcombine.low %v9888, %v9895
        %v9897 = vcombine.low %v8502, %v8506
        %v9898 = vcombine.low %v8510, %v8514
        %v9899 = vcombine.low %v8518, %v8522
        %v9900 = vcombine.low %v8526, %v8530
        %v9902 = vunpack.c.l.s4 1966171168
        %v9903 = vunpack.c.0.s8 %v9902
        %v9904 = vlaneseq
        %v9905 = vshrl.u32 %v9904, 7
        %v9906 = vsub.s32 %v9903, %v9905
        %v9907 = vrot.slane %v9897, %v9906
        %v9909 = vunpack.c.l.s4 1966171168
        %v9910 = vunpack.c.0.s8 %v9909
        %v9911 = vlaneseq
        %v9912 = vshrl.u32 %v9911, 7
        %v9913 = vsub.s32 %v9910, %v9912
        %v9914 = vrot.slane %v9898, %v9913
        %v9916 = vunpack.c.l.s4 1966171168
        %v9917 = vunpack.c.0.s8 %v9916
        %v9918 = vlaneseq
        %v9919 = vshrl.u32 %v9918, 7
        %v9920 = vsub.s32 %v9917, %v9919
        %v9921 = vrot.slane %v9899, %v9920
        %v9923 = vunpack.c.l.s4 1966171168
        %v9924 = vunpack.c.0.s8 %v9923
        %v9925 = vlaneseq
        %v9926 = vshrl.u32 %v9925, 7
        %v9927 = vsub.s32 %v9924, %v9926
        %v9928 = vrot.slane %v9900, %v9927
        %v9929 = vcombine.low %v9907, %v9914
        %v9930 = vcombine.low %v9921, %v9928
        %v9932 = vunpack.c.l.s4 1966171168
        %v9933 = vunpack.c.0.s8 %v9932
        %v9934 = vlaneseq
        %v9935 = vshrl.u32 %v9934, 7
        %v9936 = vsub.s32 %v9933, %v9935
        %v9937 = vrot.slane %v9929, %v9936
        %v9939 = vunpack.c.l.s4 1966171168
        %v9940 = vunpack.c.0.s8 %v9939
        %v9941 = vlaneseq
        %v9942 = vshrl.u32 %v9941, 7
        %v9943 = vsub.s32 %v9940, %v9942
        %v9944 = vrot.slane %v9930, %v9943
        %v9945 = vcombine.low %v9937, %v9944
        %v9946 = vcombine.low %v8534, %v8538
        %v9947 = vcombine.low %v8542, %v8546
        %v9948 = vcombine.low %v8550, %v8554
        %v9949 = vcombine.low %v8558, %v8562
        %v9951 = vunpack.c.l.s4 1966171168
        %v9952 = vunpack.c.0.s8 %v9951
        %v9953 = vlaneseq
        %v9954 = vshrl.u32 %v9953, 7
        %v9955 = vsub.s32 %v9952, %v9954
        %v9956 = vrot.slane %v9946, %v9955
        %v9958 = vunpack.c.l.s4 1966171168
        %v9959 = vunpack.c.0.s8 %v9958
        %v9960 = vlaneseq
        %v9961 = vshrl.u32 %v9960, 7
        %v9962 = vsub.s32 %v9959, %v9961
        %v9963 = vrot.slane %v9947, %v9962
        %v9965 = vunpack.c.l.s4 1966171168
        %v9966 = vunpack.c.0.s8 %v9965
        %v9967 = vlaneseq
        %v9968 = vshrl.u32 %v9967, 7
        %v9969 = vsub.s32 %v9966, %v9968
        %v9970 = vrot.slane %v9948, %v9969
        %v9972 = vunpack.c.l.s4 1966171168
        %v9973 = vunpack.c.0.s8 %v9972
        %v9974 = vlaneseq
        %v9975 = vshrl.u32 %v9974, 7
        %v9976 = vsub.s32 %v9973, %v9975
        %v9977 = vrot.slane %v9949, %v9976
        %v9978 = vcombine.low %v9956, %v9963
        %v9979 = vcombine.low %v9970, %v9977
        %v9981 = vunpack.c.l.s4 1966171168
        %v9982 = vunpack.c.0.s8 %v9981
        %v9983 = vlaneseq
        %v9984 = vshrl.u32 %v9983, 7
        %v9985 = vsub.s32 %v9982, %v9984
        %v9986 = vrot.slane %v9978, %v9985
        %v9988 = vunpack.c.l.s4 1966171168
        %v9989 = vunpack.c.0.s8 %v9988
        %v9990 = vlaneseq
        %v9991 = vshrl.u32 %v9990, 7
        %v9992 = vsub.s32 %v9989, %v9991
        %v9993 = vrot.slane %v9979, %v9992
        %v9994 = vcombine.low %v9986, %v9993
        %v9995 = vcombine.low %v8566, %v8570
        %v9996 = vcombine.low %v8574, %v8578
        %v9997 = vcombine.low %v8582, %v8586
        %v9998 = vcombine.low %v8590, %v8594
        %v10000 = vunpack.c.l.s4 1966171168
        %v10001 = vunpack.c.0.s8 %v10000
        %v10002 = vlaneseq
        %v10003 = vshrl.u32 %v10002, 7
        %v10004 = vsub.s32 %v10001, %v10003
        %v10005 = vrot.slane %v9995, %v10004
        %v10007 = vunpack.c.l.s4 1966171168
        %v10008 = vunpack.c.0.s8 %v10007
        %v10009 = vlaneseq
        %v10010 = vshrl.u32 %v10009, 7
        %v10011 = vsub.s32 %v10008, %v10010
        %v10012 = vrot.slane %v9996, %v10011
        %v10014 = vunpack.c.l.s4 1966171168
        %v10015 = vunpack.c.0.s8 %v10014
        %v10016 = vlaneseq
        %v10017 = vshrl.u32 %v10016, 7
        %v10018 = vsub.s32 %v10015, %v10017
        %v10019 = vrot.slane %v9997, %v10018
        %v10021 = vunpack.c.l.s4 1966171168
        %v10022 = vunpack.c.0.s8 %v10021
        %v10023 = vlaneseq
        %v10024 = vshrl.u32 %v10023, 7
        %v10025 = vsub.s32 %v10022, %v10024
        %v10026 = vrot.slane %v9998, %v10025
        %v10027 = vcombine.low %v10005, %v10012
        %v10028 = vcombine.low %v10019, %v10026
        %v10030 = vunpack.c.l.s4 1966171168
        %v10031 = vunpack.c.0.s8 %v10030
        %v10032 = vlaneseq
        %v10033 = vshrl.u32 %v10032, 7
        %v10034 = vsub.s32 %v10031, %v10033
        %v10035 = vrot.slane %v10027, %v10034
        %v10037 = vunpack.c.l.s4 1966171168
        %v10038 = vunpack.c.0.s8 %v10037
        %v10039 = vlaneseq
        %v10040 = vshrl.u32 %v10039, 7
        %v10041 = vsub.s32 %v10038, %v10040
        %v10042 = vrot.slane %v10028, %v10041
        %v10043 = vcombine.low %v10035, %v10042
        %v10044 = vcombine.low %v8598, %v8602
        %v10045 = vcombine.low %v8606, %v8610
        %v10046 = vcombine.low %v8614, %v8618
        %v10047 = vcombine.low %v8622, %v8626
        %v10049 = vunpack.c.l.s4 1966171168
        %v10050 = vunpack.c.0.s8 %v10049
        %v10051 = vlaneseq
        %v10052 = vshrl.u32 %v10051, 7
        %v10053 = vsub.s32 %v10050, %v10052
        %v10054 = vrot.slane %v10044, %v10053
        %v10056 = vunpack.c.l.s4 1966171168
        %v10057 = vunpack.c.0.s8 %v10056
        %v10058 = vlaneseq
        %v10059 = vshrl.u32 %v10058, 7
        %v10060 = vsub.s32 %v10057, %v10059
        %v10061 = vrot.slane %v10045, %v10060
        %v10063 = vunpack.c.l.s4 1966171168
        %v10064 = vunpack.c.0.s8 %v10063
        %v10065 = vlaneseq
        %v10066 = vshrl.u32 %v10065, 7
        %v10067 = vsub.s32 %v10064, %v10066
        %v10068 = vrot.slane %v10046, %v10067
        %v10070 = vunpack.c.l.s4 1966171168
        %v10071 = vunpack.c.0.s8 %v10070
        %v10072 = vlaneseq
        %v10073 = vshrl.u32 %v10072, 7
        %v10074 = vsub.s32 %v10071, %v10073
        %v10075 = vrot.slane %v10047, %v10074
        %v10076 = vcombine.low %v10054, %v10061
        %v10077 = vcombine.low %v10068, %v10075
        %v10079 = vunpack.c.l.s4 1966171168
        %v10080 = vunpack.c.0.s8 %v10079
        %v10081 = vlaneseq
        %v10082 = vshrl.u32 %v10081, 7
        %v10083 = vsub.s32 %v10080, %v10082
        %v10084 = vrot.slane %v10076, %v10083
        %v10086 = vunpack.c.l.s4 1966171168
        %v10087 = vunpack.c.0.s8 %v10086
        %v10088 = vlaneseq
        %v10089 = vshrl.u32 %v10088, 7
        %v10090 = vsub.s32 %v10087, %v10089
        %v10091 = vrot.slane %v10077, %v10090
        %v10092 = vcombine.low %v10084, %v10091
        %v10093 = vcombine.low %v8630, %v8634
        %v10094 = vcombine.low %v8638, %v8642
        %v10095 = vcombine.low %v8646, %v8650
        %v10096 = vcombine.low %v8654, %v8658
        %v10098 = vunpack.c.l.s4 1966171168
        %v10099 = vunpack.c.0.s8 %v10098
        %v10100 = vlaneseq
        %v10101 = vshrl.u32 %v10100, 7
        %v10102 = vsub.s32 %v10099, %v10101
        %v10103 = vrot.slane %v10093, %v10102
        %v10105 = vunpack.c.l.s4 1966171168
        %v10106 = vunpack.c.0.s8 %v10105
        %v10107 = vlaneseq
        %v10108 = vshrl.u32 %v10107, 7
        %v10109 = vsub.s32 %v10106, %v10108
        %v10110 = vrot.slane %v10094, %v10109
        %v10112 = vunpack.c.l.s4 1966171168
        %v10113 = vunpack.c.0.s8 %v10112
        %v10114 = vlaneseq
        %v10115 = vshrl.u32 %v10114, 7
        %v10116 = vsub.s32 %v10113, %v10115
        %v10117 = vrot.slane %v10095, %v10116
        %v10119 = vunpack.c.l.s4 1966171168
        %v10120 = vunpack.c.0.s8 %v10119
        %v10121 = vlaneseq
        %v10122 = vshrl.u32 %v10121, 7
        %v10123 = vsub.s32 %v10120, %v10122
        %v10124 = vrot.slane %v10096, %v10123
        %v10125 = vcombine.low %v10103, %v10110
        %v10126 = vcombine.low %v10117, %v10124
        %v10128 = vunpack.c.l.s4 1966171168
        %v10129 = vunpack.c.0.s8 %v10128
        %v10130 = vlaneseq
        %v10131 = vshrl.u32 %v10130, 7
        %v10132 = vsub.s32 %v10129, %v10131
        %v10133 = vrot.slane %v10125, %v10132
        %v10135 = vunpack.c.l.s4 1966171168
        %v10136 = vunpack.c.0.s8 %v10135
        %v10137 = vlaneseq
        %v10138 = vshrl.u32 %v10137, 7
        %v10139 = vsub.s32 %v10136, %v10138
        %v10140 = vrot.slane %v10126, %v10139
        %v10141 = vcombine.low %v10133, %v10140
        %v10142 = vcombine.low %v8662, %v8666
        %v10143 = vcombine.low %v8670, %v8674
        %v10144 = vcombine.low %v8678, %v8682
        %v10145 = vcombine.low %v8686, %v8690
        %v10147 = vunpack.c.l.s4 1966171168
        %v10148 = vunpack.c.0.s8 %v10147
        %v10149 = vlaneseq
        %v10150 = vshrl.u32 %v10149, 7
        %v10151 = vsub.s32 %v10148, %v10150
        %v10152 = vrot.slane %v10142, %v10151
        %v10154 = vunpack.c.l.s4 1966171168
        %v10155 = vunpack.c.0.s8 %v10154
        %v10156 = vlaneseq
        %v10157 = vshrl.u32 %v10156, 7
        %v10158 = vsub.s32 %v10155, %v10157
        %v10159 = vrot.slane %v10143, %v10158
        %v10161 = vunpack.c.l.s4 1966171168
        %v10162 = vunpack.c.0.s8 %v10161
        %v10163 = vlaneseq
        %v10164 = vshrl.u32 %v10163, 7
        %v10165 = vsub.s32 %v10162, %v10164
        %v10166 = vrot.slane %v10144, %v10165
        %v10168 = vunpack.c.l.s4 1966171168
        %v10169 = vunpack.c.0.s8 %v10168
        %v10170 = vlaneseq
        %v10171 = vshrl.u32 %v10170, 7
        %v10172 = vsub.s32 %v10169, %v10171
        %v10173 = vrot.slane %v10145, %v10172
        %v10174 = vcombine.low %v10152, %v10159
        %v10175 = vcombine.low %v10166, %v10173
        %v10177 = vunpack.c.l.s4 1966171168
        %v10178 = vunpack.c.0.s8 %v10177
        %v10179 = vlaneseq
        %v10180 = vshrl.u32 %v10179, 7
        %v10181 = vsub.s32 %v10178, %v10180
        %v10182 = vrot.slane %v10174, %v10181
        %v10184 = vunpack.c.l.s4 1966171168
        %v10185 = vunpack.c.0.s8 %v10184
        %v10186 = vlaneseq
        %v10187 = vshrl.u32 %v10186, 7
        %v10188 = vsub.s32 %v10185, %v10187
        %v10189 = vrot.slane %v10175, %v10188
        %v10190 = vcombine.low %v10182, %v10189
        %v10191 = vcombine.low %v8694, %v8698
        %v10192 = vcombine.low %v8702, %v8706
        %v10193 = vcombine.low %v8710, %v8714
        %v10194 = vcombine.low %v8718, %v8722
        %v10196 = vunpack.c.l.s4 1966171168
        %v10197 = vunpack.c.0.s8 %v10196
        %v10198 = vlaneseq
        %v10199 = vshrl.u32 %v10198, 7
        %v10200 = vsub.s32 %v10197, %v10199
        %v10201 = vrot.slane %v10191, %v10200
        %v10203 = vunpack.c.l.s4 1966171168
        %v10204 = vunpack.c.0.s8 %v10203
        %v10205 = vlaneseq
        %v10206 = vshrl.u32 %v10205, 7
        %v10207 = vsub.s32 %v10204, %v10206
        %v10208 = vrot.slane %v10192, %v10207
        %v10210 = vunpack.c.l.s4 1966171168
        %v10211 = vunpack.c.0.s8 %v10210
        %v10212 = vlaneseq
        %v10213 = vshrl.u32 %v10212, 7
        %v10214 = vsub.s32 %v10211, %v10213
        %v10215 = vrot.slane %v10193, %v10214
        %v10217 = vunpack.c.l.s4 1966171168
        %v10218 = vunpack.c.0.s8 %v10217
        %v10219 = vlaneseq
        %v10220 = vshrl.u32 %v10219, 7
        %v10221 = vsub.s32 %v10218, %v10220
        %v10222 = vrot.slane %v10194, %v10221
        %v10223 = vcombine.low %v10201, %v10208
        %v10224 = vcombine.low %v10215, %v10222
        %v10226 = vunpack.c.l.s4 1966171168
        %v10227 = vunpack.c.0.s8 %v10226
        %v10228 = vlaneseq
        %v10229 = vshrl.u32 %v10228, 7
        %v10230 = vsub.s32 %v10227, %v10229
        %v10231 = vrot.slane %v10223, %v10230
        %v10233 = vunpack.c.l.s4 1966171168
        %v10234 = vunpack.c.0.s8 %v10233
        %v10235 = vlaneseq
        %v10236 = vshrl.u32 %v10235, 7
        %v10237 = vsub.s32 %v10234, %v10236
        %v10238 = vrot.slane %v10224, %v10237
        %v10239 = vcombine.low %v10231, %v10238
        %v10240 = vcombine.low %v8726, %v8730
        %v10241 = vcombine.low %v8734, %v8738
        %v10242 = vcombine.low %v8742, %v8746
        %v10243 = vcombine.low %v8750, %v8754
        %v10245 = vunpack.c.l.s4 1966171168
        %v10246 = vunpack.c.0.s8 %v10245
        %v10247 = vlaneseq
        %v10248 = vshrl.u32 %v10247, 7
        %v10249 = vsub.s32 %v10246, %v10248
        %v10250 = vrot.slane %v10240, %v10249
        %v10252 = vunpack.c.l.s4 1966171168
        %v10253 = vunpack.c.0.s8 %v10252
        %v10254 = vlaneseq
        %v10255 = vshrl.u32 %v10254, 7
        %v10256 = vsub.s32 %v10253, %v10255
        %v10257 = vrot.slane %v10241, %v10256
        %v10259 = vunpack.c.l.s4 1966171168
        %v10260 = vunpack.c.0.s8 %v10259
        %v10261 = vlaneseq
        %v10262 = vshrl.u32 %v10261, 7
        %v10263 = vsub.s32 %v10260, %v10262
        %v10264 = vrot.slane %v10242, %v10263
        %v10266 = vunpack.c.l.s4 1966171168
        %v10267 = vunpack.c.0.s8 %v10266
        %v10268 = vlaneseq
        %v10269 = vshrl.u32 %v10268, 7
        %v10270 = vsub.s32 %v10267, %v10269
        %v10271 = vrot.slane %v10243, %v10270
        %v10272 = vcombine.low %v10250, %v10257
        %v10273 = vcombine.low %v10264, %v10271
        %v10275 = vunpack.c.l.s4 1966171168
        %v10276 = vunpack.c.0.s8 %v10275
        %v10277 = vlaneseq
        %v10278 = vshrl.u32 %v10277, 7
        %v10279 = vsub.s32 %v10276, %v10278
        %v10280 = vrot.slane %v10272, %v10279
        %v10282 = vunpack.c.l.s4 1966171168
        %v10283 = vunpack.c.0.s8 %v10282
        %v10284 = vlaneseq
        %v10285 = vshrl.u32 %v10284, 7
        %v10286 = vsub.s32 %v10283, %v10285
        %v10287 = vrot.slane %v10273, %v10286
        %v10288 = vcombine.low %v10280, %v10287
        %v10289 = vcombine.low %v8758, %v8762
        %v10290 = vcombine.low %v8766, %v8770
        %v10291 = vcombine.low %v8774, %v8778
        %v10292 = vcombine.low %v8782, %v8786
        %v10294 = vunpack.c.l.s4 1966171168
        %v10295 = vunpack.c.0.s8 %v10294
        %v10296 = vlaneseq
        %v10297 = vshrl.u32 %v10296, 7
        %v10298 = vsub.s32 %v10295, %v10297
        %v10299 = vrot.slane %v10289, %v10298
        %v10301 = vunpack.c.l.s4 1966171168
        %v10302 = vunpack.c.0.s8 %v10301
        %v10303 = vlaneseq
        %v10304 = vshrl.u32 %v10303, 7
        %v10305 = vsub.s32 %v10302, %v10304
        %v10306 = vrot.slane %v10290, %v10305
        %v10308 = vunpack.c.l.s4 1966171168
        %v10309 = vunpack.c.0.s8 %v10308
        %v10310 = vlaneseq
        %v10311 = vshrl.u32 %v10310, 7
        %v10312 = vsub.s32 %v10309, %v10311
        %v10313 = vrot.slane %v10291, %v10312
        %v10315 = vunpack.c.l.s4 1966171168
        %v10316 = vunpack.c.0.s8 %v10315
        %v10317 = vlaneseq
        %v10318 = vshrl.u32 %v10317, 7
        %v10319 = vsub.s32 %v10316, %v10318
        %v10320 = vrot.slane %v10292, %v10319
        %v10321 = vcombine.low %v10299, %v10306
        %v10322 = vcombine.low %v10313, %v10320
        %v10324 = vunpack.c.l.s4 1966171168
        %v10325 = vunpack.c.0.s8 %v10324
        %v10326 = vlaneseq
        %v10327 = vshrl.u32 %v10326, 7
        %v10328 = vsub.s32 %v10325, %v10327
        %v10329 = vrot.slane %v10321, %v10328
        %v10331 = vunpack.c.l.s4 1966171168
        %v10332 = vunpack.c.0.s8 %v10331
        %v10333 = vlaneseq
        %v10334 = vshrl.u32 %v10333, 7
        %v10335 = vsub.s32 %v10332, %v10334
        %v10336 = vrot.slane %v10322, %v10335
        %v10337 = vcombine.low %v10329, %v10336
        %v10338 = vcombine.low %v8790, %v8794
        %v10339 = vcombine.low %v8798, %v8802
        %v10340 = vcombine.low %v8806, %v8810
        %v10341 = vcombine.low %v8814, %v8818
        %v10343 = vunpack.c.l.s4 1966171168
        %v10344 = vunpack.c.0.s8 %v10343
        %v10345 = vlaneseq
        %v10346 = vshrl.u32 %v10345, 7
        %v10347 = vsub.s32 %v10344, %v10346
        %v10348 = vrot.slane %v10338, %v10347
        %v10350 = vunpack.c.l.s4 1966171168
        %v10351 = vunpack.c.0.s8 %v10350
        %v10352 = vlaneseq
        %v10353 = vshrl.u32 %v10352, 7
        %v10354 = vsub.s32 %v10351, %v10353
        %v10355 = vrot.slane %v10339, %v10354
        %v10357 = vunpack.c.l.s4 1966171168
        %v10358 = vunpack.c.0.s8 %v10357
        %v10359 = vlaneseq
        %v10360 = vshrl.u32 %v10359, 7
        %v10361 = vsub.s32 %v10358, %v10360
        %v10362 = vrot.slane %v10340, %v10361
        %v10364 = vunpack.c.l.s4 1966171168
        %v10365 = vunpack.c.0.s8 %v10364
        %v10366 = vlaneseq
        %v10367 = vshrl.u32 %v10366, 7
        %v10368 = vsub.s32 %v10365, %v10367
        %v10369 = vrot.slane %v10341, %v10368
        %v10370 = vcombine.low %v10348, %v10355
        %v10371 = vcombine.low %v10362, %v10369
        %v10373 = vunpack.c.l.s4 1966171168
        %v10374 = vunpack.c.0.s8 %v10373
        %v10375 = vlaneseq
        %v10376 = vshrl.u32 %v10375, 7
        %v10377 = vsub.s32 %v10374, %v10376
        %v10378 = vrot.slane %v10370, %v10377
        %v10380 = vunpack.c.l.s4 1966171168
        %v10381 = vunpack.c.0.s8 %v10380
        %v10382 = vlaneseq
        %v10383 = vshrl.u32 %v10382, 7
        %v10384 = vsub.s32 %v10381, %v10383
        %v10385 = vrot.slane %v10371, %v10384
        %v10386 = vcombine.low %v10378, %v10385
        %10387 = vset.pattern.permute.xlu0 0
        %10388 = vperm.xlu0 %10387, %v8867
        %v10389 = vpop.permute.xlu0 %10388
        %10390 = vset.pattern.permute.xlu0 0
        %10391 = vperm.xlu0 %10390, %v8916
        %v10392 = vpop.permute.xlu0 %10391
        %10393 = vset.pattern.permute.xlu0 0
        %10394 = vperm.xlu0 %10393, %v8965
        %v10395 = vpop.permute.xlu0 %10394
        %10396 = vset.pattern.permute.xlu0 0
        %10397 = vperm.xlu0 %10396, %v9014
        %v10398 = vpop.permute.xlu0 %10397
        %10399 = vset.pattern.permute.xlu0 0
        %10400 = vperm.xlu0 %10399, %v9063
        %v10401 = vpop.permute.xlu0 %10400
        %10402 = vset.pattern.permute.xlu0 0
        %10403 = vperm.xlu0 %10402, %v9112
        %v10404 = vpop.permute.xlu0 %10403
        %10405 = vset.pattern.permute.xlu0 0
        %10406 = vperm.xlu0 %10405, %v9161
        %v10407 = vpop.permute.xlu0 %10406
        %10408 = vset.pattern.permute.xlu0 0
        %10409 = vperm.xlu0 %10408, %v9210
        %v10410 = vpop.permute.xlu0 %10409
        %10411 = vset.pattern.permute.xlu0 0
        %10412 = vperm.xlu0 %10411, %v9259
        %v10413 = vpop.permute.xlu0 %10412
        %10414 = vset.pattern.permute.xlu0 0
        %10415 = vperm.xlu0 %10414, %v9308
        %v10416 = vpop.permute.xlu0 %10415
        %10417 = vset.pattern.permute.xlu0 0
        %10418 = vperm.xlu0 %10417, %v9357
        %v10419 = vpop.permute.xlu0 %10418
        %10420 = vset.pattern.permute.xlu0 0
        %10421 = vperm.xlu0 %10420, %v9406
        %v10422 = vpop.permute.xlu0 %10421
        %10423 = vset.pattern.permute.xlu0 0
        %10424 = vperm.xlu0 %10423, %v9455
        %v10425 = vpop.permute.xlu0 %10424
        %10426 = vset.pattern.permute.xlu0 0
        %10427 = vperm.xlu0 %10426, %v9504
        %v10428 = vpop.permute.xlu0 %10427
        %10429 = vset.pattern.permute.xlu0 0
        %10430 = vperm.xlu0 %10429, %v9553
        %v10431 = vpop.permute.xlu0 %10430
        %10432 = vset.pattern.permute.xlu0 0
        %10433 = vperm.xlu0 %10432, %v9602
        %v10434 = vpop.permute.xlu0 %10433
        %10435 = vset.pattern.permute.xlu0 0
        %10436 = vperm.xlu0 %10435, %v9651
        %v10437 = vpop.permute.xlu0 %10436
        %10438 = vset.pattern.permute.xlu0 0
        %10439 = vperm.xlu0 %10438, %v9700
        %v10440 = vpop.permute.xlu0 %10439
        %10441 = vset.pattern.permute.xlu0 0
        %10442 = vperm.xlu0 %10441, %v9749
        %v10443 = vpop.permute.xlu0 %10442
        %10444 = vset.pattern.permute.xlu0 0
        %10445 = vperm.xlu0 %10444, %v9798
        %v10446 = vpop.permute.xlu0 %10445
        %10447 = vset.pattern.permute.xlu0 0
        %10448 = vperm.xlu0 %10447, %v9847
        %v10449 = vpop.permute.xlu0 %10448
        %10450 = vset.pattern.permute.xlu0 0
        %10451 = vperm.xlu0 %10450, %v9896
        %v10452 = vpop.permute.xlu0 %10451
        %10453 = vset.pattern.permute.xlu0 0
        %10454 = vperm.xlu0 %10453, %v9945
        %v10455 = vpop.permute.xlu0 %10454
        %10456 = vset.pattern.permute.xlu0 0
        %10457 = vperm.xlu0 %10456, %v9994
        %v10458 = vpop.permute.xlu0 %10457
        %10459 = vset.pattern.permute.xlu0 0
        %10460 = vperm.xlu0 %10459, %v10043
        %v10461 = vpop.permute.xlu0 %10460
        %10462 = vset.pattern.permute.xlu0 0
        %10463 = vperm.xlu0 %10462, %v10092
        %v10464 = vpop.permute.xlu0 %10463
        %10465 = vset.pattern.permute.xlu0 0
        %10466 = vperm.xlu0 %10465, %v10141
        %v10467 = vpop.permute.xlu0 %10466
        %10468 = vset.pattern.permute.xlu0 0
        %10469 = vperm.xlu0 %10468, %v10190
        %v10470 = vpop.permute.xlu0 %10469
        %10471 = vset.pattern.permute.xlu0 0
        %10472 = vperm.xlu0 %10471, %v10239
        %v10473 = vpop.permute.xlu0 %10472
        %10474 = vset.pattern.permute.xlu0 0
        %10475 = vperm.xlu0 %10474, %v10288
        %v10476 = vpop.permute.xlu0 %10475
        %10477 = vset.pattern.permute.xlu0 0
        %10478 = vperm.xlu0 %10477, %v10337
        %v10479 = vpop.permute.xlu0 %10478
        %10480 = vset.pattern.permute.xlu0 0
        %10481 = vperm.xlu0 %10480, %v10386
        %v10482 = vpop.permute.xlu0 %10481
        %v10483 = vlaneseq
        %v10484 = vshrl.u32 %v10483, 7
        %v10485 = vsub.s32 %v328, %v10484
        %v10486 = vrot.slane %v10389, %v10485
        %v10487 = vlaneseq
        %v10488 = vshrl.u32 %v10487, 7
        %v10489 = vsub.s32 %v5316, %v10488
        %v10490 = vrot.slane %v10392, %v10489
        %v10491 = vsel %vm5321, %v10490, %v10486
        %v10492 = vlaneseq
        %v10493 = vshrl.u32 %v10492, 7
        %v10494 = vsub.s32 %v5323, %v10493
        %v10495 = vrot.slane %v10395, %v10494
        %v10496 = vsel %vm5328, %v10495, %v10491
        %v10497 = vlaneseq
        %v10498 = vshrl.u32 %v10497, 7
        %v10499 = vsub.s32 %v5330, %v10498
        %v10500 = vrot.slane %v10398, %v10499
        %v10501 = vsel %vm5335, %v10500, %v10496
        %v10502 = vlaneseq
        %v10503 = vshrl.u32 %v10502, 7
        %v10504 = vsub.s32 %v5337, %v10503
        %v10505 = vrot.slane %v10401, %v10504
        %v10506 = vsel %vm5342, %v10505, %v10501
        %v10507 = vlaneseq
        %v10508 = vshrl.u32 %v10507, 7
        %v10509 = vsub.s32 %v5344, %v10508
        %v10510 = vrot.slane %v10404, %v10509
        %v10511 = vsel %vm5349, %v10510, %v10506
        %v10512 = vlaneseq
        %v10513 = vshrl.u32 %v10512, 7
        %v10514 = vsub.s32 %v5351, %v10513
        %v10515 = vrot.slane %v10407, %v10514
        %v10516 = vsel %vm5356, %v10515, %v10511
        %v10517 = vlaneseq
        %v10518 = vshrl.u32 %v10517, 7
        %v10519 = vsub.s32 %v5358, %v10518
        %v10520 = vrot.slane %v10410, %v10519
        %v10521 = vsel %vm5363, %v10520, %v10516
        %v10522 = vlaneseq
        %v10523 = vshrl.u32 %v10522, 7
        %v10524 = vsub.s32 %v5365, %v10523
        %v10525 = vrot.slane %v10413, %v10524
        %v10526 = vsel %vm5370, %v10525, %v10521
        %v10527 = vlaneseq
        %v10528 = vshrl.u32 %v10527, 7
        %v10529 = vsub.s32 %v5372, %v10528
        %v10530 = vrot.slane %v10416, %v10529
        %v10531 = vsel %vm5377, %v10530, %v10526
        %v10532 = vlaneseq
        %v10533 = vshrl.u32 %v10532, 7
        %v10534 = vsub.s32 %v5379, %v10533
        %v10535 = vrot.slane %v10419, %v10534
        %v10536 = vsel %vm5384, %v10535, %v10531
        %v10537 = vlaneseq
        %v10538 = vshrl.u32 %v10537, 7
        %v10539 = vsub.s32 %v5386, %v10538
        %v10540 = vrot.slane %v10422, %v10539
        %v10541 = vsel %vm5391, %v10540, %v10536
        %v10542 = vlaneseq
        %v10543 = vshrl.u32 %v10542, 7
        %v10544 = vsub.s32 %v5393, %v10543
        %v10545 = vrot.slane %v10425, %v10544
        %v10546 = vsel %vm5398, %v10545, %v10541
        %v10547 = vlaneseq
        %v10548 = vshrl.u32 %v10547, 7
        %v10549 = vsub.s32 %v5400, %v10548
        %v10550 = vrot.slane %v10428, %v10549
        %v10551 = vsel %vm5405, %v10550, %v10546
        %v10552 = vlaneseq
        %v10553 = vshrl.u32 %v10552, 7
        %v10554 = vsub.s32 %v5407, %v10553
        %v10555 = vrot.slane %v10431, %v10554
        %v10556 = vsel %vm5412, %v10555, %v10551
        %v10557 = vlaneseq
        %v10558 = vshrl.u32 %v10557, 7
        %v10559 = vsub.s32 %v5414, %v10558
        %v10560 = vrot.slane %v10434, %v10559
        %v10561 = vsel %vm5419, %v10560, %v10556
        %v10562 = vlaneseq
        %v10563 = vshrl.u32 %v10562, 7
        %v10564 = vsub.s32 %v328, %v10563
        %v10565 = vrot.slane %v10437, %v10564
        %v10566 = vlaneseq
        %v10567 = vshrl.u32 %v10566, 7
        %v10568 = vsub.s32 %v5316, %v10567
        %v10569 = vrot.slane %v10440, %v10568
        %v10570 = vsel %vm5321, %v10569, %v10565
        %v10571 = vlaneseq
        %v10572 = vshrl.u32 %v10571, 7
        %v10573 = vsub.s32 %v5323, %v10572
        %v10574 = vrot.slane %v10443, %v10573
        %v10575 = vsel %vm5328, %v10574, %v10570
        %v10576 = vlaneseq
        %v10577 = vshrl.u32 %v10576, 7
        %v10578 = vsub.s32 %v5330, %v10577
        %v10579 = vrot.slane %v10446, %v10578
        %v10580 = vsel %vm5335, %v10579, %v10575
        %v10581 = vlaneseq
        %v10582 = vshrl.u32 %v10581, 7
        %v10583 = vsub.s32 %v5337, %v10582
        %v10584 = vrot.slane %v10449, %v10583
        %v10585 = vsel %vm5342, %v10584, %v10580
        %v10586 = vlaneseq
        %v10587 = vshrl.u32 %v10586, 7
        %v10588 = vsub.s32 %v5344, %v10587
        %v10589 = vrot.slane %v10452, %v10588
        %v10590 = vsel %vm5349, %v10589, %v10585
        %v10591 = vlaneseq
        %v10592 = vshrl.u32 %v10591, 7
        %v10593 = vsub.s32 %v5351, %v10592
        %v10594 = vrot.slane %v10455, %v10593
        %v10595 = vsel %vm5356, %v10594, %v10590
        %v10596 = vlaneseq
        %v10597 = vshrl.u32 %v10596, 7
        %v10598 = vsub.s32 %v5358, %v10597
        %v10599 = vrot.slane %v10458, %v10598
        %v10600 = vsel %vm5363, %v10599, %v10595
        %v10601 = vlaneseq
        %v10602 = vshrl.u32 %v10601, 7
        %v10603 = vsub.s32 %v5365, %v10602
        %v10604 = vrot.slane %v10461, %v10603
        %v10605 = vsel %vm5370, %v10604, %v10600
        %v10606 = vlaneseq
        %v10607 = vshrl.u32 %v10606, 7
        %v10608 = vsub.s32 %v5372, %v10607
        %v10609 = vrot.slane %v10464, %v10608
        %v10610 = vsel %vm5377, %v10609, %v10605
        %v10611 = vlaneseq
        %v10612 = vshrl.u32 %v10611, 7
        %v10613 = vsub.s32 %v5379, %v10612
        %v10614 = vrot.slane %v10467, %v10613
        %v10615 = vsel %vm5384, %v10614, %v10610
        %v10616 = vlaneseq
        %v10617 = vshrl.u32 %v10616, 7
        %v10618 = vsub.s32 %v5386, %v10617
        %v10619 = vrot.slane %v10470, %v10618
        %v10620 = vsel %vm5391, %v10619, %v10615
        %v10621 = vlaneseq
        %v10622 = vshrl.u32 %v10621, 7
        %v10623 = vsub.s32 %v5393, %v10622
        %v10624 = vrot.slane %v10473, %v10623
        %v10625 = vsel %vm5398, %v10624, %v10620
        %v10626 = vlaneseq
        %v10627 = vshrl.u32 %v10626, 7
        %v10628 = vsub.s32 %v5400, %v10627
        %v10629 = vrot.slane %v10476, %v10628
        %v10630 = vsel %vm5405, %v10629, %v10625
        %v10631 = vlaneseq
        %v10632 = vshrl.u32 %v10631, 7
        %v10633 = vsub.s32 %v5407, %v10632
        %v10634 = vrot.slane %v10479, %v10633
        %v10635 = vsel %vm5412, %v10634, %v10630
        %v10636 = vlaneseq
        %v10637 = vshrl.u32 %v10636, 7
        %v10638 = vsub.s32 %v5414, %v10637
        %v10639 = vrot.slane %v10482, %v10638
        %v10640 = vsel %vm5419, %v10639, %v10635
        %v10641 = vcombine.low %v10561, %v10640
        %v10643 = vunpack.c.l.s4 1966171168
        %v10644 = vunpack.c.0.s8 %v10643
        %v10645 = vlaneseq
        %v10646 = vshrl.u32 %v10645, 7
        %v10647 = vsub.s32 %v10644, %v10646
        %v10648 = vrot.slane %v10641, %v10647
        %v10650 = vunpack.c.l.s4 1966171168
        %v10651 = vunpack.c.0.s8 %v10650
        %v10652 = vlaneseq
        %v10653 = vshrl.u32 %v10652, 7
        %v10654 = vsub.s32 %v10651, %v10653
        %v10655 = vrot.slane %v10648, %v10654
        %10657 = vst.msk [vmem:[%s273 + $0x2] sm:$0x3] %vm5519, %v10655
        %s10658 = sand.u32 %s182, 1
        %s10659 = scalar_lea.sflag [#allocation4], %s10658
        %s10660 = sand.u32 %s182, 1
        %s10661 = smul.addr %s10660, 4
        %s10662 = scalar_lea.vmem [#allocation3], %s10661
        // Predicated region
        $region49: #{tpu_custom_call.1} parent=47 // pred_check
          %p10663 = pneg %p192
        $region50: #{tpu_custom_call.1} parent=47 // pred_check_branch
          %10665 = sbr.rel (%p10663) target = $region52
        $region51: #{tpu_custom_call.1} parent=47 // pred_region
          %s10666 = smul.u32 4, %s22
          %s10668 = ssub.s32 64, 64
          %10669 = vsyncadd %s10659, %s10668
          %s10670 = smul.addr %s10666, 16
          %s10671 = scalar_lea.hbm %s7, %s10670
          %s10673 = sshll.u32 %s10662, 4
          %s10674 = int_to_ptr.vmem [resolvable:$true] %s10673
          %10676 = dma.vmem_to_hbm [thread:$0]  %s10674, 64, %s10671, %s10659
        $region52: #{tpu_custom_call.1} parent=47 // pred_fallthru
          _
      $region48: #{tpu_custom_call.1} parent=5 // pred_fallthru
        _
      %p10677 = scmp.le.s32.totalorder 2, %s17
      // Predicated region
      $region53: #{tpu_custom_call.1} parent=5 // pred_check
        %p10678 = pneg %p10677
      $region54: #{tpu_custom_call.1} parent=5 // pred_check_branch
        %10680 = sbr.rel (%p10678) target = $region56
      $region55: #{tpu_custom_call.1} parent=5 // pred_region
        %s10681 = ssub.s32 %s17, 2
        // Predicated region
        $region57: #{tpu_custom_call.1} parent=55 // pred_check
          %p10682 = pneg %p198
        $region58: #{tpu_custom_call.1} parent=55 // pred_check_branch
          %10684 = sbr.rel (%p10682) target = $region60
        $region59: #{tpu_custom_call.1} parent=55 // pred_region
          %s10685 = sand.u32 %s183, 1
          %s10686 = scalar_lea.sflag [#allocation4], %s10685
          %s10687 = sand.u32 %s183, 1
          %s10688 = smul.addr %s10687, 4
          %s10689 = scalar_lea.vmem [#allocation3], %s10688
          %10690 = dma.done %s10686, 64
        $region60: #{tpu_custom_call.1} parent=55 // pred_fallthru
          _
      $region56: #{tpu_custom_call.1} parent=5 // pred_fallthru
        _
    $region6: #{tpu_custom_call.1} parent=1 // loop_footer
      %s21 = sadd.s32 1, %s17
    $region7: #{tpu_custom_call.1} parent=1 // loop_footer_branch
      %16 = sbr.rel target = $region3
    $region8: #{tpu_custom_call.1} parent=1 // loop_exit
      _
    %10691 = vsyncpa [#allocation4], 1
    %s10692 = scalar_lea.sflag [#allocation4], 1
    %10693 = vsyncpa %s10692, 1

</llo_original>
